<compile_context>
chip_gen: v6e
topology: v6e:2x2x1
jax: 0.10.0
libtpu: 0.0.40
codegen_flags: <defaults>
</compile_context>

<pallas_src>
import functools

import jax
import jax.numpy as jnp
from jax.experimental import pallas as pl
from jax.experimental.pallas import tpu as pltpu

LRELU_SLOPE = 0.2
BN_EPS = 1e-5
LANE = 128
VMEM_LIMIT = 32 * 1024 * 1024   # well above worst-case ~14 MiB usage, safe on all gens


# ----------------------------- small helpers ------------------------------- #

def _round_up(x, m):
    return (x + m - 1) // m * m


def _pad_to(x, shape):
    pads = [(0, s - d) for d, s in zip(x.shape, shape)]
    return jnp.pad(x, pads)


@functools.lru_cache(maxsize=1)
def _default_tm():
    """M-tile target.  v5e gets a smaller tile (16 MiB scoped-VMEM default, 1 vst slot)."""
    try:
        kind = jax.devices()[0].device_kind.lower()
    except Exception:  # pragma: no cover - conservative fallback
        return 512
    return 512 if "v5" in kind else 1024


def _tiles(m):
    """Return (padded_M, tile_M, num_tiles) with tile_M a multiple of 8."""
    tm_target = _default_tm()
    m8 = _round_up(max(m, 1), 8)
    if m8 <= tm_target:
        return m8, m8, 1
    mp = _round_up(m, tm_target)
    return mp, tm_target, mp // tm_target


# ----------------------------- Pallas kernels ------------------------------ #

def _conv_bias_kernel(p_ref, w_ref, b_ref, o_ref, *, slope):
    """Fused im2col-matmul (bf16 MXU, f32 acc) + bias (+ optional LeakyReLU)."""
    acc = jnp.dot(p_ref[...], w_ref[...], preferred_element_type=jnp.float32)
    acc = acc + b_ref[...]                         # (TM, Np) + (1, Np)
    if slope is not None:
        acc = jnp.where(acc >= 0, acc, slope * acc)
    o_ref[...] = acc


def _conv_bn_stats_kernel(p_ref, w_ref, g_ref, bta_ref, conv_ref, aff_ref,
                          sum_ref, sq_ref, *, m_real, eps):
    """Pass 1: tiled matmul; accumulate per-channel sum / sum-of-squares across the
    (arbitrary) M-tile axis; finalize BN scale/shift on the last tile."""
    i = pl.program_id(0)

    @pl.when(i == 0)
    def _():
        sum_ref[...] = jnp.zeros_like(sum_ref)
        sq_ref[...] = jnp.zeros_like(sq_ref)
        aff_ref[...] = jnp.zeros_like(aff_ref)

    acc = jnp.dot(p_ref[...], w_ref[...], preferred_element_type=jnp.float32)  # (TM, Np)
    conv_ref[...] = acc
    # Zero-padded M rows contribute 0 here; we divide by the *real* M below.
    sum_ref[...] += jnp.sum(acc, axis=0, keepdims=True)
    sq_ref[...] += jnp.sum(acc * acc, axis=0, keepdims=True)

    @pl.when(i == pl.num_programs(0) - 1)
    def _():
        inv_m = 1.0 / m_real
        mean = sum_ref[...] * inv_m
        var = sq_ref[...] * inv_m - mean * mean          # biased variance (training mode)
        inv_std = jax.lax.rsqrt(var + eps)
        scale = g_ref[...] * inv_std                     # (1, Np)
        shift = bta_ref[...] - mean * scale              # (1, Np)
        pad = jnp.zeros((aff_ref.shape[0] - 2, aff_ref.shape[1]), jnp.float32)
        aff_ref[...] = jnp.concatenate([scale, shift, pad], axis=0)


def _bn_lrelu_apply_kernel(conv_ref, aff_ref, o_ref, *, slope):
    """Pass 2: y = x*scale + shift, then LeakyReLU (parallel over M tiles)."""
    x = conv_ref[...]
    scale = aff_ref[0:1, :]
    shift = aff_ref[1:2, :]
    y = x * scale + shift
    o_ref[...] = jnp.where(y >= 0, y, slope * y)


# ------------------------------ JAX glue ----------------------------------- #

def _im2col_nhwc(x, k, stride, pad):
    """x: (B, H, W, C) -> patches (B*Ho*Wo, k*k*C), feature order = (kh, kw, C)."""
    B, H, W, C = x.shape
    xp = jnp.pad(x, ((0, 0), (pad, pad), (pad, pad), (0, 0)))
    Ho = (H + 2 * pad - k) // stride + 1
    Wo = (W + 2 * pad - k) // stride + 1
    cols = []
    for ki in range(k):
        for kj in range(k):
            cols.append(xp[:, ki:ki + stride * Ho:stride, kj:kj + stride * Wo:stride, :])
    patches = jnp.stack(cols, axis=3)                 # (B, Ho, Wo, k*k, C)
    return patches.reshape(B * Ho * Wo, k * k * C), Ho, Wo


def _prep_operands(x_nhwc, w, *, stride, pad):
    """Shared padding / layout plumbing. Returns bf16 patches & weights plus shapes."""
    B = x_nhwc.shape[0]
    Cout, Cin, k, _ = w.shape
    p, Ho, Wo = _im2col_nhwc(x_nhwc, k, stride, pad)
    M, K = p.shape
    Kp = _round_up(K, LANE)                           # MXU-friendly contraction dim
    Np = _round_up(Cout, LANE)                        # lane-dense output channels
    Mp, TM, nt = _tiles(M)
    p_pad = _pad_to(p, (Mp, Kp)).astype(jnp.bfloat16)
    wm = w.transpose(2, 3, 1, 0).reshape(K, Cout).astype(jnp.float32)   # (kh,kw,Cin,Cout)
    wm = _pad_to(wm, (Kp, Np)).astype(jnp.bfloat16)
    return p_pad, wm, (B, Ho, Wo, M, Cout, Kp, Np, Mp, TM, nt)


def _conv_bias(x_nhwc, w, b, *, stride, pad, slope):
    p_pad, wm, (B, Ho, Wo, M, Cout, Kp, Np, Mp, TM, nt) = _prep_operands(
        x_nhwc, w, stride=stride, pad=pad)
    bm = _pad_to(b.reshape(1, Cout).astype(jnp.float32), (1, Np))

    cost = pl.CostEstimate(
        flops=2 * Mp * Kp * Np,
        transcendentals=0,
        bytes_accessed=p_pad.size * 2 + wm.size * 2 + Np * 4 + Mp * Np * 4)

    out = pl.pallas_call(
        functools.partial(_conv_bias_kernel, slope=slope),
        out_shape=jax.ShapeDtypeStruct((Mp, Np), jnp.float32),
        grid_spec=pltpu.PrefetchScalarGridSpec(
            num_scalar_prefetch=0,
            grid=(nt,),
            in_specs=[pl.BlockSpec((TM, Kp), lambda i: (i, 0)),
                      pl.BlockSpec((Kp, Np), lambda i: (0, 0)),   # weights resident
                      pl.BlockSpec((1, Np), lambda i: (0, 0))],   # bias resident
            out_specs=pl.BlockSpec((TM, Np), lambda i: (i, 0))),
        compiler_params=pltpu.CompilerParams(
            dimension_semantics=("parallel",),
            vmem_limit_bytes=VMEM_LIMIT),
        cost_estimate=cost,
    )(p_pad, wm, bm)

    return out[:M, :Cout].reshape(B, Ho, Wo, Cout)


def _conv_bn_lrelu(x_nhwc, w, gamma, beta, *, stride, pad, slope, eps):
    p_pad, wm, (B, Ho, Wo, M, Cout, Kp, Np, Mp, TM, nt) = _prep_operands(
        x_nhwc, w, stride=stride, pad=pad)
    gm = _pad_to(gamma.reshape(1, Cout).astype(jnp.float32), (1, Np))
    bm = _pad_to(beta.reshape(1, Cout).astype(jnp.float32), (1, Np))

    # ---- pass 1: matmul + exact batch statistics (accumulated across M tiles) ----
    cost1 = pl.CostEstimate(
        flops=2 * Mp * Kp * Np + 4 * Mp * Np,
        transcendentals=0,
        bytes_accessed=p_pad.size * 2 + wm.size * 2 + Mp * Np * 4 + 10 * Np * 4)

    conv, aff = pl.pallas_call(
        functools.partial(_conv_bn_stats_kernel, m_real=float(M), eps=eps),
        out_shape=(jax.ShapeDtypeStruct((Mp, Np), jnp.float32),
                   jax.ShapeDtypeStruct((8, Np), jnp.float32)),
        grid_spec=pltpu.PrefetchScalarGridSpec(
            num_scalar_prefetch=0,
            grid=(nt,),
            in_specs=[pl.BlockSpec((TM, Kp), lambda i: (i, 0)),
                      pl.BlockSpec((Kp, Np), lambda i: (0, 0)),
                      pl.BlockSpec((1, Np), lambda i: (0, 0)),
                      pl.BlockSpec((1, Np), lambda i: (0, 0))],
            out_specs=[pl.BlockSpec((TM, Np), lambda i: (i, 0)),
                       pl.BlockSpec((8, Np), lambda i: (0, 0))],  # resident accumulator
            scratch_shapes=[pltpu.VMEM((1, Np), jnp.float32),
                            pltpu.VMEM((1, Np), jnp.float32)]),
        compiler_params=pltpu.CompilerParams(
            dimension_semantics=("arbitrary",),          # stats carried across tiles
            vmem_limit_bytes=VMEM_LIMIT),
        cost_estimate=cost1,
    )(p_pad, wm, gm, bm)

    # ---- pass 2: normalize + affine + LeakyReLU (fully parallel over M tiles) ----
    cost2 = pl.CostEstimate(
        flops=3 * Mp * Np,
        transcendentals=0,
        bytes_accessed=2 * Mp * Np * 4 + 8 * Np * 4)

    out = pl.pallas_call(
        functools.partial(_bn_lrelu_apply_kernel, slope=slope),
        out_shape=jax.ShapeDtypeStruct((Mp, Np), jnp.float32),
        grid_spec=pltpu.PrefetchScalarGridSpec(
            num_scalar_prefetch=0,
            grid=(nt,),
            in_specs=[pl.BlockSpec((TM, Np), lambda i: (i, 0)),
                      pl.BlockSpec((8, Np), lambda i: (0, 0))],
            out_specs=pl.BlockSpec((TM, Np), lambda i: (i, 0))),
        compiler_params=pltpu.CompilerParams(
            dimension_semantics=("parallel",),
            vmem_limit_bytes=VMEM_LIMIT),
        cost_estimate=cost2,
    )(conv, aff)

    return out[:M, :Cout].reshape(B, Ho, Wo, Cout)


# --------------------------- Parameter init -------------------------------- #

def init_discriminator_params(key, img_channel):
    c_in = 2 * img_channel
    ks = jax.random.split(key, 12)
    scale = 0.05
    params = {
        # Conv2d(2C -> 32, k4 s2 p1, bias=True)
        "w1": scale * jax.random.normal(ks[0], (32, c_in, 4, 4), jnp.float32),
        "b1": scale * jax.random.normal(ks[1], (32,), jnp.float32),
        # Conv2d(32 -> 64, bias=False) + BN(64)
        "w2": scale * jax.random.normal(ks[2], (64, 32, 4, 4), jnp.float32),
        "g2": 1.0 + 0.1 * jax.random.normal(ks[3], (64,), jnp.float32),
        "be2": 0.1 * jax.random.normal(ks[4], (64,), jnp.float32),
        # Conv2d(64 -> 128, bias=False) + BN(128)
        "w3": scale * jax.random.normal(ks[5], (128, 64, 4, 4), jnp.float32),
        "g3": 1.0 + 0.1 * jax.random.normal(ks[6], (128,), jnp.float32),
        "be3": 0.1 * jax.random.normal(ks[7], (128,), jnp.float32),
        # Conv2d(128 -> 256, bias=False) + BN(256)
        "w4": scale * jax.random.normal(ks[8], (256, 128, 4, 4), jnp.float32),
        "g4": 1.0 + 0.1 * jax.random.normal(ks[9], (256,), jnp.float32),
        "be4": 0.1 * jax.random.normal(ks[10], (256,), jnp.float32),
        # Conv2d(256 -> 1, k4 s1 p1, bias=True)
        "w5": scale * jax.random.normal(ks[11], (1, 256, 4, 4), jnp.float32),
        "b5": jnp.zeros((1,), jnp.float32),
    }
    return params


# ------------------------------ Forward ------------------------------------ #

def discriminator_forward(params, I):
    """I: (B, 2*img_channel, H, W) float32, NCHW (same contract as the PyTorch module)."""
    x = jnp.transpose(I, (0, 2, 3, 1))       # NCHW -> NHWC once, at the boundary
    x = _conv_bias(x, params["w1"], params["b1"], stride=2, pad=1, slope=LRELU_SLOPE)
    x = _conv_bn_lrelu(x, params["w2"], params["g2"], params["be2"],
                       stride=2, pad=1, slope=LRELU_SLOPE, eps=BN_EPS)
    x = _conv_bn_lrelu(x, params["w3"], params["g3"], params["be3"],
                       stride=2, pad=1, slope=LRELU_SLOPE, eps=BN_EPS)
    x = _conv_bn_lrelu(x, params["w4"], params["g4"], params["be4"],
                       stride=2, pad=1, slope=LRELU_SLOPE, eps=BN_EPS)
    x = _conv_bias(x, params["w5"], params["b5"], stride=1, pad=1, slope=None)
    return jnp.transpose(x, (0, 3, 1, 2))    # NHWC -> NCHW once, at the boundary


# -------------------------------- Main -------------------------------------- #

if __name__ == "__main__":
    key = jax.random.PRNGKey(0)
    k_param, k_data = jax.random.split(key)

    img_channel = 2                       # module input has 2 * img_channel channels
    B, H, W = 2, 32, 32
    I = jax.random.normal(k_data, (B, 2 * img_channel, H, W), jnp.float32)

    params = init_discriminator_params(k_param, img_channel)

    fwd = jax.jit(discriminator_forward)
    pred = fwd(params, I)
    pred = jax.block_until_ready(pred)

    # Expected PatchGAN output: (B, 1, 1, 1) for 32x32 inputs.
    assert pred.shape == (B, 1, 1, 1), pred.shape
    assert bool(jnp.all(jnp.isfinite(pred)))
    print("KERNEL_OK")
</pallas_src>

<mosaic_0001>
module attributes {stable_mosaic.version = 11 : i64} {
  func.func @_conv_bias_kernel(%arg0: i32, %arg1: memref<512x128xbf16, #tpu.memory_space<vmem>>, %arg2: memref<128x128xbf16, #tpu.memory_space<vmem>>, %arg3: memref<1x128xf32, #tpu.memory_space<vmem>>, %arg4: memref<512x128xf32, #tpu.memory_space<vmem>>) attributes {dimension_semantics = [#tpu.dimension_semantics<parallel>], iteration_bounds = array<i64: 1>, scalar_prefetch = 0 : i64, scratch_operands = 0 : i64, tpu.core_type = #tpu.core_type<tc>, window_params = [{transform_indices = @transform_0, window_bounds = array<i64: 512, 128>}, {pipeline_mode = #tpu.pipeline_mode<synchronous>, transform_indices = @transform_1, window_bounds = array<i64: 128, 128>}, {pipeline_mode = #tpu.pipeline_mode<synchronous>, transform_indices = @transform_2, window_bounds = array<i64: 1, 128>}, {transform_indices = @transform_3, window_bounds = array<i64: 512, 128>}]} {
    %c0 = arith.constant 0 : index
    %c0_0 = arith.constant 0 : index
    %0 = vector.load %arg1[%c0, %c0_0] : memref<512x128xbf16, #tpu.memory_space<vmem>>, vector<512x128xbf16>
    %c0_1 = arith.constant 0 : index
    %c0_2 = arith.constant 0 : index
    %1 = vector.load %arg2[%c0_1, %c0_2] : memref<128x128xbf16, #tpu.memory_space<vmem>>, vector<128x128xbf16>
    %cst = arith.constant dense<0.000000e+00> : vector<512x128xf32>
    %2 = tpu.matmul %0, %1, %cst {dimension_numbers = #tpu.dot_dimension_numbers<[1], [0], [0], [1], [0, 0, 1, 1], [], []>} : vector<512x128xbf16>, vector<128x128xbf16>, vector<512x128xf32> -> vector<512x128xf32>
    %c0_3 = arith.constant 0 : index
    %c0_4 = arith.constant 0 : index
    %3 = vector.load %arg3[%c0_3, %c0_4] : memref<1x128xf32, #tpu.memory_space<vmem>>, vector<1x128xf32>
    %4 = vector.broadcast %3 : vector<1x128xf32> to vector<512x128xf32>
    %5 = arith.addf %2, %4 : vector<512x128xf32>
    %cst_5 = arith.constant 0.000000e+00 : f32
    %6 = vector.broadcast %cst_5 : f32 to vector<512x128xf32>
    %7 = arith.cmpf oge, %5, %6 : vector<512x128xf32>
    %cst_6 = arith.constant 2.000000e-01 : f32
    %8 = vector.broadcast %cst_6 : f32 to vector<512x128xf32>
    %9 = arith.mulf %8, %5 : vector<512x128xf32>
    %10 = arith.select %7, %5, %9 : vector<512x128xi1>, vector<512x128xf32>
    %c0_7 = arith.constant 0 : index
    %c0_8 = arith.constant 0 : index
    %11 = vector.load %arg4[%c0_7, %c0_8] : memref<512x128xf32, #tpu.memory_space<vmem>>, vector<512x128xf32>
    tpu.vector_store %arg4[%c0_7, %c0_8], %10 {strides = array<i32>} : memref<512x128xf32, #tpu.memory_space<vmem>>, vector<512x128xf32>,
    return
  }
  func.func @transform_0(%arg0: i32) -> (i32, i32) {
    %c0_i32 = arith.constant 0 : i32
    %c0_i32_0 = arith.constant 0 : i32
    return %arg0, %c0_i32 : i32, i32
  }
  func.func @transform_1(%arg0: i32) -> (i32, i32) {
    %c0_i32 = arith.constant 0 : i32
    %c0_i32_0 = arith.constant 0 : i32
    %c0_i32_1 = arith.constant 0 : i32
    return %c0_i32, %c0_i32_0 : i32, i32
  }
  func.func @transform_2(%arg0: i32) -> (i32, i32) {
    %c0_i32 = arith.constant 0 : i32
    %c0_i32_0 = arith.constant 0 : i32
    %c0_i32_1 = arith.constant 0 : i32
    return %c0_i32, %c0_i32_0 : i32, i32
  }
  func.func @transform_3(%arg0: i32) -> (i32, i32) {
    %c0_i32 = arith.constant 0 : i32
    %c0_i32_0 = arith.constant 0 : i32
    return %arg0, %c0_i32 : i32, i32
  }
}

module attributes {stable_mosaic.version = 11 : i64} {
  func.func @_conv_bn_stats_kernel(%arg0: i32, %arg1: memref<128x512xbf16, #tpu.memory_space<vmem>>, %arg2: memref<512x128xbf16, #tpu.memory_space<vmem>>, %arg3: memref<1x128xf32, #tpu.memory_space<vmem>>, %arg4: memref<1x128xf32, #tpu.memory_space<vmem>>, %arg5: memref<128x128xf32, #tpu.memory_space<vmem>>, %arg6: memref<8x128xf32, #tpu.memory_space<vmem>>, %arg7: memref<1x128xf32, #tpu.memory_space<vmem>>, %arg8: memref<1x128xf32, #tpu.memory_space<vmem>>) attributes {dimension_semantics = [#tpu.dimension_semantics<arbitrary>], iteration_bounds = array<i64: 1>, scalar_prefetch = 0 : i64, scratch_operands = 2 : i64, tpu.core_type = #tpu.core_type<tc>, window_params = [{transform_indices = @transform_0, window_bounds = array<i64: 128, 512>}, {pipeline_mode = #tpu.pipeline_mode<synchronous>, transform_indices = @transform_1, window_bounds = array<i64: 512, 128>}, {pipeline_mode = #tpu.pipeline_mode<synchronous>, transform_indices = @transform_2, window_bounds = array<i64: 1, 128>}, {pipeline_mode = #tpu.pipeline_mode<synchronous>, transform_indices = @transform_3, window_bounds = array<i64: 1, 128>}, {transform_indices = @transform_4, window_bounds = array<i64: 128, 128>}, {pipeline_mode = #tpu.pipeline_mode<synchronous>, transform_indices = @transform_5, window_bounds = array<i64: 8, 128>}]} {
    %c0_i32 = arith.constant 0 : i32
    %0 = arith.cmpi eq, %arg0, %c0_i32 : i32
    %1 = arith.extui %0 : i1 to i32
    %c0_i32_0 = arith.constant 0 : i32
    %2 = arith.cmpi ne, %1, %c0_i32_0 : i32
    scf.if %2 {
      %cst_18 = arith.constant 0.000000e+00 : f32
      %21 = vector.broadcast %cst_18 : f32 to vector<1x128xf32>
      %c0_19 = arith.constant 0 : index
      %c0_20 = arith.constant 0 : index
      %22 = vector.load %arg7[%c0_19, %c0_20] : memref<1x128xf32, #tpu.memory_space<vmem>>, vector<1x128xf32>
      tpu.vector_store %arg7[%c0_19, %c0_20], %21 {strides = array<i32>} : memref<1x128xf32, #tpu.memory_space<vmem>>, vector<1x128xf32>,
      %cst_21 = arith.constant 0.000000e+00 : f32
      %23 = vector.broadcast %cst_21 : f32 to vector<1x128xf32>
      %c0_22 = arith.constant 0 : index
      %c0_23 = arith.constant 0 : index
      %24 = vector.load %arg8[%c0_22, %c0_23] : memref<1x128xf32, #tpu.memory_space<vmem>>, vector<1x128xf32>
      tpu.vector_store %arg8[%c0_22, %c0_23], %23 {strides = array<i32>} : memref<1x128xf32, #tpu.memory_space<vmem>>, vector<1x128xf32>,
      %cst_24 = arith.constant 0.000000e+00 : f32
      %25 = vector.broadcast %cst_24 : f32 to vector<8x128xf32>
      %c0_25 = arith.constant 0 : index
      %c0_26 = arith.constant 0 : index
      %26 = vector.load %arg6[%c0_25, %c0_26] : memref<8x128xf32, #tpu.memory_space<vmem>>, vector<8x128xf32>
      tpu.vector_store %arg6[%c0_25, %c0_26], %25 {strides = array<i32>} : memref<8x128xf32, #tpu.memory_space<vmem>>, vector<8x128xf32>,
    } else {
    }
    %c0 = arith.constant 0 : index
    %c0_1 = arith.constant 0 : index
    %3 = vector.load %arg1[%c0, %c0_1] : memref<128x512xbf16, #tpu.memory_space<vmem>>, vector<128x512xbf16>
    %c0_2 = arith.constant 0 : index
    %c0_3 = arith.constant 0 : index
    %4 = vector.load %arg2[%c0_2, %c0_3] : memref<512x128xbf16, #tpu.memory_space<vmem>>, vector<512x128xbf16>
    %cst = arith.constant dense<0.000000e+00> : vector<128x128xf32>
    %5 = tpu.matmul %3, %4, %cst {dimension_numbers = #tpu.dot_dimension_numbers<[1], [0], [0], [1], [0, 0, 1, 1], [], []>} : vector<128x512xbf16>, vector<512x128xbf16>, vector<128x128xf32> -> vector<128x128xf32>
    %c0_4 = arith.constant 0 : index
    %c0_5 = arith.constant 0 : index
    %6 = vector.load %arg5[%c0_4, %c0_5] : memref<128x128xf32, #tpu.memory_space<vmem>>, vector<128x128xf32>
    tpu.vector_store %arg5[%c0_4, %c0_5], %5 {strides = array<i32>} : memref<128x128xf32, #tpu.memory_space<vmem>>, vector<128x128xf32>,
    %c0_6 = arith.constant 0 : index
    %c0_7 = arith.constant 0 : index
    %7 = vector.load %arg7[%c0_6, %c0_7] : memref<1x128xf32, #tpu.memory_space<vmem>>, vector<1x128xf32>
    %cst_8 = arith.constant dense<0.000000e+00> : vector<128xf32>
    %8 = vector.multi_reduction <add>, %5, %cst_8 [0] : vector<128x128xf32> to vector<128xf32>
    %9 = vector.shape_cast %8 : vector<128xf32> to vector<1x128xf32>
    %10 = arith.addf %7, %9 : vector<1x128xf32>
    %c0_9 = arith.constant 0 : index
    %c0_10 = arith.constant 0 : index
    %11 = vector.load %arg7[%c0_9, %c0_10] : memref<1x128xf32, #tpu.memory_space<vmem>>, vector<1x128xf32>
    tpu.vector_store %arg7[%c0_9, %c0_10], %10 {strides = array<i32>} : memref<1x128xf32, #tpu.memory_space<vmem>>, vector<1x128xf32>,
    %c0_11 = arith.constant 0 : index
    %c0_12 = arith.constant 0 : index
    %12 = vector.load %arg8[%c0_11, %c0_12] : memref<1x128xf32, #tpu.memory_space<vmem>>, vector<1x128xf32>
    %13 = arith.mulf %5, %5 : vector<128x128xf32>
    %cst_13 = arith.constant dense<0.000000e+00> : vector<128xf32>
    %14 = vector.multi_reduction <add>, %13, %cst_13 [0] : vector<128x128xf32> to vector<128xf32>
    %15 = vector.shape_cast %14 : vector<128xf32> to vector<1x128xf32>
    %16 = arith.addf %12, %15 : vector<1x128xf32>
    %c0_14 = arith.constant 0 : index
    %c0_15 = arith.constant 0 : index
    %17 = vector.load %arg8[%c0_14, %c0_15] : memref<1x128xf32, #tpu.memory_space<vmem>>, vector<1x128xf32>
    tpu.vector_store %arg8[%c0_14, %c0_15], %16 {strides = array<i32>} : memref<1x128xf32, #tpu.memory_space<vmem>>, vector<1x128xf32>,
    %c0_i32_16 = arith.constant 0 : i32
    %18 = arith.cmpi eq, %arg0, %c0_i32_16 : i32
    %19 = arith.extui %18 : i1 to i32
    %c0_i32_17 = arith.constant 0 : i32
    %20 = arith.cmpi ne, %19, %c0_i32_17 : i32
    scf.if %20 {
      %c0_18 = arith.constant 0 : index
      %c0_19 = arith.constant 0 : index
      %21 = vector.load %arg7[%c0_18, %c0_19] : memref<1x128xf32, #tpu.memory_space<vmem>>, vector<1x128xf32>
      %cst_20 = arith.constant 7.812500e-03 : f32
      %22 = vector.broadcast %cst_20 : f32 to vector<1x128xf32>
      %23 = arith.mulf %21, %22 : vector<1x128xf32>
      %c0_21 = arith.constant 0 : index
      %c0_22 = arith.constant 0 : index
      %24 = vector.load %arg8[%c0_21, %c0_22] : memref<1x128xf32, #tpu.memory_space<vmem>>, vector<1x128xf32>
      %cst_23 = arith.constant 7.812500e-03 : f32
      %25 = vector.broadcast %cst_23 : f32 to vector<1x128xf32>
      %26 = arith.mulf %24, %25 : vector<1x128xf32>
      %27 = arith.mulf %23, %23 : vector<1x128xf32>
      %28 = arith.subf %26, %27 : vector<1x128xf32>
      %cst_24 = arith.constant 9.99999974E-6 : f32
      %29 = vector.broadcast %cst_24 : f32 to vector<1x128xf32>
      %30 = arith.addf %28, %29 : vector<1x128xf32>
      %31 = math.rsqrt %30 : vector<1x128xf32>
      %c0_25 = arith.constant 0 : index
      %c0_26 = arith.constant 0 : index
      %32 = vector.load %arg3[%c0_25, %c0_26] : memref<1x128xf32, #tpu.memory_space<vmem>>, vector<1x128xf32>
      %33 = arith.mulf %32, %31 : vector<1x128xf32>
      %c0_27 = arith.constant 0 : index
      %c0_28 = arith.constant 0 : index
      %34 = vector.load %arg4[%c0_27, %c0_28] : memref<1x128xf32, #tpu.memory_space<vmem>>, vector<1x128xf32>
      %35 = arith.mulf %23, %33 : vector<1x128xf32>
      %36 = arith.subf %34, %35 : vector<1x128xf32>
      %cst_29 = arith.constant 0.000000e+00 : f32
      %37 = vector.broadcast %cst_29 : f32 to vector<6x128xf32>
      %38 = tpu.concatenate %33, %36, %37 in 0 : vector<1x128xf32>, vector<1x128xf32>, vector<6x128xf32> -> vector<8x128xf32>
      %c0_30 = arith.constant 0 : index
      %c0_31 = arith.constant 0 : index
      %39 = vector.load %arg6[%c0_30, %c0_31] : memref<8x128xf32, #tpu.memory_space<vmem>>, vector<8x128xf32>
      tpu.vector_store %arg6[%c0_30, %c0_31], %38 {strides = array<i32>} : memref<8x128xf32, #tpu.memory_space<vmem>>, vector<8x128xf32>,
    } else {
    }
    return
  }
  func.func @transform_0(%arg0: i32) -> (i32, i32) {
    %c0_i32 = arith.constant 0 : i32
    %c0_i32_0 = arith.constant 0 : i32
    return %arg0, %c0_i32 : i32, i32
  }
  func.func @transform_1(%arg0: i32) -> (i32, i32) {
    %c0_i32 = arith.constant 0 : i32
    %c0_i32_0 = arith.constant 0 : i32
    %c0_i32_1 = arith.constant 0 : i32
    return %c0_i32, %c0_i32_0 : i32, i32
  }
  func.func @transform_2(%arg0: i32) -> (i32, i32) {
    %c0_i32 = arith.constant 0 : i32
    %c0_i32_0 = arith.constant 0 : i32
    %c0_i32_1 = arith.constant 0 : i32
    return %c0_i32, %c0_i32_0 : i32, i32
  }
  func.func @transform_3(%arg0: i32) -> (i32, i32) {
    %c0_i32 = arith.constant 0 : i32
    %c0_i32_0 = arith.constant 0 : i32
    %c0_i32_1 = arith.constant 0 : i32
    return %c0_i32, %c0_i32_0 : i32, i32
  }
  func.func @transform_4(%arg0: i32) -> (i32, i32) {
    %c0_i32 = arith.constant 0 : i32
    %c0_i32_0 = arith.constant 0 : i32
    return %arg0, %c0_i32 : i32, i32
  }
  func.func @transform_5(%arg0: i32) -> (i32, i32) {
    %c0_i32 = arith.constant 0 : i32
    %c0_i32_0 = arith.constant 0 : i32
    %c0_i32_1 = arith.constant 0 : i32
    return %c0_i32, %c0_i32_0 : i32, i32
  }
}

module attributes {stable_mosaic.version = 11 : i64} {
  func.func @_bn_lrelu_apply_kernel(%arg0: i32, %arg1: memref<128x128xf32, #tpu.memory_space<vmem>>, %arg2: memref<8x128xf32, #tpu.memory_space<vmem>>, %arg3: memref<128x128xf32, #tpu.memory_space<vmem>>) attributes {dimension_semantics = [#tpu.dimension_semantics<parallel>], iteration_bounds = array<i64: 1>, scalar_prefetch = 0 : i64, scratch_operands = 0 : i64, tpu.core_type = #tpu.core_type<tc>, window_params = [{transform_indices = @transform_0, window_bounds = array<i64: 128, 128>}, {pipeline_mode = #tpu.pipeline_mode<synchronous>, transform_indices = @transform_1, window_bounds = array<i64: 8, 128>}, {transform_indices = @transform_2, window_bounds = array<i64: 128, 128>}]} {
    %c0 = arith.constant 0 : index
    %c0_0 = arith.constant 0 : index
    %0 = vector.load %arg1[%c0, %c0_0] : memref<128x128xf32, #tpu.memory_space<vmem>>, vector<128x128xf32>
    %c0_1 = arith.constant 0 : index
    %c0_2 = arith.constant 0 : index
    %1 = vector.load %arg2[%c0_1, %c0_2] : memref<8x128xf32, #tpu.memory_space<vmem>>, vector<1x128xf32>
    %c1 = arith.constant 1 : index
    %c0_3 = arith.constant 0 : index
    %2 = vector.load %arg2[%c1, %c0_3] : memref<8x128xf32, #tpu.memory_space<vmem>>, vector<1x128xf32>
    %3 = vector.broadcast %1 : vector<1x128xf32> to vector<128x128xf32>
    %4 = arith.mulf %0, %3 : vector<128x128xf32>
    %5 = vector.broadcast %2 : vector<1x128xf32> to vector<128x128xf32>
    %6 = arith.addf %4, %5 : vector<128x128xf32>
    %cst = arith.constant 0.000000e+00 : f32
    %7 = vector.broadcast %cst : f32 to vector<128x128xf32>
    %8 = arith.cmpf oge, %6, %7 : vector<128x128xf32>
    %cst_4 = arith.constant 2.000000e-01 : f32
    %9 = vector.broadcast %cst_4 : f32 to vector<128x128xf32>
    %10 = arith.mulf %9, %6 : vector<128x128xf32>
    %11 = arith.select %8, %6, %10 : vector<128x128xi1>, vector<128x128xf32>
    %c0_5 = arith.constant 0 : index
    %c0_6 = arith.constant 0 : index
    %12 = vector.load %arg3[%c0_5, %c0_6] : memref<128x128xf32, #tpu.memory_space<vmem>>, vector<128x128xf32>
    tpu.vector_store %arg3[%c0_5, %c0_6], %11 {strides = array<i32>} : memref<128x128xf32, #tpu.memory_space<vmem>>, vector<128x128xf32>,
    return
  }
  func.func @transform_0(%arg0: i32) -> (i32, i32) {
    %c0_i32 = arith.constant 0 : i32
    %c0_i32_0 = arith.constant 0 : i32
    return %arg0, %c0_i32 : i32, i32
  }
  func.func @transform_1(%arg0: i32) -> (i32, i32) {
    %c0_i32 = arith.constant 0 : i32
    %c0_i32_0 = arith.constant 0 : i32
    %c0_i32_1 = arith.constant 0 : i32
    return %c0_i32, %c0_i32_0 : i32, i32
  }
  func.func @transform_2(%arg0: i32) -> (i32, i32) {
    %c0_i32 = arith.constant 0 : i32
    %c0_i32_0 = arith.constant 0 : i32
    return %arg0, %c0_i32 : i32, i32
  }
}

module attributes {stable_mosaic.version = 11 : i64} {
  func.func @_bn_lrelu_apply_kernel(%arg0: i32, %arg1: memref<32x128xf32, #tpu.memory_space<vmem>>, %arg2: memref<8x128xf32, #tpu.memory_space<vmem>>, %arg3: memref<32x128xf32, #tpu.memory_space<vmem>>) attributes {dimension_semantics = [#tpu.dimension_semantics<parallel>], iteration_bounds = array<i64: 1>, scalar_prefetch = 0 : i64, scratch_operands = 0 : i64, tpu.core_type = #tpu.core_type<tc>, window_params = [{transform_indices = @transform_0, window_bounds = array<i64: 32, 128>}, {pipeline_mode = #tpu.pipeline_mode<synchronous>, transform_indices = @transform_1, window_bounds = array<i64: 8, 128>}, {transform_indices = @transform_2, window_bounds = array<i64: 32, 128>}]} {
    %c0 = arith.constant 0 : index
    %c0_0 = arith.constant 0 : index
    %0 = vector.load %arg1[%c0, %c0_0] : memref<32x128xf32, #tpu.memory_space<vmem>>, vector<32x128xf32>
    %c0_1 = arith.constant 0 : index
    %c0_2 = arith.constant 0 : index
    %1 = vector.load %arg2[%c0_1, %c0_2] : memref<8x128xf32, #tpu.memory_space<vmem>>, vector<1x128xf32>
    %c1 = arith.constant 1 : index
    %c0_3 = arith.constant 0 : index
    %2 = vector.load %arg2[%c1, %c0_3] : memref<8x128xf32, #tpu.memory_space<vmem>>, vector<1x128xf32>
    %3 = vector.broadcast %1 : vector<1x128xf32> to vector<32x128xf32>
    %4 = arith.mulf %0, %3 : vector<32x128xf32>
    %5 = vector.broadcast %2 : vector<1x128xf32> to vector<32x128xf32>
    %6 = arith.addf %4, %5 : vector<32x128xf32>
    %cst = arith.constant 0.000000e+00 : f32
    %7 = vector.broadcast %cst : f32 to vector<32x128xf32>
    %8 = arith.cmpf oge, %6, %7 : vector<32x128xf32>
    %cst_4 = arith.constant 2.000000e-01 : f32
    %9 = vector.broadcast %cst_4 : f32 to vector<32x128xf32>
    %10 = arith.mulf %9, %6 : vector<32x128xf32>
    %11 = arith.select %8, %6, %10 : vector<32x128xi1>, vector<32x128xf32>
    %c0_5 = arith.constant 0 : index
    %c0_6 = arith.constant 0 : index
    %12 = vector.load %arg3[%c0_5, %c0_6] : memref<32x128xf32, #tpu.memory_space<vmem>>, vector<32x128xf32>
    tpu.vector_store %arg3[%c0_5, %c0_6], %11 {strides = array<i32>} : memref<32x128xf32, #tpu.memory_space<vmem>>, vector<32x128xf32>,
    return
  }
  func.func @transform_0(%arg0: i32) -> (i32, i32) {
    %c0_i32 = arith.constant 0 : i32
    %c0_i32_0 = arith.constant 0 : i32
    return %arg0, %c0_i32 : i32, i32
  }
  func.func @transform_1(%arg0: i32) -> (i32, i32) {
    %c0_i32 = arith.constant 0 : i32
    %c0_i32_0 = arith.constant 0 : i32
    %c0_i32_1 = arith.constant 0 : i32
    return %c0_i32, %c0_i32_0 : i32, i32
  }
  func.func @transform_2(%arg0: i32) -> (i32, i32) {
    %c0_i32 = arith.constant 0 : i32
    %c0_i32_0 = arith.constant 0 : i32
    return %arg0, %c0_i32 : i32, i32
  }
}

module attributes {stable_mosaic.version = 11 : i64} {
  func.func @_conv_bn_stats_kernel(%arg0: i32, %arg1: memref<32x1024xbf16, #tpu.memory_space<vmem>>, %arg2: memref<1024x128xbf16, #tpu.memory_space<vmem>>, %arg3: memref<1x128xf32, #tpu.memory_space<vmem>>, %arg4: memref<1x128xf32, #tpu.memory_space<vmem>>, %arg5: memref<32x128xf32, #tpu.memory_space<vmem>>, %arg6: memref<8x128xf32, #tpu.memory_space<vmem>>, %arg7: memref<1x128xf32, #tpu.memory_space<vmem>>, %arg8: memref<1x128xf32, #tpu.memory_space<vmem>>) attributes {dimension_semantics = [#tpu.dimension_semantics<arbitrary>], iteration_bounds = array<i64: 1>, scalar_prefetch = 0 : i64, scratch_operands = 2 : i64, tpu.core_type = #tpu.core_type<tc>, window_params = [{transform_indices = @transform_0, window_bounds = array<i64: 32, 1024>}, {pipeline_mode = #tpu.pipeline_mode<synchronous>, transform_indices = @transform_1, window_bounds = array<i64: 1024, 128>}, {pipeline_mode = #tpu.pipeline_mode<synchronous>, transform_indices = @transform_2, window_bounds = array<i64: 1, 128>}, {pipeline_mode = #tpu.pipeline_mode<synchronous>, transform_indices = @transform_3, window_bounds = array<i64: 1, 128>}, {transform_indices = @transform_4, window_bounds = array<i64: 32, 128>}, {pipeline_mode = #tpu.pipeline_mode<synchronous>, transform_indices = @transform_5, window_bounds = array<i64: 8, 128>}]} {
    %c0_i32 = arith.constant 0 : i32
    %0 = arith.cmpi eq, %arg0, %c0_i32 : i32
    %1 = arith.extui %0 : i1 to i32
    %c0_i32_0 = arith.constant 0 : i32
    %2 = arith.cmpi ne, %1, %c0_i32_0 : i32
    scf.if %2 {
      %cst_18 = arith.constant 0.000000e+00 : f32
      %21 = vector.broadcast %cst_18 : f32 to vector<1x128xf32>
      %c0_19 = arith.constant 0 : index
      %c0_20 = arith.constant 0 : index
      %22 = vector.load %arg7[%c0_19, %c0_20] : memref<1x128xf32, #tpu.memory_space<vmem>>, vector<1x128xf32>
      tpu.vector_store %arg7[%c0_19, %c0_20], %21 {strides = array<i32>} : memref<1x128xf32, #tpu.memory_space<vmem>>, vector<1x128xf32>,
      %cst_21 = arith.constant 0.000000e+00 : f32
      %23 = vector.broadcast %cst_21 : f32 to vector<1x128xf32>
      %c0_22 = arith.constant 0 : index
      %c0_23 = arith.constant 0 : index
      %24 = vector.load %arg8[%c0_22, %c0_23] : memref<1x128xf32, #tpu.memory_space<vmem>>, vector<1x128xf32>
      tpu.vector_store %arg8[%c0_22, %c0_23], %23 {strides = array<i32>} : memref<1x128xf32, #tpu.memory_space<vmem>>, vector<1x128xf32>,
      %cst_24 = arith.constant 0.000000e+00 : f32
      %25 = vector.broadcast %cst_24 : f32 to vector<8x128xf32>
      %c0_25 = arith.constant 0 : index
      %c0_26 = arith.constant 0 : index
      %26 = vector.load %arg6[%c0_25, %c0_26] : memref<8x128xf32, #tpu.memory_space<vmem>>, vector<8x128xf32>
      tpu.vector_store %arg6[%c0_25, %c0_26], %25 {strides = array<i32>} : memref<8x128xf32, #tpu.memory_space<vmem>>, vector<8x128xf32>,
    } else {
    }
    %c0 = arith.constant 0 : index
    %c0_1 = arith.constant 0 : index
    %3 = vector.load %arg1[%c0, %c0_1] : memref<32x1024xbf16, #tpu.memory_space<vmem>>, vector<32x1024xbf16>
    %c0_2 = arith.constant 0 : index
    %c0_3 = arith.constant 0 : index
    %4 = vector.load %arg2[%c0_2, %c0_3] : memref<1024x128xbf16, #tpu.memory_space<vmem>>, vector<1024x128xbf16>
    %cst = arith.constant dense<0.000000e+00> : vector<32x128xf32>
    %5 = tpu.matmul %3, %4, %cst {dimension_numbers = #tpu.dot_dimension_numbers<[1], [0], [0], [1], [0, 0, 1, 1], [], []>} : vector<32x1024xbf16>, vector<1024x128xbf16>, vector<32x128xf32> -> vector<32x128xf32>
    %c0_4 = arith.constant 0 : index
    %c0_5 = arith.constant 0 : index
    %6 = vector.load %arg5[%c0_4, %c0_5] : memref<32x128xf32, #tpu.memory_space<vmem>>, vector<32x128xf32>
    tpu.vector_store %arg5[%c0_4, %c0_5], %5 {strides = array<i32>} : memref<32x128xf32, #tpu.memory_space<vmem>>, vector<32x128xf32>,
    %c0_6 = arith.constant 0 : index
    %c0_7 = arith.constant 0 : index
    %7 = vector.load %arg7[%c0_6, %c0_7] : memref<1x128xf32, #tpu.memory_space<vmem>>, vector<1x128xf32>
    %cst_8 = arith.constant dense<0.000000e+00> : vector<128xf32>
    %8 = vector.multi_reduction <add>, %5, %cst_8 [0] : vector<32x128xf32> to vector<128xf32>
    %9 = vector.shape_cast %8 : vector<128xf32> to vector<1x128xf32>
    %10 = arith.addf %7, %9 : vector<1x128xf32>
    %c0_9 = arith.constant 0 : index
    %c0_10 = arith.constant 0 : index
    %11 = vector.load %arg7[%c0_9, %c0_10] : memref<1x128xf32, #tpu.memory_space<vmem>>, vector<1x128xf32>
    tpu.vector_store %arg7[%c0_9, %c0_10], %10 {strides = array<i32>} : memref<1x128xf32, #tpu.memory_space<vmem>>, vector<1x128xf32>,
    %c0_11 = arith.constant 0 : index
    %c0_12 = arith.constant 0 : index
    %12 = vector.load %arg8[%c0_11, %c0_12] : memref<1x128xf32, #tpu.memory_space<vmem>>, vector<1x128xf32>
    %13 = arith.mulf %5, %5 : vector<32x128xf32>
    %cst_13 = arith.constant dense<0.000000e+00> : vector<128xf32>
    %14 = vector.multi_reduction <add>, %13, %cst_13 [0] : vector<32x128xf32> to vector<128xf32>
    %15 = vector.shape_cast %14 : vector<128xf32> to vector<1x128xf32>
    %16 = arith.addf %12, %15 : vector<1x128xf32>
    %c0_14 = arith.constant 0 : index
    %c0_15 = arith.constant 0 : index
    %17 = vector.load %arg8[%c0_14, %c0_15] : memref<1x128xf32, #tpu.memory_space<vmem>>, vector<1x128xf32>
    tpu.vector_store %arg8[%c0_14, %c0_15], %16 {strides = array<i32>} : memref<1x128xf32, #tpu.memory_space<vmem>>, vector<1x128xf32>,
    %c0_i32_16 = arith.constant 0 : i32
    %18 = arith.cmpi eq, %arg0, %c0_i32_16 : i32
    %19 = arith.extui %18 : i1 to i32
    %c0_i32_17 = arith.constant 0 : i32
    %20 = arith.cmpi ne, %19, %c0_i32_17 : i32
    scf.if %20 {
      %c0_18 = arith.constant 0 : index
      %c0_19 = arith.constant 0 : index
      %21 = vector.load %arg7[%c0_18, %c0_19] : memref<1x128xf32, #tpu.memory_space<vmem>>, vector<1x128xf32>
      %cst_20 = arith.constant 3.125000e-02 : f32
      %22 = vector.broadcast %cst_20 : f32 to vector<1x128xf32>
      %23 = arith.mulf %21, %22 : vector<1x128xf32>
      %c0_21 = arith.constant 0 : index
      %c0_22 = arith.constant 0 : index
      %24 = vector.load %arg8[%c0_21, %c0_22] : memref<1x128xf32, #tpu.memory_space<vmem>>, vector<1x128xf32>
      %cst_23 = arith.constant 3.125000e-02 : f32
      %25 = vector.broadcast %cst_23 : f32 to vector<1x128xf32>
      %26 = arith.mulf %24, %25 : vector<1x128xf32>
      %27 = arith.mulf %23, %23 : vector<1x128xf32>
      %28 = arith.subf %26, %27 : vector<1x128xf32>
      %cst_24 = arith.constant 9.99999974E-6 : f32
      %29 = vector.broadcast %cst_24 : f32 to vector<1x128xf32>
      %30 = arith.addf %28, %29 : vector<1x128xf32>
      %31 = math.rsqrt %30 : vector<1x128xf32>
      %c0_25 = arith.constant 0 : index
      %c0_26 = arith.constant 0 : index
      %32 = vector.load %arg3[%c0_25, %c0_26] : memref<1x128xf32, #tpu.memory_space<vmem>>, vector<1x128xf32>
      %33 = arith.mulf %32, %31 : vector<1x128xf32>
      %c0_27 = arith.constant 0 : index
      %c0_28 = arith.constant 0 : index
      %34 = vector.load %arg4[%c0_27, %c0_28] : memref<1x128xf32, #tpu.memory_space<vmem>>, vector<1x128xf32>
      %35 = arith.mulf %23, %33 : vector<1x128xf32>
      %36 = arith.subf %34, %35 : vector<1x128xf32>
      %cst_29 = arith.constant 0.000000e+00 : f32
      %37 = vector.broadcast %cst_29 : f32 to vector<6x128xf32>
      %38 = tpu.concatenate %33, %36, %37 in 0 : vector<1x128xf32>, vector<1x128xf32>, vector<6x128xf32> -> vector<8x128xf32>
      %c0_30 = arith.constant 0 : index
      %c0_31 = arith.constant 0 : index
      %39 = vector.load %arg6[%c0_30, %c0_31] : memref<8x128xf32, #tpu.memory_space<vmem>>, vector<8x128xf32>
      tpu.vector_store %arg6[%c0_30, %c0_31], %38 {strides = array<i32>} : memref<8x128xf32, #tpu.memory_space<vmem>>, vector<8x128xf32>,
    } else {
    }
    return
  }
  func.func @transform_0(%arg0: i32) -> (i32, i32) {
    %c0_i32 = arith.constant 0 : i32
    %c0_i32_0 = arith.constant 0 : i32
    return %arg0, %c0_i32 : i32, i32
  }
  func.func @transform_1(%arg0: i32) -> (i32, i32) {
    %c0_i32 = arith.constant 0 : i32
    %c0_i32_0 = arith.constant 0 : i32
    %c0_i32_1 = arith.constant 0 : i32
    return %c0_i32, %c0_i32_0 : i32, i32
  }
  func.func @transform_2(%arg0: i32) -> (i32, i32) {
    %c0_i32 = arith.constant 0 : i32
    %c0_i32_0 = arith.constant 0 : i32
    %c0_i32_1 = arith.constant 0 : i32
    return %c0_i32, %c0_i32_0 : i32, i32
  }
  func.func @transform_3(%arg0: i32) -> (i32, i32) {
    %c0_i32 = arith.constant 0 : i32
    %c0_i32_0 = arith.constant 0 : i32
    %c0_i32_1 = arith.constant 0 : i32
    return %c0_i32, %c0_i32_0 : i32, i32
  }
  func.func @transform_4(%arg0: i32) -> (i32, i32) {
    %c0_i32 = arith.constant 0 : i32
    %c0_i32_0 = arith.constant 0 : i32
    return %arg0, %c0_i32 : i32, i32
  }
  func.func @transform_5(%arg0: i32) -> (i32, i32) {
    %c0_i32 = arith.constant 0 : i32
    %c0_i32_0 = arith.constant 0 : i32
    %c0_i32_1 = arith.constant 0 : i32
    return %c0_i32, %c0_i32_0 : i32, i32
  }
}

module attributes {stable_mosaic.version = 11 : i64} {
  func.func @_conv_bn_stats_kernel(%arg0: i32, %arg1: memref<8x2048xbf16, #tpu.memory_space<vmem>>, %arg2: memref<2048x256xbf16, #tpu.memory_space<vmem>>, %arg3: memref<1x256xf32, #tpu.memory_space<vmem>>, %arg4: memref<1x256xf32, #tpu.memory_space<vmem>>, %arg5: memref<8x256xf32, #tpu.memory_space<vmem>>, %arg6: memref<8x256xf32, #tpu.memory_space<vmem>>, %arg7: memref<1x256xf32, #tpu.memory_space<vmem>>, %arg8: memref<1x256xf32, #tpu.memory_space<vmem>>) attributes {dimension_semantics = [#tpu.dimension_semantics<arbitrary>], iteration_bounds = array<i64: 1>, scalar_prefetch = 0 : i64, scratch_operands = 2 : i64, tpu.core_type = #tpu.core_type<tc>, window_params = [{transform_indices = @transform_0, window_bounds = array<i64: 8, 2048>}, {pipeline_mode = #tpu.pipeline_mode<synchronous>, transform_indices = @transform_1, window_bounds = array<i64: 2048, 256>}, {pipeline_mode = #tpu.pipeline_mode<synchronous>, transform_indices = @transform_2, window_bounds = array<i64: 1, 256>}, {pipeline_mode = #tpu.pipeline_mode<synchronous>, transform_indices = @transform_3, window_bounds = array<i64: 1, 256>}, {transform_indices = @transform_4, window_bounds = array<i64: 8, 256>}, {pipeline_mode = #tpu.pipeline_mode<synchronous>, transform_indices = @transform_5, window_bounds = array<i64: 8, 256>}]} {
    %c0_i32 = arith.constant 0 : i32
    %0 = arith.cmpi eq, %arg0, %c0_i32 : i32
    %1 = arith.extui %0 : i1 to i32
    %c0_i32_0 = arith.constant 0 : i32
    %2 = arith.cmpi ne, %1, %c0_i32_0 : i32
    scf.if %2 {
      %cst_18 = arith.constant 0.000000e+00 : f32
      %21 = vector.broadcast %cst_18 : f32 to vector<1x256xf32>
      %c0_19 = arith.constant 0 : index
      %c0_20 = arith.constant 0 : index
      %22 = vector.load %arg7[%c0_19, %c0_20] : memref<1x256xf32, #tpu.memory_space<vmem>>, vector<1x256xf32>
      tpu.vector_store %arg7[%c0_19, %c0_20], %21 {strides = array<i32>} : memref<1x256xf32, #tpu.memory_space<vmem>>, vector<1x256xf32>,
      %cst_21 = arith.constant 0.000000e+00 : f32
      %23 = vector.broadcast %cst_21 : f32 to vector<1x256xf32>
      %c0_22 = arith.constant 0 : index
      %c0_23 = arith.constant 0 : index
      %24 = vector.load %arg8[%c0_22, %c0_23] : memref<1x256xf32, #tpu.memory_space<vmem>>, vector<1x256xf32>
      tpu.vector_store %arg8[%c0_22, %c0_23], %23 {strides = array<i32>} : memref<1x256xf32, #tpu.memory_space<vmem>>, vector<1x256xf32>,
      %cst_24 = arith.constant 0.000000e+00 : f32
      %25 = vector.broadcast %cst_24 : f32 to vector<8x256xf32>
      %c0_25 = arith.constant 0 : index
      %c0_26 = arith.constant 0 : index
      %26 = vector.load %arg6[%c0_25, %c0_26] : memref<8x256xf32, #tpu.memory_space<vmem>>, vector<8x256xf32>
      tpu.vector_store %arg6[%c0_25, %c0_26], %25 {strides = array<i32>} : memref<8x256xf32, #tpu.memory_space<vmem>>, vector<8x256xf32>,
    } else {
    }
    %c0 = arith.constant 0 : index
    %c0_1 = arith.constant 0 : index
    %3 = vector.load %arg1[%c0, %c0_1] : memref<8x2048xbf16, #tpu.memory_space<vmem>>, vector<8x2048xbf16>
    %c0_2 = arith.constant 0 : index
    %c0_3 = arith.constant 0 : index
    %4 = vector.load %arg2[%c0_2, %c0_3] : memref<2048x256xbf16, #tpu.memory_space<vmem>>, vector<2048x256xbf16>
    %cst = arith.constant dense<0.000000e+00> : vector<8x256xf32>
    %5 = tpu.matmul %3, %4, %cst {dimension_numbers = #tpu.dot_dimension_numbers<[1], [0], [0], [1], [0, 0, 1, 1], [], []>} : vector<8x2048xbf16>, vector<2048x256xbf16>, vector<8x256xf32> -> vector<8x256xf32>
    %c0_4 = arith.constant 0 : index
    %c0_5 = arith.constant 0 : index
    %6 = vector.load %arg5[%c0_4, %c0_5] : memref<8x256xf32, #tpu.memory_space<vmem>>, vector<8x256xf32>
    tpu.vector_store %arg5[%c0_4, %c0_5], %5 {strides = array<i32>} : memref<8x256xf32, #tpu.memory_space<vmem>>, vector<8x256xf32>,
    %c0_6 = arith.constant 0 : index
    %c0_7 = arith.constant 0 : index
    %7 = vector.load %arg7[%c0_6, %c0_7] : memref<1x256xf32, #tpu.memory_space<vmem>>, vector<1x256xf32>
    %cst_8 = arith.constant dense<0.000000e+00> : vector<256xf32>
    %8 = vector.multi_reduction <add>, %5, %cst_8 [0] : vector<8x256xf32> to vector<256xf32>
    %9 = vector.shape_cast %8 : vector<256xf32> to vector<1x256xf32>
    %10 = arith.addf %7, %9 : vector<1x256xf32>
    %c0_9 = arith.constant 0 : index
    %c0_10 = arith.constant 0 : index
    %11 = vector.load %arg7[%c0_9, %c0_10] : memref<1x256xf32, #tpu.memory_space<vmem>>, vector<1x256xf32>
    tpu.vector_store %arg7[%c0_9, %c0_10], %10 {strides = array<i32>} : memref<1x256xf32, #tpu.memory_space<vmem>>, vector<1x256xf32>,
    %c0_11 = arith.constant 0 : index
    %c0_12 = arith.constant 0 : index
    %12 = vector.load %arg8[%c0_11, %c0_12] : memref<1x256xf32, #tpu.memory_space<vmem>>, vector<1x256xf32>
    %13 = arith.mulf %5, %5 : vector<8x256xf32>
    %cst_13 = arith.constant dense<0.000000e+00> : vector<256xf32>
    %14 = vector.multi_reduction <add>, %13, %cst_13 [0] : vector<8x256xf32> to vector<256xf32>
    %15 = vector.shape_cast %14 : vector<256xf32> to vector<1x256xf32>
    %16 = arith.addf %12, %15 : vector<1x256xf32>
    %c0_14 = arith.constant 0 : index
    %c0_15 = arith.constant 0 : index
    %17 = vector.load %arg8[%c0_14, %c0_15] : memref<1x256xf32, #tpu.memory_space<vmem>>, vector<1x256xf32>
    tpu.vector_store %arg8[%c0_14, %c0_15], %16 {strides = array<i32>} : memref<1x256xf32, #tpu.memory_space<vmem>>, vector<1x256xf32>,
    %c0_i32_16 = arith.constant 0 : i32
    %18 = arith.cmpi eq, %arg0, %c0_i32_16 : i32
    %19 = arith.extui %18 : i1 to i32
    %c0_i32_17 = arith.constant 0 : i32
    %20 = arith.cmpi ne, %19, %c0_i32_17 : i32
    scf.if %20 {
      %c0_18 = arith.constant 0 : index
      %c0_19 = arith.constant 0 : index
      %21 = vector.load %arg7[%c0_18, %c0_19] : memref<1x256xf32, #tpu.memory_space<vmem>>, vector<1x256xf32>
      %cst_20 = arith.constant 1.250000e-01 : f32
      %22 = vector.broadcast %cst_20 : f32 to vector<1x256xf32>
      %23 = arith.mulf %21, %22 : vector<1x256xf32>
      %c0_21 = arith.constant 0 : index
      %c0_22 = arith.constant 0 : index
      %24 = vector.load %arg8[%c0_21, %c0_22] : memref<1x256xf32, #tpu.memory_space<vmem>>, vector<1x256xf32>
      %cst_23 = arith.constant 1.250000e-01 : f32
      %25 = vector.broadcast %cst_23 : f32 to vector<1x256xf32>
      %26 = arith.mulf %24, %25 : vector<1x256xf32>
      %27 = arith.mulf %23, %23 : vector<1x256xf32>
      %28 = arith.subf %26, %27 : vector<1x256xf32>
      %cst_24 = arith.constant 9.99999974E-6 : f32
      %29 = vector.broadcast %cst_24 : f32 to vector<1x256xf32>
      %30 = arith.addf %28, %29 : vector<1x256xf32>
      %31 = math.rsqrt %30 : vector<1x256xf32>
      %c0_25 = arith.constant 0 : index
      %c0_26 = arith.constant 0 : index
      %32 = vector.load %arg3[%c0_25, %c0_26] : memref<1x256xf32, #tpu.memory_space<vmem>>, vector<1x256xf32>
      %33 = arith.mulf %32, %31 : vector<1x256xf32>
      %c0_27 = arith.constant 0 : index
      %c0_28 = arith.constant 0 : index
      %34 = vector.load %arg4[%c0_27, %c0_28] : memref<1x256xf32, #tpu.memory_space<vmem>>, vector<1x256xf32>
      %35 = arith.mulf %23, %33 : vector<1x256xf32>
      %36 = arith.subf %34, %35 : vector<1x256xf32>
      %cst_29 = arith.constant 0.000000e+00 : f32
      %37 = vector.broadcast %cst_29 : f32 to vector<6x256xf32>
      %38 = tpu.concatenate %33, %36, %37 in 0 : vector<1x256xf32>, vector<1x256xf32>, vector<6x256xf32> -> vector<8x256xf32>
      %c0_30 = arith.constant 0 : index
      %c0_31 = arith.constant 0 : index
      %39 = vector.load %arg6[%c0_30, %c0_31] : memref<8x256xf32, #tpu.memory_space<vmem>>, vector<8x256xf32>
      tpu.vector_store %arg6[%c0_30, %c0_31], %38 {strides = array<i32>} : memref<8x256xf32, #tpu.memory_space<vmem>>, vector<8x256xf32>,
    } else {
    }
    return
  }
  func.func @transform_0(%arg0: i32) -> (i32, i32) {
    %c0_i32 = arith.constant 0 : i32
    %c0_i32_0 = arith.constant 0 : i32
    return %arg0, %c0_i32 : i32, i32
  }
  func.func @transform_1(%arg0: i32) -> (i32, i32) {
    %c0_i32 = arith.constant 0 : i32
    %c0_i32_0 = arith.constant 0 : i32
    %c0_i32_1 = arith.constant 0 : i32
    return %c0_i32, %c0_i32_0 : i32, i32
  }
  func.func @transform_2(%arg0: i32) -> (i32, i32) {
    %c0_i32 = arith.constant 0 : i32
    %c0_i32_0 = arith.constant 0 : i32
    %c0_i32_1 = arith.constant 0 : i32
    return %c0_i32, %c0_i32_0 : i32, i32
  }
  func.func @transform_3(%arg0: i32) -> (i32, i32) {
    %c0_i32 = arith.constant 0 : i32
    %c0_i32_0 = arith.constant 0 : i32
    %c0_i32_1 = arith.constant 0 : i32
    return %c0_i32, %c0_i32_0 : i32, i32
  }
  func.func @transform_4(%arg0: i32) -> (i32, i32) {
    %c0_i32 = arith.constant 0 : i32
    %c0_i32_0 = arith.constant 0 : i32
    return %arg0, %c0_i32 : i32, i32
  }
  func.func @transform_5(%arg0: i32) -> (i32, i32) {
    %c0_i32 = arith.constant 0 : i32
    %c0_i32_0 = arith.constant 0 : i32
    %c0_i32_1 = arith.constant 0 : i32
    return %c0_i32, %c0_i32_0 : i32, i32
  }
}

module attributes {stable_mosaic.version = 11 : i64} {
  func.func @_bn_lrelu_apply_kernel(%arg0: i32, %arg1: memref<8x256xf32, #tpu.memory_space<vmem>>, %arg2: memref<8x256xf32, #tpu.memory_space<vmem>>, %arg3: memref<8x256xf32, #tpu.memory_space<vmem>>) attributes {dimension_semantics = [#tpu.dimension_semantics<parallel>], iteration_bounds = array<i64: 1>, scalar_prefetch = 0 : i64, scratch_operands = 0 : i64, tpu.core_type = #tpu.core_type<tc>, window_params = [{transform_indices = @transform_0, window_bounds = array<i64: 8, 256>}, {pipeline_mode = #tpu.pipeline_mode<synchronous>, transform_indices = @transform_1, window_bounds = array<i64: 8, 256>}, {transform_indices = @transform_2, window_bounds = array<i64: 8, 256>}]} {
    %c0 = arith.constant 0 : index
    %c0_0 = arith.constant 0 : index
    %0 = vector.load %arg1[%c0, %c0_0] : memref<8x256xf32, #tpu.memory_space<vmem>>, vector<8x256xf32>
    %c0_1 = arith.constant 0 : index
    %c0_2 = arith.constant 0 : index
    %1 = vector.load %arg2[%c0_1, %c0_2] : memref<8x256xf32, #tpu.memory_space<vmem>>, vector<1x256xf32>
    %c1 = arith.constant 1 : index
    %c0_3 = arith.constant 0 : index
    %2 = vector.load %arg2[%c1, %c0_3] : memref<8x256xf32, #tpu.memory_space<vmem>>, vector<1x256xf32>
    %3 = vector.broadcast %1 : vector<1x256xf32> to vector<8x256xf32>
    %4 = arith.mulf %0, %3 : vector<8x256xf32>
    %5 = vector.broadcast %2 : vector<1x256xf32> to vector<8x256xf32>
    %6 = arith.addf %4, %5 : vector<8x256xf32>
    %cst = arith.constant 0.000000e+00 : f32
    %7 = vector.broadcast %cst : f32 to vector<8x256xf32>
    %8 = arith.cmpf oge, %6, %7 : vector<8x256xf32>
    %cst_4 = arith.constant 2.000000e-01 : f32
    %9 = vector.broadcast %cst_4 : f32 to vector<8x256xf32>
    %10 = arith.mulf %9, %6 : vector<8x256xf32>
    %11 = arith.select %8, %6, %10 : vector<8x256xi1>, vector<8x256xf32>
    %c0_5 = arith.constant 0 : index
    %c0_6 = arith.constant 0 : index
    %12 = vector.load %arg3[%c0_5, %c0_6] : memref<8x256xf32, #tpu.memory_space<vmem>>, vector<8x256xf32>
    tpu.vector_store %arg3[%c0_5, %c0_6], %11 {strides = array<i32>} : memref<8x256xf32, #tpu.memory_space<vmem>>, vector<8x256xf32>,
    return
  }
  func.func @transform_0(%arg0: i32) -> (i32, i32) {
    %c0_i32 = arith.constant 0 : i32
    %c0_i32_0 = arith.constant 0 : i32
    return %arg0, %c0_i32 : i32, i32
  }
  func.func @transform_1(%arg0: i32) -> (i32, i32) {
    %c0_i32 = arith.constant 0 : i32
    %c0_i32_0 = arith.constant 0 : i32
    %c0_i32_1 = arith.constant 0 : i32
    return %c0_i32, %c0_i32_0 : i32, i32
  }
  func.func @transform_2(%arg0: i32) -> (i32, i32) {
    %c0_i32 = arith.constant 0 : i32
    %c0_i32_0 = arith.constant 0 : i32
    return %arg0, %c0_i32 : i32, i32
  }
}

module attributes {stable_mosaic.version = 11 : i64} {
  func.func @_conv_bias_kernel(%arg0: i32, %arg1: memref<8x4096xbf16, #tpu.memory_space<vmem>>, %arg2: memref<4096x128xbf16, #tpu.memory_space<vmem>>, %arg3: memref<1x128xf32, #tpu.memory_space<vmem>>, %arg4: memref<8x128xf32, #tpu.memory_space<vmem>>) attributes {dimension_semantics = [#tpu.dimension_semantics<parallel>], iteration_bounds = array<i64: 1>, scalar_prefetch = 0 : i64, scratch_operands = 0 : i64, tpu.core_type = #tpu.core_type<tc>, window_params = [{transform_indices = @transform_0, window_bounds = array<i64: 8, 4096>}, {pipeline_mode = #tpu.pipeline_mode<synchronous>, transform_indices = @transform_1, window_bounds = array<i64: 4096, 128>}, {pipeline_mode = #tpu.pipeline_mode<synchronous>, transform_indices = @transform_2, window_bounds = array<i64: 1, 128>}, {transform_indices = @transform_3, window_bounds = array<i64: 8, 128>}]} {
    %c0 = arith.constant 0 : index
    %c0_0 = arith.constant 0 : index
    %0 = vector.load %arg1[%c0, %c0_0] : memref<8x4096xbf16, #tpu.memory_space<vmem>>, vector<8x4096xbf16>
    %c0_1 = arith.constant 0 : index
    %c0_2 = arith.constant 0 : index
    %1 = vector.load %arg2[%c0_1, %c0_2] : memref<4096x128xbf16, #tpu.memory_space<vmem>>, vector<4096x128xbf16>
    %cst = arith.constant dense<0.000000e+00> : vector<8x128xf32>
    %2 = tpu.matmul %0, %1, %cst {dimension_numbers = #tpu.dot_dimension_numbers<[1], [0], [0], [1], [0, 0, 1, 1], [], []>} : vector<8x4096xbf16>, vector<4096x128xbf16>, vector<8x128xf32> -> vector<8x128xf32>
    %c0_3 = arith.constant 0 : index
    %c0_4 = arith.constant 0 : index
    %3 = vector.load %arg3[%c0_3, %c0_4] : memref<1x128xf32, #tpu.memory_space<vmem>>, vector<1x128xf32>
    %4 = vector.broadcast %3 : vector<1x128xf32> to vector<8x128xf32>
    %5 = arith.addf %2, %4 : vector<8x128xf32>
    %c0_5 = arith.constant 0 : index
    %c0_6 = arith.constant 0 : index
    %6 = vector.load %arg4[%c0_5, %c0_6] : memref<8x128xf32, #tpu.memory_space<vmem>>, vector<8x128xf32>
    tpu.vector_store %arg4[%c0_5, %c0_6], %5 {strides = array<i32>} : memref<8x128xf32, #tpu.memory_space<vmem>>, vector<8x128xf32>,
    return
  }
  func.func @transform_0(%arg0: i32) -> (i32, i32) {
    %c0_i32 = arith.constant 0 : i32
    %c0_i32_0 = arith.constant 0 : i32
    return %arg0, %c0_i32 : i32, i32
  }
  func.func @transform_1(%arg0: i32) -> (i32, i32) {
    %c0_i32 = arith.constant 0 : i32
    %c0_i32_0 = arith.constant 0 : i32
    %c0_i32_1 = arith.constant 0 : i32
    return %c0_i32, %c0_i32_0 : i32, i32
  }
  func.func @transform_2(%arg0: i32) -> (i32, i32) {
    %c0_i32 = arith.constant 0 : i32
    %c0_i32_0 = arith.constant 0 : i32
    %c0_i32_1 = arith.constant 0 : i32
    return %c0_i32, %c0_i32_0 : i32, i32
  }
  func.func @transform_3(%arg0: i32) -> (i32, i32) {
    %c0_i32 = arith.constant 0 : i32
    %c0_i32_0 = arith.constant 0 : i32
    return %arg0, %c0_i32 : i32, i32
  }
}

</mosaic_0001>

<llo_original>
// kernel: discriminator_forward.8
$region0: #{discriminator_forward.8}
  #allocation0 [shape = 'u32[]', space=smem, size = 0x4, offset = 0x4, fixed_abs, tag = 'smem constant byte address 0x4 - core index']
  #allocation1 [shape = 'u32[144,128]{1,0:T(1,128)}', space=vmem, size = 0x12000, scoped, tag = 'internal scratch']
  %s0 = inlined_call_operand.vmem [shape: bf16[512,128], index: 0, kind: input, shape index: {}]
  %s1 = inlined_call_operand.vmem [shape: bf16[128,128], index: 1, kind: input, shape index: {}]
  %s2 = inlined_call_operand.vmem [shape: f32[1,128], index: 2, kind: input, shape index: {}]
  %s3 = inlined_call_operand.vmem [shape: f32[512,128], index: 3, kind: output, shape index: {}]
  %s4 = sld [smem:[#allocation0]]
  $region22: #{discriminator_forward.8} parent=0
    _
  %s6 = ssub.s32 1, %s4
  %s7 = scalar_select 0, %s6, %s4
  // Predicated region
  $region2: #{discriminator_forward.8} parent=0 // pred_check
    _
  $region3: #{discriminator_forward.8} parent=0 // pred_check_branch
    %9 = sbr.rel (0) target = $region5
  $region4: #{discriminator_forward.8} parent=0 // pred_region
    _
  $region5: #{discriminator_forward.8} parent=0 // pred_fallthru
    _
  // Predicated region
  $region6: #{discriminator_forward.8} parent=0 // pred_check
    _
  $region7: #{discriminator_forward.8} parent=0 // pred_check_branch
    %11 = sbr.rel (0) target = $region9
  $region8: #{discriminator_forward.8} parent=0 // pred_region
    _
  $region9: #{discriminator_forward.8} parent=0 // pred_fallthru
    _
  // Predicated region
  $region10: #{discriminator_forward.8} parent=0 // pred_check
    _
  $region11: #{discriminator_forward.8} parent=0 // pred_check_branch
    %13 = sbr.rel (0) target = $region13
  $region12: #{discriminator_forward.8} parent=0 // pred_region
    _
  $region13: #{discriminator_forward.8} parent=0 // pred_fallthru
    _
  %v15 = vld [vmem:[%s0] sm:$0xf]
  %v16 = vld [vmem:[%s0 + $0x4] sm:$0xf]
  %v17 = vld [vmem:[%s0 + $0x8] sm:$0xf]
  %v18 = vld [vmem:[%s0 + $0xc] sm:$0xf]
  %v19 = vld [vmem:[%s0 + $0x10] sm:$0xf]
  %v20 = vld [vmem:[%s0 + $0x14] sm:$0xf]
  %v21 = vld [vmem:[%s0 + $0x18] sm:$0xf]
  %v22 = vld [vmem:[%s0 + $0x1c] sm:$0xf]
  %v23 = vld [vmem:[%s0 + $0x20] sm:$0xf]
  %v24 = vld [vmem:[%s0 + $0x24] sm:$0xf]
  %v25 = vld [vmem:[%s0 + $0x28] sm:$0xf]
  %v26 = vld [vmem:[%s0 + $0x2c] sm:$0xf]
  %v27 = vld [vmem:[%s0 + $0x30] sm:$0xf]
  %v28 = vld [vmem:[%s0 + $0x34] sm:$0xf]
  %v29 = vld [vmem:[%s0 + $0x38] sm:$0xf]
  %v30 = vld [vmem:[%s0 + $0x3c] sm:$0xf]
  %v31 = vld [vmem:[%s0 + $0x40] sm:$0xf]
  %v32 = vld [vmem:[%s0 + $0x44] sm:$0xf]
  %v33 = vld [vmem:[%s0 + $0x48] sm:$0xf]
  %v34 = vld [vmem:[%s0 + $0x4c] sm:$0xf]
  %v35 = vld [vmem:[%s0 + $0x50] sm:$0xf]
  %v36 = vld [vmem:[%s0 + $0x54] sm:$0xf]
  %v37 = vld [vmem:[%s0 + $0x58] sm:$0xf]
  %v38 = vld [vmem:[%s0 + $0x5c] sm:$0xf]
  %v39 = vld [vmem:[%s0 + $0x60] sm:$0xf]
  %v40 = vld [vmem:[%s0 + $0x64] sm:$0xf]
  %v41 = vld [vmem:[%s0 + $0x68] sm:$0xf]
  %v42 = vld [vmem:[%s0 + $0x6c] sm:$0xf]
  %v43 = vld [vmem:[%s0 + $0x70] sm:$0xf]
  %v44 = vld [vmem:[%s0 + $0x74] sm:$0xf]
  %v45 = vld [vmem:[%s0 + $0x78] sm:$0xf]
  %v46 = vld [vmem:[%s0 + $0x7c] sm:$0xf]
  %v47 = vld [vmem:[%s0 + $0x80] sm:$0xf]
  %v48 = vld [vmem:[%s0 + $0x84] sm:$0xf]
  %v49 = vld [vmem:[%s0 + $0x88] sm:$0xf]
  %v50 = vld [vmem:[%s0 + $0x8c] sm:$0xf]
  %v51 = vld [vmem:[%s0 + $0x90] sm:$0xf]
  %v52 = vld [vmem:[%s0 + $0x94] sm:$0xf]
  %v53 = vld [vmem:[%s0 + $0x98] sm:$0xf]
  %v54 = vld [vmem:[%s0 + $0x9c] sm:$0xf]
  %v55 = vld [vmem:[%s0 + $0xa0] sm:$0xf]
  %v56 = vld [vmem:[%s0 + $0xa4] sm:$0xf]
  %v57 = vld [vmem:[%s0 + $0xa8] sm:$0xf]
  %v58 = vld [vmem:[%s0 + $0xac] sm:$0xf]
  %v59 = vld [vmem:[%s0 + $0xb0] sm:$0xf]
  %v60 = vld [vmem:[%s0 + $0xb4] sm:$0xf]
  %v61 = vld [vmem:[%s0 + $0xb8] sm:$0xf]
  %v62 = vld [vmem:[%s0 + $0xbc] sm:$0xf]
  %v63 = vld [vmem:[%s0 + $0xc0] sm:$0xf]
  %v64 = vld [vmem:[%s0 + $0xc4] sm:$0xf]
  %v65 = vld [vmem:[%s0 + $0xc8] sm:$0xf]
  %v66 = vld [vmem:[%s0 + $0xcc] sm:$0xf]
  %v67 = vld [vmem:[%s0 + $0xd0] sm:$0xf]
  %v68 = vld [vmem:[%s0 + $0xd4] sm:$0xf]
  %v69 = vld [vmem:[%s0 + $0xd8] sm:$0xf]
  %v70 = vld [vmem:[%s0 + $0xdc] sm:$0xf]
  %v71 = vld [vmem:[%s0 + $0xe0] sm:$0xf]
  %v72 = vld [vmem:[%s0 + $0xe4] sm:$0xf]
  %v73 = vld [vmem:[%s0 + $0xe8] sm:$0xf]
  %v74 = vld [vmem:[%s0 + $0xec] sm:$0xf]
  %v75 = vld [vmem:[%s0 + $0xf0] sm:$0xf]
  %v76 = vld [vmem:[%s0 + $0xf4] sm:$0xf]
  %v77 = vld [vmem:[%s0 + $0xf8] sm:$0xf]
  %v78 = vld [vmem:[%s0 + $0xfc] sm:$0xf]
  %v79 = vld [vmem:[%s1] sm:$0xf]
  %v80 = vld [vmem:[%s1 + $0x4] sm:$0xf]
  %v81 = vld [vmem:[%s1 + $0x8] sm:$0xf]
  %v82 = vld [vmem:[%s1 + $0xc] sm:$0xf]
  %v83 = vld [vmem:[%s1 + $0x10] sm:$0xf]
  %v84 = vld [vmem:[%s1 + $0x14] sm:$0xf]
  %v85 = vld [vmem:[%s1 + $0x18] sm:$0xf]
  %v86 = vld [vmem:[%s1 + $0x1c] sm:$0xf]
  %v87 = vld [vmem:[%s1 + $0x20] sm:$0xf]
  %v88 = vld [vmem:[%s1 + $0x24] sm:$0xf]
  %v89 = vld [vmem:[%s1 + $0x28] sm:$0xf]
  %v90 = vld [vmem:[%s1 + $0x2c] sm:$0xf]
  %v91 = vld [vmem:[%s1 + $0x30] sm:$0xf]
  %v92 = vld [vmem:[%s1 + $0x34] sm:$0xf]
  %v93 = vld [vmem:[%s1 + $0x38] sm:$0xf]
  %v94 = vld [vmem:[%s1 + $0x3c] sm:$0xf]
  %v95 = vld [vmem:[%s2] sm:$0x1]
  %v97 = vlaneseq
  %v98 = vshrl.u32 %v97, 7
  %v99 = vsub.s32 0, %v98
  %v100 = vrot.slane %v95, %v99
  %v166 = vunpack.c.l.b16 %v15
  %v167 = vunpack.c.l.b16 %v16
  %v168 = vunpack.c.l.b16 %v17
  %v169 = vunpack.c.l.b16 %v18
  %v170 = vunpack.c.l.b16 %v19
  %v171 = vunpack.c.l.b16 %v20
  %v172 = vunpack.c.l.b16 %v21
  %v173 = vunpack.c.l.b16 %v22
  %v174 = vunpack.c.l.b16 %v23
  %v175 = vunpack.c.l.b16 %v24
  %v176 = vunpack.c.l.b16 %v25
  %v177 = vunpack.c.l.b16 %v26
  %v178 = vunpack.c.l.b16 %v27
  %v179 = vunpack.c.l.b16 %v28
  %v180 = vunpack.c.l.b16 %v29
  %v181 = vunpack.c.l.b16 %v30
  %v182 = vunpack.c.l.b16 %v31
  %v183 = vunpack.c.l.b16 %v32
  %v184 = vunpack.c.l.b16 %v33
  %v185 = vunpack.c.l.b16 %v34
  %v186 = vunpack.c.l.b16 %v35
  %v187 = vunpack.c.l.b16 %v36
  %v188 = vunpack.c.l.b16 %v37
  %v189 = vunpack.c.l.b16 %v38
  %v190 = vunpack.c.l.b16 %v39
  %v191 = vunpack.c.l.b16 %v40
  %v192 = vunpack.c.l.b16 %v41
  %v193 = vunpack.c.l.b16 %v42
  %v194 = vunpack.c.l.b16 %v43
  %v195 = vunpack.c.l.b16 %v44
  %v196 = vunpack.c.l.b16 %v45
  %v197 = vunpack.c.l.b16 %v46
  %v198 = vunpack.c.l.b16 %v47
  %v199 = vunpack.c.l.b16 %v48
  %v200 = vunpack.c.l.b16 %v49
  %v201 = vunpack.c.l.b16 %v50
  %v202 = vunpack.c.l.b16 %v51
  %v203 = vunpack.c.l.b16 %v52
  %v204 = vunpack.c.l.b16 %v53
  %v205 = vunpack.c.l.b16 %v54
  %v206 = vunpack.c.l.b16 %v55
  %v207 = vunpack.c.l.b16 %v56
  %v208 = vunpack.c.l.b16 %v57
  %v209 = vunpack.c.l.b16 %v58
  %v210 = vunpack.c.l.b16 %v59
  %v211 = vunpack.c.l.b16 %v60
  %v212 = vunpack.c.l.b16 %v61
  %v213 = vunpack.c.l.b16 %v62
  %v214 = vunpack.c.l.b16 %v63
  %v215 = vunpack.c.l.b16 %v64
  %v216 = vunpack.c.l.b16 %v65
  %v217 = vunpack.c.l.b16 %v66
  %v218 = vunpack.c.l.b16 %v67
  %v219 = vunpack.c.l.b16 %v68
  %v220 = vunpack.c.l.b16 %v69
  %v221 = vunpack.c.l.b16 %v70
  %v222 = vunpack.c.l.b16 %v71
  %v223 = vunpack.c.l.b16 %v72
  %v224 = vunpack.c.l.b16 %v73
  %v225 = vunpack.c.l.b16 %v74
  %v226 = vunpack.c.l.b16 %v75
  %v227 = vunpack.c.l.b16 %v76
  %v228 = vunpack.c.l.b16 %v77
  %v229 = vunpack.c.l.b16 %v78
  %v230 = vpack.c.b16 %v167, %v166
  %v231 = vpack.c.b16 %v169, %v168
  %v232 = vpack.c.b16 %v171, %v170
  %v233 = vpack.c.b16 %v173, %v172
  %v234 = vpack.c.b16 %v175, %v174
  %v235 = vpack.c.b16 %v177, %v176
  %v236 = vpack.c.b16 %v179, %v178
  %v237 = vpack.c.b16 %v181, %v180
  %v238 = vpack.c.b16 %v183, %v182
  %v239 = vpack.c.b16 %v185, %v184
  %v240 = vpack.c.b16 %v187, %v186
  %v241 = vpack.c.b16 %v189, %v188
  %v242 = vpack.c.b16 %v191, %v190
  %v243 = vpack.c.b16 %v193, %v192
  %v244 = vpack.c.b16 %v195, %v194
  %v245 = vpack.c.b16 %v197, %v196
  %v246 = vpack.c.b16 %v199, %v198
  %v247 = vpack.c.b16 %v201, %v200
  %v248 = vpack.c.b16 %v203, %v202
  %v249 = vpack.c.b16 %v205, %v204
  %v250 = vpack.c.b16 %v207, %v206
  %v251 = vpack.c.b16 %v209, %v208
  %v252 = vpack.c.b16 %v211, %v210
  %v253 = vpack.c.b16 %v213, %v212
  %v254 = vpack.c.b16 %v215, %v214
  %v255 = vpack.c.b16 %v217, %v216
  %v256 = vpack.c.b16 %v219, %v218
  %v257 = vpack.c.b16 %v221, %v220
  %v258 = vpack.c.b16 %v223, %v222
  %v259 = vpack.c.b16 %v225, %v224
  %v260 = vpack.c.b16 %v227, %v226
  %v261 = vpack.c.b16 %v229, %v228
  %v310 = vunpack.c.l.b16 %v79
  %v311 = vunpack.c.l.b16 %v80
  %v312 = vunpack.c.l.b16 %v81
  %v313 = vunpack.c.l.b16 %v82
  %v314 = vunpack.c.l.b16 %v83
  %v315 = vunpack.c.l.b16 %v84
  %v316 = vunpack.c.l.b16 %v85
  %v317 = vunpack.c.l.b16 %v86
  %v318 = vunpack.c.l.b16 %v87
  %v319 = vunpack.c.l.b16 %v88
  %v320 = vunpack.c.l.b16 %v89
  %v321 = vunpack.c.l.b16 %v90
  %v322 = vunpack.c.l.b16 %v91
  %v323 = vunpack.c.l.b16 %v92
  %v324 = vunpack.c.l.b16 %v93
  %v325 = vunpack.c.l.b16 %v94
  %v326 = vpack.c.b16 %v311, %v310
  %v327 = vpack.c.b16 %v313, %v312
  %v328 = vpack.c.b16 %v315, %v314
  %v329 = vpack.c.b16 %v317, %v316
  %v330 = vpack.c.b16 %v319, %v318
  %v331 = vpack.c.b16 %v321, %v320
  %v332 = vpack.c.b16 %v323, %v322
  %v333 = vpack.c.b16 %v325, %v324
  %342 = vmatprep.subr.bf16.mxu0 0
  %343 = vmatpush1.bf16.msra.mxu0 %v333
  %344 = vmatprep.subr.bf16.mxu0 0
  %345 = vmatpush1.bf16.msra.mxu0 %v332
  %346 = vmatprep.subr.bf16.mxu0 0
  %347 = vmatpush1.bf16.msra.mxu0 %v331
  %348 = vmatprep.subr.bf16.mxu0 0
  %349 = vmatpush1.bf16.msra.mxu0 %v330
  %350 = vmatprep.subr.bf16.mxu0 0
  %351 = vmatpush1.bf16.msra.mxu0 %v329
  %352 = vmatprep.subr.bf16.mxu0 0
  %353 = vmatpush1.bf16.msra.mxu0 %v328
  %354 = vmatprep.subr.bf16.mxu0 0
  %355 = vmatpush1.bf16.msra.mxu0 %v327
  %356 = vmatprep.subr.bf16.mxu0 0
  %357 = vmatpush1.bf16.msra.mxu0 %v326
  %358 = vmatprep.subr.bf16.mxu0 0
  %359 = vmatpush2.bf16.msra.mxu0 0
  %360 = vmatprep.subr.bf16.mxu0 0
  %361 = vmatpush2.bf16.msra.mxu0 0
  %362 = vmatprep.subr.bf16.mxu0 0
  %363 = vmatpush2.bf16.msra.mxu0 0
  %364 = vmatprep.subr.bf16.mxu0 0
  %365 = vmatpush2.bf16.msra.mxu0 0
  %366 = vmatprep.subr.bf16.mxu0 0
  %367 = vmatpush2.bf16.msra.mxu0 0
  %368 = vmatprep.subr.bf16.mxu0 0
  %369 = vmatpush2.bf16.msra.mxu0 0
  %370 = vmatprep.subr.bf16.mxu0 0
  %371 = vmatpush2.bf16.msra.mxu0 0
  %372 = vmatprep.subr.bf16.mxu0 0
  %373 = vmatpush2.bf16.msra.mxu0 0
  %374 = vmatprep.mubr.bf16.mxu0 0
  %375 = vmatmul.mubr.bf16.gmra.mxu0 %v230
  %v376 = vpop.f32.mrf.mxu0
  %v377 = vadd.f32 %v100, %v376
  %v378 = vpop.f32.mrf.mxu0
  %v379 = vpop.f32.mrf.mxu0
  %v380 = vadd.f32 %v100, %v379
  %v381 = vpop.f32.mrf.mxu0
  %382 = vmatprep.mubr.bf16.mxu0 0
  %383 = vmatmul.mubr.bf16.gmra.mxu0 %v231
  %v384 = vpop.f32.mrf.mxu0
  %v385 = vadd.f32 %v100, %v384
  %v386 = vpop.f32.mrf.mxu0
  %v387 = vpop.f32.mrf.mxu0
  %v388 = vadd.f32 %v100, %v387
  %v389 = vpop.f32.mrf.mxu0
  %390 = vmatprep.mubr.bf16.mxu0 0
  %391 = vmatmul.mubr.bf16.gmra.mxu0 %v232
  %v392 = vpop.f32.mrf.mxu0
  %v393 = vadd.f32 %v100, %v392
  %v394 = vpop.f32.mrf.mxu0
  %v395 = vpop.f32.mrf.mxu0
  %v396 = vadd.f32 %v100, %v395
  %v397 = vpop.f32.mrf.mxu0
  %398 = vmatprep.mubr.bf16.mxu0 0
  %399 = vmatmul.mubr.bf16.gmra.mxu0 %v233
  %v400 = vpop.f32.mrf.mxu0
  %v401 = vadd.f32 %v100, %v400
  %v402 = vpop.f32.mrf.mxu0
  %v403 = vpop.f32.mrf.mxu0
  %v404 = vadd.f32 %v100, %v403
  %v405 = vpop.f32.mrf.mxu0
  %406 = vmatprep.mubr.bf16.mxu0 0
  %407 = vmatmul.mubr.bf16.gmra.mxu0 %v234
  %v408 = vpop.f32.mrf.mxu0
  %v409 = vadd.f32 %v100, %v408
  %v410 = vpop.f32.mrf.mxu0
  %v411 = vpop.f32.mrf.mxu0
  %v412 = vadd.f32 %v100, %v411
  %v413 = vpop.f32.mrf.mxu0
  %414 = vmatprep.mubr.bf16.mxu0 0
  %415 = vmatmul.mubr.bf16.gmra.mxu0 %v235
  %v416 = vpop.f32.mrf.mxu0
  %v417 = vadd.f32 %v100, %v416
  %v418 = vpop.f32.mrf.mxu0
  %v419 = vpop.f32.mrf.mxu0
  %v420 = vadd.f32 %v100, %v419
  %v421 = vpop.f32.mrf.mxu0
  %422 = vmatprep.mubr.bf16.mxu0 0
  %423 = vmatmul.mubr.bf16.gmra.mxu0 %v236
  %v424 = vpop.f32.mrf.mxu0
  %v425 = vadd.f32 %v100, %v424
  %v426 = vpop.f32.mrf.mxu0
  %v427 = vpop.f32.mrf.mxu0
  %v428 = vadd.f32 %v100, %v427
  %v429 = vpop.f32.mrf.mxu0
  %430 = vmatprep.mubr.bf16.mxu0 0
  %431 = vmatmul.mubr.bf16.gmra.mxu0 %v237
  %v432 = vpop.f32.mrf.mxu0
  %v433 = vadd.f32 %v100, %v432
  %v434 = vpop.f32.mrf.mxu0
  %v435 = vpop.f32.mrf.mxu0
  %v436 = vadd.f32 %v100, %v435
  %v437 = vpop.f32.mrf.mxu0
  %438 = vmatprep.mubr.bf16.mxu0 0
  %439 = vmatmul.mubr.bf16.gmra.mxu0 %v238
  %v440 = vpop.f32.mrf.mxu0
  %v441 = vadd.f32 %v100, %v440
  %v442 = vpop.f32.mrf.mxu0
  %v443 = vpop.f32.mrf.mxu0
  %v444 = vadd.f32 %v100, %v443
  %v445 = vpop.f32.mrf.mxu0
  %446 = vmatprep.mubr.bf16.mxu0 0
  %447 = vmatmul.mubr.bf16.gmra.mxu0 %v239
  %v448 = vpop.f32.mrf.mxu0
  %v449 = vadd.f32 %v100, %v448
  %v450 = vpop.f32.mrf.mxu0
  %v451 = vpop.f32.mrf.mxu0
  %v452 = vadd.f32 %v100, %v451
  %v453 = vpop.f32.mrf.mxu0
  %454 = vmatprep.mubr.bf16.mxu0 0
  %455 = vmatmul.mubr.bf16.gmra.mxu0 %v240
  %v456 = vpop.f32.mrf.mxu0
  %v457 = vadd.f32 %v100, %v456
  %v458 = vpop.f32.mrf.mxu0
  %v459 = vpop.f32.mrf.mxu0
  %v460 = vadd.f32 %v100, %v459
  %v461 = vpop.f32.mrf.mxu0
  %462 = vmatprep.mubr.bf16.mxu0 0
  %463 = vmatmul.mubr.bf16.gmra.mxu0 %v241
  %v464 = vpop.f32.mrf.mxu0
  %v465 = vadd.f32 %v100, %v464
  %v466 = vpop.f32.mrf.mxu0
  %v467 = vpop.f32.mrf.mxu0
  %v468 = vadd.f32 %v100, %v467
  %v469 = vpop.f32.mrf.mxu0
  %470 = vmatprep.mubr.bf16.mxu0 0
  %471 = vmatmul.mubr.bf16.gmra.mxu0 %v242
  %v472 = vpop.f32.mrf.mxu0
  %v473 = vadd.f32 %v100, %v472
  %v474 = vpop.f32.mrf.mxu0
  %v475 = vpop.f32.mrf.mxu0
  %v476 = vadd.f32 %v100, %v475
  %v477 = vpop.f32.mrf.mxu0
  %478 = vmatprep.mubr.bf16.mxu0 0
  %479 = vmatmul.mubr.bf16.gmra.mxu0 %v243
  %v480 = vpop.f32.mrf.mxu0
  %v481 = vadd.f32 %v100, %v480
  %v482 = vpop.f32.mrf.mxu0
  %v483 = vpop.f32.mrf.mxu0
  %v484 = vadd.f32 %v100, %v483
  %v485 = vpop.f32.mrf.mxu0
  %486 = vmatprep.mubr.bf16.mxu0 0
  %487 = vmatmul.mubr.bf16.gmra.mxu0 %v244
  %v488 = vpop.f32.mrf.mxu0
  %v489 = vadd.f32 %v100, %v488
  %v490 = vpop.f32.mrf.mxu0
  %v491 = vpop.f32.mrf.mxu0
  %v492 = vadd.f32 %v100, %v491
  %v493 = vpop.f32.mrf.mxu0
  %494 = vmatprep.mubr.bf16.mxu0 0
  %495 = vmatmul.mubr.bf16.gmra.mxu0 %v245
  %v496 = vpop.f32.mrf.mxu0
  %v497 = vadd.f32 %v100, %v496
  %v498 = vpop.f32.mrf.mxu0
  %v499 = vpop.f32.mrf.mxu0
  %v500 = vadd.f32 %v100, %v499
  %v501 = vpop.f32.mrf.mxu0
  %502 = vmatprep.mubr.bf16.mxu0 0
  %503 = vmatmul.mubr.bf16.gmra.mxu0 %v246
  %v504 = vpop.f32.mrf.mxu0
  %v505 = vadd.f32 %v100, %v504
  %v506 = vpop.f32.mrf.mxu0
  %v507 = vpop.f32.mrf.mxu0
  %v508 = vadd.f32 %v100, %v507
  %v509 = vpop.f32.mrf.mxu0
  %510 = vmatprep.mubr.bf16.mxu0 0
  %511 = vmatmul.mubr.bf16.gmra.mxu0 %v247
  %v512 = vpop.f32.mrf.mxu0
  %v513 = vadd.f32 %v100, %v512
  %v514 = vpop.f32.mrf.mxu0
  %v515 = vpop.f32.mrf.mxu0
  %v516 = vadd.f32 %v100, %v515
  %v517 = vpop.f32.mrf.mxu0
  %518 = vmatprep.mubr.bf16.mxu0 0
  %519 = vmatmul.mubr.bf16.gmra.mxu0 %v248
  %v520 = vpop.f32.mrf.mxu0
  %v521 = vadd.f32 %v100, %v520
  %v522 = vpop.f32.mrf.mxu0
  %v523 = vpop.f32.mrf.mxu0
  %v524 = vadd.f32 %v100, %v523
  %v525 = vpop.f32.mrf.mxu0
  %526 = vmatprep.mubr.bf16.mxu0 0
  %527 = vmatmul.mubr.bf16.gmra.mxu0 %v249
  %v528 = vpop.f32.mrf.mxu0
  %v529 = vadd.f32 %v100, %v528
  %v530 = vpop.f32.mrf.mxu0
  %v531 = vpop.f32.mrf.mxu0
  %v532 = vadd.f32 %v100, %v531
  %v533 = vpop.f32.mrf.mxu0
  %534 = vmatprep.mubr.bf16.mxu0 0
  %535 = vmatmul.mubr.bf16.gmra.mxu0 %v250
  %v536 = vpop.f32.mrf.mxu0
  %v537 = vadd.f32 %v100, %v536
  %v538 = vpop.f32.mrf.mxu0
  %v539 = vpop.f32.mrf.mxu0
  %v540 = vadd.f32 %v100, %v539
  %v541 = vpop.f32.mrf.mxu0
  %542 = vmatprep.mubr.bf16.mxu0 0
  %543 = vmatmul.mubr.bf16.gmra.mxu0 %v251
  %v544 = vpop.f32.mrf.mxu0
  %v545 = vadd.f32 %v100, %v544
  %v546 = vpop.f32.mrf.mxu0
  %v547 = vpop.f32.mrf.mxu0
  %v548 = vadd.f32 %v100, %v547
  %v549 = vpop.f32.mrf.mxu0
  %550 = vmatprep.mubr.bf16.mxu0 0
  %551 = vmatmul.mubr.bf16.gmra.mxu0 %v252
  %v552 = vpop.f32.mrf.mxu0
  %v553 = vadd.f32 %v100, %v552
  %v554 = vpop.f32.mrf.mxu0
  %v555 = vpop.f32.mrf.mxu0
  %v556 = vadd.f32 %v100, %v555
  %v557 = vpop.f32.mrf.mxu0
  %558 = vmatprep.mubr.bf16.mxu0 0
  %559 = vmatmul.mubr.bf16.gmra.mxu0 %v253
  %v560 = vpop.f32.mrf.mxu0
  %v561 = vadd.f32 %v100, %v560
  %v562 = vpop.f32.mrf.mxu0
  %v563 = vpop.f32.mrf.mxu0
  %v564 = vadd.f32 %v100, %v563
  %v565 = vpop.f32.mrf.mxu0
  %566 = vmatprep.mubr.bf16.mxu0 0
  %567 = vmatmul.mubr.bf16.gmra.mxu0 %v254
  %v568 = vpop.f32.mrf.mxu0
  %v569 = vadd.f32 %v100, %v568
  %v570 = vpop.f32.mrf.mxu0
  %v571 = vpop.f32.mrf.mxu0
  %v572 = vadd.f32 %v100, %v571
  %v573 = vpop.f32.mrf.mxu0
  %574 = vmatprep.mubr.bf16.mxu0 0
  %575 = vmatmul.mubr.bf16.gmra.mxu0 %v255
  %v576 = vpop.f32.mrf.mxu0
  %v577 = vadd.f32 %v100, %v576
  %v578 = vpop.f32.mrf.mxu0
  %v579 = vpop.f32.mrf.mxu0
  %v580 = vadd.f32 %v100, %v579
  %v581 = vpop.f32.mrf.mxu0
  %582 = vmatprep.mubr.bf16.mxu0 0
  %583 = vmatmul.mubr.bf16.gmra.mxu0 %v256
  %v584 = vpop.f32.mrf.mxu0
  %v585 = vadd.f32 %v100, %v584
  %v586 = vpop.f32.mrf.mxu0
  %v587 = vpop.f32.mrf.mxu0
  %v588 = vadd.f32 %v100, %v587
  %v589 = vpop.f32.mrf.mxu0
  %590 = vmatprep.mubr.bf16.mxu0 0
  %591 = vmatmul.mubr.bf16.gmra.mxu0 %v257
  %v592 = vpop.f32.mrf.mxu0
  %v593 = vadd.f32 %v100, %v592
  %v594 = vpop.f32.mrf.mxu0
  %v595 = vpop.f32.mrf.mxu0
  %v596 = vadd.f32 %v100, %v595
  %v597 = vpop.f32.mrf.mxu0
  %598 = vmatprep.mubr.bf16.mxu0 0
  %599 = vmatmul.mubr.bf16.gmra.mxu0 %v258
  %v600 = vpop.f32.mrf.mxu0
  %v601 = vadd.f32 %v100, %v600
  %v602 = vpop.f32.mrf.mxu0
  %v603 = vpop.f32.mrf.mxu0
  %v604 = vadd.f32 %v100, %v603
  %v605 = vpop.f32.mrf.mxu0
  %606 = vmatprep.mubr.bf16.mxu0 0
  %607 = vmatmul.mubr.bf16.gmra.mxu0 %v259
  %v608 = vpop.f32.mrf.mxu0
  %v609 = vadd.f32 %v100, %v608
  %v610 = vpop.f32.mrf.mxu0
  %v611 = vpop.f32.mrf.mxu0
  %v612 = vadd.f32 %v100, %v611
  %v613 = vpop.f32.mrf.mxu0
  %614 = vmatprep.mubr.bf16.mxu0 0
  %615 = vmatmul.mubr.bf16.gmra.mxu0 %v260
  %v616 = vpop.f32.mrf.mxu0
  %v617 = vadd.f32 %v100, %v616
  %v618 = vpop.f32.mrf.mxu0
  %v619 = vpop.f32.mrf.mxu0
  %v620 = vadd.f32 %v100, %v619
  %v621 = vpop.f32.mrf.mxu0
  %622 = vmatprep.mubr.bf16.mxu0 0
  %623 = vmatmul.mubr.bf16.gmra.mxu0 %v261
  %v624 = vpop.f32.mrf.mxu0
  %v625 = vadd.f32 %v100, %v624
  %v626 = vpop.f32.mrf.mxu0
  %v627 = vpop.f32.mrf.mxu0
  %v628 = vadd.f32 %v100, %v627
  %v629 = vpop.f32.mrf.mxu0
  %630 = vdwg.mxu0
  %vm631 = vcmp.ge.f32.partialorder %v377, 0.0
  %vm632 = vcmp.ge.f32.partialorder %v380, 0.0
  %vm633 = vcmp.ge.f32.partialorder %v385, 0.0
  %vm634 = vcmp.ge.f32.partialorder %v388, 0.0
  %vm635 = vcmp.ge.f32.partialorder %v393, 0.0
  %vm636 = vcmp.ge.f32.partialorder %v396, 0.0
  %vm637 = vcmp.ge.f32.partialorder %v401, 0.0
  %vm638 = vcmp.ge.f32.partialorder %v404, 0.0
  %vm639 = vcmp.ge.f32.partialorder %v409, 0.0
  %vm640 = vcmp.ge.f32.partialorder %v412, 0.0
  %vm641 = vcmp.ge.f32.partialorder %v417, 0.0
  %vm642 = vcmp.ge.f32.partialorder %v420, 0.0
  %vm643 = vcmp.ge.f32.partialorder %v425, 0.0
  %vm644 = vcmp.ge.f32.partialorder %v428, 0.0
  %vm645 = vcmp.ge.f32.partialorder %v433, 0.0
  %vm646 = vcmp.ge.f32.partialorder %v436, 0.0
  %vm647 = vcmp.ge.f32.partialorder %v441, 0.0
  %vm648 = vcmp.ge.f32.partialorder %v444, 0.0
  %vm649 = vcmp.ge.f32.partialorder %v449, 0.0
  %vm650 = vcmp.ge.f32.partialorder %v452, 0.0
  %vm651 = vcmp.ge.f32.partialorder %v457, 0.0
  %vm652 = vcmp.ge.f32.partialorder %v460, 0.0
  %vm653 = vcmp.ge.f32.partialorder %v465, 0.0
  %vm654 = vcmp.ge.f32.partialorder %v468, 0.0
  %vm655 = vcmp.ge.f32.partialorder %v473, 0.0
  %vm656 = vcmp.ge.f32.partialorder %v476, 0.0
  %vm657 = vcmp.ge.f32.partialorder %v481, 0.0
  %vm658 = vcmp.ge.f32.partialorder %v484, 0.0
  %vm659 = vcmp.ge.f32.partialorder %v489, 0.0
  %vm660 = vcmp.ge.f32.partialorder %v492, 0.0
  %vm661 = vcmp.ge.f32.partialorder %v497, 0.0
  %vm662 = vcmp.ge.f32.partialorder %v500, 0.0
  %vm663 = vcmp.ge.f32.partialorder %v505, 0.0
  %vm664 = vcmp.ge.f32.partialorder %v508, 0.0
  %vm665 = vcmp.ge.f32.partialorder %v513, 0.0
  %vm666 = vcmp.ge.f32.partialorder %v516, 0.0
  %vm667 = vcmp.ge.f32.partialorder %v521, 0.0
  %vm668 = vcmp.ge.f32.partialorder %v524, 0.0
  %vm669 = vcmp.ge.f32.partialorder %v529, 0.0
  %vm670 = vcmp.ge.f32.partialorder %v532, 0.0
  %vm671 = vcmp.ge.f32.partialorder %v537, 0.0
  %vm672 = vcmp.ge.f32.partialorder %v540, 0.0
  %vm673 = vcmp.ge.f32.partialorder %v545, 0.0
  %vm674 = vcmp.ge.f32.partialorder %v548, 0.0
  %vm675 = vcmp.ge.f32.partialorder %v553, 0.0
  %vm676 = vcmp.ge.f32.partialorder %v556, 0.0
  %vm677 = vcmp.ge.f32.partialorder %v561, 0.0
  %vm678 = vcmp.ge.f32.partialorder %v564, 0.0
  %vm679 = vcmp.ge.f32.partialorder %v569, 0.0
  %vm680 = vcmp.ge.f32.partialorder %v572, 0.0
  %vm681 = vcmp.ge.f32.partialorder %v577, 0.0
  %vm682 = vcmp.ge.f32.partialorder %v580, 0.0
  %vm683 = vcmp.ge.f32.partialorder %v585, 0.0
  %vm684 = vcmp.ge.f32.partialorder %v588, 0.0
  %vm685 = vcmp.ge.f32.partialorder %v593, 0.0
  %vm686 = vcmp.ge.f32.partialorder %v596, 0.0
  %vm687 = vcmp.ge.f32.partialorder %v601, 0.0
  %vm688 = vcmp.ge.f32.partialorder %v604, 0.0
  %vm689 = vcmp.ge.f32.partialorder %v609, 0.0
  %vm690 = vcmp.ge.f32.partialorder %v612, 0.0
  %vm691 = vcmp.ge.f32.partialorder %v617, 0.0
  %vm692 = vcmp.ge.f32.partialorder %v620, 0.0
  %vm693 = vcmp.ge.f32.partialorder %v625, 0.0
  %vm694 = vcmp.ge.f32.partialorder %v628, 0.0
  %v695 = vmul.f32 %v377, 0.2
  %v696 = vmul.f32 %v380, 0.2
  %v697 = vmul.f32 %v385, 0.2
  %v698 = vmul.f32 %v388, 0.2
  %v699 = vmul.f32 %v393, 0.2
  %v700 = vmul.f32 %v396, 0.2
  %v701 = vmul.f32 %v401, 0.2
  %v702 = vmul.f32 %v404, 0.2
  %v703 = vmul.f32 %v409, 0.2
  %v704 = vmul.f32 %v412, 0.2
  %v705 = vmul.f32 %v417, 0.2
  %v706 = vmul.f32 %v420, 0.2
  %v707 = vmul.f32 %v425, 0.2
  %v708 = vmul.f32 %v428, 0.2
  %v709 = vmul.f32 %v433, 0.2
  %v710 = vmul.f32 %v436, 0.2
  %v711 = vmul.f32 %v441, 0.2
  %v712 = vmul.f32 %v444, 0.2
  %v713 = vmul.f32 %v449, 0.2
  %v714 = vmul.f32 %v452, 0.2
  %v715 = vmul.f32 %v457, 0.2
  %v716 = vmul.f32 %v460, 0.2
  %v717 = vmul.f32 %v465, 0.2
  %v718 = vmul.f32 %v468, 0.2
  %v719 = vmul.f32 %v473, 0.2
  %v720 = vmul.f32 %v476, 0.2
  %v721 = vmul.f32 %v481, 0.2
  %v722 = vmul.f32 %v484, 0.2
  %v723 = vmul.f32 %v489, 0.2
  %v724 = vmul.f32 %v492, 0.2
  %v725 = vmul.f32 %v497, 0.2
  %v726 = vmul.f32 %v500, 0.2
  %v727 = vmul.f32 %v505, 0.2
  %v728 = vmul.f32 %v508, 0.2
  %v729 = vmul.f32 %v513, 0.2
  %v730 = vmul.f32 %v516, 0.2
  %v731 = vmul.f32 %v521, 0.2
  %v732 = vmul.f32 %v524, 0.2
  %v733 = vmul.f32 %v529, 0.2
  %v734 = vmul.f32 %v532, 0.2
  %v735 = vmul.f32 %v537, 0.2
  %v736 = vmul.f32 %v540, 0.2
  %v737 = vmul.f32 %v545, 0.2
  %v738 = vmul.f32 %v548, 0.2
  %v739 = vmul.f32 %v553, 0.2
  %v740 = vmul.f32 %v556, 0.2
  %v741 = vmul.f32 %v561, 0.2
  %v742 = vmul.f32 %v564, 0.2
  %v743 = vmul.f32 %v569, 0.2
  %v744 = vmul.f32 %v572, 0.2
  %v745 = vmul.f32 %v577, 0.2
  %v746 = vmul.f32 %v580, 0.2
  %v747 = vmul.f32 %v585, 0.2
  %v748 = vmul.f32 %v588, 0.2
  %v749 = vmul.f32 %v593, 0.2
  %v750 = vmul.f32 %v596, 0.2
  %v751 = vmul.f32 %v601, 0.2
  %v752 = vmul.f32 %v604, 0.2
  %v753 = vmul.f32 %v609, 0.2
  %v754 = vmul.f32 %v612, 0.2
  %v755 = vmul.f32 %v617, 0.2
  %v756 = vmul.f32 %v620, 0.2
  %v757 = vmul.f32 %v625, 0.2
  %v758 = vmul.f32 %v628, 0.2
  %v759 = vsel %vm631, %v377, %v695
  %v760 = vsel %vm632, %v380, %v696
  %v761 = vsel %vm633, %v385, %v697
  %v762 = vsel %vm634, %v388, %v698
  %v763 = vsel %vm635, %v393, %v699
  %v764 = vsel %vm636, %v396, %v700
  %v765 = vsel %vm637, %v401, %v701
  %v766 = vsel %vm638, %v404, %v702
  %v767 = vsel %vm639, %v409, %v703
  %v768 = vsel %vm640, %v412, %v704
  %v769 = vsel %vm641, %v417, %v705
  %v770 = vsel %vm642, %v420, %v706
  %v771 = vsel %vm643, %v425, %v707
  %v772 = vsel %vm644, %v428, %v708
  %v773 = vsel %vm645, %v433, %v709
  %v774 = vsel %vm646, %v436, %v710
  %v775 = vsel %vm647, %v441, %v711
  %v776 = vsel %vm648, %v444, %v712
  %v777 = vsel %vm649, %v449, %v713
  %v778 = vsel %vm650, %v452, %v714
  %v779 = vsel %vm651, %v457, %v715
  %v780 = vsel %vm652, %v460, %v716
  %v781 = vsel %vm653, %v465, %v717
  %v782 = vsel %vm654, %v468, %v718
  %v783 = vsel %vm655, %v473, %v719
  %v784 = vsel %vm656, %v476, %v720
  %v785 = vsel %vm657, %v481, %v721
  %v786 = vsel %vm658, %v484, %v722
  %v787 = vsel %vm659, %v489, %v723
  %v788 = vsel %vm660, %v492, %v724
  %v789 = vsel %vm661, %v497, %v725
  %v790 = vsel %vm662, %v500, %v726
  %v791 = vsel %vm663, %v505, %v727
  %v792 = vsel %vm664, %v508, %v728
  %v793 = vsel %vm665, %v513, %v729
  %v794 = vsel %vm666, %v516, %v730
  %v795 = vsel %vm667, %v521, %v731
  %v796 = vsel %vm668, %v524, %v732
  %v797 = vsel %vm669, %v529, %v733
  %v798 = vsel %vm670, %v532, %v734
  %v799 = vsel %vm671, %v537, %v735
  %v800 = vsel %vm672, %v540, %v736
  %v801 = vsel %vm673, %v545, %v737
  %v802 = vsel %vm674, %v548, %v738
  %v803 = vsel %vm675, %v553, %v739
  %v804 = vsel %vm676, %v556, %v740
  %v805 = vsel %vm677, %v561, %v741
  %v806 = vsel %vm678, %v564, %v742
  %v807 = vsel %vm679, %v569, %v743
  %v808 = vsel %vm680, %v572, %v744
  %v809 = vsel %vm681, %v577, %v745
  %v810 = vsel %vm682, %v580, %v746
  %v811 = vsel %vm683, %v585, %v747
  %v812 = vsel %vm684, %v588, %v748
  %v813 = vsel %vm685, %v593, %v749
  %v814 = vsel %vm686, %v596, %v750
  %v815 = vsel %vm687, %v601, %v751
  %v816 = vsel %vm688, %v604, %v752
  %v817 = vsel %vm689, %v609, %v753
  %v818 = vsel %vm690, %v612, %v754
  %v819 = vsel %vm691, %v617, %v755
  %v820 = vsel %vm692, %v620, %v756
  %v821 = vsel %vm693, %v625, %v757
  %v822 = vsel %vm694, %v628, %v758
  %823 = vst [vmem:[%s3] sm:$0xff] %v759
  %824 = vst [vmem:[%s3 + $0x8] sm:$0xff] %v760
  %825 = vst [vmem:[%s3 + $0x10] sm:$0xff] %v761
  %826 = vst [vmem:[%s3 + $0x18] sm:$0xff] %v762
  %827 = vst [vmem:[%s3 + $0x20] sm:$0xff] %v763
  %828 = vst [vmem:[%s3 + $0x28] sm:$0xff] %v764
  %829 = vst [vmem:[%s3 + $0x30] sm:$0xff] %v765
  %830 = vst [vmem:[%s3 + $0x38] sm:$0xff] %v766
  %831 = vst [vmem:[%s3 + $0x40] sm:$0xff] %v767
  %832 = vst [vmem:[%s3 + $0x48] sm:$0xff] %v768
  %833 = vst [vmem:[%s3 + $0x50] sm:$0xff] %v769
  %834 = vst [vmem:[%s3 + $0x58] sm:$0xff] %v770
  %835 = vst [vmem:[%s3 + $0x60] sm:$0xff] %v771
  %836 = vst [vmem:[%s3 + $0x68] sm:$0xff] %v772
  %837 = vst [vmem:[%s3 + $0x70] sm:$0xff] %v773
  %838 = vst [vmem:[%s3 + $0x78] sm:$0xff] %v774
  %839 = vst [vmem:[%s3 + $0x80] sm:$0xff] %v775
  %840 = vst [vmem:[%s3 + $0x88] sm:$0xff] %v776
  %841 = vst [vmem:[%s3 + $0x90] sm:$0xff] %v777
  %842 = vst [vmem:[%s3 + $0x98] sm:$0xff] %v778
  %843 = vst [vmem:[%s3 + $0xa0] sm:$0xff] %v779
  %844 = vst [vmem:[%s3 + $0xa8] sm:$0xff] %v780
  %845 = vst [vmem:[%s3 + $0xb0] sm:$0xff] %v781
  %846 = vst [vmem:[%s3 + $0xb8] sm:$0xff] %v782
  %847 = vst [vmem:[%s3 + $0xc0] sm:$0xff] %v783
  %848 = vst [vmem:[%s3 + $0xc8] sm:$0xff] %v784
  %849 = vst [vmem:[%s3 + $0xd0] sm:$0xff] %v785
  %850 = vst [vmem:[%s3 + $0xd8] sm:$0xff] %v786
  %851 = vst [vmem:[%s3 + $0xe0] sm:$0xff] %v787
  %852 = vst [vmem:[%s3 + $0xe8] sm:$0xff] %v788
  %853 = vst [vmem:[%s3 + $0xf0] sm:$0xff] %v789
  %854 = vst [vmem:[%s3 + $0xf8] sm:$0xff] %v790
  %855 = vst [vmem:[%s3 + $0x100] sm:$0xff] %v791
  %856 = vst [vmem:[%s3 + $0x108] sm:$0xff] %v792
  %857 = vst [vmem:[%s3 + $0x110] sm:$0xff] %v793
  %858 = vst [vmem:[%s3 + $0x118] sm:$0xff] %v794
  %859 = vst [vmem:[%s3 + $0x120] sm:$0xff] %v795
  %860 = vst [vmem:[%s3 + $0x128] sm:$0xff] %v796
  %861 = vst [vmem:[%s3 + $0x130] sm:$0xff] %v797
  %862 = vst [vmem:[%s3 + $0x138] sm:$0xff] %v798
  %863 = vst [vmem:[%s3 + $0x140] sm:$0xff] %v799
  %864 = vst [vmem:[%s3 + $0x148] sm:$0xff] %v800
  %865 = vst [vmem:[%s3 + $0x150] sm:$0xff] %v801
  %866 = vst [vmem:[%s3 + $0x158] sm:$0xff] %v802
  %867 = vst [vmem:[%s3 + $0x160] sm:$0xff] %v803
  %868 = vst [vmem:[%s3 + $0x168] sm:$0xff] %v804
  %869 = vst [vmem:[%s3 + $0x170] sm:$0xff] %v805
  %870 = vst [vmem:[%s3 + $0x178] sm:$0xff] %v806
  %871 = vst [vmem:[%s3 + $0x180] sm:$0xff] %v807
  %872 = vst [vmem:[%s3 + $0x188] sm:$0xff] %v808
  %873 = vst [vmem:[%s3 + $0x190] sm:$0xff] %v809
  %874 = vst [vmem:[%s3 + $0x198] sm:$0xff] %v810
  %875 = vst [vmem:[%s3 + $0x1a0] sm:$0xff] %v811
  %876 = vst [vmem:[%s3 + $0x1a8] sm:$0xff] %v812
  %877 = vst [vmem:[%s3 + $0x1b0] sm:$0xff] %v813
  %878 = vst [vmem:[%s3 + $0x1b8] sm:$0xff] %v814
  %879 = vst [vmem:[%s3 + $0x1c0] sm:$0xff] %v815
  %880 = vst [vmem:[%s3 + $0x1c8] sm:$0xff] %v816
  %881 = vst [vmem:[%s3 + $0x1d0] sm:$0xff] %v817
  %882 = vst [vmem:[%s3 + $0x1d8] sm:$0xff] %v818
  %883 = vst [vmem:[%s3 + $0x1e0] sm:$0xff] %v819
  %884 = vst [vmem:[%s3 + $0x1e8] sm:$0xff] %v820
  %885 = vst [vmem:[%s3 + $0x1f0] sm:$0xff] %v821
  %886 = vst [vmem:[%s3 + $0x1f8] sm:$0xff] %v822
  // Predicated region
  $region14: #{discriminator_forward.8} parent=0 // pred_check
    _
  $region15: #{discriminator_forward.8} parent=0 // pred_check_branch
    %888 = sbr.rel (0) target = $region17
  $region16: #{discriminator_forward.8} parent=0 // pred_region
    _
  $region17: #{discriminator_forward.8} parent=0 // pred_fallthru
    _
  // Predicated region
  $region18: #{discriminator_forward.8} parent=0 // pred_check
    _
  $region19: #{discriminator_forward.8} parent=0 // pred_check_branch
    %890 = sbr.rel (0) target = $region21
  $region20: #{discriminator_forward.8} parent=0 // pred_region
    _
  $region21: #{discriminator_forward.8} parent=0 // pred_fallthru
    _

// kernel: discriminator_forward.9
$region0: #{discriminator_forward.9}
  #allocation0 [shape = 'u32[]', space=smem, size = 0x4, offset = 0x4, fixed_abs, tag = 'smem constant byte address 0x4 - core index']
  #allocation1 [shape = 'u32[144,128]{1,0:T(1,128)}', space=vmem, size = 0x12000, scoped, tag = 'internal scratch']
  #allocation2 [shape = 'f32[1,128]{1,0:T(1,128)}', space=vmem, size = 0x200, scoped, tag = 'scratch operand']
  #allocation3 [shape = 'f32[1,128]{1,0:T(1,128)}', space=vmem, size = 0x200, scoped, tag = 'scratch operand']
  %s0 = inlined_call_operand.vmem [shape: bf16[128,512], index: 0, kind: input, shape index: {}]
  %s1 = inlined_call_operand.vmem [shape: bf16[512,128], index: 1, kind: input, shape index: {}]
  %s2 = inlined_call_operand.vmem [shape: f32[1,128], index: 2, kind: input, shape index: {}]
  %s3 = inlined_call_operand.vmem [shape: f32[1,128], index: 3, kind: input, shape index: {}]
  %s4 = inlined_call_operand.vmem [shape: f32[128,128], index: 4, kind: output, shape index: {0}]
  %s5 = inlined_call_operand.vmem [shape: f32[8,128], index: 5, kind: output, shape index: {1}]
  %6 = xla_tuple %s4, %s5
  %s7 = sld [smem:[#allocation0]]
  $region42: #{discriminator_forward.9} parent=0
    _
  %s9 = ssub.s32 1, %s7
  %s10 = scalar_select 0, %s9, %s7
  // Predicated region
  $region2: #{discriminator_forward.9} parent=0 // pred_check
    _
  $region3: #{discriminator_forward.9} parent=0 // pred_check_branch
    %12 = sbr.rel (0) target = $region5
  $region4: #{discriminator_forward.9} parent=0 // pred_region
    _
  $region5: #{discriminator_forward.9} parent=0 // pred_fallthru
    _
  // Predicated region
  $region6: #{discriminator_forward.9} parent=0 // pred_check
    _
  $region7: #{discriminator_forward.9} parent=0 // pred_check_branch
    %14 = sbr.rel (0) target = $region9
  $region8: #{discriminator_forward.9} parent=0 // pred_region
    _
  $region9: #{discriminator_forward.9} parent=0 // pred_fallthru
    _
  // Predicated region
  $region10: #{discriminator_forward.9} parent=0 // pred_check
    _
  $region11: #{discriminator_forward.9} parent=0 // pred_check_branch
    %16 = sbr.rel (0) target = $region13
  $region12: #{discriminator_forward.9} parent=0 // pred_region
    _
  $region13: #{discriminator_forward.9} parent=0 // pred_fallthru
    _
  // Predicated region
  $region14: #{discriminator_forward.9} parent=0 // pred_check
    _
  $region15: #{discriminator_forward.9} parent=0 // pred_check_branch
    %18 = sbr.rel (0) target = $region17
  $region16: #{discriminator_forward.9} parent=0 // pred_region
    _
  $region17: #{discriminator_forward.9} parent=0 // pred_fallthru
    _
  %p20 = scmp.eq.s32.totalorder 0, 0
  // Predicated region
  $region18: #{discriminator_forward.9} parent=0 // pred_check
    %p21 = pneg %p20
  $region19: #{discriminator_forward.9} parent=0 // pred_check_branch
    %23 = sbr.rel (%p21) target = $region21
  $region20: #{discriminator_forward.9} parent=0 // pred_region
    %24 = vst [vmem:[#allocation2] sm:$0x1] 0.0
    %25 = vst [vmem:[#allocation3] sm:$0x1] 0.0
    %26 = vst [vmem:[%s5] sm:$0xff] 0.0
  $region21: #{discriminator_forward.9} parent=0 // pred_fallthru
    _
  %v27 = vld [vmem:[%s0] sm:$0xff]
  %v28 = vld [vmem:[%s0 + $0x8] sm:$0xff]
  %v29 = vld [vmem:[%s0 + $0x10] sm:$0xff]
  %v30 = vld [vmem:[%s0 + $0x18] sm:$0xff]
  %v31 = vld [vmem:[%s0 + $0x20] sm:$0xff]
  %v32 = vld [vmem:[%s0 + $0x28] sm:$0xff]
  %v33 = vld [vmem:[%s0 + $0x30] sm:$0xff]
  %v34 = vld [vmem:[%s0 + $0x38] sm:$0xff]
  %v35 = vld [vmem:[%s0 + $0x40] sm:$0xff]
  %v36 = vld [vmem:[%s0 + $0x48] sm:$0xff]
  %v37 = vld [vmem:[%s0 + $0x50] sm:$0xff]
  %v38 = vld [vmem:[%s0 + $0x58] sm:$0xff]
  %v39 = vld [vmem:[%s0 + $0x60] sm:$0xff]
  %v40 = vld [vmem:[%s0 + $0x68] sm:$0xff]
  %v41 = vld [vmem:[%s0 + $0x70] sm:$0xff]
  %v42 = vld [vmem:[%s0 + $0x78] sm:$0xff]
  %v43 = vld [vmem:[%s0 + $0x80] sm:$0xff]
  %v44 = vld [vmem:[%s0 + $0x88] sm:$0xff]
  %v45 = vld [vmem:[%s0 + $0x90] sm:$0xff]
  %v46 = vld [vmem:[%s0 + $0x98] sm:$0xff]
  %v47 = vld [vmem:[%s0 + $0xa0] sm:$0xff]
  %v48 = vld [vmem:[%s0 + $0xa8] sm:$0xff]
  %v49 = vld [vmem:[%s0 + $0xb0] sm:$0xff]
  %v50 = vld [vmem:[%s0 + $0xb8] sm:$0xff]
  %v51 = vld [vmem:[%s0 + $0xc0] sm:$0xff]
  %v52 = vld [vmem:[%s0 + $0xc8] sm:$0xff]
  %v53 = vld [vmem:[%s0 + $0xd0] sm:$0xff]
  %v54 = vld [vmem:[%s0 + $0xd8] sm:$0xff]
  %v55 = vld [vmem:[%s0 + $0xe0] sm:$0xff]
  %v56 = vld [vmem:[%s0 + $0xe8] sm:$0xff]
  %v57 = vld [vmem:[%s0 + $0xf0] sm:$0xff]
  %v58 = vld [vmem:[%s0 + $0xf8] sm:$0xff]
  %v59 = vld [vmem:[%s1] sm:$0xf]
  %v60 = vld [vmem:[%s1 + $0x4] sm:$0xf]
  %v61 = vld [vmem:[%s1 + $0x8] sm:$0xf]
  %v62 = vld [vmem:[%s1 + $0xc] sm:$0xf]
  %v63 = vld [vmem:[%s1 + $0x10] sm:$0xf]
  %v64 = vld [vmem:[%s1 + $0x14] sm:$0xf]
  %v65 = vld [vmem:[%s1 + $0x18] sm:$0xf]
  %v66 = vld [vmem:[%s1 + $0x1c] sm:$0xf]
  %v67 = vld [vmem:[%s1 + $0x20] sm:$0xf]
  %v68 = vld [vmem:[%s1 + $0x24] sm:$0xf]
  %v69 = vld [vmem:[%s1 + $0x28] sm:$0xf]
  %v70 = vld [vmem:[%s1 + $0x2c] sm:$0xf]
  %v71 = vld [vmem:[%s1 + $0x30] sm:$0xf]
  %v72 = vld [vmem:[%s1 + $0x34] sm:$0xf]
  %v73 = vld [vmem:[%s1 + $0x38] sm:$0xf]
  %v74 = vld [vmem:[%s1 + $0x3c] sm:$0xf]
  %v75 = vld [vmem:[%s1 + $0x40] sm:$0xf]
  %v76 = vld [vmem:[%s1 + $0x44] sm:$0xf]
  %v77 = vld [vmem:[%s1 + $0x48] sm:$0xf]
  %v78 = vld [vmem:[%s1 + $0x4c] sm:$0xf]
  %v79 = vld [vmem:[%s1 + $0x50] sm:$0xf]
  %v80 = vld [vmem:[%s1 + $0x54] sm:$0xf]
  %v81 = vld [vmem:[%s1 + $0x58] sm:$0xf]
  %v82 = vld [vmem:[%s1 + $0x5c] sm:$0xf]
  %v83 = vld [vmem:[%s1 + $0x60] sm:$0xf]
  %v84 = vld [vmem:[%s1 + $0x64] sm:$0xf]
  %v85 = vld [vmem:[%s1 + $0x68] sm:$0xf]
  %v86 = vld [vmem:[%s1 + $0x6c] sm:$0xf]
  %v87 = vld [vmem:[%s1 + $0x70] sm:$0xf]
  %v88 = vld [vmem:[%s1 + $0x74] sm:$0xf]
  %v89 = vld [vmem:[%s1 + $0x78] sm:$0xf]
  %v90 = vld [vmem:[%s1 + $0x7c] sm:$0xf]
  %v91 = vld [vmem:[%s1 + $0x80] sm:$0xf]
  %v92 = vld [vmem:[%s1 + $0x84] sm:$0xf]
  %v93 = vld [vmem:[%s1 + $0x88] sm:$0xf]
  %v94 = vld [vmem:[%s1 + $0x8c] sm:$0xf]
  %v95 = vld [vmem:[%s1 + $0x90] sm:$0xf]
  %v96 = vld [vmem:[%s1 + $0x94] sm:$0xf]
  %v97 = vld [vmem:[%s1 + $0x98] sm:$0xf]
  %v98 = vld [vmem:[%s1 + $0x9c] sm:$0xf]
  %v99 = vld [vmem:[%s1 + $0xa0] sm:$0xf]
  %v100 = vld [vmem:[%s1 + $0xa4] sm:$0xf]
  %v101 = vld [vmem:[%s1 + $0xa8] sm:$0xf]
  %v102 = vld [vmem:[%s1 + $0xac] sm:$0xf]
  %v103 = vld [vmem:[%s1 + $0xb0] sm:$0xf]
  %v104 = vld [vmem:[%s1 + $0xb4] sm:$0xf]
  %v105 = vld [vmem:[%s1 + $0xb8] sm:$0xf]
  %v106 = vld [vmem:[%s1 + $0xbc] sm:$0xf]
  %v107 = vld [vmem:[%s1 + $0xc0] sm:$0xf]
  %v108 = vld [vmem:[%s1 + $0xc4] sm:$0xf]
  %v109 = vld [vmem:[%s1 + $0xc8] sm:$0xf]
  %v110 = vld [vmem:[%s1 + $0xcc] sm:$0xf]
  %v111 = vld [vmem:[%s1 + $0xd0] sm:$0xf]
  %v112 = vld [vmem:[%s1 + $0xd4] sm:$0xf]
  %v113 = vld [vmem:[%s1 + $0xd8] sm:$0xf]
  %v114 = vld [vmem:[%s1 + $0xdc] sm:$0xf]
  %v115 = vld [vmem:[%s1 + $0xe0] sm:$0xf]
  %v116 = vld [vmem:[%s1 + $0xe4] sm:$0xf]
  %v117 = vld [vmem:[%s1 + $0xe8] sm:$0xf]
  %v118 = vld [vmem:[%s1 + $0xec] sm:$0xf]
  %v119 = vld [vmem:[%s1 + $0xf0] sm:$0xf]
  %v120 = vld [vmem:[%s1 + $0xf4] sm:$0xf]
  %v121 = vld [vmem:[%s1 + $0xf8] sm:$0xf]
  %v122 = vld [vmem:[%s1 + $0xfc] sm:$0xf]
  %v155 = vunpack.c.l.b16 %v27
  %v156 = vunpack.c.h.b16 %v27
  %v157 = vunpack.c.l.b16 %v28
  %v158 = vunpack.c.h.b16 %v28
  %v159 = vunpack.c.l.b16 %v29
  %v160 = vunpack.c.h.b16 %v29
  %v161 = vunpack.c.l.b16 %v30
  %v162 = vunpack.c.h.b16 %v30
  %v163 = vunpack.c.l.b16 %v31
  %v164 = vunpack.c.h.b16 %v31
  %v165 = vunpack.c.l.b16 %v32
  %v166 = vunpack.c.h.b16 %v32
  %v167 = vunpack.c.l.b16 %v33
  %v168 = vunpack.c.h.b16 %v33
  %v169 = vunpack.c.l.b16 %v34
  %v170 = vunpack.c.h.b16 %v34
  %v171 = vunpack.c.l.b16 %v35
  %v172 = vunpack.c.h.b16 %v35
  %v173 = vunpack.c.l.b16 %v36
  %v174 = vunpack.c.h.b16 %v36
  %v175 = vunpack.c.l.b16 %v37
  %v176 = vunpack.c.h.b16 %v37
  %v177 = vunpack.c.l.b16 %v38
  %v178 = vunpack.c.h.b16 %v38
  %v179 = vunpack.c.l.b16 %v39
  %v180 = vunpack.c.h.b16 %v39
  %v181 = vunpack.c.l.b16 %v40
  %v182 = vunpack.c.h.b16 %v40
  %v183 = vunpack.c.l.b16 %v41
  %v184 = vunpack.c.h.b16 %v41
  %v185 = vunpack.c.l.b16 %v42
  %v186 = vunpack.c.h.b16 %v42
  %v187 = vunpack.c.l.b16 %v43
  %v188 = vunpack.c.h.b16 %v43
  %v189 = vunpack.c.l.b16 %v44
  %v190 = vunpack.c.h.b16 %v44
  %v191 = vunpack.c.l.b16 %v45
  %v192 = vunpack.c.h.b16 %v45
  %v193 = vunpack.c.l.b16 %v46
  %v194 = vunpack.c.h.b16 %v46
  %v195 = vunpack.c.l.b16 %v47
  %v196 = vunpack.c.h.b16 %v47
  %v197 = vunpack.c.l.b16 %v48
  %v198 = vunpack.c.h.b16 %v48
  %v199 = vunpack.c.l.b16 %v49
  %v200 = vunpack.c.h.b16 %v49
  %v201 = vunpack.c.l.b16 %v50
  %v202 = vunpack.c.h.b16 %v50
  %v203 = vunpack.c.l.b16 %v51
  %v204 = vunpack.c.h.b16 %v51
  %v205 = vunpack.c.l.b16 %v52
  %v206 = vunpack.c.h.b16 %v52
  %v207 = vunpack.c.l.b16 %v53
  %v208 = vunpack.c.h.b16 %v53
  %v209 = vunpack.c.l.b16 %v54
  %v210 = vunpack.c.h.b16 %v54
  %v211 = vunpack.c.l.b16 %v55
  %v212 = vunpack.c.h.b16 %v55
  %v213 = vunpack.c.l.b16 %v56
  %v214 = vunpack.c.h.b16 %v56
  %v215 = vunpack.c.l.b16 %v57
  %v216 = vunpack.c.h.b16 %v57
  %v217 = vunpack.c.l.b16 %v58
  %v218 = vunpack.c.h.b16 %v58
  %v219 = vpack.c.b16 %v159, %v155
  %v220 = vpack.c.b16 %v160, %v156
  %v221 = vpack.c.b16 %v161, %v157
  %v222 = vpack.c.b16 %v162, %v158
  %v223 = vpack.c.b16 %v167, %v163
  %v224 = vpack.c.b16 %v168, %v164
  %v225 = vpack.c.b16 %v169, %v165
  %v226 = vpack.c.b16 %v170, %v166
  %v227 = vpack.c.b16 %v175, %v171
  %v228 = vpack.c.b16 %v176, %v172
  %v229 = vpack.c.b16 %v177, %v173
  %v230 = vpack.c.b16 %v178, %v174
  %v231 = vpack.c.b16 %v183, %v179
  %v232 = vpack.c.b16 %v184, %v180
  %v233 = vpack.c.b16 %v185, %v181
  %v234 = vpack.c.b16 %v186, %v182
  %v235 = vpack.c.b16 %v191, %v187
  %v236 = vpack.c.b16 %v192, %v188
  %v237 = vpack.c.b16 %v193, %v189
  %v238 = vpack.c.b16 %v194, %v190
  %v239 = vpack.c.b16 %v199, %v195
  %v240 = vpack.c.b16 %v200, %v196
  %v241 = vpack.c.b16 %v201, %v197
  %v242 = vpack.c.b16 %v202, %v198
  %v243 = vpack.c.b16 %v207, %v203
  %v244 = vpack.c.b16 %v208, %v204
  %v245 = vpack.c.b16 %v209, %v205
  %v246 = vpack.c.b16 %v210, %v206
  %v247 = vpack.c.b16 %v215, %v211
  %v248 = vpack.c.b16 %v216, %v212
  %v249 = vpack.c.b16 %v217, %v213
  %v250 = vpack.c.b16 %v218, %v214
  %v347 = vunpack.c.l.b16 %v59
  %v348 = vunpack.c.l.b16 %v60
  %v349 = vunpack.c.l.b16 %v61
  %v350 = vunpack.c.l.b16 %v62
  %v351 = vunpack.c.l.b16 %v63
  %v352 = vunpack.c.l.b16 %v64
  %v353 = vunpack.c.l.b16 %v65
  %v354 = vunpack.c.l.b16 %v66
  %v355 = vunpack.c.l.b16 %v67
  %v356 = vunpack.c.l.b16 %v68
  %v357 = vunpack.c.l.b16 %v69
  %v358 = vunpack.c.l.b16 %v70
  %v359 = vunpack.c.l.b16 %v71
  %v360 = vunpack.c.l.b16 %v72
  %v361 = vunpack.c.l.b16 %v73
  %v362 = vunpack.c.l.b16 %v74
  %v363 = vunpack.c.l.b16 %v75
  %v364 = vunpack.c.l.b16 %v76
  %v365 = vunpack.c.l.b16 %v77
  %v366 = vunpack.c.l.b16 %v78
  %v367 = vunpack.c.l.b16 %v79
  %v368 = vunpack.c.l.b16 %v80
  %v369 = vunpack.c.l.b16 %v81
  %v370 = vunpack.c.l.b16 %v82
  %v371 = vunpack.c.l.b16 %v83
  %v372 = vunpack.c.l.b16 %v84
  %v373 = vunpack.c.l.b16 %v85
  %v374 = vunpack.c.l.b16 %v86
  %v375 = vunpack.c.l.b16 %v87
  %v376 = vunpack.c.l.b16 %v88
  %v377 = vunpack.c.l.b16 %v89
  %v378 = vunpack.c.l.b16 %v90
  %v379 = vunpack.c.l.b16 %v91
  %v380 = vunpack.c.l.b16 %v92
  %v381 = vunpack.c.l.b16 %v93
  %v382 = vunpack.c.l.b16 %v94
  %v383 = vunpack.c.l.b16 %v95
  %v384 = vunpack.c.l.b16 %v96
  %v385 = vunpack.c.l.b16 %v97
  %v386 = vunpack.c.l.b16 %v98
  %v387 = vunpack.c.l.b16 %v99
  %v388 = vunpack.c.l.b16 %v100
  %v389 = vunpack.c.l.b16 %v101
  %v390 = vunpack.c.l.b16 %v102
  %v391 = vunpack.c.l.b16 %v103
  %v392 = vunpack.c.l.b16 %v104
  %v393 = vunpack.c.l.b16 %v105
  %v394 = vunpack.c.l.b16 %v106
  %v395 = vunpack.c.l.b16 %v107
  %v396 = vunpack.c.l.b16 %v108
  %v397 = vunpack.c.l.b16 %v109
  %v398 = vunpack.c.l.b16 %v110
  %v399 = vunpack.c.l.b16 %v111
  %v400 = vunpack.c.l.b16 %v112
  %v401 = vunpack.c.l.b16 %v113
  %v402 = vunpack.c.l.b16 %v114
  %v403 = vunpack.c.l.b16 %v115
  %v404 = vunpack.c.l.b16 %v116
  %v405 = vunpack.c.l.b16 %v117
  %v406 = vunpack.c.l.b16 %v118
  %v407 = vunpack.c.l.b16 %v119
  %v408 = vunpack.c.l.b16 %v120
  %v409 = vunpack.c.l.b16 %v121
  %v410 = vunpack.c.l.b16 %v122
  %v411 = vpack.c.b16 %v348, %v347
  %v412 = vpack.c.b16 %v350, %v349
  %v413 = vpack.c.b16 %v352, %v351
  %v414 = vpack.c.b16 %v354, %v353
  %v415 = vpack.c.b16 %v356, %v355
  %v416 = vpack.c.b16 %v358, %v357
  %v417 = vpack.c.b16 %v360, %v359
  %v418 = vpack.c.b16 %v362, %v361
  %v419 = vpack.c.b16 %v364, %v363
  %v420 = vpack.c.b16 %v366, %v365
  %v421 = vpack.c.b16 %v368, %v367
  %v422 = vpack.c.b16 %v370, %v369
  %v423 = vpack.c.b16 %v372, %v371
  %v424 = vpack.c.b16 %v374, %v373
  %v425 = vpack.c.b16 %v376, %v375
  %v426 = vpack.c.b16 %v378, %v377
  %v427 = vpack.c.b16 %v380, %v379
  %v428 = vpack.c.b16 %v382, %v381
  %v429 = vpack.c.b16 %v384, %v383
  %v430 = vpack.c.b16 %v386, %v385
  %v431 = vpack.c.b16 %v388, %v387
  %v432 = vpack.c.b16 %v390, %v389
  %v433 = vpack.c.b16 %v392, %v391
  %v434 = vpack.c.b16 %v394, %v393
  %v435 = vpack.c.b16 %v396, %v395
  %v436 = vpack.c.b16 %v398, %v397
  %v437 = vpack.c.b16 %v400, %v399
  %v438 = vpack.c.b16 %v402, %v401
  %v439 = vpack.c.b16 %v404, %v403
  %v440 = vpack.c.b16 %v406, %v405
  %v441 = vpack.c.b16 %v408, %v407
  %v442 = vpack.c.b16 %v410, %v409
  %475 = vmatprep.subr.bf16.mxu0 0
  %476 = vmatpush1.bf16.msra.mxu0 %v418
  %477 = vmatprep.subr.bf16.mxu0 0
  %478 = vmatpush1.bf16.msra.mxu0 %v417
  %479 = vmatprep.subr.bf16.mxu0 0
  %480 = vmatpush1.bf16.msra.mxu0 %v416
  %481 = vmatprep.subr.bf16.mxu0 0
  %482 = vmatpush1.bf16.msra.mxu0 %v415
  %483 = vmatprep.subr.bf16.mxu0 0
  %484 = vmatpush1.bf16.msra.mxu0 %v414
  %485 = vmatprep.subr.bf16.mxu0 0
  %486 = vmatpush1.bf16.msra.mxu0 %v413
  %487 = vmatprep.subr.bf16.mxu0 0
  %488 = vmatpush1.bf16.msra.mxu0 %v412
  %489 = vmatprep.subr.bf16.mxu0 0
  %490 = vmatpush1.bf16.msra.mxu0 %v411
  %491 = vmatprep.subr.bf16.mxu0 0
  %492 = vmatpush2.bf16.msra.mxu0 %v426
  %493 = vmatprep.subr.bf16.mxu0 0
  %494 = vmatpush2.bf16.msra.mxu0 %v425
  %495 = vmatprep.subr.bf16.mxu0 0
  %496 = vmatpush2.bf16.msra.mxu0 %v424
  %497 = vmatprep.subr.bf16.mxu0 0
  %498 = vmatpush2.bf16.msra.mxu0 %v423
  %499 = vmatprep.subr.bf16.mxu0 0
  %500 = vmatpush2.bf16.msra.mxu0 %v422
  %501 = vmatprep.subr.bf16.mxu0 0
  %502 = vmatpush2.bf16.msra.mxu0 %v421
  %503 = vmatprep.subr.bf16.mxu0 0
  %504 = vmatpush2.bf16.msra.mxu0 %v420
  %505 = vmatprep.subr.bf16.mxu0 0
  %506 = vmatpush2.bf16.msra.mxu0 %v419
  %507 = vmatprep.mubr.bf16.mxu0 %v220
  %508 = vmatmul.mubr.bf16.gmra.mxu0 %v219
  %v509 = vpop.f32.mrf.mxu0
  %v510 = vadd.f32 0.0, %v509
  %v511 = vpop.f32.mrf.mxu0
  %v512 = vpop.f32.mrf.mxu0
  %v513 = vadd.f32 0.0, %v512
  %v514 = vpop.f32.mrf.mxu0
  %515 = vmatprep.mubr.bf16.mxu0 %v224
  %516 = vmatmul.mubr.bf16.gmra.mxu0 %v223
  %v517 = vpop.f32.mrf.mxu0
  %v518 = vadd.f32 0.0, %v517
  %v519 = vpop.f32.mrf.mxu0
  %v520 = vpop.f32.mrf.mxu0
  %v521 = vadd.f32 0.0, %v520
  %v522 = vpop.f32.mrf.mxu0
  %523 = vmatprep.mubr.bf16.mxu0 %v228
  %524 = vmatmul.mubr.bf16.gmra.mxu0 %v227
  %v525 = vpop.f32.mrf.mxu0
  %v526 = vadd.f32 0.0, %v525
  %v527 = vpop.f32.mrf.mxu0
  %v528 = vpop.f32.mrf.mxu0
  %v529 = vadd.f32 0.0, %v528
  %v530 = vpop.f32.mrf.mxu0
  %531 = vmatprep.mubr.bf16.mxu0 %v232
  %532 = vmatmul.mubr.bf16.gmra.mxu0 %v231
  %v533 = vpop.f32.mrf.mxu0
  %v534 = vadd.f32 0.0, %v533
  %v535 = vpop.f32.mrf.mxu0
  %v536 = vpop.f32.mrf.mxu0
  %v537 = vadd.f32 0.0, %v536
  %v538 = vpop.f32.mrf.mxu0
  %539 = vmatprep.mubr.bf16.mxu0 %v236
  %540 = vmatmul.mubr.bf16.gmra.mxu0 %v235
  %v541 = vpop.f32.mrf.mxu0
  %v542 = vadd.f32 0.0, %v541
  %v543 = vpop.f32.mrf.mxu0
  %v544 = vpop.f32.mrf.mxu0
  %v545 = vadd.f32 0.0, %v544
  %v546 = vpop.f32.mrf.mxu0
  %547 = vmatprep.mubr.bf16.mxu0 %v240
  %548 = vmatmul.mubr.bf16.gmra.mxu0 %v239
  %v549 = vpop.f32.mrf.mxu0
  %v550 = vadd.f32 0.0, %v549
  %v551 = vpop.f32.mrf.mxu0
  %v552 = vpop.f32.mrf.mxu0
  %v553 = vadd.f32 0.0, %v552
  %v554 = vpop.f32.mrf.mxu0
  %555 = vmatprep.mubr.bf16.mxu0 %v244
  %556 = vmatmul.mubr.bf16.gmra.mxu0 %v243
  %v557 = vpop.f32.mrf.mxu0
  %v558 = vadd.f32 0.0, %v557
  %v559 = vpop.f32.mrf.mxu0
  %v560 = vpop.f32.mrf.mxu0
  %v561 = vadd.f32 0.0, %v560
  %v562 = vpop.f32.mrf.mxu0
  %563 = vmatprep.mubr.bf16.mxu0 %v248
  %564 = vmatmul.mubr.bf16.gmra.mxu0 %v247
  %v565 = vpop.f32.mrf.mxu0
  %v566 = vadd.f32 0.0, %v565
  %v567 = vpop.f32.mrf.mxu0
  %v568 = vpop.f32.mrf.mxu0
  %v569 = vadd.f32 0.0, %v568
  %v570 = vpop.f32.mrf.mxu0
  %571 = vdwg.mxu0
  %572 = vmatprep.subr.bf16.mxu0 0
  %573 = vmatpush1.bf16.msra.mxu0 %v434
  %574 = vmatprep.subr.bf16.mxu0 0
  %575 = vmatpush1.bf16.msra.mxu0 %v433
  %576 = vmatprep.subr.bf16.mxu0 0
  %577 = vmatpush1.bf16.msra.mxu0 %v432
  %578 = vmatprep.subr.bf16.mxu0 0
  %579 = vmatpush1.bf16.msra.mxu0 %v431
  %580 = vmatprep.subr.bf16.mxu0 0
  %581 = vmatpush1.bf16.msra.mxu0 %v430
  %582 = vmatprep.subr.bf16.mxu0 0
  %583 = vmatpush1.bf16.msra.mxu0 %v429
  %584 = vmatprep.subr.bf16.mxu0 0
  %585 = vmatpush1.bf16.msra.mxu0 %v428
  %586 = vmatprep.subr.bf16.mxu0 0
  %587 = vmatpush1.bf16.msra.mxu0 %v427
  %588 = vmatprep.subr.bf16.mxu0 0
  %589 = vmatpush2.bf16.msra.mxu0 %v442
  %590 = vmatprep.subr.bf16.mxu0 0
  %591 = vmatpush2.bf16.msra.mxu0 %v441
  %592 = vmatprep.subr.bf16.mxu0 0
  %593 = vmatpush2.bf16.msra.mxu0 %v440
  %594 = vmatprep.subr.bf16.mxu0 0
  %595 = vmatpush2.bf16.msra.mxu0 %v439
  %596 = vmatprep.subr.bf16.mxu0 0
  %597 = vmatpush2.bf16.msra.mxu0 %v438
  %598 = vmatprep.subr.bf16.mxu0 0
  %599 = vmatpush2.bf16.msra.mxu0 %v437
  %600 = vmatprep.subr.bf16.mxu0 0
  %601 = vmatpush2.bf16.msra.mxu0 %v436
  %602 = vmatprep.subr.bf16.mxu0 0
  %603 = vmatpush2.bf16.msra.mxu0 %v435
  %604 = vmatprep.mubr.bf16.mxu0 %v222
  %605 = vmatmul.mubr.bf16.gmra.mxu0 %v221
  %v606 = vpop.f32.mrf.mxu0
  %v607 = vadd.f32 %v510, %v606
  %v608 = vpop.f32.mrf.mxu0
  %v609 = vpop.f32.mrf.mxu0
  %v610 = vadd.f32 %v513, %v609
  %v611 = vpop.f32.mrf.mxu0
  %612 = vmatprep.mubr.bf16.mxu0 %v226
  %613 = vmatmul.mubr.bf16.gmra.mxu0 %v225
  %v614 = vpop.f32.mrf.mxu0
  %v615 = vadd.f32 %v518, %v614
  %v616 = vpop.f32.mrf.mxu0
  %v617 = vpop.f32.mrf.mxu0
  %v618 = vadd.f32 %v521, %v617
  %v619 = vpop.f32.mrf.mxu0
  %620 = vmatprep.mubr.bf16.mxu0 %v230
  %621 = vmatmul.mubr.bf16.gmra.mxu0 %v229
  %v622 = vpop.f32.mrf.mxu0
  %v623 = vadd.f32 %v526, %v622
  %v624 = vpop.f32.mrf.mxu0
  %v625 = vpop.f32.mrf.mxu0
  %v626 = vadd.f32 %v529, %v625
  %v627 = vpop.f32.mrf.mxu0
  %628 = vmatprep.mubr.bf16.mxu0 %v234
  %629 = vmatmul.mubr.bf16.gmra.mxu0 %v233
  %v630 = vpop.f32.mrf.mxu0
  %v631 = vadd.f32 %v534, %v630
  %v632 = vpop.f32.mrf.mxu0
  %v633 = vpop.f32.mrf.mxu0
  %v634 = vadd.f32 %v537, %v633
  %v635 = vpop.f32.mrf.mxu0
  %636 = vmatprep.mubr.bf16.mxu0 %v238
  %637 = vmatmul.mubr.bf16.gmra.mxu0 %v237
  %v638 = vpop.f32.mrf.mxu0
  %v639 = vadd.f32 %v542, %v638
  %v640 = vpop.f32.mrf.mxu0
  %v641 = vpop.f32.mrf.mxu0
  %v642 = vadd.f32 %v545, %v641
  %v643 = vpop.f32.mrf.mxu0
  %644 = vmatprep.mubr.bf16.mxu0 %v242
  %645 = vmatmul.mubr.bf16.gmra.mxu0 %v241
  %v646 = vpop.f32.mrf.mxu0
  %v647 = vadd.f32 %v550, %v646
  %v648 = vpop.f32.mrf.mxu0
  %v649 = vpop.f32.mrf.mxu0
  %v650 = vadd.f32 %v553, %v649
  %v651 = vpop.f32.mrf.mxu0
  %652 = vmatprep.mubr.bf16.mxu0 %v246
  %653 = vmatmul.mubr.bf16.gmra.mxu0 %v245
  %v654 = vpop.f32.mrf.mxu0
  %v655 = vadd.f32 %v558, %v654
  %v656 = vpop.f32.mrf.mxu0
  %v657 = vpop.f32.mrf.mxu0
  %v658 = vadd.f32 %v561, %v657
  %v659 = vpop.f32.mrf.mxu0
  %660 = vmatprep.mubr.bf16.mxu0 %v250
  %661 = vmatmul.mubr.bf16.gmra.mxu0 %v249
  %v662 = vpop.f32.mrf.mxu0
  %v663 = vadd.f32 %v566, %v662
  %v664 = vpop.f32.mrf.mxu0
  %v665 = vpop.f32.mrf.mxu0
  %v666 = vadd.f32 %v569, %v665
  %v667 = vpop.f32.mrf.mxu0
  %668 = vdwg.mxu0
  %669 = vst [vmem:[%s4] sm:$0xff] %v607
  %670 = vst [vmem:[%s4 + $0x8] sm:$0xff] %v610
  %671 = vst [vmem:[%s4 + $0x10] sm:$0xff] %v615
  %672 = vst [vmem:[%s4 + $0x18] sm:$0xff] %v618
  %673 = vst [vmem:[%s4 + $0x20] sm:$0xff] %v623
  %674 = vst [vmem:[%s4 + $0x28] sm:$0xff] %v626
  %675 = vst [vmem:[%s4 + $0x30] sm:$0xff] %v631
  %676 = vst [vmem:[%s4 + $0x38] sm:$0xff] %v634
  %677 = vst [vmem:[%s4 + $0x40] sm:$0xff] %v639
  %678 = vst [vmem:[%s4 + $0x48] sm:$0xff] %v642
  %679 = vst [vmem:[%s4 + $0x50] sm:$0xff] %v647
  %680 = vst [vmem:[%s4 + $0x58] sm:$0xff] %v650
  %681 = vst [vmem:[%s4 + $0x60] sm:$0xff] %v655
  %682 = vst [vmem:[%s4 + $0x68] sm:$0xff] %v658
  %683 = vst [vmem:[%s4 + $0x70] sm:$0xff] %v663
  %684 = vst [vmem:[%s4 + $0x78] sm:$0xff] %v666
  %v685 = vld [vmem:[#allocation2] sm:$0x1]
  %v686 = vadd.f32 %v607, %v610
  %v687 = vadd.f32 %v686, %v615
  %v688 = vadd.f32 %v687, %v618
  %v689 = vadd.f32 %v688, %v623
  %v690 = vadd.f32 %v689, %v626
  %v691 = vadd.f32 %v690, %v631
  %v692 = vadd.f32 %v691, %v634
  %v693 = vadd.f32 %v692, %v639
  %v694 = vadd.f32 %v693, %v642
  %v695 = vadd.f32 %v694, %v647
  %v696 = vadd.f32 %v695, %v650
  %v697 = vadd.f32 %v696, %v655
  %v698 = vadd.f32 %v697, %v658
  %v699 = vadd.f32 %v698, %v663
  %v700 = vadd.f32 %v699, %v666
  %v701 = vrot.slane %v700, 4
  %v702 = vadd.f32 %v700, %v701
  %v703 = vrot.slane %v702, 2
  %v704 = vadd.f32 %v702, %v703
  %v705 = vrot.slane %v704, 1
  %v706 = vadd.f32 %v704, %v705
  %v707 = vadd.f32 %v685, %v706
  %708 = vst [vmem:[#allocation2] sm:$0x1] %v707
  %v709 = vld [vmem:[#allocation3] sm:$0x1]
  %v710 = vmul.f32 %v607, %v607
  %v711 = vmul.f32 %v610, %v610
  %v712 = vmul.f32 %v615, %v615
  %v713 = vmul.f32 %v618, %v618
  %v714 = vmul.f32 %v623, %v623
  %v715 = vmul.f32 %v626, %v626
  %v716 = vmul.f32 %v631, %v631
  %v717 = vmul.f32 %v634, %v634
  %v718 = vmul.f32 %v639, %v639
  %v719 = vmul.f32 %v642, %v642
  %v720 = vmul.f32 %v647, %v647
  %v721 = vmul.f32 %v650, %v650
  %v722 = vmul.f32 %v655, %v655
  %v723 = vmul.f32 %v658, %v658
  %v724 = vmul.f32 %v663, %v663
  %v725 = vmul.f32 %v666, %v666
  %v726 = vadd.f32 %v710, %v711
  %v727 = vadd.f32 %v726, %v712
  %v728 = vadd.f32 %v727, %v713
  %v729 = vadd.f32 %v728, %v714
  %v730 = vadd.f32 %v729, %v715
  %v731 = vadd.f32 %v730, %v716
  %v732 = vadd.f32 %v731, %v717
  %v733 = vadd.f32 %v732, %v718
  %v734 = vadd.f32 %v733, %v719
  %v735 = vadd.f32 %v734, %v720
  %v736 = vadd.f32 %v735, %v721
  %v737 = vadd.f32 %v736, %v722
  %v738 = vadd.f32 %v737, %v723
  %v739 = vadd.f32 %v738, %v724
  %v740 = vadd.f32 %v739, %v725
  %v741 = vrot.slane %v740, 4
  %v742 = vadd.f32 %v740, %v741
  %v743 = vrot.slane %v742, 2
  %v744 = vadd.f32 %v742, %v743
  %v745 = vrot.slane %v744, 1
  %v746 = vadd.f32 %v744, %v745
  %v747 = vadd.f32 %v709, %v746
  %748 = vst [vmem:[#allocation3] sm:$0x1] %v747
  // Predicated region
  $region22: #{discriminator_forward.9} parent=0 // pred_check
    %p749 = pneg %p20
  $region23: #{discriminator_forward.9} parent=0 // pred_check_branch
    %751 = sbr.rel (%p749) target = $region25
  $region24: #{discriminator_forward.9} parent=0 // pred_region
    %v752 = vld [vmem:[#allocation2] sm:$0x1]
    %v753 = vmul.f32 %v752, 0.0078125
    %v754 = vld [vmem:[#allocation3] sm:$0x1]
    %v755 = vmul.f32 %v754, 0.0078125
    %v756 = vmul.f32 %v753, %v753
    %v757 = vsub.f32 %v755, %v756
    %v758 = vadd.f32 %v757, 1e-05
    %v759 = vrsqrt.pop %v758
    %v760 = vld [vmem:[%s2] sm:$0x1]
    %v761 = vmul.f32 %v760, %v759
    %v762 = vld [vmem:[%s3] sm:$0x1]
    %v763 = vmul.f32 %v753, %v761
    %v764 = vsub.f32 %v762, %v763
    %v766 = vlaneseq
    %v767 = vshrl.u32 %v766, 7
    %v768 = vsub.s32 0, %v767
    %v769 = vrot.slane %v764, %v768
    %vm771 = vcmask 1040384
    %v772 = vsel %vm771, %v761, %v769
    %vm773 = vcmask 1041408
    %v774 = vsel %vm773, %v772, 0.0
    %775 = vst [vmem:[%s5] sm:$0xff] %v774
  $region25: #{discriminator_forward.9} parent=0 // pred_fallthru
    _
  // Predicated region
  $region26: #{discriminator_forward.9} parent=0 // pred_check
    _
  $region27: #{discriminator_forward.9} parent=0 // pred_check_branch
    %777 = sbr.rel (0) target = $region29
  $region28: #{discriminator_forward.9} parent=0 // pred_region
    _
  $region29: #{discriminator_forward.9} parent=0 // pred_fallthru
    _
  // Predicated region
  $region30: #{discriminator_forward.9} parent=0 // pred_check
    _
  $region31: #{discriminator_forward.9} parent=0 // pred_check_branch
    %779 = sbr.rel (0) target = $region33
  $region32: #{discriminator_forward.9} parent=0 // pred_region
    _
  $region33: #{discriminator_forward.9} parent=0 // pred_fallthru
    _
  // Predicated region
  $region34: #{discriminator_forward.9} parent=0 // pred_check
    _
  $region35: #{discriminator_forward.9} parent=0 // pred_check_branch
    %781 = sbr.rel (0) target = $region37
  $region36: #{discriminator_forward.9} parent=0 // pred_region
    _
  $region37: #{discriminator_forward.9} parent=0 // pred_fallthru
    _
  // Predicated region
  $region38: #{discriminator_forward.9} parent=0 // pred_check
    _
  $region39: #{discriminator_forward.9} parent=0 // pred_check_branch
    %783 = sbr.rel (0) target = $region41
  $region40: #{discriminator_forward.9} parent=0 // pred_region
    _
  $region41: #{discriminator_forward.9} parent=0 // pred_fallthru
    _

// kernel: discriminator_forward.10
$region0: #{discriminator_forward.10}
  #allocation0 [shape = 'u32[]', space=smem, size = 0x4, offset = 0x4, fixed_abs, tag = 'smem constant byte address 0x4 - core index']
  #allocation1 [shape = 'u32[144,128]{1,0:T(1,128)}', space=vmem, size = 0x12000, scoped, tag = 'internal scratch']
  %s0 = inlined_call_operand.vmem [shape: f32[128,128], index: 0, kind: input, shape index: {}]
  %s1 = inlined_call_operand.vmem [shape: f32[8,128], index: 1, kind: input, shape index: {}]
  %s2 = inlined_call_operand.vmem [shape: f32[128,128], index: 2, kind: output, shape index: {}]
  %s3 = sld [smem:[#allocation0]]
  $region18: #{discriminator_forward.10} parent=0
    _
  %s5 = ssub.s32 1, %s3
  %s6 = scalar_select 0, %s5, %s3
  // Predicated region
  $region2: #{discriminator_forward.10} parent=0 // pred_check
    _
  $region3: #{discriminator_forward.10} parent=0 // pred_check_branch
    %8 = sbr.rel (0) target = $region5
  $region4: #{discriminator_forward.10} parent=0 // pred_region
    _
  $region5: #{discriminator_forward.10} parent=0 // pred_fallthru
    _
  // Predicated region
  $region6: #{discriminator_forward.10} parent=0 // pred_check
    _
  $region7: #{discriminator_forward.10} parent=0 // pred_check_branch
    %10 = sbr.rel (0) target = $region9
  $region8: #{discriminator_forward.10} parent=0 // pred_region
    _
  $region9: #{discriminator_forward.10} parent=0 // pred_fallthru
    _
  %v11 = vld [vmem:[%s0] sm:$0xff]
  %v12 = vld [vmem:[%s0 + $0x8] sm:$0xff]
  %v13 = vld [vmem:[%s0 + $0x10] sm:$0xff]
  %v14 = vld [vmem:[%s0 + $0x18] sm:$0xff]
  %v15 = vld [vmem:[%s0 + $0x20] sm:$0xff]
  %v16 = vld [vmem:[%s0 + $0x28] sm:$0xff]
  %v17 = vld [vmem:[%s0 + $0x30] sm:$0xff]
  %v18 = vld [vmem:[%s0 + $0x38] sm:$0xff]
  %v19 = vld [vmem:[%s0 + $0x40] sm:$0xff]
  %v20 = vld [vmem:[%s0 + $0x48] sm:$0xff]
  %v21 = vld [vmem:[%s0 + $0x50] sm:$0xff]
  %v22 = vld [vmem:[%s0 + $0x58] sm:$0xff]
  %v23 = vld [vmem:[%s0 + $0x60] sm:$0xff]
  %v24 = vld [vmem:[%s0 + $0x68] sm:$0xff]
  %v25 = vld [vmem:[%s0 + $0x70] sm:$0xff]
  %v26 = vld [vmem:[%s0 + $0x78] sm:$0xff]
  %v27 = vld [vmem:[%s1] sm:$0x1]
  %v28 = vld [vmem:[%s1 + $0x1] sm:$0x1]
  %v29 = vlaneseq
  %v30 = vshrl.u32 %v29, 7
  %v31 = vsub.s32 0, %v30
  %v32 = vrot.slane %v27, %v31
  %v33 = vmul.f32 %v11, %v32
  %v34 = vmul.f32 %v12, %v32
  %v35 = vmul.f32 %v13, %v32
  %v36 = vmul.f32 %v14, %v32
  %v37 = vmul.f32 %v15, %v32
  %v38 = vmul.f32 %v16, %v32
  %v39 = vmul.f32 %v17, %v32
  %v40 = vmul.f32 %v18, %v32
  %v41 = vmul.f32 %v19, %v32
  %v42 = vmul.f32 %v20, %v32
  %v43 = vmul.f32 %v21, %v32
  %v44 = vmul.f32 %v22, %v32
  %v45 = vmul.f32 %v23, %v32
  %v46 = vmul.f32 %v24, %v32
  %v47 = vmul.f32 %v25, %v32
  %v48 = vmul.f32 %v26, %v32
  %v49 = vlaneseq
  %v50 = vshrl.u32 %v49, 7
  %v51 = vsub.s32 0, %v50
  %v52 = vrot.slane %v28, %v51
  %v53 = vadd.f32 %v33, %v52
  %v54 = vadd.f32 %v34, %v52
  %v55 = vadd.f32 %v35, %v52
  %v56 = vadd.f32 %v36, %v52
  %v57 = vadd.f32 %v37, %v52
  %v58 = vadd.f32 %v38, %v52
  %v59 = vadd.f32 %v39, %v52
  %v60 = vadd.f32 %v40, %v52
  %v61 = vadd.f32 %v41, %v52
  %v62 = vadd.f32 %v42, %v52
  %v63 = vadd.f32 %v43, %v52
  %v64 = vadd.f32 %v44, %v52
  %v65 = vadd.f32 %v45, %v52
  %v66 = vadd.f32 %v46, %v52
  %v67 = vadd.f32 %v47, %v52
  %v68 = vadd.f32 %v48, %v52
  %vm69 = vcmp.ge.f32.partialorder %v53, 0.0
  %vm70 = vcmp.ge.f32.partialorder %v54, 0.0
  %vm71 = vcmp.ge.f32.partialorder %v55, 0.0
  %vm72 = vcmp.ge.f32.partialorder %v56, 0.0
  %vm73 = vcmp.ge.f32.partialorder %v57, 0.0
  %vm74 = vcmp.ge.f32.partialorder %v58, 0.0
  %vm75 = vcmp.ge.f32.partialorder %v59, 0.0
  %vm76 = vcmp.ge.f32.partialorder %v60, 0.0
  %vm77 = vcmp.ge.f32.partialorder %v61, 0.0
  %vm78 = vcmp.ge.f32.partialorder %v62, 0.0
  %vm79 = vcmp.ge.f32.partialorder %v63, 0.0
  %vm80 = vcmp.ge.f32.partialorder %v64, 0.0
  %vm81 = vcmp.ge.f32.partialorder %v65, 0.0
  %vm82 = vcmp.ge.f32.partialorder %v66, 0.0
  %vm83 = vcmp.ge.f32.partialorder %v67, 0.0
  %vm84 = vcmp.ge.f32.partialorder %v68, 0.0
  %v85 = vmul.f32 %v53, 0.2
  %v86 = vmul.f32 %v54, 0.2
  %v87 = vmul.f32 %v55, 0.2
  %v88 = vmul.f32 %v56, 0.2
  %v89 = vmul.f32 %v57, 0.2
  %v90 = vmul.f32 %v58, 0.2
  %v91 = vmul.f32 %v59, 0.2
  %v92 = vmul.f32 %v60, 0.2
  %v93 = vmul.f32 %v61, 0.2
  %v94 = vmul.f32 %v62, 0.2
  %v95 = vmul.f32 %v63, 0.2
  %v96 = vmul.f32 %v64, 0.2
  %v97 = vmul.f32 %v65, 0.2
  %v98 = vmul.f32 %v66, 0.2
  %v99 = vmul.f32 %v67, 0.2
  %v100 = vmul.f32 %v68, 0.2
  %v101 = vsel %vm69, %v53, %v85
  %v102 = vsel %vm70, %v54, %v86
  %v103 = vsel %vm71, %v55, %v87
  %v104 = vsel %vm72, %v56, %v88
  %v105 = vsel %vm73, %v57, %v89
  %v106 = vsel %vm74, %v58, %v90
  %v107 = vsel %vm75, %v59, %v91
  %v108 = vsel %vm76, %v60, %v92
  %v109 = vsel %vm77, %v61, %v93
  %v110 = vsel %vm78, %v62, %v94
  %v111 = vsel %vm79, %v63, %v95
  %v112 = vsel %vm80, %v64, %v96
  %v113 = vsel %vm81, %v65, %v97
  %v114 = vsel %vm82, %v66, %v98
  %v115 = vsel %vm83, %v67, %v99
  %v116 = vsel %vm84, %v68, %v100
  %117 = vst [vmem:[%s2] sm:$0xff] %v101
  %118 = vst [vmem:[%s2 + $0x8] sm:$0xff] %v102
  %119 = vst [vmem:[%s2 + $0x10] sm:$0xff] %v103
  %120 = vst [vmem:[%s2 + $0x18] sm:$0xff] %v104
  %121 = vst [vmem:[%s2 + $0x20] sm:$0xff] %v105
  %122 = vst [vmem:[%s2 + $0x28] sm:$0xff] %v106
  %123 = vst [vmem:[%s2 + $0x30] sm:$0xff] %v107
  %124 = vst [vmem:[%s2 + $0x38] sm:$0xff] %v108
  %125 = vst [vmem:[%s2 + $0x40] sm:$0xff] %v109
  %126 = vst [vmem:[%s2 + $0x48] sm:$0xff] %v110
  %127 = vst [vmem:[%s2 + $0x50] sm:$0xff] %v111
  %128 = vst [vmem:[%s2 + $0x58] sm:$0xff] %v112
  %129 = vst [vmem:[%s2 + $0x60] sm:$0xff] %v113
  %130 = vst [vmem:[%s2 + $0x68] sm:$0xff] %v114
  %131 = vst [vmem:[%s2 + $0x70] sm:$0xff] %v115
  %132 = vst [vmem:[%s2 + $0x78] sm:$0xff] %v116
  // Predicated region
  $region10: #{discriminator_forward.10} parent=0 // pred_check
    _
  $region11: #{discriminator_forward.10} parent=0 // pred_check_branch
    %134 = sbr.rel (0) target = $region13
  $region12: #{discriminator_forward.10} parent=0 // pred_region
    _
  $region13: #{discriminator_forward.10} parent=0 // pred_fallthru
    _
  // Predicated region
  $region14: #{discriminator_forward.10} parent=0 // pred_check
    _
  $region15: #{discriminator_forward.10} parent=0 // pred_check_branch
    %136 = sbr.rel (0) target = $region17
  $region16: #{discriminator_forward.10} parent=0 // pred_region
    _
  $region17: #{discriminator_forward.10} parent=0 // pred_fallthru
    _

// kernel: discriminator_forward.12
$region0: #{discriminator_forward.12}
  #allocation0 [shape = 'u32[]', space=smem, size = 0x4, offset = 0x4, fixed_abs, tag = 'smem constant byte address 0x4 - core index']
  #allocation1 [shape = 'u32[144,128]{1,0:T(1,128)}', space=vmem, size = 0x12000, scoped, tag = 'internal scratch']
  %s0 = inlined_call_operand.vmem [shape: f32[32,128], index: 0, kind: input, shape index: {}]
  %s1 = inlined_call_operand.vmem [shape: f32[8,128], index: 1, kind: input, shape index: {}]
  %s2 = inlined_call_operand.vmem [shape: f32[32,128], index: 2, kind: output, shape index: {}]
  %s3 = sld [smem:[#allocation0]]
  $region18: #{discriminator_forward.12} parent=0
    _
  %s5 = ssub.s32 1, %s3
  %s6 = scalar_select 0, %s5, %s3
  // Predicated region
  $region2: #{discriminator_forward.12} parent=0 // pred_check
    _
  $region3: #{discriminator_forward.12} parent=0 // pred_check_branch
    %8 = sbr.rel (0) target = $region5
  $region4: #{discriminator_forward.12} parent=0 // pred_region
    _
  $region5: #{discriminator_forward.12} parent=0 // pred_fallthru
    _
  // Predicated region
  $region6: #{discriminator_forward.12} parent=0 // pred_check
    _
  $region7: #{discriminator_forward.12} parent=0 // pred_check_branch
    %10 = sbr.rel (0) target = $region9
  $region8: #{discriminator_forward.12} parent=0 // pred_region
    _
  $region9: #{discriminator_forward.12} parent=0 // pred_fallthru
    _
  %v11 = vld [vmem:[%s0] sm:$0xff]
  %v12 = vld [vmem:[%s0 + $0x8] sm:$0xff]
  %v13 = vld [vmem:[%s0 + $0x10] sm:$0xff]
  %v14 = vld [vmem:[%s0 + $0x18] sm:$0xff]
  %v15 = vld [vmem:[%s1] sm:$0x1]
  %v16 = vld [vmem:[%s1 + $0x1] sm:$0x1]
  %v17 = vlaneseq
  %v18 = vshrl.u32 %v17, 7
  %v19 = vsub.s32 0, %v18
  %v20 = vrot.slane %v15, %v19
  %v21 = vmul.f32 %v11, %v20
  %v22 = vmul.f32 %v12, %v20
  %v23 = vmul.f32 %v13, %v20
  %v24 = vmul.f32 %v14, %v20
  %v25 = vlaneseq
  %v26 = vshrl.u32 %v25, 7
  %v27 = vsub.s32 0, %v26
  %v28 = vrot.slane %v16, %v27
  %v29 = vadd.f32 %v21, %v28
  %v30 = vadd.f32 %v22, %v28
  %v31 = vadd.f32 %v23, %v28
  %v32 = vadd.f32 %v24, %v28
  %vm33 = vcmp.ge.f32.partialorder %v29, 0.0
  %vm34 = vcmp.ge.f32.partialorder %v30, 0.0
  %vm35 = vcmp.ge.f32.partialorder %v31, 0.0
  %vm36 = vcmp.ge.f32.partialorder %v32, 0.0
  %v37 = vmul.f32 %v29, 0.2
  %v38 = vmul.f32 %v30, 0.2
  %v39 = vmul.f32 %v31, 0.2
  %v40 = vmul.f32 %v32, 0.2
  %v41 = vsel %vm33, %v29, %v37
  %v42 = vsel %vm34, %v30, %v38
  %v43 = vsel %vm35, %v31, %v39
  %v44 = vsel %vm36, %v32, %v40
  %45 = vst [vmem:[%s2] sm:$0xff] %v41
  %46 = vst [vmem:[%s2 + $0x8] sm:$0xff] %v42
  %47 = vst [vmem:[%s2 + $0x10] sm:$0xff] %v43
  %48 = vst [vmem:[%s2 + $0x18] sm:$0xff] %v44
  // Predicated region
  $region10: #{discriminator_forward.12} parent=0 // pred_check
    _
  $region11: #{discriminator_forward.12} parent=0 // pred_check_branch
    %50 = sbr.rel (0) target = $region13
  $region12: #{discriminator_forward.12} parent=0 // pred_region
    _
  $region13: #{discriminator_forward.12} parent=0 // pred_fallthru
    _
  // Predicated region
  $region14: #{discriminator_forward.12} parent=0 // pred_check
    _
  $region15: #{discriminator_forward.12} parent=0 // pred_check_branch
    %52 = sbr.rel (0) target = $region17
  $region16: #{discriminator_forward.12} parent=0 // pred_region
    _
  $region17: #{discriminator_forward.12} parent=0 // pred_fallthru
    _

// kernel: discriminator_forward.11
$region0: #{discriminator_forward.11}
  #allocation0 [shape = 'u32[]', space=smem, size = 0x4, offset = 0x4, fixed_abs, tag = 'smem constant byte address 0x4 - core index']
  #allocation1 [shape = 'u32[144,128]{1,0:T(1,128)}', space=vmem, size = 0x12000, scoped, tag = 'internal scratch']
  #allocation2 [shape = 'f32[1,128]{1,0:T(1,128)}', space=vmem, size = 0x200, scoped, tag = 'scratch operand']
  #allocation3 [shape = 'f32[1,128]{1,0:T(1,128)}', space=vmem, size = 0x200, scoped, tag = 'scratch operand']
  %s0 = inlined_call_operand.vmem [shape: bf16[32,1024], index: 0, kind: input, shape index: {}]
  %s1 = inlined_call_operand.vmem [shape: bf16[1024,128], index: 1, kind: input, shape index: {}]
  %s2 = inlined_call_operand.vmem [shape: f32[1,128], index: 2, kind: input, shape index: {}]
  %s3 = inlined_call_operand.vmem [shape: f32[1,128], index: 3, kind: input, shape index: {}]
  %s4 = inlined_call_operand.vmem [shape: f32[32,128], index: 4, kind: output, shape index: {0}]
  %s5 = inlined_call_operand.vmem [shape: f32[8,128], index: 5, kind: output, shape index: {1}]
  %6 = xla_tuple %s4, %s5
  %s7 = sld [smem:[#allocation0]]
  $region42: #{discriminator_forward.11} parent=0
    _
  %s9 = ssub.s32 1, %s7
  %s10 = scalar_select 0, %s9, %s7
  // Predicated region
  $region2: #{discriminator_forward.11} parent=0 // pred_check
    _
  $region3: #{discriminator_forward.11} parent=0 // pred_check_branch
    %12 = sbr.rel (0) target = $region5
  $region4: #{discriminator_forward.11} parent=0 // pred_region
    _
  $region5: #{discriminator_forward.11} parent=0 // pred_fallthru
    _
  // Predicated region
  $region6: #{discriminator_forward.11} parent=0 // pred_check
    _
  $region7: #{discriminator_forward.11} parent=0 // pred_check_branch
    %14 = sbr.rel (0) target = $region9
  $region8: #{discriminator_forward.11} parent=0 // pred_region
    _
  $region9: #{discriminator_forward.11} parent=0 // pred_fallthru
    _
  // Predicated region
  $region10: #{discriminator_forward.11} parent=0 // pred_check
    _
  $region11: #{discriminator_forward.11} parent=0 // pred_check_branch
    %16 = sbr.rel (0) target = $region13
  $region12: #{discriminator_forward.11} parent=0 // pred_region
    _
  $region13: #{discriminator_forward.11} parent=0 // pred_fallthru
    _
  // Predicated region
  $region14: #{discriminator_forward.11} parent=0 // pred_check
    _
  $region15: #{discriminator_forward.11} parent=0 // pred_check_branch
    %18 = sbr.rel (0) target = $region17
  $region16: #{discriminator_forward.11} parent=0 // pred_region
    _
  $region17: #{discriminator_forward.11} parent=0 // pred_fallthru
    _
  %p20 = scmp.eq.s32.totalorder 0, 0
  // Predicated region
  $region18: #{discriminator_forward.11} parent=0 // pred_check
    %p21 = pneg %p20
  $region19: #{discriminator_forward.11} parent=0 // pred_check_branch
    %23 = sbr.rel (%p21) target = $region21
  $region20: #{discriminator_forward.11} parent=0 // pred_region
    %24 = vst [vmem:[#allocation2] sm:$0x1] 0.0
    %25 = vst [vmem:[#allocation3] sm:$0x1] 0.0
    %26 = vst [vmem:[%s5] sm:$0xff] 0.0
  $region21: #{discriminator_forward.11} parent=0 // pred_fallthru
    _
  %v27 = vld [vmem:[%s0] sm:$0xff]
  %v28 = vld [vmem:[%s0 + $0x8] sm:$0xff]
  %v29 = vld [vmem:[%s0 + $0x10] sm:$0xff]
  %v30 = vld [vmem:[%s0 + $0x18] sm:$0xff]
  %v31 = vld [vmem:[%s0 + $0x20] sm:$0xff]
  %v32 = vld [vmem:[%s0 + $0x28] sm:$0xff]
  %v33 = vld [vmem:[%s0 + $0x30] sm:$0xff]
  %v34 = vld [vmem:[%s0 + $0x38] sm:$0xff]
  %v35 = vld [vmem:[%s0 + $0x40] sm:$0xff]
  %v36 = vld [vmem:[%s0 + $0x48] sm:$0xff]
  %v37 = vld [vmem:[%s0 + $0x50] sm:$0xff]
  %v38 = vld [vmem:[%s0 + $0x58] sm:$0xff]
  %v39 = vld [vmem:[%s0 + $0x60] sm:$0xff]
  %v40 = vld [vmem:[%s0 + $0x68] sm:$0xff]
  %v41 = vld [vmem:[%s0 + $0x70] sm:$0xff]
  %v42 = vld [vmem:[%s0 + $0x78] sm:$0xff]
  %v43 = vld [vmem:[%s1] sm:$0xf]
  %v44 = vld [vmem:[%s1 + $0x4] sm:$0xf]
  %v45 = vld [vmem:[%s1 + $0x8] sm:$0xf]
  %v46 = vld [vmem:[%s1 + $0xc] sm:$0xf]
  %v47 = vld [vmem:[%s1 + $0x10] sm:$0xf]
  %v48 = vld [vmem:[%s1 + $0x14] sm:$0xf]
  %v49 = vld [vmem:[%s1 + $0x18] sm:$0xf]
  %v50 = vld [vmem:[%s1 + $0x1c] sm:$0xf]
  %v51 = vld [vmem:[%s1 + $0x20] sm:$0xf]
  %v52 = vld [vmem:[%s1 + $0x24] sm:$0xf]
  %v53 = vld [vmem:[%s1 + $0x28] sm:$0xf]
  %v54 = vld [vmem:[%s1 + $0x2c] sm:$0xf]
  %v55 = vld [vmem:[%s1 + $0x30] sm:$0xf]
  %v56 = vld [vmem:[%s1 + $0x34] sm:$0xf]
  %v57 = vld [vmem:[%s1 + $0x38] sm:$0xf]
  %v58 = vld [vmem:[%s1 + $0x3c] sm:$0xf]
  %v59 = vld [vmem:[%s1 + $0x40] sm:$0xf]
  %v60 = vld [vmem:[%s1 + $0x44] sm:$0xf]
  %v61 = vld [vmem:[%s1 + $0x48] sm:$0xf]
  %v62 = vld [vmem:[%s1 + $0x4c] sm:$0xf]
  %v63 = vld [vmem:[%s1 + $0x50] sm:$0xf]
  %v64 = vld [vmem:[%s1 + $0x54] sm:$0xf]
  %v65 = vld [vmem:[%s1 + $0x58] sm:$0xf]
  %v66 = vld [vmem:[%s1 + $0x5c] sm:$0xf]
  %v67 = vld [vmem:[%s1 + $0x60] sm:$0xf]
  %v68 = vld [vmem:[%s1 + $0x64] sm:$0xf]
  %v69 = vld [vmem:[%s1 + $0x68] sm:$0xf]
  %v70 = vld [vmem:[%s1 + $0x6c] sm:$0xf]
  %v71 = vld [vmem:[%s1 + $0x70] sm:$0xf]
  %v72 = vld [vmem:[%s1 + $0x74] sm:$0xf]
  %v73 = vld [vmem:[%s1 + $0x78] sm:$0xf]
  %v74 = vld [vmem:[%s1 + $0x7c] sm:$0xf]
  %v75 = vld [vmem:[%s1 + $0x80] sm:$0xf]
  %v76 = vld [vmem:[%s1 + $0x84] sm:$0xf]
  %v77 = vld [vmem:[%s1 + $0x88] sm:$0xf]
  %v78 = vld [vmem:[%s1 + $0x8c] sm:$0xf]
  %v79 = vld [vmem:[%s1 + $0x90] sm:$0xf]
  %v80 = vld [vmem:[%s1 + $0x94] sm:$0xf]
  %v81 = vld [vmem:[%s1 + $0x98] sm:$0xf]
  %v82 = vld [vmem:[%s1 + $0x9c] sm:$0xf]
  %v83 = vld [vmem:[%s1 + $0xa0] sm:$0xf]
  %v84 = vld [vmem:[%s1 + $0xa4] sm:$0xf]
  %v85 = vld [vmem:[%s1 + $0xa8] sm:$0xf]
  %v86 = vld [vmem:[%s1 + $0xac] sm:$0xf]
  %v87 = vld [vmem:[%s1 + $0xb0] sm:$0xf]
  %v88 = vld [vmem:[%s1 + $0xb4] sm:$0xf]
  %v89 = vld [vmem:[%s1 + $0xb8] sm:$0xf]
  %v90 = vld [vmem:[%s1 + $0xbc] sm:$0xf]
  %v91 = vld [vmem:[%s1 + $0xc0] sm:$0xf]
  %v92 = vld [vmem:[%s1 + $0xc4] sm:$0xf]
  %v93 = vld [vmem:[%s1 + $0xc8] sm:$0xf]
  %v94 = vld [vmem:[%s1 + $0xcc] sm:$0xf]
  %v95 = vld [vmem:[%s1 + $0xd0] sm:$0xf]
  %v96 = vld [vmem:[%s1 + $0xd4] sm:$0xf]
  %v97 = vld [vmem:[%s1 + $0xd8] sm:$0xf]
  %v98 = vld [vmem:[%s1 + $0xdc] sm:$0xf]
  %v99 = vld [vmem:[%s1 + $0xe0] sm:$0xf]
  %v100 = vld [vmem:[%s1 + $0xe4] sm:$0xf]
  %v101 = vld [vmem:[%s1 + $0xe8] sm:$0xf]
  %v102 = vld [vmem:[%s1 + $0xec] sm:$0xf]
  %v103 = vld [vmem:[%s1 + $0xf0] sm:$0xf]
  %v104 = vld [vmem:[%s1 + $0xf4] sm:$0xf]
  %v105 = vld [vmem:[%s1 + $0xf8] sm:$0xf]
  %v106 = vld [vmem:[%s1 + $0xfc] sm:$0xf]
  %v107 = vld [vmem:[%s1 + $0x100] sm:$0xf]
  %v108 = vld [vmem:[%s1 + $0x104] sm:$0xf]
  %v109 = vld [vmem:[%s1 + $0x108] sm:$0xf]
  %v110 = vld [vmem:[%s1 + $0x10c] sm:$0xf]
  %v111 = vld [vmem:[%s1 + $0x110] sm:$0xf]
  %v112 = vld [vmem:[%s1 + $0x114] sm:$0xf]
  %v113 = vld [vmem:[%s1 + $0x118] sm:$0xf]
  %v114 = vld [vmem:[%s1 + $0x11c] sm:$0xf]
  %v115 = vld [vmem:[%s1 + $0x120] sm:$0xf]
  %v116 = vld [vmem:[%s1 + $0x124] sm:$0xf]
  %v117 = vld [vmem:[%s1 + $0x128] sm:$0xf]
  %v118 = vld [vmem:[%s1 + $0x12c] sm:$0xf]
  %v119 = vld [vmem:[%s1 + $0x130] sm:$0xf]
  %v120 = vld [vmem:[%s1 + $0x134] sm:$0xf]
  %v121 = vld [vmem:[%s1 + $0x138] sm:$0xf]
  %v122 = vld [vmem:[%s1 + $0x13c] sm:$0xf]
  %v123 = vld [vmem:[%s1 + $0x140] sm:$0xf]
  %v124 = vld [vmem:[%s1 + $0x144] sm:$0xf]
  %v125 = vld [vmem:[%s1 + $0x148] sm:$0xf]
  %v126 = vld [vmem:[%s1 + $0x14c] sm:$0xf]
  %v127 = vld [vmem:[%s1 + $0x150] sm:$0xf]
  %v128 = vld [vmem:[%s1 + $0x154] sm:$0xf]
  %v129 = vld [vmem:[%s1 + $0x158] sm:$0xf]
  %v130 = vld [vmem:[%s1 + $0x15c] sm:$0xf]
  %v131 = vld [vmem:[%s1 + $0x160] sm:$0xf]
  %v132 = vld [vmem:[%s1 + $0x164] sm:$0xf]
  %v133 = vld [vmem:[%s1 + $0x168] sm:$0xf]
  %v134 = vld [vmem:[%s1 + $0x16c] sm:$0xf]
  %v135 = vld [vmem:[%s1 + $0x170] sm:$0xf]
  %v136 = vld [vmem:[%s1 + $0x174] sm:$0xf]
  %v137 = vld [vmem:[%s1 + $0x178] sm:$0xf]
  %v138 = vld [vmem:[%s1 + $0x17c] sm:$0xf]
  %v139 = vld [vmem:[%s1 + $0x180] sm:$0xf]
  %v140 = vld [vmem:[%s1 + $0x184] sm:$0xf]
  %v141 = vld [vmem:[%s1 + $0x188] sm:$0xf]
  %v142 = vld [vmem:[%s1 + $0x18c] sm:$0xf]
  %v143 = vld [vmem:[%s1 + $0x190] sm:$0xf]
  %v144 = vld [vmem:[%s1 + $0x194] sm:$0xf]
  %v145 = vld [vmem:[%s1 + $0x198] sm:$0xf]
  %v146 = vld [vmem:[%s1 + $0x19c] sm:$0xf]
  %v147 = vld [vmem:[%s1 + $0x1a0] sm:$0xf]
  %v148 = vld [vmem:[%s1 + $0x1a4] sm:$0xf]
  %v149 = vld [vmem:[%s1 + $0x1a8] sm:$0xf]
  %v150 = vld [vmem:[%s1 + $0x1ac] sm:$0xf]
  %v151 = vld [vmem:[%s1 + $0x1b0] sm:$0xf]
  %v152 = vld [vmem:[%s1 + $0x1b4] sm:$0xf]
  %v153 = vld [vmem:[%s1 + $0x1b8] sm:$0xf]
  %v154 = vld [vmem:[%s1 + $0x1bc] sm:$0xf]
  %v155 = vld [vmem:[%s1 + $0x1c0] sm:$0xf]
  %v156 = vld [vmem:[%s1 + $0x1c4] sm:$0xf]
  %v157 = vld [vmem:[%s1 + $0x1c8] sm:$0xf]
  %v158 = vld [vmem:[%s1 + $0x1cc] sm:$0xf]
  %v159 = vld [vmem:[%s1 + $0x1d0] sm:$0xf]
  %v160 = vld [vmem:[%s1 + $0x1d4] sm:$0xf]
  %v161 = vld [vmem:[%s1 + $0x1d8] sm:$0xf]
  %v162 = vld [vmem:[%s1 + $0x1dc] sm:$0xf]
  %v163 = vld [vmem:[%s1 + $0x1e0] sm:$0xf]
  %v164 = vld [vmem:[%s1 + $0x1e4] sm:$0xf]
  %v165 = vld [vmem:[%s1 + $0x1e8] sm:$0xf]
  %v166 = vld [vmem:[%s1 + $0x1ec] sm:$0xf]
  %v167 = vld [vmem:[%s1 + $0x1f0] sm:$0xf]
  %v168 = vld [vmem:[%s1 + $0x1f4] sm:$0xf]
  %v169 = vld [vmem:[%s1 + $0x1f8] sm:$0xf]
  %v170 = vld [vmem:[%s1 + $0x1fc] sm:$0xf]
  %v187 = vunpack.c.l.b16 %v27
  %v188 = vunpack.c.h.b16 %v27
  %v189 = vunpack.c.l.b16 %v28
  %v190 = vunpack.c.h.b16 %v28
  %v191 = vunpack.c.l.b16 %v29
  %v192 = vunpack.c.h.b16 %v29
  %v193 = vunpack.c.l.b16 %v30
  %v194 = vunpack.c.h.b16 %v30
  %v195 = vunpack.c.l.b16 %v31
  %v196 = vunpack.c.h.b16 %v31
  %v197 = vunpack.c.l.b16 %v32
  %v198 = vunpack.c.h.b16 %v32
  %v199 = vunpack.c.l.b16 %v33
  %v200 = vunpack.c.h.b16 %v33
  %v201 = vunpack.c.l.b16 %v34
  %v202 = vunpack.c.h.b16 %v34
  %v203 = vunpack.c.l.b16 %v35
  %v204 = vunpack.c.h.b16 %v35
  %v205 = vunpack.c.l.b16 %v36
  %v206 = vunpack.c.h.b16 %v36
  %v207 = vunpack.c.l.b16 %v37
  %v208 = vunpack.c.h.b16 %v37
  %v209 = vunpack.c.l.b16 %v38
  %v210 = vunpack.c.h.b16 %v38
  %v211 = vunpack.c.l.b16 %v39
  %v212 = vunpack.c.h.b16 %v39
  %v213 = vunpack.c.l.b16 %v40
  %v214 = vunpack.c.h.b16 %v40
  %v215 = vunpack.c.l.b16 %v41
  %v216 = vunpack.c.h.b16 %v41
  %v217 = vunpack.c.l.b16 %v42
  %v218 = vunpack.c.h.b16 %v42
  %v219 = vpack.c.b16 %v195, %v187
  %v220 = vpack.c.b16 %v196, %v188
  %v221 = vpack.c.b16 %v197, %v189
  %v222 = vpack.c.b16 %v198, %v190
  %v223 = vpack.c.b16 %v199, %v191
  %v224 = vpack.c.b16 %v200, %v192
  %v225 = vpack.c.b16 %v201, %v193
  %v226 = vpack.c.b16 %v202, %v194
  %v227 = vpack.c.b16 %v211, %v203
  %v228 = vpack.c.b16 %v212, %v204
  %v229 = vpack.c.b16 %v213, %v205
  %v230 = vpack.c.b16 %v214, %v206
  %v231 = vpack.c.b16 %v215, %v207
  %v232 = vpack.c.b16 %v216, %v208
  %v233 = vpack.c.b16 %v217, %v209
  %v234 = vpack.c.b16 %v218, %v210
  %v379 = vunpack.c.l.b16 %v43
  %v380 = vunpack.c.l.b16 %v44
  %v381 = vunpack.c.l.b16 %v45
  %v382 = vunpack.c.l.b16 %v46
  %v383 = vunpack.c.l.b16 %v47
  %v384 = vunpack.c.l.b16 %v48
  %v385 = vunpack.c.l.b16 %v49
  %v386 = vunpack.c.l.b16 %v50
  %v387 = vunpack.c.l.b16 %v51
  %v388 = vunpack.c.l.b16 %v52
  %v389 = vunpack.c.l.b16 %v53
  %v390 = vunpack.c.l.b16 %v54
  %v391 = vunpack.c.l.b16 %v55
  %v392 = vunpack.c.l.b16 %v56
  %v393 = vunpack.c.l.b16 %v57
  %v394 = vunpack.c.l.b16 %v58
  %v395 = vunpack.c.l.b16 %v59
  %v396 = vunpack.c.l.b16 %v60
  %v397 = vunpack.c.l.b16 %v61
  %v398 = vunpack.c.l.b16 %v62
  %v399 = vunpack.c.l.b16 %v63
  %v400 = vunpack.c.l.b16 %v64
  %v401 = vunpack.c.l.b16 %v65
  %v402 = vunpack.c.l.b16 %v66
  %v403 = vunpack.c.l.b16 %v67
  %v404 = vunpack.c.l.b16 %v68
  %v405 = vunpack.c.l.b16 %v69
  %v406 = vunpack.c.l.b16 %v70
  %v407 = vunpack.c.l.b16 %v71
  %v408 = vunpack.c.l.b16 %v72
  %v409 = vunpack.c.l.b16 %v73
  %v410 = vunpack.c.l.b16 %v74
  %v411 = vunpack.c.l.b16 %v75
  %v412 = vunpack.c.l.b16 %v76
  %v413 = vunpack.c.l.b16 %v77
  %v414 = vunpack.c.l.b16 %v78
  %v415 = vunpack.c.l.b16 %v79
  %v416 = vunpack.c.l.b16 %v80
  %v417 = vunpack.c.l.b16 %v81
  %v418 = vunpack.c.l.b16 %v82
  %v419 = vunpack.c.l.b16 %v83
  %v420 = vunpack.c.l.b16 %v84
  %v421 = vunpack.c.l.b16 %v85
  %v422 = vunpack.c.l.b16 %v86
  %v423 = vunpack.c.l.b16 %v87
  %v424 = vunpack.c.l.b16 %v88
  %v425 = vunpack.c.l.b16 %v89
  %v426 = vunpack.c.l.b16 %v90
  %v427 = vunpack.c.l.b16 %v91
  %v428 = vunpack.c.l.b16 %v92
  %v429 = vunpack.c.l.b16 %v93
  %v430 = vunpack.c.l.b16 %v94
  %v431 = vunpack.c.l.b16 %v95
  %v432 = vunpack.c.l.b16 %v96
  %v433 = vunpack.c.l.b16 %v97
  %v434 = vunpack.c.l.b16 %v98
  %v435 = vunpack.c.l.b16 %v99
  %v436 = vunpack.c.l.b16 %v100
  %v437 = vunpack.c.l.b16 %v101
  %v438 = vunpack.c.l.b16 %v102
  %v439 = vunpack.c.l.b16 %v103
  %v440 = vunpack.c.l.b16 %v104
  %v441 = vunpack.c.l.b16 %v105
  %v442 = vunpack.c.l.b16 %v106
  %v443 = vunpack.c.l.b16 %v107
  %v444 = vunpack.c.l.b16 %v108
  %v445 = vunpack.c.l.b16 %v109
  %v446 = vunpack.c.l.b16 %v110
  %v447 = vunpack.c.l.b16 %v111
  %v448 = vunpack.c.l.b16 %v112
  %v449 = vunpack.c.l.b16 %v113
  %v450 = vunpack.c.l.b16 %v114
  %v451 = vunpack.c.l.b16 %v115
  %v452 = vunpack.c.l.b16 %v116
  %v453 = vunpack.c.l.b16 %v117
  %v454 = vunpack.c.l.b16 %v118
  %v455 = vunpack.c.l.b16 %v119
  %v456 = vunpack.c.l.b16 %v120
  %v457 = vunpack.c.l.b16 %v121
  %v458 = vunpack.c.l.b16 %v122
  %v459 = vunpack.c.l.b16 %v123
  %v460 = vunpack.c.l.b16 %v124
  %v461 = vunpack.c.l.b16 %v125
  %v462 = vunpack.c.l.b16 %v126
  %v463 = vunpack.c.l.b16 %v127
  %v464 = vunpack.c.l.b16 %v128
  %v465 = vunpack.c.l.b16 %v129
  %v466 = vunpack.c.l.b16 %v130
  %v467 = vunpack.c.l.b16 %v131
  %v468 = vunpack.c.l.b16 %v132
  %v469 = vunpack.c.l.b16 %v133
  %v470 = vunpack.c.l.b16 %v134
  %v471 = vunpack.c.l.b16 %v135
  %v472 = vunpack.c.l.b16 %v136
  %v473 = vunpack.c.l.b16 %v137
  %v474 = vunpack.c.l.b16 %v138
  %v475 = vunpack.c.l.b16 %v139
  %v476 = vunpack.c.l.b16 %v140
  %v477 = vunpack.c.l.b16 %v141
  %v478 = vunpack.c.l.b16 %v142
  %v479 = vunpack.c.l.b16 %v143
  %v480 = vunpack.c.l.b16 %v144
  %v481 = vunpack.c.l.b16 %v145
  %v482 = vunpack.c.l.b16 %v146
  %v483 = vunpack.c.l.b16 %v147
  %v484 = vunpack.c.l.b16 %v148
  %v485 = vunpack.c.l.b16 %v149
  %v486 = vunpack.c.l.b16 %v150
  %v487 = vunpack.c.l.b16 %v151
  %v488 = vunpack.c.l.b16 %v152
  %v489 = vunpack.c.l.b16 %v153
  %v490 = vunpack.c.l.b16 %v154
  %v491 = vunpack.c.l.b16 %v155
  %v492 = vunpack.c.l.b16 %v156
  %v493 = vunpack.c.l.b16 %v157
  %v494 = vunpack.c.l.b16 %v158
  %v495 = vunpack.c.l.b16 %v159
  %v496 = vunpack.c.l.b16 %v160
  %v497 = vunpack.c.l.b16 %v161
  %v498 = vunpack.c.l.b16 %v162
  %v499 = vunpack.c.l.b16 %v163
  %v500 = vunpack.c.l.b16 %v164
  %v501 = vunpack.c.l.b16 %v165
  %v502 = vunpack.c.l.b16 %v166
  %v503 = vunpack.c.l.b16 %v167
  %v504 = vunpack.c.l.b16 %v168
  %v505 = vunpack.c.l.b16 %v169
  %v506 = vunpack.c.l.b16 %v170
  %v507 = vpack.c.b16 %v380, %v379
  %v508 = vpack.c.b16 %v382, %v381
  %v509 = vpack.c.b16 %v384, %v383
  %v510 = vpack.c.b16 %v386, %v385
  %v511 = vpack.c.b16 %v388, %v387
  %v512 = vpack.c.b16 %v390, %v389
  %v513 = vpack.c.b16 %v392, %v391
  %v514 = vpack.c.b16 %v394, %v393
  %v515 = vpack.c.b16 %v396, %v395
  %v516 = vpack.c.b16 %v398, %v397
  %v517 = vpack.c.b16 %v400, %v399
  %v518 = vpack.c.b16 %v402, %v401
  %v519 = vpack.c.b16 %v404, %v403
  %v520 = vpack.c.b16 %v406, %v405
  %v521 = vpack.c.b16 %v408, %v407
  %v522 = vpack.c.b16 %v410, %v409
  %v523 = vpack.c.b16 %v412, %v411
  %v524 = vpack.c.b16 %v414, %v413
  %v525 = vpack.c.b16 %v416, %v415
  %v526 = vpack.c.b16 %v418, %v417
  %v527 = vpack.c.b16 %v420, %v419
  %v528 = vpack.c.b16 %v422, %v421
  %v529 = vpack.c.b16 %v424, %v423
  %v530 = vpack.c.b16 %v426, %v425
  %v531 = vpack.c.b16 %v428, %v427
  %v532 = vpack.c.b16 %v430, %v429
  %v533 = vpack.c.b16 %v432, %v431
  %v534 = vpack.c.b16 %v434, %v433
  %v535 = vpack.c.b16 %v436, %v435
  %v536 = vpack.c.b16 %v438, %v437
  %v537 = vpack.c.b16 %v440, %v439
  %v538 = vpack.c.b16 %v442, %v441
  %v539 = vpack.c.b16 %v444, %v443
  %v540 = vpack.c.b16 %v446, %v445
  %v541 = vpack.c.b16 %v448, %v447
  %v542 = vpack.c.b16 %v450, %v449
  %v543 = vpack.c.b16 %v452, %v451
  %v544 = vpack.c.b16 %v454, %v453
  %v545 = vpack.c.b16 %v456, %v455
  %v546 = vpack.c.b16 %v458, %v457
  %v547 = vpack.c.b16 %v460, %v459
  %v548 = vpack.c.b16 %v462, %v461
  %v549 = vpack.c.b16 %v464, %v463
  %v550 = vpack.c.b16 %v466, %v465
  %v551 = vpack.c.b16 %v468, %v467
  %v552 = vpack.c.b16 %v470, %v469
  %v553 = vpack.c.b16 %v472, %v471
  %v554 = vpack.c.b16 %v474, %v473
  %v555 = vpack.c.b16 %v476, %v475
  %v556 = vpack.c.b16 %v478, %v477
  %v557 = vpack.c.b16 %v480, %v479
  %v558 = vpack.c.b16 %v482, %v481
  %v559 = vpack.c.b16 %v484, %v483
  %v560 = vpack.c.b16 %v486, %v485
  %v561 = vpack.c.b16 %v488, %v487
  %v562 = vpack.c.b16 %v490, %v489
  %v563 = vpack.c.b16 %v492, %v491
  %v564 = vpack.c.b16 %v494, %v493
  %v565 = vpack.c.b16 %v496, %v495
  %v566 = vpack.c.b16 %v498, %v497
  %v567 = vpack.c.b16 %v500, %v499
  %v568 = vpack.c.b16 %v502, %v501
  %v569 = vpack.c.b16 %v504, %v503
  %v570 = vpack.c.b16 %v506, %v505
  %635 = vmatprep.subr.bf16.mxu0 0
  %636 = vmatpush1.bf16.msra.mxu0 %v514
  %637 = vmatprep.subr.bf16.mxu0 0
  %638 = vmatpush1.bf16.msra.mxu0 %v513
  %639 = vmatprep.subr.bf16.mxu0 0
  %640 = vmatpush1.bf16.msra.mxu0 %v512
  %641 = vmatprep.subr.bf16.mxu0 0
  %642 = vmatpush1.bf16.msra.mxu0 %v511
  %643 = vmatprep.subr.bf16.mxu0 0
  %644 = vmatpush1.bf16.msra.mxu0 %v510
  %645 = vmatprep.subr.bf16.mxu0 0
  %646 = vmatpush1.bf16.msra.mxu0 %v509
  %647 = vmatprep.subr.bf16.mxu0 0
  %648 = vmatpush1.bf16.msra.mxu0 %v508
  %649 = vmatprep.subr.bf16.mxu0 0
  %650 = vmatpush1.bf16.msra.mxu0 %v507
  %651 = vmatprep.subr.bf16.mxu0 0
  %652 = vmatpush2.bf16.msra.mxu0 %v522
  %653 = vmatprep.subr.bf16.mxu0 0
  %654 = vmatpush2.bf16.msra.mxu0 %v521
  %655 = vmatprep.subr.bf16.mxu0 0
  %656 = vmatpush2.bf16.msra.mxu0 %v520
  %657 = vmatprep.subr.bf16.mxu0 0
  %658 = vmatpush2.bf16.msra.mxu0 %v519
  %659 = vmatprep.subr.bf16.mxu0 0
  %660 = vmatpush2.bf16.msra.mxu0 %v518
  %661 = vmatprep.subr.bf16.mxu0 0
  %662 = vmatpush2.bf16.msra.mxu0 %v517
  %663 = vmatprep.subr.bf16.mxu0 0
  %664 = vmatpush2.bf16.msra.mxu0 %v516
  %665 = vmatprep.subr.bf16.mxu0 0
  %666 = vmatpush2.bf16.msra.mxu0 %v515
  %667 = vmatprep.mubr.bf16.mxu0 %v220
  %668 = vmatmul.mubr.bf16.gmra.mxu0 %v219
  %v669 = vpop.f32.mrf.mxu0
  %v670 = vadd.f32 0.0, %v669
  %v671 = vpop.f32.mrf.mxu0
  %v672 = vpop.f32.mrf.mxu0
  %v673 = vadd.f32 0.0, %v672
  %v674 = vpop.f32.mrf.mxu0
  %675 = vmatprep.mubr.bf16.mxu0 %v228
  %676 = vmatmul.mubr.bf16.gmra.mxu0 %v227
  %v677 = vpop.f32.mrf.mxu0
  %v678 = vadd.f32 0.0, %v677
  %v679 = vpop.f32.mrf.mxu0
  %v680 = vpop.f32.mrf.mxu0
  %v681 = vadd.f32 0.0, %v680
  %v682 = vpop.f32.mrf.mxu0
  %683 = vdwg.mxu0
  %684 = vmatprep.subr.bf16.mxu0 0
  %685 = vmatpush1.bf16.msra.mxu0 %v530
  %686 = vmatprep.subr.bf16.mxu0 0
  %687 = vmatpush1.bf16.msra.mxu0 %v529
  %688 = vmatprep.subr.bf16.mxu0 0
  %689 = vmatpush1.bf16.msra.mxu0 %v528
  %690 = vmatprep.subr.bf16.mxu0 0
  %691 = vmatpush1.bf16.msra.mxu0 %v527
  %692 = vmatprep.subr.bf16.mxu0 0
  %693 = vmatpush1.bf16.msra.mxu0 %v526
  %694 = vmatprep.subr.bf16.mxu0 0
  %695 = vmatpush1.bf16.msra.mxu0 %v525
  %696 = vmatprep.subr.bf16.mxu0 0
  %697 = vmatpush1.bf16.msra.mxu0 %v524
  %698 = vmatprep.subr.bf16.mxu0 0
  %699 = vmatpush1.bf16.msra.mxu0 %v523
  %700 = vmatprep.subr.bf16.mxu0 0
  %701 = vmatpush2.bf16.msra.mxu0 %v538
  %702 = vmatprep.subr.bf16.mxu0 0
  %703 = vmatpush2.bf16.msra.mxu0 %v537
  %704 = vmatprep.subr.bf16.mxu0 0
  %705 = vmatpush2.bf16.msra.mxu0 %v536
  %706 = vmatprep.subr.bf16.mxu0 0
  %707 = vmatpush2.bf16.msra.mxu0 %v535
  %708 = vmatprep.subr.bf16.mxu0 0
  %709 = vmatpush2.bf16.msra.mxu0 %v534
  %710 = vmatprep.subr.bf16.mxu0 0
  %711 = vmatpush2.bf16.msra.mxu0 %v533
  %712 = vmatprep.subr.bf16.mxu0 0
  %713 = vmatpush2.bf16.msra.mxu0 %v532
  %714 = vmatprep.subr.bf16.mxu0 0
  %715 = vmatpush2.bf16.msra.mxu0 %v531
  %716 = vmatprep.mubr.bf16.mxu0 %v222
  %717 = vmatmul.mubr.bf16.gmra.mxu0 %v221
  %v718 = vpop.f32.mrf.mxu0
  %v719 = vadd.f32 %v670, %v718
  %v720 = vpop.f32.mrf.mxu0
  %v721 = vpop.f32.mrf.mxu0
  %v722 = vadd.f32 %v673, %v721
  %v723 = vpop.f32.mrf.mxu0
  %724 = vmatprep.mubr.bf16.mxu0 %v230
  %725 = vmatmul.mubr.bf16.gmra.mxu0 %v229
  %v726 = vpop.f32.mrf.mxu0
  %v727 = vadd.f32 %v678, %v726
  %v728 = vpop.f32.mrf.mxu0
  %v729 = vpop.f32.mrf.mxu0
  %v730 = vadd.f32 %v681, %v729
  %v731 = vpop.f32.mrf.mxu0
  %732 = vdwg.mxu0
  %733 = vmatprep.subr.bf16.mxu0 0
  %734 = vmatpush1.bf16.msra.mxu0 %v546
  %735 = vmatprep.subr.bf16.mxu0 0
  %736 = vmatpush1.bf16.msra.mxu0 %v545
  %737 = vmatprep.subr.bf16.mxu0 0
  %738 = vmatpush1.bf16.msra.mxu0 %v544
  %739 = vmatprep.subr.bf16.mxu0 0
  %740 = vmatpush1.bf16.msra.mxu0 %v543
  %741 = vmatprep.subr.bf16.mxu0 0
  %742 = vmatpush1.bf16.msra.mxu0 %v542
  %743 = vmatprep.subr.bf16.mxu0 0
  %744 = vmatpush1.bf16.msra.mxu0 %v541
  %745 = vmatprep.subr.bf16.mxu0 0
  %746 = vmatpush1.bf16.msra.mxu0 %v540
  %747 = vmatprep.subr.bf16.mxu0 0
  %748 = vmatpush1.bf16.msra.mxu0 %v539
  %749 = vmatprep.subr.bf16.mxu0 0
  %750 = vmatpush2.bf16.msra.mxu0 %v554
  %751 = vmatprep.subr.bf16.mxu0 0
  %752 = vmatpush2.bf16.msra.mxu0 %v553
  %753 = vmatprep.subr.bf16.mxu0 0
  %754 = vmatpush2.bf16.msra.mxu0 %v552
  %755 = vmatprep.subr.bf16.mxu0 0
  %756 = vmatpush2.bf16.msra.mxu0 %v551
  %757 = vmatprep.subr.bf16.mxu0 0
  %758 = vmatpush2.bf16.msra.mxu0 %v550
  %759 = vmatprep.subr.bf16.mxu0 0
  %760 = vmatpush2.bf16.msra.mxu0 %v549
  %761 = vmatprep.subr.bf16.mxu0 0
  %762 = vmatpush2.bf16.msra.mxu0 %v548
  %763 = vmatprep.subr.bf16.mxu0 0
  %764 = vmatpush2.bf16.msra.mxu0 %v547
  %765 = vmatprep.mubr.bf16.mxu0 %v224
  %766 = vmatmul.mubr.bf16.gmra.mxu0 %v223
  %v767 = vpop.f32.mrf.mxu0
  %v768 = vadd.f32 %v719, %v767
  %v769 = vpop.f32.mrf.mxu0
  %v770 = vpop.f32.mrf.mxu0
  %v771 = vadd.f32 %v722, %v770
  %v772 = vpop.f32.mrf.mxu0
  %773 = vmatprep.mubr.bf16.mxu0 %v232
  %774 = vmatmul.mubr.bf16.gmra.mxu0 %v231
  %v775 = vpop.f32.mrf.mxu0
  %v776 = vadd.f32 %v727, %v775
  %v777 = vpop.f32.mrf.mxu0
  %v778 = vpop.f32.mrf.mxu0
  %v779 = vadd.f32 %v730, %v778
  %v780 = vpop.f32.mrf.mxu0
  %781 = vdwg.mxu0
  %782 = vmatprep.subr.bf16.mxu0 0
  %783 = vmatpush1.bf16.msra.mxu0 %v562
  %784 = vmatprep.subr.bf16.mxu0 0
  %785 = vmatpush1.bf16.msra.mxu0 %v561
  %786 = vmatprep.subr.bf16.mxu0 0
  %787 = vmatpush1.bf16.msra.mxu0 %v560
  %788 = vmatprep.subr.bf16.mxu0 0
  %789 = vmatpush1.bf16.msra.mxu0 %v559
  %790 = vmatprep.subr.bf16.mxu0 0
  %791 = vmatpush1.bf16.msra.mxu0 %v558
  %792 = vmatprep.subr.bf16.mxu0 0
  %793 = vmatpush1.bf16.msra.mxu0 %v557
  %794 = vmatprep.subr.bf16.mxu0 0
  %795 = vmatpush1.bf16.msra.mxu0 %v556
  %796 = vmatprep.subr.bf16.mxu0 0
  %797 = vmatpush1.bf16.msra.mxu0 %v555
  %798 = vmatprep.subr.bf16.mxu0 0
  %799 = vmatpush2.bf16.msra.mxu0 %v570
  %800 = vmatprep.subr.bf16.mxu0 0
  %801 = vmatpush2.bf16.msra.mxu0 %v569
  %802 = vmatprep.subr.bf16.mxu0 0
  %803 = vmatpush2.bf16.msra.mxu0 %v568
  %804 = vmatprep.subr.bf16.mxu0 0
  %805 = vmatpush2.bf16.msra.mxu0 %v567
  %806 = vmatprep.subr.bf16.mxu0 0
  %807 = vmatpush2.bf16.msra.mxu0 %v566
  %808 = vmatprep.subr.bf16.mxu0 0
  %809 = vmatpush2.bf16.msra.mxu0 %v565
  %810 = vmatprep.subr.bf16.mxu0 0
  %811 = vmatpush2.bf16.msra.mxu0 %v564
  %812 = vmatprep.subr.bf16.mxu0 0
  %813 = vmatpush2.bf16.msra.mxu0 %v563
  %814 = vmatprep.mubr.bf16.mxu0 %v226
  %815 = vmatmul.mubr.bf16.gmra.mxu0 %v225
  %v816 = vpop.f32.mrf.mxu0
  %v817 = vadd.f32 %v768, %v816
  %v818 = vpop.f32.mrf.mxu0
  %v819 = vpop.f32.mrf.mxu0
  %v820 = vadd.f32 %v771, %v819
  %v821 = vpop.f32.mrf.mxu0
  %822 = vmatprep.mubr.bf16.mxu0 %v234
  %823 = vmatmul.mubr.bf16.gmra.mxu0 %v233
  %v824 = vpop.f32.mrf.mxu0
  %v825 = vadd.f32 %v776, %v824
  %v826 = vpop.f32.mrf.mxu0
  %v827 = vpop.f32.mrf.mxu0
  %v828 = vadd.f32 %v779, %v827
  %v829 = vpop.f32.mrf.mxu0
  %830 = vdwg.mxu0
  %831 = vst [vmem:[%s4] sm:$0xff] %v817
  %832 = vst [vmem:[%s4 + $0x8] sm:$0xff] %v820
  %833 = vst [vmem:[%s4 + $0x10] sm:$0xff] %v825
  %834 = vst [vmem:[%s4 + $0x18] sm:$0xff] %v828
  %v835 = vld [vmem:[#allocation2] sm:$0x1]
  %v836 = vadd.f32 %v817, %v820
  %v837 = vadd.f32 %v836, %v825
  %v838 = vadd.f32 %v837, %v828
  %v839 = vrot.slane %v838, 4
  %v840 = vadd.f32 %v838, %v839
  %v841 = vrot.slane %v840, 2
  %v842 = vadd.f32 %v840, %v841
  %v843 = vrot.slane %v842, 1
  %v844 = vadd.f32 %v842, %v843
  %v845 = vadd.f32 %v835, %v844
  %846 = vst [vmem:[#allocation2] sm:$0x1] %v845
  %v847 = vld [vmem:[#allocation3] sm:$0x1]
  %v848 = vmul.f32 %v817, %v817
  %v849 = vmul.f32 %v820, %v820
  %v850 = vmul.f32 %v825, %v825
  %v851 = vmul.f32 %v828, %v828
  %v852 = vadd.f32 %v848, %v849
  %v853 = vadd.f32 %v852, %v850
  %v854 = vadd.f32 %v853, %v851
  %v855 = vrot.slane %v854, 4
  %v856 = vadd.f32 %v854, %v855
  %v857 = vrot.slane %v856, 2
  %v858 = vadd.f32 %v856, %v857
  %v859 = vrot.slane %v858, 1
  %v860 = vadd.f32 %v858, %v859
  %v861 = vadd.f32 %v847, %v860
  %862 = vst [vmem:[#allocation3] sm:$0x1] %v861
  // Predicated region
  $region22: #{discriminator_forward.11} parent=0 // pred_check
    %p863 = pneg %p20
  $region23: #{discriminator_forward.11} parent=0 // pred_check_branch
    %865 = sbr.rel (%p863) target = $region25
  $region24: #{discriminator_forward.11} parent=0 // pred_region
    %v866 = vld [vmem:[#allocation2] sm:$0x1]
    %v867 = vmul.f32 %v866, 0.03125
    %v868 = vld [vmem:[#allocation3] sm:$0x1]
    %v869 = vmul.f32 %v868, 0.03125
    %v870 = vmul.f32 %v867, %v867
    %v871 = vsub.f32 %v869, %v870
    %v872 = vadd.f32 %v871, 1e-05
    %v873 = vrsqrt.pop %v872
    %v874 = vld [vmem:[%s2] sm:$0x1]
    %v875 = vmul.f32 %v874, %v873
    %v876 = vld [vmem:[%s3] sm:$0x1]
    %v877 = vmul.f32 %v867, %v875
    %v878 = vsub.f32 %v876, %v877
    %v880 = vlaneseq
    %v881 = vshrl.u32 %v880, 7
    %v882 = vsub.s32 0, %v881
    %v883 = vrot.slane %v878, %v882
    %vm885 = vcmask 1040384
    %v886 = vsel %vm885, %v875, %v883
    %vm887 = vcmask 1041408
    %v888 = vsel %vm887, %v886, 0.0
    %889 = vst [vmem:[%s5] sm:$0xff] %v888
  $region25: #{discriminator_forward.11} parent=0 // pred_fallthru
    _
  // Predicated region
  $region26: #{discriminator_forward.11} parent=0 // pred_check
    _
  $region27: #{discriminator_forward.11} parent=0 // pred_check_branch
    %891 = sbr.rel (0) target = $region29
  $region28: #{discriminator_forward.11} parent=0 // pred_region
    _
  $region29: #{discriminator_forward.11} parent=0 // pred_fallthru
    _
  // Predicated region
  $region30: #{discriminator_forward.11} parent=0 // pred_check
    _
  $region31: #{discriminator_forward.11} parent=0 // pred_check_branch
    %893 = sbr.rel (0) target = $region33
  $region32: #{discriminator_forward.11} parent=0 // pred_region
    _
  $region33: #{discriminator_forward.11} parent=0 // pred_fallthru
    _
  // Predicated region
  $region34: #{discriminator_forward.11} parent=0 // pred_check
    _
  $region35: #{discriminator_forward.11} parent=0 // pred_check_branch
    %895 = sbr.rel (0) target = $region37
  $region36: #{discriminator_forward.11} parent=0 // pred_region
    _
  $region37: #{discriminator_forward.11} parent=0 // pred_fallthru
    _
  // Predicated region
  $region38: #{discriminator_forward.11} parent=0 // pred_check
    _
  $region39: #{discriminator_forward.11} parent=0 // pred_check_branch
    %897 = sbr.rel (0) target = $region41
  $region40: #{discriminator_forward.11} parent=0 // pred_region
    _
  $region41: #{discriminator_forward.11} parent=0 // pred_fallthru
    _

// kernel: discriminator_forward.14
$region0: #{discriminator_forward.14}
  #allocation0 [shape = 'u32[]', space=smem, size = 0x4, offset = 0x4, fixed_abs, tag = 'smem constant byte address 0x4 - core index']
  #allocation1 [shape = 'u32[144,128]{1,0:T(1,128)}', space=vmem, size = 0x12000, scoped, tag = 'internal scratch']
  %s0 = inlined_call_operand.vmem [shape: f32[8,256], index: 0, kind: input, shape index: {}]
  %s1 = inlined_call_operand.vmem [shape: f32[8,256], index: 1, kind: input, shape index: {}]
  %s2 = inlined_call_operand.vmem [shape: f32[8,256], index: 2, kind: output, shape index: {}]
  %s3 = sld [smem:[#allocation0]]
  $region18: #{discriminator_forward.14} parent=0
    _
  %s5 = ssub.s32 1, %s3
  %s6 = scalar_select 0, %s5, %s3
  // Predicated region
  $region2: #{discriminator_forward.14} parent=0 // pred_check
    _
  $region3: #{discriminator_forward.14} parent=0 // pred_check_branch
    %8 = sbr.rel (0) target = $region5
  $region4: #{discriminator_forward.14} parent=0 // pred_region
    _
  $region5: #{discriminator_forward.14} parent=0 // pred_fallthru
    _
  // Predicated region
  $region6: #{discriminator_forward.14} parent=0 // pred_check
    _
  $region7: #{discriminator_forward.14} parent=0 // pred_check_branch
    %10 = sbr.rel (0) target = $region9
  $region8: #{discriminator_forward.14} parent=0 // pred_region
    _
  $region9: #{discriminator_forward.14} parent=0 // pred_fallthru
    _
  %v11 = vld [vmem:[%s0] sm:$0xff]
  %v12 = vld [vmem:[%s0 + $0x8] sm:$0xff]
  %v13 = vld [vmem:[%s1] ss:$8 sm:$0x3]
  %s14 = scalar_lea.vmem %s1, 1
  %v15 = vld [vmem:[%s14] ss:$8 sm:$0x3]
  %v17 = vlaneseq
  %v18 = vshrl.u32 %v17, 7
  %v19 = vsub.s32 0, %v18
  %v20 = vrot.slane %v13, %v19
  %v21 = vlaneseq
  %v22 = vshrl.u32 %v21, 7
  %v23 = vsub.s32 1, %v22
  %v24 = vrot.slane %v13, %v23
  %v27 = vmul.f32 %v11, %v20
  %v28 = vmul.f32 %v12, %v24
  %v30 = vlaneseq
  %v31 = vshrl.u32 %v30, 7
  %v32 = vsub.s32 0, %v31
  %v33 = vrot.slane %v15, %v32
  %v34 = vlaneseq
  %v35 = vshrl.u32 %v34, 7
  %v36 = vsub.s32 1, %v35
  %v37 = vrot.slane %v15, %v36
  %v40 = vadd.f32 %v27, %v33
  %v41 = vadd.f32 %v28, %v37
  %vm42 = vcmp.ge.f32.partialorder %v40, 0.0
  %vm43 = vcmp.ge.f32.partialorder %v41, 0.0
  %v44 = vmul.f32 %v40, 0.2
  %v45 = vmul.f32 %v41, 0.2
  %v46 = vsel %vm42, %v40, %v44
  %v47 = vsel %vm43, %v41, %v45
  %48 = vst [vmem:[%s2] sm:$0xff] %v46
  %49 = vst [vmem:[%s2 + $0x8] sm:$0xff] %v47
  // Predicated region
  $region10: #{discriminator_forward.14} parent=0 // pred_check
    _
  $region11: #{discriminator_forward.14} parent=0 // pred_check_branch
    %51 = sbr.rel (0) target = $region13
  $region12: #{discriminator_forward.14} parent=0 // pred_region
    _
  $region13: #{discriminator_forward.14} parent=0 // pred_fallthru
    _
  // Predicated region
  $region14: #{discriminator_forward.14} parent=0 // pred_check
    _
  $region15: #{discriminator_forward.14} parent=0 // pred_check_branch
    %53 = sbr.rel (0) target = $region17
  $region16: #{discriminator_forward.14} parent=0 // pred_region
    _
  $region17: #{discriminator_forward.14} parent=0 // pred_fallthru
    _

// kernel: discriminator_forward.13
$region0: #{discriminator_forward.13}
  #allocation0 [shape = 'u32[]', space=smem, size = 0x4, offset = 0x4, fixed_abs, tag = 'smem constant byte address 0x4 - core index']
  #allocation1 [shape = 'u32[144,128]{1,0:T(1,128)}', space=vmem, size = 0x12000, scoped, tag = 'internal scratch']
  #allocation2 [shape = 'f32[1,256]{1,0:T(1,128)}', space=vmem, size = 0x400, scoped, tag = 'scratch operand']
  #allocation3 [shape = 'f32[1,256]{1,0:T(1,128)}', space=vmem, size = 0x400, scoped, tag = 'scratch operand']
  %s0 = inlined_call_operand.vmem [shape: bf16[8,2048], index: 0, kind: input, shape index: {}]
  %s1 = inlined_call_operand.vmem [shape: bf16[2048,256], index: 1, kind: input, shape index: {}]
  %s2 = inlined_call_operand.vmem [shape: f32[1,256], index: 2, kind: input, shape index: {}]
  %s3 = inlined_call_operand.vmem [shape: f32[1,256], index: 3, kind: input, shape index: {}]
  %s4 = inlined_call_operand.vmem [shape: f32[8,256], index: 4, kind: output, shape index: {0}]
  %s5 = inlined_call_operand.vmem [shape: f32[8,256], index: 5, kind: output, shape index: {1}]
  %6 = xla_tuple %s4, %s5
  %s7 = sld [smem:[#allocation0]]
  $region42: #{discriminator_forward.13} parent=0
    _
  %s9 = ssub.s32 1, %s7
  %s10 = scalar_select 0, %s9, %s7
  // Predicated region
  $region2: #{discriminator_forward.13} parent=0 // pred_check
    _
  $region3: #{discriminator_forward.13} parent=0 // pred_check_branch
    %12 = sbr.rel (0) target = $region5
  $region4: #{discriminator_forward.13} parent=0 // pred_region
    _
  $region5: #{discriminator_forward.13} parent=0 // pred_fallthru
    _
  // Predicated region
  $region6: #{discriminator_forward.13} parent=0 // pred_check
    _
  $region7: #{discriminator_forward.13} parent=0 // pred_check_branch
    %14 = sbr.rel (0) target = $region9
  $region8: #{discriminator_forward.13} parent=0 // pred_region
    _
  $region9: #{discriminator_forward.13} parent=0 // pred_fallthru
    _
  // Predicated region
  $region10: #{discriminator_forward.13} parent=0 // pred_check
    _
  $region11: #{discriminator_forward.13} parent=0 // pred_check_branch
    %16 = sbr.rel (0) target = $region13
  $region12: #{discriminator_forward.13} parent=0 // pred_region
    _
  $region13: #{discriminator_forward.13} parent=0 // pred_fallthru
    _
  // Predicated region
  $region14: #{discriminator_forward.13} parent=0 // pred_check
    _
  $region15: #{discriminator_forward.13} parent=0 // pred_check_branch
    %18 = sbr.rel (0) target = $region17
  $region16: #{discriminator_forward.13} parent=0 // pred_region
    _
  $region17: #{discriminator_forward.13} parent=0 // pred_fallthru
    _
  %p19 = scmp.eq.s32.totalorder 0, 0
  // Predicated region
  $region18: #{discriminator_forward.13} parent=0 // pred_check
    %p20 = pneg %p19
  $region19: #{discriminator_forward.13} parent=0 // pred_check_branch
    %22 = sbr.rel (%p20) target = $region21
  $region20: #{discriminator_forward.13} parent=0 // pred_region
    %v23 = vlaneseq
    %vm24 = vcmp.ge.s32.totalorder %v23, 0
    %vm25 = vcmp.lt.s32.totalorder %v23, 256
    %vm26 = vmand %vm24, %vm25
    %27 = vst.msk [vmem:[#allocation2] sm:$0x3] %vm26, 0.0
    %28 = vst.msk [vmem:[#allocation3] sm:$0x3] %vm26, 0.0
    %29 = vst [vmem:[%s5] sm:$0xff] 0.0
    %30 = vst [vmem:[%s5 + $0x8] sm:$0xff] 0.0
  $region21: #{discriminator_forward.13} parent=0 // pred_fallthru
    _
  %v31 = vld [vmem:[%s0] sm:$0xff]
  %v32 = vld [vmem:[%s0 + $0x8] sm:$0xff]
  %v33 = vld [vmem:[%s0 + $0x10] sm:$0xff]
  %v34 = vld [vmem:[%s0 + $0x18] sm:$0xff]
  %v35 = vld [vmem:[%s0 + $0x20] sm:$0xff]
  %v36 = vld [vmem:[%s0 + $0x28] sm:$0xff]
  %v37 = vld [vmem:[%s0 + $0x30] sm:$0xff]
  %v38 = vld [vmem:[%s0 + $0x38] sm:$0xff]
  %v39 = vld [vmem:[%s1] sm:$0xff]
  %v40 = vld [vmem:[%s1 + $0x8] sm:$0xff]
  %v41 = vld [vmem:[%s1 + $0x10] sm:$0xff]
  %v42 = vld [vmem:[%s1 + $0x18] sm:$0xff]
  %v43 = vld [vmem:[%s1 + $0x20] sm:$0xff]
  %v44 = vld [vmem:[%s1 + $0x28] sm:$0xff]
  %v45 = vld [vmem:[%s1 + $0x30] sm:$0xff]
  %v46 = vld [vmem:[%s1 + $0x38] sm:$0xff]
  %v47 = vld [vmem:[%s1 + $0x40] sm:$0xff]
  %v48 = vld [vmem:[%s1 + $0x48] sm:$0xff]
  %v49 = vld [vmem:[%s1 + $0x50] sm:$0xff]
  %v50 = vld [vmem:[%s1 + $0x58] sm:$0xff]
  %v51 = vld [vmem:[%s1 + $0x60] sm:$0xff]
  %v52 = vld [vmem:[%s1 + $0x68] sm:$0xff]
  %v53 = vld [vmem:[%s1 + $0x70] sm:$0xff]
  %v54 = vld [vmem:[%s1 + $0x78] sm:$0xff]
  %v55 = vld [vmem:[%s1 + $0x80] sm:$0xff]
  %v56 = vld [vmem:[%s1 + $0x88] sm:$0xff]
  %v57 = vld [vmem:[%s1 + $0x90] sm:$0xff]
  %v58 = vld [vmem:[%s1 + $0x98] sm:$0xff]
  %v59 = vld [vmem:[%s1 + $0xa0] sm:$0xff]
  %v60 = vld [vmem:[%s1 + $0xa8] sm:$0xff]
  %v61 = vld [vmem:[%s1 + $0xb0] sm:$0xff]
  %v62 = vld [vmem:[%s1 + $0xb8] sm:$0xff]
  %v63 = vld [vmem:[%s1 + $0xc0] sm:$0xff]
  %v64 = vld [vmem:[%s1 + $0xc8] sm:$0xff]
  %v65 = vld [vmem:[%s1 + $0xd0] sm:$0xff]
  %v66 = vld [vmem:[%s1 + $0xd8] sm:$0xff]
  %v67 = vld [vmem:[%s1 + $0xe0] sm:$0xff]
  %v68 = vld [vmem:[%s1 + $0xe8] sm:$0xff]
  %v69 = vld [vmem:[%s1 + $0xf0] sm:$0xff]
  %v70 = vld [vmem:[%s1 + $0xf8] sm:$0xff]
  %v71 = vld [vmem:[%s1 + $0x100] sm:$0xff]
  %v72 = vld [vmem:[%s1 + $0x108] sm:$0xff]
  %v73 = vld [vmem:[%s1 + $0x110] sm:$0xff]
  %v74 = vld [vmem:[%s1 + $0x118] sm:$0xff]
  %v75 = vld [vmem:[%s1 + $0x120] sm:$0xff]
  %v76 = vld [vmem:[%s1 + $0x128] sm:$0xff]
  %v77 = vld [vmem:[%s1 + $0x130] sm:$0xff]
  %v78 = vld [vmem:[%s1 + $0x138] sm:$0xff]
  %v79 = vld [vmem:[%s1 + $0x140] sm:$0xff]
  %v80 = vld [vmem:[%s1 + $0x148] sm:$0xff]
  %v81 = vld [vmem:[%s1 + $0x150] sm:$0xff]
  %v82 = vld [vmem:[%s1 + $0x158] sm:$0xff]
  %v83 = vld [vmem:[%s1 + $0x160] sm:$0xff]
  %v84 = vld [vmem:[%s1 + $0x168] sm:$0xff]
  %v85 = vld [vmem:[%s1 + $0x170] sm:$0xff]
  %v86 = vld [vmem:[%s1 + $0x178] sm:$0xff]
  %v87 = vld [vmem:[%s1 + $0x180] sm:$0xff]
  %v88 = vld [vmem:[%s1 + $0x188] sm:$0xff]
  %v89 = vld [vmem:[%s1 + $0x190] sm:$0xff]
  %v90 = vld [vmem:[%s1 + $0x198] sm:$0xff]
  %v91 = vld [vmem:[%s1 + $0x1a0] sm:$0xff]
  %v92 = vld [vmem:[%s1 + $0x1a8] sm:$0xff]
  %v93 = vld [vmem:[%s1 + $0x1b0] sm:$0xff]
  %v94 = vld [vmem:[%s1 + $0x1b8] sm:$0xff]
  %v95 = vld [vmem:[%s1 + $0x1c0] sm:$0xff]
  %v96 = vld [vmem:[%s1 + $0x1c8] sm:$0xff]
  %v97 = vld [vmem:[%s1 + $0x1d0] sm:$0xff]
  %v98 = vld [vmem:[%s1 + $0x1d8] sm:$0xff]
  %v99 = vld [vmem:[%s1 + $0x1e0] sm:$0xff]
  %v100 = vld [vmem:[%s1 + $0x1e8] sm:$0xff]
  %v101 = vld [vmem:[%s1 + $0x1f0] sm:$0xff]
  %v102 = vld [vmem:[%s1 + $0x1f8] sm:$0xff]
  %v103 = vld [vmem:[%s1 + $0x200] sm:$0xff]
  %v104 = vld [vmem:[%s1 + $0x208] sm:$0xff]
  %v105 = vld [vmem:[%s1 + $0x210] sm:$0xff]
  %v106 = vld [vmem:[%s1 + $0x218] sm:$0xff]
  %v107 = vld [vmem:[%s1 + $0x220] sm:$0xff]
  %v108 = vld [vmem:[%s1 + $0x228] sm:$0xff]
  %v109 = vld [vmem:[%s1 + $0x230] sm:$0xff]
  %v110 = vld [vmem:[%s1 + $0x238] sm:$0xff]
  %v111 = vld [vmem:[%s1 + $0x240] sm:$0xff]
  %v112 = vld [vmem:[%s1 + $0x248] sm:$0xff]
  %v113 = vld [vmem:[%s1 + $0x250] sm:$0xff]
  %v114 = vld [vmem:[%s1 + $0x258] sm:$0xff]
  %v115 = vld [vmem:[%s1 + $0x260] sm:$0xff]
  %v116 = vld [vmem:[%s1 + $0x268] sm:$0xff]
  %v117 = vld [vmem:[%s1 + $0x270] sm:$0xff]
  %v118 = vld [vmem:[%s1 + $0x278] sm:$0xff]
  %v119 = vld [vmem:[%s1 + $0x280] sm:$0xff]
  %v120 = vld [vmem:[%s1 + $0x288] sm:$0xff]
  %v121 = vld [vmem:[%s1 + $0x290] sm:$0xff]
  %v122 = vld [vmem:[%s1 + $0x298] sm:$0xff]
  %v123 = vld [vmem:[%s1 + $0x2a0] sm:$0xff]
  %v124 = vld [vmem:[%s1 + $0x2a8] sm:$0xff]
  %v125 = vld [vmem:[%s1 + $0x2b0] sm:$0xff]
  %v126 = vld [vmem:[%s1 + $0x2b8] sm:$0xff]
  %v127 = vld [vmem:[%s1 + $0x2c0] sm:$0xff]
  %v128 = vld [vmem:[%s1 + $0x2c8] sm:$0xff]
  %v129 = vld [vmem:[%s1 + $0x2d0] sm:$0xff]
  %v130 = vld [vmem:[%s1 + $0x2d8] sm:$0xff]
  %v131 = vld [vmem:[%s1 + $0x2e0] sm:$0xff]
  %v132 = vld [vmem:[%s1 + $0x2e8] sm:$0xff]
  %v133 = vld [vmem:[%s1 + $0x2f0] sm:$0xff]
  %v134 = vld [vmem:[%s1 + $0x2f8] sm:$0xff]
  %v135 = vld [vmem:[%s1 + $0x300] sm:$0xff]
  %v136 = vld [vmem:[%s1 + $0x308] sm:$0xff]
  %v137 = vld [vmem:[%s1 + $0x310] sm:$0xff]
  %v138 = vld [vmem:[%s1 + $0x318] sm:$0xff]
  %v139 = vld [vmem:[%s1 + $0x320] sm:$0xff]
  %v140 = vld [vmem:[%s1 + $0x328] sm:$0xff]
  %v141 = vld [vmem:[%s1 + $0x330] sm:$0xff]
  %v142 = vld [vmem:[%s1 + $0x338] sm:$0xff]
  %v143 = vld [vmem:[%s1 + $0x340] sm:$0xff]
  %v144 = vld [vmem:[%s1 + $0x348] sm:$0xff]
  %v145 = vld [vmem:[%s1 + $0x350] sm:$0xff]
  %v146 = vld [vmem:[%s1 + $0x358] sm:$0xff]
  %v147 = vld [vmem:[%s1 + $0x360] sm:$0xff]
  %v148 = vld [vmem:[%s1 + $0x368] sm:$0xff]
  %v149 = vld [vmem:[%s1 + $0x370] sm:$0xff]
  %v150 = vld [vmem:[%s1 + $0x378] sm:$0xff]
  %v151 = vld [vmem:[%s1 + $0x380] sm:$0xff]
  %v152 = vld [vmem:[%s1 + $0x388] sm:$0xff]
  %v153 = vld [vmem:[%s1 + $0x390] sm:$0xff]
  %v154 = vld [vmem:[%s1 + $0x398] sm:$0xff]
  %v155 = vld [vmem:[%s1 + $0x3a0] sm:$0xff]
  %v156 = vld [vmem:[%s1 + $0x3a8] sm:$0xff]
  %v157 = vld [vmem:[%s1 + $0x3b0] sm:$0xff]
  %v158 = vld [vmem:[%s1 + $0x3b8] sm:$0xff]
  %v159 = vld [vmem:[%s1 + $0x3c0] sm:$0xff]
  %v160 = vld [vmem:[%s1 + $0x3c8] sm:$0xff]
  %v161 = vld [vmem:[%s1 + $0x3d0] sm:$0xff]
  %v162 = vld [vmem:[%s1 + $0x3d8] sm:$0xff]
  %v163 = vld [vmem:[%s1 + $0x3e0] sm:$0xff]
  %v164 = vld [vmem:[%s1 + $0x3e8] sm:$0xff]
  %v165 = vld [vmem:[%s1 + $0x3f0] sm:$0xff]
  %v166 = vld [vmem:[%s1 + $0x3f8] sm:$0xff]
  %v167 = vld [vmem:[%s1 + $0x400] sm:$0xff]
  %v168 = vld [vmem:[%s1 + $0x408] sm:$0xff]
  %v169 = vld [vmem:[%s1 + $0x410] sm:$0xff]
  %v170 = vld [vmem:[%s1 + $0x418] sm:$0xff]
  %v171 = vld [vmem:[%s1 + $0x420] sm:$0xff]
  %v172 = vld [vmem:[%s1 + $0x428] sm:$0xff]
  %v173 = vld [vmem:[%s1 + $0x430] sm:$0xff]
  %v174 = vld [vmem:[%s1 + $0x438] sm:$0xff]
  %v175 = vld [vmem:[%s1 + $0x440] sm:$0xff]
  %v176 = vld [vmem:[%s1 + $0x448] sm:$0xff]
  %v177 = vld [vmem:[%s1 + $0x450] sm:$0xff]
  %v178 = vld [vmem:[%s1 + $0x458] sm:$0xff]
  %v179 = vld [vmem:[%s1 + $0x460] sm:$0xff]
  %v180 = vld [vmem:[%s1 + $0x468] sm:$0xff]
  %v181 = vld [vmem:[%s1 + $0x470] sm:$0xff]
  %v182 = vld [vmem:[%s1 + $0x478] sm:$0xff]
  %v183 = vld [vmem:[%s1 + $0x480] sm:$0xff]
  %v184 = vld [vmem:[%s1 + $0x488] sm:$0xff]
  %v185 = vld [vmem:[%s1 + $0x490] sm:$0xff]
  %v186 = vld [vmem:[%s1 + $0x498] sm:$0xff]
  %v187 = vld [vmem:[%s1 + $0x4a0] sm:$0xff]
  %v188 = vld [vmem:[%s1 + $0x4a8] sm:$0xff]
  %v189 = vld [vmem:[%s1 + $0x4b0] sm:$0xff]
  %v190 = vld [vmem:[%s1 + $0x4b8] sm:$0xff]
  %v191 = vld [vmem:[%s1 + $0x4c0] sm:$0xff]
  %v192 = vld [vmem:[%s1 + $0x4c8] sm:$0xff]
  %v193 = vld [vmem:[%s1 + $0x4d0] sm:$0xff]
  %v194 = vld [vmem:[%s1 + $0x4d8] sm:$0xff]
  %v195 = vld [vmem:[%s1 + $0x4e0] sm:$0xff]
  %v196 = vld [vmem:[%s1 + $0x4e8] sm:$0xff]
  %v197 = vld [vmem:[%s1 + $0x4f0] sm:$0xff]
  %v198 = vld [vmem:[%s1 + $0x4f8] sm:$0xff]
  %v199 = vld [vmem:[%s1 + $0x500] sm:$0xff]
  %v200 = vld [vmem:[%s1 + $0x508] sm:$0xff]
  %v201 = vld [vmem:[%s1 + $0x510] sm:$0xff]
  %v202 = vld [vmem:[%s1 + $0x518] sm:$0xff]
  %v203 = vld [vmem:[%s1 + $0x520] sm:$0xff]
  %v204 = vld [vmem:[%s1 + $0x528] sm:$0xff]
  %v205 = vld [vmem:[%s1 + $0x530] sm:$0xff]
  %v206 = vld [vmem:[%s1 + $0x538] sm:$0xff]
  %v207 = vld [vmem:[%s1 + $0x540] sm:$0xff]
  %v208 = vld [vmem:[%s1 + $0x548] sm:$0xff]
  %v209 = vld [vmem:[%s1 + $0x550] sm:$0xff]
  %v210 = vld [vmem:[%s1 + $0x558] sm:$0xff]
  %v211 = vld [vmem:[%s1 + $0x560] sm:$0xff]
  %v212 = vld [vmem:[%s1 + $0x568] sm:$0xff]
  %v213 = vld [vmem:[%s1 + $0x570] sm:$0xff]
  %v214 = vld [vmem:[%s1 + $0x578] sm:$0xff]
  %v215 = vld [vmem:[%s1 + $0x580] sm:$0xff]
  %v216 = vld [vmem:[%s1 + $0x588] sm:$0xff]
  %v217 = vld [vmem:[%s1 + $0x590] sm:$0xff]
  %v218 = vld [vmem:[%s1 + $0x598] sm:$0xff]
  %v219 = vld [vmem:[%s1 + $0x5a0] sm:$0xff]
  %v220 = vld [vmem:[%s1 + $0x5a8] sm:$0xff]
  %v221 = vld [vmem:[%s1 + $0x5b0] sm:$0xff]
  %v222 = vld [vmem:[%s1 + $0x5b8] sm:$0xff]
  %v223 = vld [vmem:[%s1 + $0x5c0] sm:$0xff]
  %v224 = vld [vmem:[%s1 + $0x5c8] sm:$0xff]
  %v225 = vld [vmem:[%s1 + $0x5d0] sm:$0xff]
  %v226 = vld [vmem:[%s1 + $0x5d8] sm:$0xff]
  %v227 = vld [vmem:[%s1 + $0x5e0] sm:$0xff]
  %v228 = vld [vmem:[%s1 + $0x5e8] sm:$0xff]
  %v229 = vld [vmem:[%s1 + $0x5f0] sm:$0xff]
  %v230 = vld [vmem:[%s1 + $0x5f8] sm:$0xff]
  %v231 = vld [vmem:[%s1 + $0x600] sm:$0xff]
  %v232 = vld [vmem:[%s1 + $0x608] sm:$0xff]
  %v233 = vld [vmem:[%s1 + $0x610] sm:$0xff]
  %v234 = vld [vmem:[%s1 + $0x618] sm:$0xff]
  %v235 = vld [vmem:[%s1 + $0x620] sm:$0xff]
  %v236 = vld [vmem:[%s1 + $0x628] sm:$0xff]
  %v237 = vld [vmem:[%s1 + $0x630] sm:$0xff]
  %v238 = vld [vmem:[%s1 + $0x638] sm:$0xff]
  %v239 = vld [vmem:[%s1 + $0x640] sm:$0xff]
  %v240 = vld [vmem:[%s1 + $0x648] sm:$0xff]
  %v241 = vld [vmem:[%s1 + $0x650] sm:$0xff]
  %v242 = vld [vmem:[%s1 + $0x658] sm:$0xff]
  %v243 = vld [vmem:[%s1 + $0x660] sm:$0xff]
  %v244 = vld [vmem:[%s1 + $0x668] sm:$0xff]
  %v245 = vld [vmem:[%s1 + $0x670] sm:$0xff]
  %v246 = vld [vmem:[%s1 + $0x678] sm:$0xff]
  %v247 = vld [vmem:[%s1 + $0x680] sm:$0xff]
  %v248 = vld [vmem:[%s1 + $0x688] sm:$0xff]
  %v249 = vld [vmem:[%s1 + $0x690] sm:$0xff]
  %v250 = vld [vmem:[%s1 + $0x698] sm:$0xff]
  %v251 = vld [vmem:[%s1 + $0x6a0] sm:$0xff]
  %v252 = vld [vmem:[%s1 + $0x6a8] sm:$0xff]
  %v253 = vld [vmem:[%s1 + $0x6b0] sm:$0xff]
  %v254 = vld [vmem:[%s1 + $0x6b8] sm:$0xff]
  %v255 = vld [vmem:[%s1 + $0x6c0] sm:$0xff]
  %v256 = vld [vmem:[%s1 + $0x6c8] sm:$0xff]
  %v257 = vld [vmem:[%s1 + $0x6d0] sm:$0xff]
  %v258 = vld [vmem:[%s1 + $0x6d8] sm:$0xff]
  %v259 = vld [vmem:[%s1 + $0x6e0] sm:$0xff]
  %v260 = vld [vmem:[%s1 + $0x6e8] sm:$0xff]
  %v261 = vld [vmem:[%s1 + $0x6f0] sm:$0xff]
  %v262 = vld [vmem:[%s1 + $0x6f8] sm:$0xff]
  %v263 = vld [vmem:[%s1 + $0x700] sm:$0xff]
  %v264 = vld [vmem:[%s1 + $0x708] sm:$0xff]
  %v265 = vld [vmem:[%s1 + $0x710] sm:$0xff]
  %v266 = vld [vmem:[%s1 + $0x718] sm:$0xff]
  %v267 = vld [vmem:[%s1 + $0x720] sm:$0xff]
  %v268 = vld [vmem:[%s1 + $0x728] sm:$0xff]
  %v269 = vld [vmem:[%s1 + $0x730] sm:$0xff]
  %v270 = vld [vmem:[%s1 + $0x738] sm:$0xff]
  %v271 = vld [vmem:[%s1 + $0x740] sm:$0xff]
  %v272 = vld [vmem:[%s1 + $0x748] sm:$0xff]
  %v273 = vld [vmem:[%s1 + $0x750] sm:$0xff]
  %v274 = vld [vmem:[%s1 + $0x758] sm:$0xff]
  %v275 = vld [vmem:[%s1 + $0x760] sm:$0xff]
  %v276 = vld [vmem:[%s1 + $0x768] sm:$0xff]
  %v277 = vld [vmem:[%s1 + $0x770] sm:$0xff]
  %v278 = vld [vmem:[%s1 + $0x778] sm:$0xff]
  %v279 = vld [vmem:[%s1 + $0x780] sm:$0xff]
  %v280 = vld [vmem:[%s1 + $0x788] sm:$0xff]
  %v281 = vld [vmem:[%s1 + $0x790] sm:$0xff]
  %v282 = vld [vmem:[%s1 + $0x798] sm:$0xff]
  %v283 = vld [vmem:[%s1 + $0x7a0] sm:$0xff]
  %v284 = vld [vmem:[%s1 + $0x7a8] sm:$0xff]
  %v285 = vld [vmem:[%s1 + $0x7b0] sm:$0xff]
  %v286 = vld [vmem:[%s1 + $0x7b8] sm:$0xff]
  %v287 = vld [vmem:[%s1 + $0x7c0] sm:$0xff]
  %v288 = vld [vmem:[%s1 + $0x7c8] sm:$0xff]
  %v289 = vld [vmem:[%s1 + $0x7d0] sm:$0xff]
  %v290 = vld [vmem:[%s1 + $0x7d8] sm:$0xff]
  %v291 = vld [vmem:[%s1 + $0x7e0] sm:$0xff]
  %v292 = vld [vmem:[%s1 + $0x7e8] sm:$0xff]
  %v293 = vld [vmem:[%s1 + $0x7f0] sm:$0xff]
  %v294 = vld [vmem:[%s1 + $0x7f8] sm:$0xff]
  %v303 = vunpack.c.l.b16 %v31
  %v304 = vunpack.c.h.b16 %v31
  %v305 = vunpack.c.l.b16 %v32
  %v306 = vunpack.c.h.b16 %v32
  %v307 = vunpack.c.l.b16 %v33
  %v308 = vunpack.c.h.b16 %v33
  %v309 = vunpack.c.l.b16 %v34
  %v310 = vunpack.c.h.b16 %v34
  %v311 = vunpack.c.l.b16 %v35
  %v312 = vunpack.c.h.b16 %v35
  %v313 = vunpack.c.l.b16 %v36
  %v314 = vunpack.c.h.b16 %v36
  %v315 = vunpack.c.l.b16 %v37
  %v316 = vunpack.c.h.b16 %v37
  %v317 = vunpack.c.l.b16 %v38
  %v318 = vunpack.c.h.b16 %v38
  %v319 = vpack.c.b16 %v303, %v303
  %v320 = vpack.c.b16 %v304, %v304
  %v321 = vpack.c.b16 %v305, %v305
  %v322 = vpack.c.b16 %v306, %v306
  %v323 = vpack.c.b16 %v307, %v307
  %v324 = vpack.c.b16 %v308, %v308
  %v325 = vpack.c.b16 %v309, %v309
  %v326 = vpack.c.b16 %v310, %v310
  %v327 = vpack.c.b16 %v311, %v311
  %v328 = vpack.c.b16 %v312, %v312
  %v329 = vpack.c.b16 %v313, %v313
  %v330 = vpack.c.b16 %v314, %v314
  %v331 = vpack.c.b16 %v315, %v315
  %v332 = vpack.c.b16 %v316, %v316
  %v333 = vpack.c.b16 %v317, %v317
  %v334 = vpack.c.b16 %v318, %v318
  %v607 = vunpack.c.l.b16 %v39
  %v608 = vunpack.c.h.b16 %v39
  %v609 = vunpack.c.l.b16 %v40
  %v610 = vunpack.c.h.b16 %v40
  %v611 = vunpack.c.l.b16 %v41
  %v612 = vunpack.c.h.b16 %v41
  %v613 = vunpack.c.l.b16 %v42
  %v614 = vunpack.c.h.b16 %v42
  %v615 = vunpack.c.l.b16 %v43
  %v616 = vunpack.c.h.b16 %v43
  %v617 = vunpack.c.l.b16 %v44
  %v618 = vunpack.c.h.b16 %v44
  %v619 = vunpack.c.l.b16 %v45
  %v620 = vunpack.c.h.b16 %v45
  %v621 = vunpack.c.l.b16 %v46
  %v622 = vunpack.c.h.b16 %v46
  %v623 = vunpack.c.l.b16 %v47
  %v624 = vunpack.c.h.b16 %v47
  %v625 = vunpack.c.l.b16 %v48
  %v626 = vunpack.c.h.b16 %v48
  %v627 = vunpack.c.l.b16 %v49
  %v628 = vunpack.c.h.b16 %v49
  %v629 = vunpack.c.l.b16 %v50
  %v630 = vunpack.c.h.b16 %v50
  %v631 = vunpack.c.l.b16 %v51
  %v632 = vunpack.c.h.b16 %v51
  %v633 = vunpack.c.l.b16 %v52
  %v634 = vunpack.c.h.b16 %v52
  %v635 = vunpack.c.l.b16 %v53
  %v636 = vunpack.c.h.b16 %v53
  %v637 = vunpack.c.l.b16 %v54
  %v638 = vunpack.c.h.b16 %v54
  %v639 = vunpack.c.l.b16 %v55
  %v640 = vunpack.c.h.b16 %v55
  %v641 = vunpack.c.l.b16 %v56
  %v642 = vunpack.c.h.b16 %v56
  %v643 = vunpack.c.l.b16 %v57
  %v644 = vunpack.c.h.b16 %v57
  %v645 = vunpack.c.l.b16 %v58
  %v646 = vunpack.c.h.b16 %v58
  %v647 = vunpack.c.l.b16 %v59
  %v648 = vunpack.c.h.b16 %v59
  %v649 = vunpack.c.l.b16 %v60
  %v650 = vunpack.c.h.b16 %v60
  %v651 = vunpack.c.l.b16 %v61
  %v652 = vunpack.c.h.b16 %v61
  %v653 = vunpack.c.l.b16 %v62
  %v654 = vunpack.c.h.b16 %v62
  %v655 = vunpack.c.l.b16 %v63
  %v656 = vunpack.c.h.b16 %v63
  %v657 = vunpack.c.l.b16 %v64
  %v658 = vunpack.c.h.b16 %v64
  %v659 = vunpack.c.l.b16 %v65
  %v660 = vunpack.c.h.b16 %v65
  %v661 = vunpack.c.l.b16 %v66
  %v662 = vunpack.c.h.b16 %v66
  %v663 = vunpack.c.l.b16 %v67
  %v664 = vunpack.c.h.b16 %v67
  %v665 = vunpack.c.l.b16 %v68
  %v666 = vunpack.c.h.b16 %v68
  %v667 = vunpack.c.l.b16 %v69
  %v668 = vunpack.c.h.b16 %v69
  %v669 = vunpack.c.l.b16 %v70
  %v670 = vunpack.c.h.b16 %v70
  %v671 = vunpack.c.l.b16 %v71
  %v672 = vunpack.c.h.b16 %v71
  %v673 = vunpack.c.l.b16 %v72
  %v674 = vunpack.c.h.b16 %v72
  %v675 = vunpack.c.l.b16 %v73
  %v676 = vunpack.c.h.b16 %v73
  %v677 = vunpack.c.l.b16 %v74
  %v678 = vunpack.c.h.b16 %v74
  %v679 = vunpack.c.l.b16 %v75
  %v680 = vunpack.c.h.b16 %v75
  %v681 = vunpack.c.l.b16 %v76
  %v682 = vunpack.c.h.b16 %v76
  %v683 = vunpack.c.l.b16 %v77
  %v684 = vunpack.c.h.b16 %v77
  %v685 = vunpack.c.l.b16 %v78
  %v686 = vunpack.c.h.b16 %v78
  %v687 = vunpack.c.l.b16 %v79
  %v688 = vunpack.c.h.b16 %v79
  %v689 = vunpack.c.l.b16 %v80
  %v690 = vunpack.c.h.b16 %v80
  %v691 = vunpack.c.l.b16 %v81
  %v692 = vunpack.c.h.b16 %v81
  %v693 = vunpack.c.l.b16 %v82
  %v694 = vunpack.c.h.b16 %v82
  %v695 = vunpack.c.l.b16 %v83
  %v696 = vunpack.c.h.b16 %v83
  %v697 = vunpack.c.l.b16 %v84
  %v698 = vunpack.c.h.b16 %v84
  %v699 = vunpack.c.l.b16 %v85
  %v700 = vunpack.c.h.b16 %v85
  %v701 = vunpack.c.l.b16 %v86
  %v702 = vunpack.c.h.b16 %v86
  %v703 = vunpack.c.l.b16 %v87
  %v704 = vunpack.c.h.b16 %v87
  %v705 = vunpack.c.l.b16 %v88
  %v706 = vunpack.c.h.b16 %v88
  %v707 = vunpack.c.l.b16 %v89
  %v708 = vunpack.c.h.b16 %v89
  %v709 = vunpack.c.l.b16 %v90
  %v710 = vunpack.c.h.b16 %v90
  %v711 = vunpack.c.l.b16 %v91
  %v712 = vunpack.c.h.b16 %v91
  %v713 = vunpack.c.l.b16 %v92
  %v714 = vunpack.c.h.b16 %v92
  %v715 = vunpack.c.l.b16 %v93
  %v716 = vunpack.c.h.b16 %v93
  %v717 = vunpack.c.l.b16 %v94
  %v718 = vunpack.c.h.b16 %v94
  %v719 = vunpack.c.l.b16 %v95
  %v720 = vunpack.c.h.b16 %v95
  %v721 = vunpack.c.l.b16 %v96
  %v722 = vunpack.c.h.b16 %v96
  %v723 = vunpack.c.l.b16 %v97
  %v724 = vunpack.c.h.b16 %v97
  %v725 = vunpack.c.l.b16 %v98
  %v726 = vunpack.c.h.b16 %v98
  %v727 = vunpack.c.l.b16 %v99
  %v728 = vunpack.c.h.b16 %v99
  %v729 = vunpack.c.l.b16 %v100
  %v730 = vunpack.c.h.b16 %v100
  %v731 = vunpack.c.l.b16 %v101
  %v732 = vunpack.c.h.b16 %v101
  %v733 = vunpack.c.l.b16 %v102
  %v734 = vunpack.c.h.b16 %v102
  %v735 = vunpack.c.l.b16 %v103
  %v736 = vunpack.c.h.b16 %v103
  %v737 = vunpack.c.l.b16 %v104
  %v738 = vunpack.c.h.b16 %v104
  %v739 = vunpack.c.l.b16 %v105
  %v740 = vunpack.c.h.b16 %v105
  %v741 = vunpack.c.l.b16 %v106
  %v742 = vunpack.c.h.b16 %v106
  %v743 = vunpack.c.l.b16 %v107
  %v744 = vunpack.c.h.b16 %v107
  %v745 = vunpack.c.l.b16 %v108
  %v746 = vunpack.c.h.b16 %v108
  %v747 = vunpack.c.l.b16 %v109
  %v748 = vunpack.c.h.b16 %v109
  %v749 = vunpack.c.l.b16 %v110
  %v750 = vunpack.c.h.b16 %v110
  %v751 = vunpack.c.l.b16 %v111
  %v752 = vunpack.c.h.b16 %v111
  %v753 = vunpack.c.l.b16 %v112
  %v754 = vunpack.c.h.b16 %v112
  %v755 = vunpack.c.l.b16 %v113
  %v756 = vunpack.c.h.b16 %v113
  %v757 = vunpack.c.l.b16 %v114
  %v758 = vunpack.c.h.b16 %v114
  %v759 = vunpack.c.l.b16 %v115
  %v760 = vunpack.c.h.b16 %v115
  %v761 = vunpack.c.l.b16 %v116
  %v762 = vunpack.c.h.b16 %v116
  %v763 = vunpack.c.l.b16 %v117
  %v764 = vunpack.c.h.b16 %v117
  %v765 = vunpack.c.l.b16 %v118
  %v766 = vunpack.c.h.b16 %v118
  %v767 = vunpack.c.l.b16 %v119
  %v768 = vunpack.c.h.b16 %v119
  %v769 = vunpack.c.l.b16 %v120
  %v770 = vunpack.c.h.b16 %v120
  %v771 = vunpack.c.l.b16 %v121
  %v772 = vunpack.c.h.b16 %v121
  %v773 = vunpack.c.l.b16 %v122
  %v774 = vunpack.c.h.b16 %v122
  %v775 = vunpack.c.l.b16 %v123
  %v776 = vunpack.c.h.b16 %v123
  %v777 = vunpack.c.l.b16 %v124
  %v778 = vunpack.c.h.b16 %v124
  %v779 = vunpack.c.l.b16 %v125
  %v780 = vunpack.c.h.b16 %v125
  %v781 = vunpack.c.l.b16 %v126
  %v782 = vunpack.c.h.b16 %v126
  %v783 = vunpack.c.l.b16 %v127
  %v784 = vunpack.c.h.b16 %v127
  %v785 = vunpack.c.l.b16 %v128
  %v786 = vunpack.c.h.b16 %v128
  %v787 = vunpack.c.l.b16 %v129
  %v788 = vunpack.c.h.b16 %v129
  %v789 = vunpack.c.l.b16 %v130
  %v790 = vunpack.c.h.b16 %v130
  %v791 = vunpack.c.l.b16 %v131
  %v792 = vunpack.c.h.b16 %v131
  %v793 = vunpack.c.l.b16 %v132
  %v794 = vunpack.c.h.b16 %v132
  %v795 = vunpack.c.l.b16 %v133
  %v796 = vunpack.c.h.b16 %v133
  %v797 = vunpack.c.l.b16 %v134
  %v798 = vunpack.c.h.b16 %v134
  %v799 = vunpack.c.l.b16 %v135
  %v800 = vunpack.c.h.b16 %v135
  %v801 = vunpack.c.l.b16 %v136
  %v802 = vunpack.c.h.b16 %v136
  %v803 = vunpack.c.l.b16 %v137
  %v804 = vunpack.c.h.b16 %v137
  %v805 = vunpack.c.l.b16 %v138
  %v806 = vunpack.c.h.b16 %v138
  %v807 = vunpack.c.l.b16 %v139
  %v808 = vunpack.c.h.b16 %v139
  %v809 = vunpack.c.l.b16 %v140
  %v810 = vunpack.c.h.b16 %v140
  %v811 = vunpack.c.l.b16 %v141
  %v812 = vunpack.c.h.b16 %v141
  %v813 = vunpack.c.l.b16 %v142
  %v814 = vunpack.c.h.b16 %v142
  %v815 = vunpack.c.l.b16 %v143
  %v816 = vunpack.c.h.b16 %v143
  %v817 = vunpack.c.l.b16 %v144
  %v818 = vunpack.c.h.b16 %v144
  %v819 = vunpack.c.l.b16 %v145
  %v820 = vunpack.c.h.b16 %v145
  %v821 = vunpack.c.l.b16 %v146
  %v822 = vunpack.c.h.b16 %v146
  %v823 = vunpack.c.l.b16 %v147
  %v824 = vunpack.c.h.b16 %v147
  %v825 = vunpack.c.l.b16 %v148
  %v826 = vunpack.c.h.b16 %v148
  %v827 = vunpack.c.l.b16 %v149
  %v828 = vunpack.c.h.b16 %v149
  %v829 = vunpack.c.l.b16 %v150
  %v830 = vunpack.c.h.b16 %v150
  %v831 = vunpack.c.l.b16 %v151
  %v832 = vunpack.c.h.b16 %v151
  %v833 = vunpack.c.l.b16 %v152
  %v834 = vunpack.c.h.b16 %v152
  %v835 = vunpack.c.l.b16 %v153
  %v836 = vunpack.c.h.b16 %v153
  %v837 = vunpack.c.l.b16 %v154
  %v838 = vunpack.c.h.b16 %v154
  %v839 = vunpack.c.l.b16 %v155
  %v840 = vunpack.c.h.b16 %v155
  %v841 = vunpack.c.l.b16 %v156
  %v842 = vunpack.c.h.b16 %v156
  %v843 = vunpack.c.l.b16 %v157
  %v844 = vunpack.c.h.b16 %v157
  %v845 = vunpack.c.l.b16 %v158
  %v846 = vunpack.c.h.b16 %v158
  %v847 = vunpack.c.l.b16 %v159
  %v848 = vunpack.c.h.b16 %v159
  %v849 = vunpack.c.l.b16 %v160
  %v850 = vunpack.c.h.b16 %v160
  %v851 = vunpack.c.l.b16 %v161
  %v852 = vunpack.c.h.b16 %v161
  %v853 = vunpack.c.l.b16 %v162
  %v854 = vunpack.c.h.b16 %v162
  %v855 = vunpack.c.l.b16 %v163
  %v856 = vunpack.c.h.b16 %v163
  %v857 = vunpack.c.l.b16 %v164
  %v858 = vunpack.c.h.b16 %v164
  %v859 = vunpack.c.l.b16 %v165
  %v860 = vunpack.c.h.b16 %v165
  %v861 = vunpack.c.l.b16 %v166
  %v862 = vunpack.c.h.b16 %v166
  %v863 = vunpack.c.l.b16 %v167
  %v864 = vunpack.c.h.b16 %v167
  %v865 = vunpack.c.l.b16 %v168
  %v866 = vunpack.c.h.b16 %v168
  %v867 = vunpack.c.l.b16 %v169
  %v868 = vunpack.c.h.b16 %v169
  %v869 = vunpack.c.l.b16 %v170
  %v870 = vunpack.c.h.b16 %v170
  %v871 = vunpack.c.l.b16 %v171
  %v872 = vunpack.c.h.b16 %v171
  %v873 = vunpack.c.l.b16 %v172
  %v874 = vunpack.c.h.b16 %v172
  %v875 = vunpack.c.l.b16 %v173
  %v876 = vunpack.c.h.b16 %v173
  %v877 = vunpack.c.l.b16 %v174
  %v878 = vunpack.c.h.b16 %v174
  %v879 = vunpack.c.l.b16 %v175
  %v880 = vunpack.c.h.b16 %v175
  %v881 = vunpack.c.l.b16 %v176
  %v882 = vunpack.c.h.b16 %v176
  %v883 = vunpack.c.l.b16 %v177
  %v884 = vunpack.c.h.b16 %v177
  %v885 = vunpack.c.l.b16 %v178
  %v886 = vunpack.c.h.b16 %v178
  %v887 = vunpack.c.l.b16 %v179
  %v888 = vunpack.c.h.b16 %v179
  %v889 = vunpack.c.l.b16 %v180
  %v890 = vunpack.c.h.b16 %v180
  %v891 = vunpack.c.l.b16 %v181
  %v892 = vunpack.c.h.b16 %v181
  %v893 = vunpack.c.l.b16 %v182
  %v894 = vunpack.c.h.b16 %v182
  %v895 = vunpack.c.l.b16 %v183
  %v896 = vunpack.c.h.b16 %v183
  %v897 = vunpack.c.l.b16 %v184
  %v898 = vunpack.c.h.b16 %v184
  %v899 = vunpack.c.l.b16 %v185
  %v900 = vunpack.c.h.b16 %v185
  %v901 = vunpack.c.l.b16 %v186
  %v902 = vunpack.c.h.b16 %v186
  %v903 = vunpack.c.l.b16 %v187
  %v904 = vunpack.c.h.b16 %v187
  %v905 = vunpack.c.l.b16 %v188
  %v906 = vunpack.c.h.b16 %v188
  %v907 = vunpack.c.l.b16 %v189
  %v908 = vunpack.c.h.b16 %v189
  %v909 = vunpack.c.l.b16 %v190
  %v910 = vunpack.c.h.b16 %v190
  %v911 = vunpack.c.l.b16 %v191
  %v912 = vunpack.c.h.b16 %v191
  %v913 = vunpack.c.l.b16 %v192
  %v914 = vunpack.c.h.b16 %v192
  %v915 = vunpack.c.l.b16 %v193
  %v916 = vunpack.c.h.b16 %v193
  %v917 = vunpack.c.l.b16 %v194
  %v918 = vunpack.c.h.b16 %v194
  %v919 = vunpack.c.l.b16 %v195
  %v920 = vunpack.c.h.b16 %v195
  %v921 = vunpack.c.l.b16 %v196
  %v922 = vunpack.c.h.b16 %v196
  %v923 = vunpack.c.l.b16 %v197
  %v924 = vunpack.c.h.b16 %v197
  %v925 = vunpack.c.l.b16 %v198
  %v926 = vunpack.c.h.b16 %v198
  %v927 = vunpack.c.l.b16 %v199
  %v928 = vunpack.c.h.b16 %v199
  %v929 = vunpack.c.l.b16 %v200
  %v930 = vunpack.c.h.b16 %v200
  %v931 = vunpack.c.l.b16 %v201
  %v932 = vunpack.c.h.b16 %v201
  %v933 = vunpack.c.l.b16 %v202
  %v934 = vunpack.c.h.b16 %v202
  %v935 = vunpack.c.l.b16 %v203
  %v936 = vunpack.c.h.b16 %v203
  %v937 = vunpack.c.l.b16 %v204
  %v938 = vunpack.c.h.b16 %v204
  %v939 = vunpack.c.l.b16 %v205
  %v940 = vunpack.c.h.b16 %v205
  %v941 = vunpack.c.l.b16 %v206
  %v942 = vunpack.c.h.b16 %v206
  %v943 = vunpack.c.l.b16 %v207
  %v944 = vunpack.c.h.b16 %v207
  %v945 = vunpack.c.l.b16 %v208
  %v946 = vunpack.c.h.b16 %v208
  %v947 = vunpack.c.l.b16 %v209
  %v948 = vunpack.c.h.b16 %v209
  %v949 = vunpack.c.l.b16 %v210
  %v950 = vunpack.c.h.b16 %v210
  %v951 = vunpack.c.l.b16 %v211
  %v952 = vunpack.c.h.b16 %v211
  %v953 = vunpack.c.l.b16 %v212
  %v954 = vunpack.c.h.b16 %v212
  %v955 = vunpack.c.l.b16 %v213
  %v956 = vunpack.c.h.b16 %v213
  %v957 = vunpack.c.l.b16 %v214
  %v958 = vunpack.c.h.b16 %v214
  %v959 = vunpack.c.l.b16 %v215
  %v960 = vunpack.c.h.b16 %v215
  %v961 = vunpack.c.l.b16 %v216
  %v962 = vunpack.c.h.b16 %v216
  %v963 = vunpack.c.l.b16 %v217
  %v964 = vunpack.c.h.b16 %v217
  %v965 = vunpack.c.l.b16 %v218
  %v966 = vunpack.c.h.b16 %v218
  %v967 = vunpack.c.l.b16 %v219
  %v968 = vunpack.c.h.b16 %v219
  %v969 = vunpack.c.l.b16 %v220
  %v970 = vunpack.c.h.b16 %v220
  %v971 = vunpack.c.l.b16 %v221
  %v972 = vunpack.c.h.b16 %v221
  %v973 = vunpack.c.l.b16 %v222
  %v974 = vunpack.c.h.b16 %v222
  %v975 = vunpack.c.l.b16 %v223
  %v976 = vunpack.c.h.b16 %v223
  %v977 = vunpack.c.l.b16 %v224
  %v978 = vunpack.c.h.b16 %v224
  %v979 = vunpack.c.l.b16 %v225
  %v980 = vunpack.c.h.b16 %v225
  %v981 = vunpack.c.l.b16 %v226
  %v982 = vunpack.c.h.b16 %v226
  %v983 = vunpack.c.l.b16 %v227
  %v984 = vunpack.c.h.b16 %v227
  %v985 = vunpack.c.l.b16 %v228
  %v986 = vunpack.c.h.b16 %v228
  %v987 = vunpack.c.l.b16 %v229
  %v988 = vunpack.c.h.b16 %v229
  %v989 = vunpack.c.l.b16 %v230
  %v990 = vunpack.c.h.b16 %v230
  %v991 = vunpack.c.l.b16 %v231
  %v992 = vunpack.c.h.b16 %v231
  %v993 = vunpack.c.l.b16 %v232
  %v994 = vunpack.c.h.b16 %v232
  %v995 = vunpack.c.l.b16 %v233
  %v996 = vunpack.c.h.b16 %v233
  %v997 = vunpack.c.l.b16 %v234
  %v998 = vunpack.c.h.b16 %v234
  %v999 = vunpack.c.l.b16 %v235
  %v1000 = vunpack.c.h.b16 %v235
  %v1001 = vunpack.c.l.b16 %v236
  %v1002 = vunpack.c.h.b16 %v236
  %v1003 = vunpack.c.l.b16 %v237
  %v1004 = vunpack.c.h.b16 %v237
  %v1005 = vunpack.c.l.b16 %v238
  %v1006 = vunpack.c.h.b16 %v238
  %v1007 = vunpack.c.l.b16 %v239
  %v1008 = vunpack.c.h.b16 %v239
  %v1009 = vunpack.c.l.b16 %v240
  %v1010 = vunpack.c.h.b16 %v240
  %v1011 = vunpack.c.l.b16 %v241
  %v1012 = vunpack.c.h.b16 %v241
  %v1013 = vunpack.c.l.b16 %v242
  %v1014 = vunpack.c.h.b16 %v242
  %v1015 = vunpack.c.l.b16 %v243
  %v1016 = vunpack.c.h.b16 %v243
  %v1017 = vunpack.c.l.b16 %v244
  %v1018 = vunpack.c.h.b16 %v244
  %v1019 = vunpack.c.l.b16 %v245
  %v1020 = vunpack.c.h.b16 %v245
  %v1021 = vunpack.c.l.b16 %v246
  %v1022 = vunpack.c.h.b16 %v246
  %v1023 = vunpack.c.l.b16 %v247
  %v1024 = vunpack.c.h.b16 %v247
  %v1025 = vunpack.c.l.b16 %v248
  %v1026 = vunpack.c.h.b16 %v248
  %v1027 = vunpack.c.l.b16 %v249
  %v1028 = vunpack.c.h.b16 %v249
  %v1029 = vunpack.c.l.b16 %v250
  %v1030 = vunpack.c.h.b16 %v250
  %v1031 = vunpack.c.l.b16 %v251
  %v1032 = vunpack.c.h.b16 %v251
  %v1033 = vunpack.c.l.b16 %v252
  %v1034 = vunpack.c.h.b16 %v252
  %v1035 = vunpack.c.l.b16 %v253
  %v1036 = vunpack.c.h.b16 %v253
  %v1037 = vunpack.c.l.b16 %v254
  %v1038 = vunpack.c.h.b16 %v254
  %v1039 = vunpack.c.l.b16 %v255
  %v1040 = vunpack.c.h.b16 %v255
  %v1041 = vunpack.c.l.b16 %v256
  %v1042 = vunpack.c.h.b16 %v256
  %v1043 = vunpack.c.l.b16 %v257
  %v1044 = vunpack.c.h.b16 %v257
  %v1045 = vunpack.c.l.b16 %v258
  %v1046 = vunpack.c.h.b16 %v258
  %v1047 = vunpack.c.l.b16 %v259
  %v1048 = vunpack.c.h.b16 %v259
  %v1049 = vunpack.c.l.b16 %v260
  %v1050 = vunpack.c.h.b16 %v260
  %v1051 = vunpack.c.l.b16 %v261
  %v1052 = vunpack.c.h.b16 %v261
  %v1053 = vunpack.c.l.b16 %v262
  %v1054 = vunpack.c.h.b16 %v262
  %v1055 = vunpack.c.l.b16 %v263
  %v1056 = vunpack.c.h.b16 %v263
  %v1057 = vunpack.c.l.b16 %v264
  %v1058 = vunpack.c.h.b16 %v264
  %v1059 = vunpack.c.l.b16 %v265
  %v1060 = vunpack.c.h.b16 %v265
  %v1061 = vunpack.c.l.b16 %v266
  %v1062 = vunpack.c.h.b16 %v266
  %v1063 = vunpack.c.l.b16 %v267
  %v1064 = vunpack.c.h.b16 %v267
  %v1065 = vunpack.c.l.b16 %v268
  %v1066 = vunpack.c.h.b16 %v268
  %v1067 = vunpack.c.l.b16 %v269
  %v1068 = vunpack.c.h.b16 %v269
  %v1069 = vunpack.c.l.b16 %v270
  %v1070 = vunpack.c.h.b16 %v270
  %v1071 = vunpack.c.l.b16 %v271
  %v1072 = vunpack.c.h.b16 %v271
  %v1073 = vunpack.c.l.b16 %v272
  %v1074 = vunpack.c.h.b16 %v272
  %v1075 = vunpack.c.l.b16 %v273
  %v1076 = vunpack.c.h.b16 %v273
  %v1077 = vunpack.c.l.b16 %v274
  %v1078 = vunpack.c.h.b16 %v274
  %v1079 = vunpack.c.l.b16 %v275
  %v1080 = vunpack.c.h.b16 %v275
  %v1081 = vunpack.c.l.b16 %v276
  %v1082 = vunpack.c.h.b16 %v276
  %v1083 = vunpack.c.l.b16 %v277
  %v1084 = vunpack.c.h.b16 %v277
  %v1085 = vunpack.c.l.b16 %v278
  %v1086 = vunpack.c.h.b16 %v278
  %v1087 = vunpack.c.l.b16 %v279
  %v1088 = vunpack.c.h.b16 %v279
  %v1089 = vunpack.c.l.b16 %v280
  %v1090 = vunpack.c.h.b16 %v280
  %v1091 = vunpack.c.l.b16 %v281
  %v1092 = vunpack.c.h.b16 %v281
  %v1093 = vunpack.c.l.b16 %v282
  %v1094 = vunpack.c.h.b16 %v282
  %v1095 = vunpack.c.l.b16 %v283
  %v1096 = vunpack.c.h.b16 %v283
  %v1097 = vunpack.c.l.b16 %v284
  %v1098 = vunpack.c.h.b16 %v284
  %v1099 = vunpack.c.l.b16 %v285
  %v1100 = vunpack.c.h.b16 %v285
  %v1101 = vunpack.c.l.b16 %v286
  %v1102 = vunpack.c.h.b16 %v286
  %v1103 = vunpack.c.l.b16 %v287
  %v1104 = vunpack.c.h.b16 %v287
  %v1105 = vunpack.c.l.b16 %v288
  %v1106 = vunpack.c.h.b16 %v288
  %v1107 = vunpack.c.l.b16 %v289
  %v1108 = vunpack.c.h.b16 %v289
  %v1109 = vunpack.c.l.b16 %v290
  %v1110 = vunpack.c.h.b16 %v290
  %v1111 = vunpack.c.l.b16 %v291
  %v1112 = vunpack.c.h.b16 %v291
  %v1113 = vunpack.c.l.b16 %v292
  %v1114 = vunpack.c.h.b16 %v292
  %v1115 = vunpack.c.l.b16 %v293
  %v1116 = vunpack.c.h.b16 %v293
  %v1117 = vunpack.c.l.b16 %v294
  %v1118 = vunpack.c.h.b16 %v294
  %v1119 = vpack.c.b16 %v609, %v607
  %v1120 = vpack.c.b16 %v610, %v608
  %v1121 = vpack.c.b16 %v613, %v611
  %v1122 = vpack.c.b16 %v614, %v612
  %v1123 = vpack.c.b16 %v617, %v615
  %v1124 = vpack.c.b16 %v618, %v616
  %v1125 = vpack.c.b16 %v621, %v619
  %v1126 = vpack.c.b16 %v622, %v620
  %v1127 = vpack.c.b16 %v625, %v623
  %v1128 = vpack.c.b16 %v626, %v624
  %v1129 = vpack.c.b16 %v629, %v627
  %v1130 = vpack.c.b16 %v630, %v628
  %v1131 = vpack.c.b16 %v633, %v631
  %v1132 = vpack.c.b16 %v634, %v632
  %v1133 = vpack.c.b16 %v637, %v635
  %v1134 = vpack.c.b16 %v638, %v636
  %v1135 = vpack.c.b16 %v641, %v639
  %v1136 = vpack.c.b16 %v642, %v640
  %v1137 = vpack.c.b16 %v645, %v643
  %v1138 = vpack.c.b16 %v646, %v644
  %v1139 = vpack.c.b16 %v649, %v647
  %v1140 = vpack.c.b16 %v650, %v648
  %v1141 = vpack.c.b16 %v653, %v651
  %v1142 = vpack.c.b16 %v654, %v652
  %v1143 = vpack.c.b16 %v657, %v655
  %v1144 = vpack.c.b16 %v658, %v656
  %v1145 = vpack.c.b16 %v661, %v659
  %v1146 = vpack.c.b16 %v662, %v660
  %v1147 = vpack.c.b16 %v665, %v663
  %v1148 = vpack.c.b16 %v666, %v664
  %v1149 = vpack.c.b16 %v669, %v667
  %v1150 = vpack.c.b16 %v670, %v668
  %v1151 = vpack.c.b16 %v673, %v671
  %v1152 = vpack.c.b16 %v674, %v672
  %v1153 = vpack.c.b16 %v677, %v675
  %v1154 = vpack.c.b16 %v678, %v676
  %v1155 = vpack.c.b16 %v681, %v679
  %v1156 = vpack.c.b16 %v682, %v680
  %v1157 = vpack.c.b16 %v685, %v683
  %v1158 = vpack.c.b16 %v686, %v684
  %v1159 = vpack.c.b16 %v689, %v687
  %v1160 = vpack.c.b16 %v690, %v688
  %v1161 = vpack.c.b16 %v693, %v691
  %v1162 = vpack.c.b16 %v694, %v692
  %v1163 = vpack.c.b16 %v697, %v695
  %v1164 = vpack.c.b16 %v698, %v696
  %v1165 = vpack.c.b16 %v701, %v699
  %v1166 = vpack.c.b16 %v702, %v700
  %v1167 = vpack.c.b16 %v705, %v703
  %v1168 = vpack.c.b16 %v706, %v704
  %v1169 = vpack.c.b16 %v709, %v707
  %v1170 = vpack.c.b16 %v710, %v708
  %v1171 = vpack.c.b16 %v713, %v711
  %v1172 = vpack.c.b16 %v714, %v712
  %v1173 = vpack.c.b16 %v717, %v715
  %v1174 = vpack.c.b16 %v718, %v716
  %v1175 = vpack.c.b16 %v721, %v719
  %v1176 = vpack.c.b16 %v722, %v720
  %v1177 = vpack.c.b16 %v725, %v723
  %v1178 = vpack.c.b16 %v726, %v724
  %v1179 = vpack.c.b16 %v729, %v727
  %v1180 = vpack.c.b16 %v730, %v728
  %v1181 = vpack.c.b16 %v733, %v731
  %v1182 = vpack.c.b16 %v734, %v732
  %v1183 = vpack.c.b16 %v737, %v735
  %v1184 = vpack.c.b16 %v738, %v736
  %v1185 = vpack.c.b16 %v741, %v739
  %v1186 = vpack.c.b16 %v742, %v740
  %v1187 = vpack.c.b16 %v745, %v743
  %v1188 = vpack.c.b16 %v746, %v744
  %v1189 = vpack.c.b16 %v749, %v747
  %v1190 = vpack.c.b16 %v750, %v748
  %v1191 = vpack.c.b16 %v753, %v751
  %v1192 = vpack.c.b16 %v754, %v752
  %v1193 = vpack.c.b16 %v757, %v755
  %v1194 = vpack.c.b16 %v758, %v756
  %v1195 = vpack.c.b16 %v761, %v759
  %v1196 = vpack.c.b16 %v762, %v760
  %v1197 = vpack.c.b16 %v765, %v763
  %v1198 = vpack.c.b16 %v766, %v764
  %v1199 = vpack.c.b16 %v769, %v767
  %v1200 = vpack.c.b16 %v770, %v768
  %v1201 = vpack.c.b16 %v773, %v771
  %v1202 = vpack.c.b16 %v774, %v772
  %v1203 = vpack.c.b16 %v777, %v775
  %v1204 = vpack.c.b16 %v778, %v776
  %v1205 = vpack.c.b16 %v781, %v779
  %v1206 = vpack.c.b16 %v782, %v780
  %v1207 = vpack.c.b16 %v785, %v783
  %v1208 = vpack.c.b16 %v786, %v784
  %v1209 = vpack.c.b16 %v789, %v787
  %v1210 = vpack.c.b16 %v790, %v788
  %v1211 = vpack.c.b16 %v793, %v791
  %v1212 = vpack.c.b16 %v794, %v792
  %v1213 = vpack.c.b16 %v797, %v795
  %v1214 = vpack.c.b16 %v798, %v796
  %v1215 = vpack.c.b16 %v801, %v799
  %v1216 = vpack.c.b16 %v802, %v800
  %v1217 = vpack.c.b16 %v805, %v803
  %v1218 = vpack.c.b16 %v806, %v804
  %v1219 = vpack.c.b16 %v809, %v807
  %v1220 = vpack.c.b16 %v810, %v808
  %v1221 = vpack.c.b16 %v813, %v811
  %v1222 = vpack.c.b16 %v814, %v812
  %v1223 = vpack.c.b16 %v817, %v815
  %v1224 = vpack.c.b16 %v818, %v816
  %v1225 = vpack.c.b16 %v821, %v819
  %v1226 = vpack.c.b16 %v822, %v820
  %v1227 = vpack.c.b16 %v825, %v823
  %v1228 = vpack.c.b16 %v826, %v824
  %v1229 = vpack.c.b16 %v829, %v827
  %v1230 = vpack.c.b16 %v830, %v828
  %v1231 = vpack.c.b16 %v833, %v831
  %v1232 = vpack.c.b16 %v834, %v832
  %v1233 = vpack.c.b16 %v837, %v835
  %v1234 = vpack.c.b16 %v838, %v836
  %v1235 = vpack.c.b16 %v841, %v839
  %v1236 = vpack.c.b16 %v842, %v840
  %v1237 = vpack.c.b16 %v845, %v843
  %v1238 = vpack.c.b16 %v846, %v844
  %v1239 = vpack.c.b16 %v849, %v847
  %v1240 = vpack.c.b16 %v850, %v848
  %v1241 = vpack.c.b16 %v853, %v851
  %v1242 = vpack.c.b16 %v854, %v852
  %v1243 = vpack.c.b16 %v857, %v855
  %v1244 = vpack.c.b16 %v858, %v856
  %v1245 = vpack.c.b16 %v861, %v859
  %v1246 = vpack.c.b16 %v862, %v860
  %v1247 = vpack.c.b16 %v865, %v863
  %v1248 = vpack.c.b16 %v866, %v864
  %v1249 = vpack.c.b16 %v869, %v867
  %v1250 = vpack.c.b16 %v870, %v868
  %v1251 = vpack.c.b16 %v873, %v871
  %v1252 = vpack.c.b16 %v874, %v872
  %v1253 = vpack.c.b16 %v877, %v875
  %v1254 = vpack.c.b16 %v878, %v876
  %v1255 = vpack.c.b16 %v881, %v879
  %v1256 = vpack.c.b16 %v882, %v880
  %v1257 = vpack.c.b16 %v885, %v883
  %v1258 = vpack.c.b16 %v886, %v884
  %v1259 = vpack.c.b16 %v889, %v887
  %v1260 = vpack.c.b16 %v890, %v888
  %v1261 = vpack.c.b16 %v893, %v891
  %v1262 = vpack.c.b16 %v894, %v892
  %v1263 = vpack.c.b16 %v897, %v895
  %v1264 = vpack.c.b16 %v898, %v896
  %v1265 = vpack.c.b16 %v901, %v899
  %v1266 = vpack.c.b16 %v902, %v900
  %v1267 = vpack.c.b16 %v905, %v903
  %v1268 = vpack.c.b16 %v906, %v904
  %v1269 = vpack.c.b16 %v909, %v907
  %v1270 = vpack.c.b16 %v910, %v908
  %v1271 = vpack.c.b16 %v913, %v911
  %v1272 = vpack.c.b16 %v914, %v912
  %v1273 = vpack.c.b16 %v917, %v915
  %v1274 = vpack.c.b16 %v918, %v916
  %v1275 = vpack.c.b16 %v921, %v919
  %v1276 = vpack.c.b16 %v922, %v920
  %v1277 = vpack.c.b16 %v925, %v923
  %v1278 = vpack.c.b16 %v926, %v924
  %v1279 = vpack.c.b16 %v929, %v927
  %v1280 = vpack.c.b16 %v930, %v928
  %v1281 = vpack.c.b16 %v933, %v931
  %v1282 = vpack.c.b16 %v934, %v932
  %v1283 = vpack.c.b16 %v937, %v935
  %v1284 = vpack.c.b16 %v938, %v936
  %v1285 = vpack.c.b16 %v941, %v939
  %v1286 = vpack.c.b16 %v942, %v940
  %v1287 = vpack.c.b16 %v945, %v943
  %v1288 = vpack.c.b16 %v946, %v944
  %v1289 = vpack.c.b16 %v949, %v947
  %v1290 = vpack.c.b16 %v950, %v948
  %v1291 = vpack.c.b16 %v953, %v951
  %v1292 = vpack.c.b16 %v954, %v952
  %v1293 = vpack.c.b16 %v957, %v955
  %v1294 = vpack.c.b16 %v958, %v956
  %v1295 = vpack.c.b16 %v961, %v959
  %v1296 = vpack.c.b16 %v962, %v960
  %v1297 = vpack.c.b16 %v965, %v963
  %v1298 = vpack.c.b16 %v966, %v964
  %v1299 = vpack.c.b16 %v969, %v967
  %v1300 = vpack.c.b16 %v970, %v968
  %v1301 = vpack.c.b16 %v973, %v971
  %v1302 = vpack.c.b16 %v974, %v972
  %v1303 = vpack.c.b16 %v977, %v975
  %v1304 = vpack.c.b16 %v978, %v976
  %v1305 = vpack.c.b16 %v981, %v979
  %v1306 = vpack.c.b16 %v982, %v980
  %v1307 = vpack.c.b16 %v985, %v983
  %v1308 = vpack.c.b16 %v986, %v984
  %v1309 = vpack.c.b16 %v989, %v987
  %v1310 = vpack.c.b16 %v990, %v988
  %v1311 = vpack.c.b16 %v993, %v991
  %v1312 = vpack.c.b16 %v994, %v992
  %v1313 = vpack.c.b16 %v997, %v995
  %v1314 = vpack.c.b16 %v998, %v996
  %v1315 = vpack.c.b16 %v1001, %v999
  %v1316 = vpack.c.b16 %v1002, %v1000
  %v1317 = vpack.c.b16 %v1005, %v1003
  %v1318 = vpack.c.b16 %v1006, %v1004
  %v1319 = vpack.c.b16 %v1009, %v1007
  %v1320 = vpack.c.b16 %v1010, %v1008
  %v1321 = vpack.c.b16 %v1013, %v1011
  %v1322 = vpack.c.b16 %v1014, %v1012
  %v1323 = vpack.c.b16 %v1017, %v1015
  %v1324 = vpack.c.b16 %v1018, %v1016
  %v1325 = vpack.c.b16 %v1021, %v1019
  %v1326 = vpack.c.b16 %v1022, %v1020
  %v1327 = vpack.c.b16 %v1025, %v1023
  %v1328 = vpack.c.b16 %v1026, %v1024
  %v1329 = vpack.c.b16 %v1029, %v1027
  %v1330 = vpack.c.b16 %v1030, %v1028
  %v1331 = vpack.c.b16 %v1033, %v1031
  %v1332 = vpack.c.b16 %v1034, %v1032
  %v1333 = vpack.c.b16 %v1037, %v1035
  %v1334 = vpack.c.b16 %v1038, %v1036
  %v1335 = vpack.c.b16 %v1041, %v1039
  %v1336 = vpack.c.b16 %v1042, %v1040
  %v1337 = vpack.c.b16 %v1045, %v1043
  %v1338 = vpack.c.b16 %v1046, %v1044
  %v1339 = vpack.c.b16 %v1049, %v1047
  %v1340 = vpack.c.b16 %v1050, %v1048
  %v1341 = vpack.c.b16 %v1053, %v1051
  %v1342 = vpack.c.b16 %v1054, %v1052
  %v1343 = vpack.c.b16 %v1057, %v1055
  %v1344 = vpack.c.b16 %v1058, %v1056
  %v1345 = vpack.c.b16 %v1061, %v1059
  %v1346 = vpack.c.b16 %v1062, %v1060
  %v1347 = vpack.c.b16 %v1065, %v1063
  %v1348 = vpack.c.b16 %v1066, %v1064
  %v1349 = vpack.c.b16 %v1069, %v1067
  %v1350 = vpack.c.b16 %v1070, %v1068
  %v1351 = vpack.c.b16 %v1073, %v1071
  %v1352 = vpack.c.b16 %v1074, %v1072
  %v1353 = vpack.c.b16 %v1077, %v1075
  %v1354 = vpack.c.b16 %v1078, %v1076
  %v1355 = vpack.c.b16 %v1081, %v1079
  %v1356 = vpack.c.b16 %v1082, %v1080
  %v1357 = vpack.c.b16 %v1085, %v1083
  %v1358 = vpack.c.b16 %v1086, %v1084
  %v1359 = vpack.c.b16 %v1089, %v1087
  %v1360 = vpack.c.b16 %v1090, %v1088
  %v1361 = vpack.c.b16 %v1093, %v1091
  %v1362 = vpack.c.b16 %v1094, %v1092
  %v1363 = vpack.c.b16 %v1097, %v1095
  %v1364 = vpack.c.b16 %v1098, %v1096
  %v1365 = vpack.c.b16 %v1101, %v1099
  %v1366 = vpack.c.b16 %v1102, %v1100
  %v1367 = vpack.c.b16 %v1105, %v1103
  %v1368 = vpack.c.b16 %v1106, %v1104
  %v1369 = vpack.c.b16 %v1109, %v1107
  %v1370 = vpack.c.b16 %v1110, %v1108
  %v1371 = vpack.c.b16 %v1113, %v1111
  %v1372 = vpack.c.b16 %v1114, %v1112
  %v1373 = vpack.c.b16 %v1117, %v1115
  %v1374 = vpack.c.b16 %v1118, %v1116
  %1631 = vmatprep.subr.bf16.mxu0 %v1134
  %1632 = vmatpush1.bf16.msra.mxu0 %v1133
  %1633 = vmatprep.subr.bf16.mxu0 %v1132
  %1634 = vmatpush1.bf16.msra.mxu0 %v1131
  %1635 = vmatprep.subr.bf16.mxu0 %v1130
  %1636 = vmatpush1.bf16.msra.mxu0 %v1129
  %1637 = vmatprep.subr.bf16.mxu0 %v1128
  %1638 = vmatpush1.bf16.msra.mxu0 %v1127
  %1639 = vmatprep.subr.bf16.mxu0 %v1126
  %1640 = vmatpush1.bf16.msra.mxu0 %v1125
  %1641 = vmatprep.subr.bf16.mxu0 %v1124
  %1642 = vmatpush1.bf16.msra.mxu0 %v1123
  %1643 = vmatprep.subr.bf16.mxu0 %v1122
  %1644 = vmatpush1.bf16.msra.mxu0 %v1121
  %1645 = vmatprep.subr.bf16.mxu0 %v1120
  %1646 = vmatpush1.bf16.msra.mxu0 %v1119
  %1647 = vmatprep.subr.bf16.mxu0 %v1150
  %1648 = vmatpush2.bf16.msra.mxu0 %v1149
  %1649 = vmatprep.subr.bf16.mxu0 %v1148
  %1650 = vmatpush2.bf16.msra.mxu0 %v1147
  %1651 = vmatprep.subr.bf16.mxu0 %v1146
  %1652 = vmatpush2.bf16.msra.mxu0 %v1145
  %1653 = vmatprep.subr.bf16.mxu0 %v1144
  %1654 = vmatpush2.bf16.msra.mxu0 %v1143
  %1655 = vmatprep.subr.bf16.mxu0 %v1142
  %1656 = vmatpush2.bf16.msra.mxu0 %v1141
  %1657 = vmatprep.subr.bf16.mxu0 %v1140
  %1658 = vmatpush2.bf16.msra.mxu0 %v1139
  %1659 = vmatprep.subr.bf16.mxu0 %v1138
  %1660 = vmatpush2.bf16.msra.mxu0 %v1137
  %1661 = vmatprep.subr.bf16.mxu0 %v1136
  %1662 = vmatpush2.bf16.msra.mxu0 %v1135
  %1663 = vmatprep.mubr.bf16.mxu0 %v320
  %1664 = vmatmul.mubr.bf16.gmra.mxu0 %v319
  %v1665 = vpop.f32.mrf.mxu0
  %v1666 = vadd.f32 0.0, %v1665
  %v1667 = vpop.f32.mrf.mxu0
  %v1668 = vadd.f32 0.0, %v1667
  %v1669 = vpop.f32.mrf.mxu0
  %v1670 = vpop.f32.mrf.mxu0
  %1671 = vdwg.mxu0
  %1672 = vmatprep.subr.bf16.mxu0 %v1166
  %1673 = vmatpush1.bf16.msra.mxu0 %v1165
  %1674 = vmatprep.subr.bf16.mxu0 %v1164
  %1675 = vmatpush1.bf16.msra.mxu0 %v1163
  %1676 = vmatprep.subr.bf16.mxu0 %v1162
  %1677 = vmatpush1.bf16.msra.mxu0 %v1161
  %1678 = vmatprep.subr.bf16.mxu0 %v1160
  %1679 = vmatpush1.bf16.msra.mxu0 %v1159
  %1680 = vmatprep.subr.bf16.mxu0 %v1158
  %1681 = vmatpush1.bf16.msra.mxu0 %v1157
  %1682 = vmatprep.subr.bf16.mxu0 %v1156
  %1683 = vmatpush1.bf16.msra.mxu0 %v1155
  %1684 = vmatprep.subr.bf16.mxu0 %v1154
  %1685 = vmatpush1.bf16.msra.mxu0 %v1153
  %1686 = vmatprep.subr.bf16.mxu0 %v1152
  %1687 = vmatpush1.bf16.msra.mxu0 %v1151
  %1688 = vmatprep.subr.bf16.mxu0 %v1182
  %1689 = vmatpush2.bf16.msra.mxu0 %v1181
  %1690 = vmatprep.subr.bf16.mxu0 %v1180
  %1691 = vmatpush2.bf16.msra.mxu0 %v1179
  %1692 = vmatprep.subr.bf16.mxu0 %v1178
  %1693 = vmatpush2.bf16.msra.mxu0 %v1177
  %1694 = vmatprep.subr.bf16.mxu0 %v1176
  %1695 = vmatpush2.bf16.msra.mxu0 %v1175
  %1696 = vmatprep.subr.bf16.mxu0 %v1174
  %1697 = vmatpush2.bf16.msra.mxu0 %v1173
  %1698 = vmatprep.subr.bf16.mxu0 %v1172
  %1699 = vmatpush2.bf16.msra.mxu0 %v1171
  %1700 = vmatprep.subr.bf16.mxu0 %v1170
  %1701 = vmatpush2.bf16.msra.mxu0 %v1169
  %1702 = vmatprep.subr.bf16.mxu0 %v1168
  %1703 = vmatpush2.bf16.msra.mxu0 %v1167
  %1704 = vmatprep.mubr.bf16.mxu0 %v322
  %1705 = vmatmul.mubr.bf16.gmra.mxu0 %v321
  %v1706 = vpop.f32.mrf.mxu0
  %v1707 = vadd.f32 %v1666, %v1706
  %v1708 = vpop.f32.mrf.mxu0
  %v1709 = vadd.f32 %v1668, %v1708
  %v1710 = vpop.f32.mrf.mxu0
  %v1711 = vpop.f32.mrf.mxu0
  %1712 = vdwg.mxu0
  %1713 = vmatprep.subr.bf16.mxu0 %v1198
  %1714 = vmatpush1.bf16.msra.mxu0 %v1197
  %1715 = vmatprep.subr.bf16.mxu0 %v1196
  %1716 = vmatpush1.bf16.msra.mxu0 %v1195
  %1717 = vmatprep.subr.bf16.mxu0 %v1194
  %1718 = vmatpush1.bf16.msra.mxu0 %v1193
  %1719 = vmatprep.subr.bf16.mxu0 %v1192
  %1720 = vmatpush1.bf16.msra.mxu0 %v1191
  %1721 = vmatprep.subr.bf16.mxu0 %v1190
  %1722 = vmatpush1.bf16.msra.mxu0 %v1189
  %1723 = vmatprep.subr.bf16.mxu0 %v1188
  %1724 = vmatpush1.bf16.msra.mxu0 %v1187
  %1725 = vmatprep.subr.bf16.mxu0 %v1186
  %1726 = vmatpush1.bf16.msra.mxu0 %v1185
  %1727 = vmatprep.subr.bf16.mxu0 %v1184
  %1728 = vmatpush1.bf16.msra.mxu0 %v1183
  %1729 = vmatprep.subr.bf16.mxu0 %v1214
  %1730 = vmatpush2.bf16.msra.mxu0 %v1213
  %1731 = vmatprep.subr.bf16.mxu0 %v1212
  %1732 = vmatpush2.bf16.msra.mxu0 %v1211
  %1733 = vmatprep.subr.bf16.mxu0 %v1210
  %1734 = vmatpush2.bf16.msra.mxu0 %v1209
  %1735 = vmatprep.subr.bf16.mxu0 %v1208
  %1736 = vmatpush2.bf16.msra.mxu0 %v1207
  %1737 = vmatprep.subr.bf16.mxu0 %v1206
  %1738 = vmatpush2.bf16.msra.mxu0 %v1205
  %1739 = vmatprep.subr.bf16.mxu0 %v1204
  %1740 = vmatpush2.bf16.msra.mxu0 %v1203
  %1741 = vmatprep.subr.bf16.mxu0 %v1202
  %1742 = vmatpush2.bf16.msra.mxu0 %v1201
  %1743 = vmatprep.subr.bf16.mxu0 %v1200
  %1744 = vmatpush2.bf16.msra.mxu0 %v1199
  %1745 = vmatprep.mubr.bf16.mxu0 %v324
  %1746 = vmatmul.mubr.bf16.gmra.mxu0 %v323
  %v1747 = vpop.f32.mrf.mxu0
  %v1748 = vadd.f32 %v1707, %v1747
  %v1749 = vpop.f32.mrf.mxu0
  %v1750 = vadd.f32 %v1709, %v1749
  %v1751 = vpop.f32.mrf.mxu0
  %v1752 = vpop.f32.mrf.mxu0
  %1753 = vdwg.mxu0
  %1754 = vmatprep.subr.bf16.mxu0 %v1230
  %1755 = vmatpush1.bf16.msra.mxu0 %v1229
  %1756 = vmatprep.subr.bf16.mxu0 %v1228
  %1757 = vmatpush1.bf16.msra.mxu0 %v1227
  %1758 = vmatprep.subr.bf16.mxu0 %v1226
  %1759 = vmatpush1.bf16.msra.mxu0 %v1225
  %1760 = vmatprep.subr.bf16.mxu0 %v1224
  %1761 = vmatpush1.bf16.msra.mxu0 %v1223
  %1762 = vmatprep.subr.bf16.mxu0 %v1222
  %1763 = vmatpush1.bf16.msra.mxu0 %v1221
  %1764 = vmatprep.subr.bf16.mxu0 %v1220
  %1765 = vmatpush1.bf16.msra.mxu0 %v1219
  %1766 = vmatprep.subr.bf16.mxu0 %v1218
  %1767 = vmatpush1.bf16.msra.mxu0 %v1217
  %1768 = vmatprep.subr.bf16.mxu0 %v1216
  %1769 = vmatpush1.bf16.msra.mxu0 %v1215
  %1770 = vmatprep.subr.bf16.mxu0 %v1246
  %1771 = vmatpush2.bf16.msra.mxu0 %v1245
  %1772 = vmatprep.subr.bf16.mxu0 %v1244
  %1773 = vmatpush2.bf16.msra.mxu0 %v1243
  %1774 = vmatprep.subr.bf16.mxu0 %v1242
  %1775 = vmatpush2.bf16.msra.mxu0 %v1241
  %1776 = vmatprep.subr.bf16.mxu0 %v1240
  %1777 = vmatpush2.bf16.msra.mxu0 %v1239
  %1778 = vmatprep.subr.bf16.mxu0 %v1238
  %1779 = vmatpush2.bf16.msra.mxu0 %v1237
  %1780 = vmatprep.subr.bf16.mxu0 %v1236
  %1781 = vmatpush2.bf16.msra.mxu0 %v1235
  %1782 = vmatprep.subr.bf16.mxu0 %v1234
  %1783 = vmatpush2.bf16.msra.mxu0 %v1233
  %1784 = vmatprep.subr.bf16.mxu0 %v1232
  %1785 = vmatpush2.bf16.msra.mxu0 %v1231
  %1786 = vmatprep.mubr.bf16.mxu0 %v326
  %1787 = vmatmul.mubr.bf16.gmra.mxu0 %v325
  %v1788 = vpop.f32.mrf.mxu0
  %v1789 = vadd.f32 %v1748, %v1788
  %v1790 = vpop.f32.mrf.mxu0
  %v1791 = vadd.f32 %v1750, %v1790
  %v1792 = vpop.f32.mrf.mxu0
  %v1793 = vpop.f32.mrf.mxu0
  %1794 = vdwg.mxu0
  %1795 = vmatprep.subr.bf16.mxu0 %v1262
  %1796 = vmatpush1.bf16.msra.mxu0 %v1261
  %1797 = vmatprep.subr.bf16.mxu0 %v1260
  %1798 = vmatpush1.bf16.msra.mxu0 %v1259
  %1799 = vmatprep.subr.bf16.mxu0 %v1258
  %1800 = vmatpush1.bf16.msra.mxu0 %v1257
  %1801 = vmatprep.subr.bf16.mxu0 %v1256
  %1802 = vmatpush1.bf16.msra.mxu0 %v1255
  %1803 = vmatprep.subr.bf16.mxu0 %v1254
  %1804 = vmatpush1.bf16.msra.mxu0 %v1253
  %1805 = vmatprep.subr.bf16.mxu0 %v1252
  %1806 = vmatpush1.bf16.msra.mxu0 %v1251
  %1807 = vmatprep.subr.bf16.mxu0 %v1250
  %1808 = vmatpush1.bf16.msra.mxu0 %v1249
  %1809 = vmatprep.subr.bf16.mxu0 %v1248
  %1810 = vmatpush1.bf16.msra.mxu0 %v1247
  %1811 = vmatprep.subr.bf16.mxu0 %v1278
  %1812 = vmatpush2.bf16.msra.mxu0 %v1277
  %1813 = vmatprep.subr.bf16.mxu0 %v1276
  %1814 = vmatpush2.bf16.msra.mxu0 %v1275
  %1815 = vmatprep.subr.bf16.mxu0 %v1274
  %1816 = vmatpush2.bf16.msra.mxu0 %v1273
  %1817 = vmatprep.subr.bf16.mxu0 %v1272
  %1818 = vmatpush2.bf16.msra.mxu0 %v1271
  %1819 = vmatprep.subr.bf16.mxu0 %v1270
  %1820 = vmatpush2.bf16.msra.mxu0 %v1269
  %1821 = vmatprep.subr.bf16.mxu0 %v1268
  %1822 = vmatpush2.bf16.msra.mxu0 %v1267
  %1823 = vmatprep.subr.bf16.mxu0 %v1266
  %1824 = vmatpush2.bf16.msra.mxu0 %v1265
  %1825 = vmatprep.subr.bf16.mxu0 %v1264
  %1826 = vmatpush2.bf16.msra.mxu0 %v1263
  %1827 = vmatprep.mubr.bf16.mxu0 %v328
  %1828 = vmatmul.mubr.bf16.gmra.mxu0 %v327
  %v1829 = vpop.f32.mrf.mxu0
  %v1830 = vadd.f32 %v1789, %v1829
  %v1831 = vpop.f32.mrf.mxu0
  %v1832 = vadd.f32 %v1791, %v1831
  %v1833 = vpop.f32.mrf.mxu0
  %v1834 = vpop.f32.mrf.mxu0
  %1835 = vdwg.mxu0
  %1836 = vmatprep.subr.bf16.mxu0 %v1294
  %1837 = vmatpush1.bf16.msra.mxu0 %v1293
  %1838 = vmatprep.subr.bf16.mxu0 %v1292
  %1839 = vmatpush1.bf16.msra.mxu0 %v1291
  %1840 = vmatprep.subr.bf16.mxu0 %v1290
  %1841 = vmatpush1.bf16.msra.mxu0 %v1289
  %1842 = vmatprep.subr.bf16.mxu0 %v1288
  %1843 = vmatpush1.bf16.msra.mxu0 %v1287
  %1844 = vmatprep.subr.bf16.mxu0 %v1286
  %1845 = vmatpush1.bf16.msra.mxu0 %v1285
  %1846 = vmatprep.subr.bf16.mxu0 %v1284
  %1847 = vmatpush1.bf16.msra.mxu0 %v1283
  %1848 = vmatprep.subr.bf16.mxu0 %v1282
  %1849 = vmatpush1.bf16.msra.mxu0 %v1281
  %1850 = vmatprep.subr.bf16.mxu0 %v1280
  %1851 = vmatpush1.bf16.msra.mxu0 %v1279
  %1852 = vmatprep.subr.bf16.mxu0 %v1310
  %1853 = vmatpush2.bf16.msra.mxu0 %v1309
  %1854 = vmatprep.subr.bf16.mxu0 %v1308
  %1855 = vmatpush2.bf16.msra.mxu0 %v1307
  %1856 = vmatprep.subr.bf16.mxu0 %v1306
  %1857 = vmatpush2.bf16.msra.mxu0 %v1305
  %1858 = vmatprep.subr.bf16.mxu0 %v1304
  %1859 = vmatpush2.bf16.msra.mxu0 %v1303
  %1860 = vmatprep.subr.bf16.mxu0 %v1302
  %1861 = vmatpush2.bf16.msra.mxu0 %v1301
  %1862 = vmatprep.subr.bf16.mxu0 %v1300
  %1863 = vmatpush2.bf16.msra.mxu0 %v1299
  %1864 = vmatprep.subr.bf16.mxu0 %v1298
  %1865 = vmatpush2.bf16.msra.mxu0 %v1297
  %1866 = vmatprep.subr.bf16.mxu0 %v1296
  %1867 = vmatpush2.bf16.msra.mxu0 %v1295
  %1868 = vmatprep.mubr.bf16.mxu0 %v330
  %1869 = vmatmul.mubr.bf16.gmra.mxu0 %v329
  %v1870 = vpop.f32.mrf.mxu0
  %v1871 = vadd.f32 %v1830, %v1870
  %v1872 = vpop.f32.mrf.mxu0
  %v1873 = vadd.f32 %v1832, %v1872
  %v1874 = vpop.f32.mrf.mxu0
  %v1875 = vpop.f32.mrf.mxu0
  %1876 = vdwg.mxu0
  %1877 = vmatprep.subr.bf16.mxu0 %v1326
  %1878 = vmatpush1.bf16.msra.mxu0 %v1325
  %1879 = vmatprep.subr.bf16.mxu0 %v1324
  %1880 = vmatpush1.bf16.msra.mxu0 %v1323
  %1881 = vmatprep.subr.bf16.mxu0 %v1322
  %1882 = vmatpush1.bf16.msra.mxu0 %v1321
  %1883 = vmatprep.subr.bf16.mxu0 %v1320
  %1884 = vmatpush1.bf16.msra.mxu0 %v1319
  %1885 = vmatprep.subr.bf16.mxu0 %v1318
  %1886 = vmatpush1.bf16.msra.mxu0 %v1317
  %1887 = vmatprep.subr.bf16.mxu0 %v1316
  %1888 = vmatpush1.bf16.msra.mxu0 %v1315
  %1889 = vmatprep.subr.bf16.mxu0 %v1314
  %1890 = vmatpush1.bf16.msra.mxu0 %v1313
  %1891 = vmatprep.subr.bf16.mxu0 %v1312
  %1892 = vmatpush1.bf16.msra.mxu0 %v1311
  %1893 = vmatprep.subr.bf16.mxu0 %v1342
  %1894 = vmatpush2.bf16.msra.mxu0 %v1341
  %1895 = vmatprep.subr.bf16.mxu0 %v1340
  %1896 = vmatpush2.bf16.msra.mxu0 %v1339
  %1897 = vmatprep.subr.bf16.mxu0 %v1338
  %1898 = vmatpush2.bf16.msra.mxu0 %v1337
  %1899 = vmatprep.subr.bf16.mxu0 %v1336
  %1900 = vmatpush2.bf16.msra.mxu0 %v1335
  %1901 = vmatprep.subr.bf16.mxu0 %v1334
  %1902 = vmatpush2.bf16.msra.mxu0 %v1333
  %1903 = vmatprep.subr.bf16.mxu0 %v1332
  %1904 = vmatpush2.bf16.msra.mxu0 %v1331
  %1905 = vmatprep.subr.bf16.mxu0 %v1330
  %1906 = vmatpush2.bf16.msra.mxu0 %v1329
  %1907 = vmatprep.subr.bf16.mxu0 %v1328
  %1908 = vmatpush2.bf16.msra.mxu0 %v1327
  %1909 = vmatprep.mubr.bf16.mxu0 %v332
  %1910 = vmatmul.mubr.bf16.gmra.mxu0 %v331
  %v1911 = vpop.f32.mrf.mxu0
  %v1912 = vadd.f32 %v1871, %v1911
  %v1913 = vpop.f32.mrf.mxu0
  %v1914 = vadd.f32 %v1873, %v1913
  %v1915 = vpop.f32.mrf.mxu0
  %v1916 = vpop.f32.mrf.mxu0
  %1917 = vdwg.mxu0
  %1918 = vmatprep.subr.bf16.mxu0 %v1358
  %1919 = vmatpush1.bf16.msra.mxu0 %v1357
  %1920 = vmatprep.subr.bf16.mxu0 %v1356
  %1921 = vmatpush1.bf16.msra.mxu0 %v1355
  %1922 = vmatprep.subr.bf16.mxu0 %v1354
  %1923 = vmatpush1.bf16.msra.mxu0 %v1353
  %1924 = vmatprep.subr.bf16.mxu0 %v1352
  %1925 = vmatpush1.bf16.msra.mxu0 %v1351
  %1926 = vmatprep.subr.bf16.mxu0 %v1350
  %1927 = vmatpush1.bf16.msra.mxu0 %v1349
  %1928 = vmatprep.subr.bf16.mxu0 %v1348
  %1929 = vmatpush1.bf16.msra.mxu0 %v1347
  %1930 = vmatprep.subr.bf16.mxu0 %v1346
  %1931 = vmatpush1.bf16.msra.mxu0 %v1345
  %1932 = vmatprep.subr.bf16.mxu0 %v1344
  %1933 = vmatpush1.bf16.msra.mxu0 %v1343
  %1934 = vmatprep.subr.bf16.mxu0 %v1374
  %1935 = vmatpush2.bf16.msra.mxu0 %v1373
  %1936 = vmatprep.subr.bf16.mxu0 %v1372
  %1937 = vmatpush2.bf16.msra.mxu0 %v1371
  %1938 = vmatprep.subr.bf16.mxu0 %v1370
  %1939 = vmatpush2.bf16.msra.mxu0 %v1369
  %1940 = vmatprep.subr.bf16.mxu0 %v1368
  %1941 = vmatpush2.bf16.msra.mxu0 %v1367
  %1942 = vmatprep.subr.bf16.mxu0 %v1366
  %1943 = vmatpush2.bf16.msra.mxu0 %v1365
  %1944 = vmatprep.subr.bf16.mxu0 %v1364
  %1945 = vmatpush2.bf16.msra.mxu0 %v1363
  %1946 = vmatprep.subr.bf16.mxu0 %v1362
  %1947 = vmatpush2.bf16.msra.mxu0 %v1361
  %1948 = vmatprep.subr.bf16.mxu0 %v1360
  %1949 = vmatpush2.bf16.msra.mxu0 %v1359
  %1950 = vmatprep.mubr.bf16.mxu0 %v334
  %1951 = vmatmul.mubr.bf16.gmra.mxu0 %v333
  %v1952 = vpop.f32.mrf.mxu0
  %v1953 = vadd.f32 %v1912, %v1952
  %v1954 = vpop.f32.mrf.mxu0
  %v1955 = vadd.f32 %v1914, %v1954
  %v1956 = vpop.f32.mrf.mxu0
  %v1957 = vpop.f32.mrf.mxu0
  %1958 = vdwg.mxu0
  %1959 = vst [vmem:[%s4] sm:$0xff] %v1953
  %1960 = vst [vmem:[%s4 + $0x8] sm:$0xff] %v1955
  %v1961 = vld [vmem:[#allocation2] sm:$0x3]
  %v1962 = vrot.slane %v1953, 4
  %v1963 = vadd.f32 %v1953, %v1962
  %v1964 = vrot.slane %v1963, 2
  %v1965 = vadd.f32 %v1963, %v1964
  %v1966 = vrot.slane %v1965, 1
  %v1967 = vadd.f32 %v1965, %v1966
  %v1968 = vrot.slane %v1955, 4
  %v1969 = vadd.f32 %v1955, %v1968
  %v1970 = vrot.slane %v1969, 2
  %v1971 = vadd.f32 %v1969, %v1970
  %v1972 = vrot.slane %v1971, 1
  %v1973 = vadd.f32 %v1971, %v1972
  %v1976 = vcombine.low %v1967, %v1973
  %v1978 = vunpack.c.l.s4 1966171168
  %v1979 = vunpack.c.0.s8 %v1978
  %v1980 = vlaneseq
  %v1981 = vshrl.u32 %v1980, 7
  %v1982 = vsub.s32 %v1979, %v1981
  %v1983 = vrot.slane %v1976, %v1982
  %v1985 = vunpack.c.l.s4 1966171168
  %v1986 = vunpack.c.0.s8 %v1985
  %v1987 = vlaneseq
  %v1988 = vshrl.u32 %v1987, 7
  %v1989 = vsub.s32 %v1986, %v1988
  %v1990 = vrot.slane %v1983, %v1989
  %v1992 = vadd.f32 %v1961, %v1990
  %v1993 = vlaneseq
  %vm1994 = vcmp.ge.s32.totalorder %v1993, 0
  %vm1995 = vcmp.lt.s32.totalorder %v1993, 256
  %vm1996 = vmand %vm1994, %vm1995
  %1997 = vst.msk [vmem:[#allocation2] sm:$0x3] %vm1996, %v1992
  %v1998 = vld [vmem:[#allocation3] sm:$0x3]
  %v1999 = vmul.f32 %v1953, %v1953
  %v2000 = vmul.f32 %v1955, %v1955
  %v2001 = vrot.slane %v1999, 4
  %v2002 = vadd.f32 %v1999, %v2001
  %v2003 = vrot.slane %v2002, 2
  %v2004 = vadd.f32 %v2002, %v2003
  %v2005 = vrot.slane %v2004, 1
  %v2006 = vadd.f32 %v2004, %v2005
  %v2007 = vrot.slane %v2000, 4
  %v2008 = vadd.f32 %v2000, %v2007
  %v2009 = vrot.slane %v2008, 2
  %v2010 = vadd.f32 %v2008, %v2009
  %v2011 = vrot.slane %v2010, 1
  %v2012 = vadd.f32 %v2010, %v2011
  %v2015 = vcombine.low %v2006, %v2012
  %v2017 = vunpack.c.l.s4 1966171168
  %v2018 = vunpack.c.0.s8 %v2017
  %v2019 = vlaneseq
  %v2020 = vshrl.u32 %v2019, 7
  %v2021 = vsub.s32 %v2018, %v2020
  %v2022 = vrot.slane %v2015, %v2021
  %v2024 = vunpack.c.l.s4 1966171168
  %v2025 = vunpack.c.0.s8 %v2024
  %v2026 = vlaneseq
  %v2027 = vshrl.u32 %v2026, 7
  %v2028 = vsub.s32 %v2025, %v2027
  %v2029 = vrot.slane %v2022, %v2028
  %v2031 = vadd.f32 %v1998, %v2029
  %2032 = vst.msk [vmem:[#allocation3] sm:$0x3] %vm1996, %v2031
  // Predicated region
  $region22: #{discriminator_forward.13} parent=0 // pred_check
    %p2033 = pneg %p19
  $region23: #{discriminator_forward.13} parent=0 // pred_check_branch
    %2035 = sbr.rel (%p2033) target = $region25
  $region24: #{discriminator_forward.13} parent=0 // pred_region
    %v2036 = vld [vmem:[#allocation2] sm:$0x3]
    %v2037 = vmul.f32 %v2036, 0.125
    %v2038 = vld [vmem:[#allocation3] sm:$0x3]
    %v2039 = vmul.f32 %v2038, 0.125
    %v2040 = vmul.f32 %v2037, %v2037
    %v2041 = vsub.f32 %v2039, %v2040
    %v2042 = vadd.f32 %v2041, 1e-05
    %v2043 = vrsqrt.pop %v2042
    %v2044 = vld [vmem:[%s2] sm:$0x3]
    %v2045 = vmul.f32 %v2044, %v2043
    %v2046 = vld [vmem:[%s3] sm:$0x3]
    %v2047 = vmul.f32 %v2037, %v2045
    %v2048 = vsub.f32 %v2046, %v2047
    %v2050 = vlaneseq
    %v2051 = vshrl.u32 %v2050, 7
    %v2052 = vsub.s32 0, %v2051
    %v2053 = vrot.slane %v2045, %v2052
    %v2054 = vlaneseq
    %v2055 = vshrl.u32 %v2054, 7
    %v2056 = vsub.s32 1, %v2055
    %v2057 = vrot.slane %v2045, %v2056
    %v2061 = vlaneseq
    %v2062 = vshrl.u32 %v2061, 7
    %v2063 = vsub.s32 0, %v2062
    %v2064 = vrot.slane %v2048, %v2063
    %v2065 = vlaneseq
    %v2066 = vshrl.u32 %v2065, 7
    %v2067 = vsub.s32 1, %v2066
    %v2068 = vrot.slane %v2048, %v2067
    %vm2071 = vcmask 1040384
    %v2072 = vsel %vm2071, %v2053, %v2064
    %v2073 = vsel %vm2071, %v2057, %v2068
    %vm2074 = vcmask 1041408
    %v2075 = vsel %vm2074, %v2072, 0.0
    %v2076 = vsel %vm2074, %v2073, 0.0
    %2077 = vst [vmem:[%s5] sm:$0xff] %v2075
    %2078 = vst [vmem:[%s5 + $0x8] sm:$0xff] %v2076
  $region25: #{discriminator_forward.13} parent=0 // pred_fallthru
    _
  // Predicated region
  $region26: #{discriminator_forward.13} parent=0 // pred_check
    _
  $region27: #{discriminator_forward.13} parent=0 // pred_check_branch
    %2080 = sbr.rel (0) target = $region29
  $region28: #{discriminator_forward.13} parent=0 // pred_region
    _
  $region29: #{discriminator_forward.13} parent=0 // pred_fallthru
    _
  // Predicated region
  $region30: #{discriminator_forward.13} parent=0 // pred_check
    _
  $region31: #{discriminator_forward.13} parent=0 // pred_check_branch
    %2082 = sbr.rel (0) target = $region33
  $region32: #{discriminator_forward.13} parent=0 // pred_region
    _
  $region33: #{discriminator_forward.13} parent=0 // pred_fallthru
    _
  // Predicated region
  $region34: #{discriminator_forward.13} parent=0 // pred_check
    _
  $region35: #{discriminator_forward.13} parent=0 // pred_check_branch
    %2084 = sbr.rel (0) target = $region37
  $region36: #{discriminator_forward.13} parent=0 // pred_region
    _
  $region37: #{discriminator_forward.13} parent=0 // pred_fallthru
    _
  // Predicated region
  $region38: #{discriminator_forward.13} parent=0 // pred_check
    _
  $region39: #{discriminator_forward.13} parent=0 // pred_check_branch
    %2086 = sbr.rel (0) target = $region41
  $region40: #{discriminator_forward.13} parent=0 // pred_region
    _
  $region41: #{discriminator_forward.13} parent=0 // pred_fallthru
    _

// kernel: discriminator_forward.15
$region0: #{discriminator_forward.15}
  #allocation0 [shape = 'u32[]', space=smem, size = 0x4, offset = 0x4, fixed_abs, tag = 'smem constant byte address 0x4 - core index']
  #allocation1 [shape = 'u32[144,128]{1,0:T(1,128)}', space=vmem, size = 0x12000, scoped, tag = 'internal scratch']
  %s0 = inlined_call_operand.vmem [shape: bf16[8,4096], index: 0, kind: input, shape index: {}]
  %s1 = inlined_call_operand.vmem [shape: bf16[4096,128], index: 1, kind: input, shape index: {}]
  %s2 = inlined_call_operand.vmem [shape: f32[1,128], index: 2, kind: input, shape index: {}]
  %s3 = inlined_call_operand.vmem [shape: f32[8,128], index: 3, kind: output, shape index: {}]
  %s4 = sld [smem:[#allocation0]]
  $region22: #{discriminator_forward.15} parent=0
    _
  %s6 = ssub.s32 1, %s4
  %s7 = scalar_select 0, %s6, %s4
  // Predicated region
  $region2: #{discriminator_forward.15} parent=0 // pred_check
    _
  $region3: #{discriminator_forward.15} parent=0 // pred_check_branch
    %9 = sbr.rel (0) target = $region5
  $region4: #{discriminator_forward.15} parent=0 // pred_region
    _
  $region5: #{discriminator_forward.15} parent=0 // pred_fallthru
    _
  // Predicated region
  $region6: #{discriminator_forward.15} parent=0 // pred_check
    _
  $region7: #{discriminator_forward.15} parent=0 // pred_check_branch
    %11 = sbr.rel (0) target = $region9
  $region8: #{discriminator_forward.15} parent=0 // pred_region
    _
  $region9: #{discriminator_forward.15} parent=0 // pred_fallthru
    _
  // Predicated region
  $region10: #{discriminator_forward.15} parent=0 // pred_check
    _
  $region11: #{discriminator_forward.15} parent=0 // pred_check_branch
    %13 = sbr.rel (0) target = $region13
  $region12: #{discriminator_forward.15} parent=0 // pred_region
    _
  $region13: #{discriminator_forward.15} parent=0 // pred_fallthru
    _
  %v15 = vld [vmem:[%s0] sm:$0xff]
  %v16 = vld [vmem:[%s0 + $0x8] sm:$0xff]
  %v17 = vld [vmem:[%s0 + $0x10] sm:$0xff]
  %v18 = vld [vmem:[%s0 + $0x18] sm:$0xff]
  %v19 = vld [vmem:[%s0 + $0x20] sm:$0xff]
  %v20 = vld [vmem:[%s0 + $0x28] sm:$0xff]
  %v21 = vld [vmem:[%s0 + $0x30] sm:$0xff]
  %v22 = vld [vmem:[%s0 + $0x38] sm:$0xff]
  %v23 = vld [vmem:[%s0 + $0x40] sm:$0xff]
  %v24 = vld [vmem:[%s0 + $0x48] sm:$0xff]
  %v25 = vld [vmem:[%s0 + $0x50] sm:$0xff]
  %v26 = vld [vmem:[%s0 + $0x58] sm:$0xff]
  %v27 = vld [vmem:[%s0 + $0x60] sm:$0xff]
  %v28 = vld [vmem:[%s0 + $0x68] sm:$0xff]
  %v29 = vld [vmem:[%s0 + $0x70] sm:$0xff]
  %v30 = vld [vmem:[%s0 + $0x78] sm:$0xff]
  %v31 = vld [vmem:[%s1] sm:$0xf]
  %v32 = vld [vmem:[%s1 + $0x4] sm:$0xf]
  %v33 = vld [vmem:[%s1 + $0x8] sm:$0xf]
  %v34 = vld [vmem:[%s1 + $0xc] sm:$0xf]
  %v35 = vld [vmem:[%s1 + $0x10] sm:$0xf]
  %v36 = vld [vmem:[%s1 + $0x14] sm:$0xf]
  %v37 = vld [vmem:[%s1 + $0x18] sm:$0xf]
  %v38 = vld [vmem:[%s1 + $0x1c] sm:$0xf]
  %v39 = vld [vmem:[%s1 + $0x20] sm:$0xf]
  %v40 = vld [vmem:[%s1 + $0x24] sm:$0xf]
  %v41 = vld [vmem:[%s1 + $0x28] sm:$0xf]
  %v42 = vld [vmem:[%s1 + $0x2c] sm:$0xf]
  %v43 = vld [vmem:[%s1 + $0x30] sm:$0xf]
  %v44 = vld [vmem:[%s1 + $0x34] sm:$0xf]
  %v45 = vld [vmem:[%s1 + $0x38] sm:$0xf]
  %v46 = vld [vmem:[%s1 + $0x3c] sm:$0xf]
  %v47 = vld [vmem:[%s1 + $0x40] sm:$0xf]
  %v48 = vld [vmem:[%s1 + $0x44] sm:$0xf]
  %v49 = vld [vmem:[%s1 + $0x48] sm:$0xf]
  %v50 = vld [vmem:[%s1 + $0x4c] sm:$0xf]
  %v51 = vld [vmem:[%s1 + $0x50] sm:$0xf]
  %v52 = vld [vmem:[%s1 + $0x54] sm:$0xf]
  %v53 = vld [vmem:[%s1 + $0x58] sm:$0xf]
  %v54 = vld [vmem:[%s1 + $0x5c] sm:$0xf]
  %v55 = vld [vmem:[%s1 + $0x60] sm:$0xf]
  %v56 = vld [vmem:[%s1 + $0x64] sm:$0xf]
  %v57 = vld [vmem:[%s1 + $0x68] sm:$0xf]
  %v58 = vld [vmem:[%s1 + $0x6c] sm:$0xf]
  %v59 = vld [vmem:[%s1 + $0x70] sm:$0xf]
  %v60 = vld [vmem:[%s1 + $0x74] sm:$0xf]
  %v61 = vld [vmem:[%s1 + $0x78] sm:$0xf]
  %v62 = vld [vmem:[%s1 + $0x7c] sm:$0xf]
  %v63 = vld [vmem:[%s1 + $0x80] sm:$0xf]
  %v64 = vld [vmem:[%s1 + $0x84] sm:$0xf]
  %v65 = vld [vmem:[%s1 + $0x88] sm:$0xf]
  %v66 = vld [vmem:[%s1 + $0x8c] sm:$0xf]
  %v67 = vld [vmem:[%s1 + $0x90] sm:$0xf]
  %v68 = vld [vmem:[%s1 + $0x94] sm:$0xf]
  %v69 = vld [vmem:[%s1 + $0x98] sm:$0xf]
  %v70 = vld [vmem:[%s1 + $0x9c] sm:$0xf]
  %v71 = vld [vmem:[%s1 + $0xa0] sm:$0xf]
  %v72 = vld [vmem:[%s1 + $0xa4] sm:$0xf]
  %v73 = vld [vmem:[%s1 + $0xa8] sm:$0xf]
  %v74 = vld [vmem:[%s1 + $0xac] sm:$0xf]
  %v75 = vld [vmem:[%s1 + $0xb0] sm:$0xf]
  %v76 = vld [vmem:[%s1 + $0xb4] sm:$0xf]
  %v77 = vld [vmem:[%s1 + $0xb8] sm:$0xf]
  %v78 = vld [vmem:[%s1 + $0xbc] sm:$0xf]
  %v79 = vld [vmem:[%s1 + $0xc0] sm:$0xf]
  %v80 = vld [vmem:[%s1 + $0xc4] sm:$0xf]
  %v81 = vld [vmem:[%s1 + $0xc8] sm:$0xf]
  %v82 = vld [vmem:[%s1 + $0xcc] sm:$0xf]
  %v83 = vld [vmem:[%s1 + $0xd0] sm:$0xf]
  %v84 = vld [vmem:[%s1 + $0xd4] sm:$0xf]
  %v85 = vld [vmem:[%s1 + $0xd8] sm:$0xf]
  %v86 = vld [vmem:[%s1 + $0xdc] sm:$0xf]
  %v87 = vld [vmem:[%s1 + $0xe0] sm:$0xf]
  %v88 = vld [vmem:[%s1 + $0xe4] sm:$0xf]
  %v89 = vld [vmem:[%s1 + $0xe8] sm:$0xf]
  %v90 = vld [vmem:[%s1 + $0xec] sm:$0xf]
  %v91 = vld [vmem:[%s1 + $0xf0] sm:$0xf]
  %v92 = vld [vmem:[%s1 + $0xf4] sm:$0xf]
  %v93 = vld [vmem:[%s1 + $0xf8] sm:$0xf]
  %v94 = vld [vmem:[%s1 + $0xfc] sm:$0xf]
  %v95 = vld [vmem:[%s1 + $0x100] sm:$0xf]
  %v96 = vld [vmem:[%s1 + $0x104] sm:$0xf]
  %v97 = vld [vmem:[%s1 + $0x108] sm:$0xf]
  %v98 = vld [vmem:[%s1 + $0x10c] sm:$0xf]
  %v99 = vld [vmem:[%s1 + $0x110] sm:$0xf]
  %v100 = vld [vmem:[%s1 + $0x114] sm:$0xf]
  %v101 = vld [vmem:[%s1 + $0x118] sm:$0xf]
  %v102 = vld [vmem:[%s1 + $0x11c] sm:$0xf]
  %v103 = vld [vmem:[%s1 + $0x120] sm:$0xf]
  %v104 = vld [vmem:[%s1 + $0x124] sm:$0xf]
  %v105 = vld [vmem:[%s1 + $0x128] sm:$0xf]
  %v106 = vld [vmem:[%s1 + $0x12c] sm:$0xf]
  %v107 = vld [vmem:[%s1 + $0x130] sm:$0xf]
  %v108 = vld [vmem:[%s1 + $0x134] sm:$0xf]
  %v109 = vld [vmem:[%s1 + $0x138] sm:$0xf]
  %v110 = vld [vmem:[%s1 + $0x13c] sm:$0xf]
  %v111 = vld [vmem:[%s1 + $0x140] sm:$0xf]
  %v112 = vld [vmem:[%s1 + $0x144] sm:$0xf]
  %v113 = vld [vmem:[%s1 + $0x148] sm:$0xf]
  %v114 = vld [vmem:[%s1 + $0x14c] sm:$0xf]
  %v115 = vld [vmem:[%s1 + $0x150] sm:$0xf]
  %v116 = vld [vmem:[%s1 + $0x154] sm:$0xf]
  %v117 = vld [vmem:[%s1 + $0x158] sm:$0xf]
  %v118 = vld [vmem:[%s1 + $0x15c] sm:$0xf]
  %v119 = vld [vmem:[%s1 + $0x160] sm:$0xf]
  %v120 = vld [vmem:[%s1 + $0x164] sm:$0xf]
  %v121 = vld [vmem:[%s1 + $0x168] sm:$0xf]
  %v122 = vld [vmem:[%s1 + $0x16c] sm:$0xf]
  %v123 = vld [vmem:[%s1 + $0x170] sm:$0xf]
  %v124 = vld [vmem:[%s1 + $0x174] sm:$0xf]
  %v125 = vld [vmem:[%s1 + $0x178] sm:$0xf]
  %v126 = vld [vmem:[%s1 + $0x17c] sm:$0xf]
  %v127 = vld [vmem:[%s1 + $0x180] sm:$0xf]
  %v128 = vld [vmem:[%s1 + $0x184] sm:$0xf]
  %v129 = vld [vmem:[%s1 + $0x188] sm:$0xf]
  %v130 = vld [vmem:[%s1 + $0x18c] sm:$0xf]
  %v131 = vld [vmem:[%s1 + $0x190] sm:$0xf]
  %v132 = vld [vmem:[%s1 + $0x194] sm:$0xf]
  %v133 = vld [vmem:[%s1 + $0x198] sm:$0xf]
  %v134 = vld [vmem:[%s1 + $0x19c] sm:$0xf]
  %v135 = vld [vmem:[%s1 + $0x1a0] sm:$0xf]
  %v136 = vld [vmem:[%s1 + $0x1a4] sm:$0xf]
  %v137 = vld [vmem:[%s1 + $0x1a8] sm:$0xf]
  %v138 = vld [vmem:[%s1 + $0x1ac] sm:$0xf]
  %v139 = vld [vmem:[%s1 + $0x1b0] sm:$0xf]
  %v140 = vld [vmem:[%s1 + $0x1b4] sm:$0xf]
  %v141 = vld [vmem:[%s1 + $0x1b8] sm:$0xf]
  %v142 = vld [vmem:[%s1 + $0x1bc] sm:$0xf]
  %v143 = vld [vmem:[%s1 + $0x1c0] sm:$0xf]
  %v144 = vld [vmem:[%s1 + $0x1c4] sm:$0xf]
  %v145 = vld [vmem:[%s1 + $0x1c8] sm:$0xf]
  %v146 = vld [vmem:[%s1 + $0x1cc] sm:$0xf]
  %v147 = vld [vmem:[%s1 + $0x1d0] sm:$0xf]
  %v148 = vld [vmem:[%s1 + $0x1d4] sm:$0xf]
  %v149 = vld [vmem:[%s1 + $0x1d8] sm:$0xf]
  %v150 = vld [vmem:[%s1 + $0x1dc] sm:$0xf]
  %v151 = vld [vmem:[%s1 + $0x1e0] sm:$0xf]
  %v152 = vld [vmem:[%s1 + $0x1e4] sm:$0xf]
  %v153 = vld [vmem:[%s1 + $0x1e8] sm:$0xf]
  %v154 = vld [vmem:[%s1 + $0x1ec] sm:$0xf]
  %v155 = vld [vmem:[%s1 + $0x1f0] sm:$0xf]
  %v156 = vld [vmem:[%s1 + $0x1f4] sm:$0xf]
  %v157 = vld [vmem:[%s1 + $0x1f8] sm:$0xf]
  %v158 = vld [vmem:[%s1 + $0x1fc] sm:$0xf]
  %v159 = vld [vmem:[%s1 + $0x200] sm:$0xf]
  %v160 = vld [vmem:[%s1 + $0x204] sm:$0xf]
  %v161 = vld [vmem:[%s1 + $0x208] sm:$0xf]
  %v162 = vld [vmem:[%s1 + $0x20c] sm:$0xf]
  %v163 = vld [vmem:[%s1 + $0x210] sm:$0xf]
  %v164 = vld [vmem:[%s1 + $0x214] sm:$0xf]
  %v165 = vld [vmem:[%s1 + $0x218] sm:$0xf]
  %v166 = vld [vmem:[%s1 + $0x21c] sm:$0xf]
  %v167 = vld [vmem:[%s1 + $0x220] sm:$0xf]
  %v168 = vld [vmem:[%s1 + $0x224] sm:$0xf]
  %v169 = vld [vmem:[%s1 + $0x228] sm:$0xf]
  %v170 = vld [vmem:[%s1 + $0x22c] sm:$0xf]
  %v171 = vld [vmem:[%s1 + $0x230] sm:$0xf]
  %v172 = vld [vmem:[%s1 + $0x234] sm:$0xf]
  %v173 = vld [vmem:[%s1 + $0x238] sm:$0xf]
  %v174 = vld [vmem:[%s1 + $0x23c] sm:$0xf]
  %v175 = vld [vmem:[%s1 + $0x240] sm:$0xf]
  %v176 = vld [vmem:[%s1 + $0x244] sm:$0xf]
  %v177 = vld [vmem:[%s1 + $0x248] sm:$0xf]
  %v178 = vld [vmem:[%s1 + $0x24c] sm:$0xf]
  %v179 = vld [vmem:[%s1 + $0x250] sm:$0xf]
  %v180 = vld [vmem:[%s1 + $0x254] sm:$0xf]
  %v181 = vld [vmem:[%s1 + $0x258] sm:$0xf]
  %v182 = vld [vmem:[%s1 + $0x25c] sm:$0xf]
  %v183 = vld [vmem:[%s1 + $0x260] sm:$0xf]
  %v184 = vld [vmem:[%s1 + $0x264] sm:$0xf]
  %v185 = vld [vmem:[%s1 + $0x268] sm:$0xf]
  %v186 = vld [vmem:[%s1 + $0x26c] sm:$0xf]
  %v187 = vld [vmem:[%s1 + $0x270] sm:$0xf]
  %v188 = vld [vmem:[%s1 + $0x274] sm:$0xf]
  %v189 = vld [vmem:[%s1 + $0x278] sm:$0xf]
  %v190 = vld [vmem:[%s1 + $0x27c] sm:$0xf]
  %v191 = vld [vmem:[%s1 + $0x280] sm:$0xf]
  %v192 = vld [vmem:[%s1 + $0x284] sm:$0xf]
  %v193 = vld [vmem:[%s1 + $0x288] sm:$0xf]
  %v194 = vld [vmem:[%s1 + $0x28c] sm:$0xf]
  %v195 = vld [vmem:[%s1 + $0x290] sm:$0xf]
  %v196 = vld [vmem:[%s1 + $0x294] sm:$0xf]
  %v197 = vld [vmem:[%s1 + $0x298] sm:$0xf]
  %v198 = vld [vmem:[%s1 + $0x29c] sm:$0xf]
  %v199 = vld [vmem:[%s1 + $0x2a0] sm:$0xf]
  %v200 = vld [vmem:[%s1 + $0x2a4] sm:$0xf]
  %v201 = vld [vmem:[%s1 + $0x2a8] sm:$0xf]
  %v202 = vld [vmem:[%s1 + $0x2ac] sm:$0xf]
  %v203 = vld [vmem:[%s1 + $0x2b0] sm:$0xf]
  %v204 = vld [vmem:[%s1 + $0x2b4] sm:$0xf]
  %v205 = vld [vmem:[%s1 + $0x2b8] sm:$0xf]
  %v206 = vld [vmem:[%s1 + $0x2bc] sm:$0xf]
  %v207 = vld [vmem:[%s1 + $0x2c0] sm:$0xf]
  %v208 = vld [vmem:[%s1 + $0x2c4] sm:$0xf]
  %v209 = vld [vmem:[%s1 + $0x2c8] sm:$0xf]
  %v210 = vld [vmem:[%s1 + $0x2cc] sm:$0xf]
  %v211 = vld [vmem:[%s1 + $0x2d0] sm:$0xf]
  %v212 = vld [vmem:[%s1 + $0x2d4] sm:$0xf]
  %v213 = vld [vmem:[%s1 + $0x2d8] sm:$0xf]
  %v214 = vld [vmem:[%s1 + $0x2dc] sm:$0xf]
  %v215 = vld [vmem:[%s1 + $0x2e0] sm:$0xf]
  %v216 = vld [vmem:[%s1 + $0x2e4] sm:$0xf]
  %v217 = vld [vmem:[%s1 + $0x2e8] sm:$0xf]
  %v218 = vld [vmem:[%s1 + $0x2ec] sm:$0xf]
  %v219 = vld [vmem:[%s1 + $0x2f0] sm:$0xf]
  %v220 = vld [vmem:[%s1 + $0x2f4] sm:$0xf]
  %v221 = vld [vmem:[%s1 + $0x2f8] sm:$0xf]
  %v222 = vld [vmem:[%s1 + $0x2fc] sm:$0xf]
  %v223 = vld [vmem:[%s1 + $0x300] sm:$0xf]
  %v224 = vld [vmem:[%s1 + $0x304] sm:$0xf]
  %v225 = vld [vmem:[%s1 + $0x308] sm:$0xf]
  %v226 = vld [vmem:[%s1 + $0x30c] sm:$0xf]
  %v227 = vld [vmem:[%s1 + $0x310] sm:$0xf]
  %v228 = vld [vmem:[%s1 + $0x314] sm:$0xf]
  %v229 = vld [vmem:[%s1 + $0x318] sm:$0xf]
  %v230 = vld [vmem:[%s1 + $0x31c] sm:$0xf]
  %v231 = vld [vmem:[%s1 + $0x320] sm:$0xf]
  %v232 = vld [vmem:[%s1 + $0x324] sm:$0xf]
  %v233 = vld [vmem:[%s1 + $0x328] sm:$0xf]
  %v234 = vld [vmem:[%s1 + $0x32c] sm:$0xf]
  %v235 = vld [vmem:[%s1 + $0x330] sm:$0xf]
  %v236 = vld [vmem:[%s1 + $0x334] sm:$0xf]
  %v237 = vld [vmem:[%s1 + $0x338] sm:$0xf]
  %v238 = vld [vmem:[%s1 + $0x33c] sm:$0xf]
  %v239 = vld [vmem:[%s1 + $0x340] sm:$0xf]
  %v240 = vld [vmem:[%s1 + $0x344] sm:$0xf]
  %v241 = vld [vmem:[%s1 + $0x348] sm:$0xf]
  %v242 = vld [vmem:[%s1 + $0x34c] sm:$0xf]
  %v243 = vld [vmem:[%s1 + $0x350] sm:$0xf]
  %v244 = vld [vmem:[%s1 + $0x354] sm:$0xf]
  %v245 = vld [vmem:[%s1 + $0x358] sm:$0xf]
  %v246 = vld [vmem:[%s1 + $0x35c] sm:$0xf]
  %v247 = vld [vmem:[%s1 + $0x360] sm:$0xf]
  %v248 = vld [vmem:[%s1 + $0x364] sm:$0xf]
  %v249 = vld [vmem:[%s1 + $0x368] sm:$0xf]
  %v250 = vld [vmem:[%s1 + $0x36c] sm:$0xf]
  %v251 = vld [vmem:[%s1 + $0x370] sm:$0xf]
  %v252 = vld [vmem:[%s1 + $0x374] sm:$0xf]
  %v253 = vld [vmem:[%s1 + $0x378] sm:$0xf]
  %v254 = vld [vmem:[%s1 + $0x37c] sm:$0xf]
  %v255 = vld [vmem:[%s1 + $0x380] sm:$0xf]
  %v256 = vld [vmem:[%s1 + $0x384] sm:$0xf]
  %v257 = vld [vmem:[%s1 + $0x388] sm:$0xf]
  %v258 = vld [vmem:[%s1 + $0x38c] sm:$0xf]
  %v259 = vld [vmem:[%s1 + $0x390] sm:$0xf]
  %v260 = vld [vmem:[%s1 + $0x394] sm:$0xf]
  %v261 = vld [vmem:[%s1 + $0x398] sm:$0xf]
  %v262 = vld [vmem:[%s1 + $0x39c] sm:$0xf]
  %v263 = vld [vmem:[%s1 + $0x3a0] sm:$0xf]
  %v264 = vld [vmem:[%s1 + $0x3a4] sm:$0xf]
  %v265 = vld [vmem:[%s1 + $0x3a8] sm:$0xf]
  %v266 = vld [vmem:[%s1 + $0x3ac] sm:$0xf]
  %v267 = vld [vmem:[%s1 + $0x3b0] sm:$0xf]
  %v268 = vld [vmem:[%s1 + $0x3b4] sm:$0xf]
  %v269 = vld [vmem:[%s1 + $0x3b8] sm:$0xf]
  %v270 = vld [vmem:[%s1 + $0x3bc] sm:$0xf]
  %v271 = vld [vmem:[%s1 + $0x3c0] sm:$0xf]
  %v272 = vld [vmem:[%s1 + $0x3c4] sm:$0xf]
  %v273 = vld [vmem:[%s1 + $0x3c8] sm:$0xf]
  %v274 = vld [vmem:[%s1 + $0x3cc] sm:$0xf]
  %v275 = vld [vmem:[%s1 + $0x3d0] sm:$0xf]
  %v276 = vld [vmem:[%s1 + $0x3d4] sm:$0xf]
  %v277 = vld [vmem:[%s1 + $0x3d8] sm:$0xf]
  %v278 = vld [vmem:[%s1 + $0x3dc] sm:$0xf]
  %v279 = vld [vmem:[%s1 + $0x3e0] sm:$0xf]
  %v280 = vld [vmem:[%s1 + $0x3e4] sm:$0xf]
  %v281 = vld [vmem:[%s1 + $0x3e8] sm:$0xf]
  %v282 = vld [vmem:[%s1 + $0x3ec] sm:$0xf]
  %v283 = vld [vmem:[%s1 + $0x3f0] sm:$0xf]
  %v284 = vld [vmem:[%s1 + $0x3f4] sm:$0xf]
  %v285 = vld [vmem:[%s1 + $0x3f8] sm:$0xf]
  %v286 = vld [vmem:[%s1 + $0x3fc] sm:$0xf]
  %v287 = vld [vmem:[%s1 + $0x400] sm:$0xf]
  %v288 = vld [vmem:[%s1 + $0x404] sm:$0xf]
  %v289 = vld [vmem:[%s1 + $0x408] sm:$0xf]
  %v290 = vld [vmem:[%s1 + $0x40c] sm:$0xf]
  %v291 = vld [vmem:[%s1 + $0x410] sm:$0xf]
  %v292 = vld [vmem:[%s1 + $0x414] sm:$0xf]
  %v293 = vld [vmem:[%s1 + $0x418] sm:$0xf]
  %v294 = vld [vmem:[%s1 + $0x41c] sm:$0xf]
  %v295 = vld [vmem:[%s1 + $0x420] sm:$0xf]
  %v296 = vld [vmem:[%s1 + $0x424] sm:$0xf]
  %v297 = vld [vmem:[%s1 + $0x428] sm:$0xf]
  %v298 = vld [vmem:[%s1 + $0x42c] sm:$0xf]
  %v299 = vld [vmem:[%s1 + $0x430] sm:$0xf]
  %v300 = vld [vmem:[%s1 + $0x434] sm:$0xf]
  %v301 = vld [vmem:[%s1 + $0x438] sm:$0xf]
  %v302 = vld [vmem:[%s1 + $0x43c] sm:$0xf]
  %v303 = vld [vmem:[%s1 + $0x440] sm:$0xf]
  %v304 = vld [vmem:[%s1 + $0x444] sm:$0xf]
  %v305 = vld [vmem:[%s1 + $0x448] sm:$0xf]
  %v306 = vld [vmem:[%s1 + $0x44c] sm:$0xf]
  %v307 = vld [vmem:[%s1 + $0x450] sm:$0xf]
  %v308 = vld [vmem:[%s1 + $0x454] sm:$0xf]
  %v309 = vld [vmem:[%s1 + $0x458] sm:$0xf]
  %v310 = vld [vmem:[%s1 + $0x45c] sm:$0xf]
  %v311 = vld [vmem:[%s1 + $0x460] sm:$0xf]
  %v312 = vld [vmem:[%s1 + $0x464] sm:$0xf]
  %v313 = vld [vmem:[%s1 + $0x468] sm:$0xf]
  %v314 = vld [vmem:[%s1 + $0x46c] sm:$0xf]
  %v315 = vld [vmem:[%s1 + $0x470] sm:$0xf]
  %v316 = vld [vmem:[%s1 + $0x474] sm:$0xf]
  %v317 = vld [vmem:[%s1 + $0x478] sm:$0xf]
  %v318 = vld [vmem:[%s1 + $0x47c] sm:$0xf]
  %v319 = vld [vmem:[%s1 + $0x480] sm:$0xf]
  %v320 = vld [vmem:[%s1 + $0x484] sm:$0xf]
  %v321 = vld [vmem:[%s1 + $0x488] sm:$0xf]
  %v322 = vld [vmem:[%s1 + $0x48c] sm:$0xf]
  %v323 = vld [vmem:[%s1 + $0x490] sm:$0xf]
  %v324 = vld [vmem:[%s1 + $0x494] sm:$0xf]
  %v325 = vld [vmem:[%s1 + $0x498] sm:$0xf]
  %v326 = vld [vmem:[%s1 + $0x49c] sm:$0xf]
  %v327 = vld [vmem:[%s1 + $0x4a0] sm:$0xf]
  %v328 = vld [vmem:[%s1 + $0x4a4] sm:$0xf]
  %v329 = vld [vmem:[%s1 + $0x4a8] sm:$0xf]
  %v330 = vld [vmem:[%s1 + $0x4ac] sm:$0xf]
  %v331 = vld [vmem:[%s1 + $0x4b0] sm:$0xf]
  %v332 = vld [vmem:[%s1 + $0x4b4] sm:$0xf]
  %v333 = vld [vmem:[%s1 + $0x4b8] sm:$0xf]
  %v334 = vld [vmem:[%s1 + $0x4bc] sm:$0xf]
  %v335 = vld [vmem:[%s1 + $0x4c0] sm:$0xf]
  %v336 = vld [vmem:[%s1 + $0x4c4] sm:$0xf]
  %v337 = vld [vmem:[%s1 + $0x4c8] sm:$0xf]
  %v338 = vld [vmem:[%s1 + $0x4cc] sm:$0xf]
  %v339 = vld [vmem:[%s1 + $0x4d0] sm:$0xf]
  %v340 = vld [vmem:[%s1 + $0x4d4] sm:$0xf]
  %v341 = vld [vmem:[%s1 + $0x4d8] sm:$0xf]
  %v342 = vld [vmem:[%s1 + $0x4dc] sm:$0xf]
  %v343 = vld [vmem:[%s1 + $0x4e0] sm:$0xf]
  %v344 = vld [vmem:[%s1 + $0x4e4] sm:$0xf]
  %v345 = vld [vmem:[%s1 + $0x4e8] sm:$0xf]
  %v346 = vld [vmem:[%s1 + $0x4ec] sm:$0xf]
  %v347 = vld [vmem:[%s1 + $0x4f0] sm:$0xf]
  %v348 = vld [vmem:[%s1 + $0x4f4] sm:$0xf]
  %v349 = vld [vmem:[%s1 + $0x4f8] sm:$0xf]
  %v350 = vld [vmem:[%s1 + $0x4fc] sm:$0xf]
  %v351 = vld [vmem:[%s1 + $0x500] sm:$0xf]
  %v352 = vld [vmem:[%s1 + $0x504] sm:$0xf]
  %v353 = vld [vmem:[%s1 + $0x508] sm:$0xf]
  %v354 = vld [vmem:[%s1 + $0x50c] sm:$0xf]
  %v355 = vld [vmem:[%s1 + $0x510] sm:$0xf]
  %v356 = vld [vmem:[%s1 + $0x514] sm:$0xf]
  %v357 = vld [vmem:[%s1 + $0x518] sm:$0xf]
  %v358 = vld [vmem:[%s1 + $0x51c] sm:$0xf]
  %v359 = vld [vmem:[%s1 + $0x520] sm:$0xf]
  %v360 = vld [vmem:[%s1 + $0x524] sm:$0xf]
  %v361 = vld [vmem:[%s1 + $0x528] sm:$0xf]
  %v362 = vld [vmem:[%s1 + $0x52c] sm:$0xf]
  %v363 = vld [vmem:[%s1 + $0x530] sm:$0xf]
  %v364 = vld [vmem:[%s1 + $0x534] sm:$0xf]
  %v365 = vld [vmem:[%s1 + $0x538] sm:$0xf]
  %v366 = vld [vmem:[%s1 + $0x53c] sm:$0xf]
  %v367 = vld [vmem:[%s1 + $0x540] sm:$0xf]
  %v368 = vld [vmem:[%s1 + $0x544] sm:$0xf]
  %v369 = vld [vmem:[%s1 + $0x548] sm:$0xf]
  %v370 = vld [vmem:[%s1 + $0x54c] sm:$0xf]
  %v371 = vld [vmem:[%s1 + $0x550] sm:$0xf]
  %v372 = vld [vmem:[%s1 + $0x554] sm:$0xf]
  %v373 = vld [vmem:[%s1 + $0x558] sm:$0xf]
  %v374 = vld [vmem:[%s1 + $0x55c] sm:$0xf]
  %v375 = vld [vmem:[%s1 + $0x560] sm:$0xf]
  %v376 = vld [vmem:[%s1 + $0x564] sm:$0xf]
  %v377 = vld [vmem:[%s1 + $0x568] sm:$0xf]
  %v378 = vld [vmem:[%s1 + $0x56c] sm:$0xf]
  %v379 = vld [vmem:[%s1 + $0x570] sm:$0xf]
  %v380 = vld [vmem:[%s1 + $0x574] sm:$0xf]
  %v381 = vld [vmem:[%s1 + $0x578] sm:$0xf]
  %v382 = vld [vmem:[%s1 + $0x57c] sm:$0xf]
  %v383 = vld [vmem:[%s1 + $0x580] sm:$0xf]
  %v384 = vld [vmem:[%s1 + $0x584] sm:$0xf]
  %v385 = vld [vmem:[%s1 + $0x588] sm:$0xf]
  %v386 = vld [vmem:[%s1 + $0x58c] sm:$0xf]
  %v387 = vld [vmem:[%s1 + $0x590] sm:$0xf]
  %v388 = vld [vmem:[%s1 + $0x594] sm:$0xf]
  %v389 = vld [vmem:[%s1 + $0x598] sm:$0xf]
  %v390 = vld [vmem:[%s1 + $0x59c] sm:$0xf]
  %v391 = vld [vmem:[%s1 + $0x5a0] sm:$0xf]
  %v392 = vld [vmem:[%s1 + $0x5a4] sm:$0xf]
  %v393 = vld [vmem:[%s1 + $0x5a8] sm:$0xf]
  %v394 = vld [vmem:[%s1 + $0x5ac] sm:$0xf]
  %v395 = vld [vmem:[%s1 + $0x5b0] sm:$0xf]
  %v396 = vld [vmem:[%s1 + $0x5b4] sm:$0xf]
  %v397 = vld [vmem:[%s1 + $0x5b8] sm:$0xf]
  %v398 = vld [vmem:[%s1 + $0x5bc] sm:$0xf]
  %v399 = vld [vmem:[%s1 + $0x5c0] sm:$0xf]
  %v400 = vld [vmem:[%s1 + $0x5c4] sm:$0xf]
  %v401 = vld [vmem:[%s1 + $0x5c8] sm:$0xf]
  %v402 = vld [vmem:[%s1 + $0x5cc] sm:$0xf]
  %v403 = vld [vmem:[%s1 + $0x5d0] sm:$0xf]
  %v404 = vld [vmem:[%s1 + $0x5d4] sm:$0xf]
  %v405 = vld [vmem:[%s1 + $0x5d8] sm:$0xf]
  %v406 = vld [vmem:[%s1 + $0x5dc] sm:$0xf]
  %v407 = vld [vmem:[%s1 + $0x5e0] sm:$0xf]
  %v408 = vld [vmem:[%s1 + $0x5e4] sm:$0xf]
  %v409 = vld [vmem:[%s1 + $0x5e8] sm:$0xf]
  %v410 = vld [vmem:[%s1 + $0x5ec] sm:$0xf]
  %v411 = vld [vmem:[%s1 + $0x5f0] sm:$0xf]
  %v412 = vld [vmem:[%s1 + $0x5f4] sm:$0xf]
  %v413 = vld [vmem:[%s1 + $0x5f8] sm:$0xf]
  %v414 = vld [vmem:[%s1 + $0x5fc] sm:$0xf]
  %v415 = vld [vmem:[%s1 + $0x600] sm:$0xf]
  %v416 = vld [vmem:[%s1 + $0x604] sm:$0xf]
  %v417 = vld [vmem:[%s1 + $0x608] sm:$0xf]
  %v418 = vld [vmem:[%s1 + $0x60c] sm:$0xf]
  %v419 = vld [vmem:[%s1 + $0x610] sm:$0xf]
  %v420 = vld [vmem:[%s1 + $0x614] sm:$0xf]
  %v421 = vld [vmem:[%s1 + $0x618] sm:$0xf]
  %v422 = vld [vmem:[%s1 + $0x61c] sm:$0xf]
  %v423 = vld [vmem:[%s1 + $0x620] sm:$0xf]
  %v424 = vld [vmem:[%s1 + $0x624] sm:$0xf]
  %v425 = vld [vmem:[%s1 + $0x628] sm:$0xf]
  %v426 = vld [vmem:[%s1 + $0x62c] sm:$0xf]
  %v427 = vld [vmem:[%s1 + $0x630] sm:$0xf]
  %v428 = vld [vmem:[%s1 + $0x634] sm:$0xf]
  %v429 = vld [vmem:[%s1 + $0x638] sm:$0xf]
  %v430 = vld [vmem:[%s1 + $0x63c] sm:$0xf]
  %v431 = vld [vmem:[%s1 + $0x640] sm:$0xf]
  %v432 = vld [vmem:[%s1 + $0x644] sm:$0xf]
  %v433 = vld [vmem:[%s1 + $0x648] sm:$0xf]
  %v434 = vld [vmem:[%s1 + $0x64c] sm:$0xf]
  %v435 = vld [vmem:[%s1 + $0x650] sm:$0xf]
  %v436 = vld [vmem:[%s1 + $0x654] sm:$0xf]
  %v437 = vld [vmem:[%s1 + $0x658] sm:$0xf]
  %v438 = vld [vmem:[%s1 + $0x65c] sm:$0xf]
  %v439 = vld [vmem:[%s1 + $0x660] sm:$0xf]
  %v440 = vld [vmem:[%s1 + $0x664] sm:$0xf]
  %v441 = vld [vmem:[%s1 + $0x668] sm:$0xf]
  %v442 = vld [vmem:[%s1 + $0x66c] sm:$0xf]
  %v443 = vld [vmem:[%s1 + $0x670] sm:$0xf]
  %v444 = vld [vmem:[%s1 + $0x674] sm:$0xf]
  %v445 = vld [vmem:[%s1 + $0x678] sm:$0xf]
  %v446 = vld [vmem:[%s1 + $0x67c] sm:$0xf]
  %v447 = vld [vmem:[%s1 + $0x680] sm:$0xf]
  %v448 = vld [vmem:[%s1 + $0x684] sm:$0xf]
  %v449 = vld [vmem:[%s1 + $0x688] sm:$0xf]
  %v450 = vld [vmem:[%s1 + $0x68c] sm:$0xf]
  %v451 = vld [vmem:[%s1 + $0x690] sm:$0xf]
  %v452 = vld [vmem:[%s1 + $0x694] sm:$0xf]
  %v453 = vld [vmem:[%s1 + $0x698] sm:$0xf]
  %v454 = vld [vmem:[%s1 + $0x69c] sm:$0xf]
  %v455 = vld [vmem:[%s1 + $0x6a0] sm:$0xf]
  %v456 = vld [vmem:[%s1 + $0x6a4] sm:$0xf]
  %v457 = vld [vmem:[%s1 + $0x6a8] sm:$0xf]
  %v458 = vld [vmem:[%s1 + $0x6ac] sm:$0xf]
  %v459 = vld [vmem:[%s1 + $0x6b0] sm:$0xf]
  %v460 = vld [vmem:[%s1 + $0x6b4] sm:$0xf]
  %v461 = vld [vmem:[%s1 + $0x6b8] sm:$0xf]
  %v462 = vld [vmem:[%s1 + $0x6bc] sm:$0xf]
  %v463 = vld [vmem:[%s1 + $0x6c0] sm:$0xf]
  %v464 = vld [vmem:[%s1 + $0x6c4] sm:$0xf]
  %v465 = vld [vmem:[%s1 + $0x6c8] sm:$0xf]
  %v466 = vld [vmem:[%s1 + $0x6cc] sm:$0xf]
  %v467 = vld [vmem:[%s1 + $0x6d0] sm:$0xf]
  %v468 = vld [vmem:[%s1 + $0x6d4] sm:$0xf]
  %v469 = vld [vmem:[%s1 + $0x6d8] sm:$0xf]
  %v470 = vld [vmem:[%s1 + $0x6dc] sm:$0xf]
  %v471 = vld [vmem:[%s1 + $0x6e0] sm:$0xf]
  %v472 = vld [vmem:[%s1 + $0x6e4] sm:$0xf]
  %v473 = vld [vmem:[%s1 + $0x6e8] sm:$0xf]
  %v474 = vld [vmem:[%s1 + $0x6ec] sm:$0xf]
  %v475 = vld [vmem:[%s1 + $0x6f0] sm:$0xf]
  %v476 = vld [vmem:[%s1 + $0x6f4] sm:$0xf]
  %v477 = vld [vmem:[%s1 + $0x6f8] sm:$0xf]
  %v478 = vld [vmem:[%s1 + $0x6fc] sm:$0xf]
  %v479 = vld [vmem:[%s1 + $0x700] sm:$0xf]
  %v480 = vld [vmem:[%s1 + $0x704] sm:$0xf]
  %v481 = vld [vmem:[%s1 + $0x708] sm:$0xf]
  %v482 = vld [vmem:[%s1 + $0x70c] sm:$0xf]
  %v483 = vld [vmem:[%s1 + $0x710] sm:$0xf]
  %v484 = vld [vmem:[%s1 + $0x714] sm:$0xf]
  %v485 = vld [vmem:[%s1 + $0x718] sm:$0xf]
  %v486 = vld [vmem:[%s1 + $0x71c] sm:$0xf]
  %v487 = vld [vmem:[%s1 + $0x720] sm:$0xf]
  %v488 = vld [vmem:[%s1 + $0x724] sm:$0xf]
  %v489 = vld [vmem:[%s1 + $0x728] sm:$0xf]
  %v490 = vld [vmem:[%s1 + $0x72c] sm:$0xf]
  %v491 = vld [vmem:[%s1 + $0x730] sm:$0xf]
  %v492 = vld [vmem:[%s1 + $0x734] sm:$0xf]
  %v493 = vld [vmem:[%s1 + $0x738] sm:$0xf]
  %v494 = vld [vmem:[%s1 + $0x73c] sm:$0xf]
  %v495 = vld [vmem:[%s1 + $0x740] sm:$0xf]
  %v496 = vld [vmem:[%s1 + $0x744] sm:$0xf]
  %v497 = vld [vmem:[%s1 + $0x748] sm:$0xf]
  %v498 = vld [vmem:[%s1 + $0x74c] sm:$0xf]
  %v499 = vld [vmem:[%s1 + $0x750] sm:$0xf]
  %v500 = vld [vmem:[%s1 + $0x754] sm:$0xf]
  %v501 = vld [vmem:[%s1 + $0x758] sm:$0xf]
  %v502 = vld [vmem:[%s1 + $0x75c] sm:$0xf]
  %v503 = vld [vmem:[%s1 + $0x760] sm:$0xf]
  %v504 = vld [vmem:[%s1 + $0x764] sm:$0xf]
  %v505 = vld [vmem:[%s1 + $0x768] sm:$0xf]
  %v506 = vld [vmem:[%s1 + $0x76c] sm:$0xf]
  %v507 = vld [vmem:[%s1 + $0x770] sm:$0xf]
  %v508 = vld [vmem:[%s1 + $0x774] sm:$0xf]
  %v509 = vld [vmem:[%s1 + $0x778] sm:$0xf]
  %v510 = vld [vmem:[%s1 + $0x77c] sm:$0xf]
  %v511 = vld [vmem:[%s1 + $0x780] sm:$0xf]
  %v512 = vld [vmem:[%s1 + $0x784] sm:$0xf]
  %v513 = vld [vmem:[%s1 + $0x788] sm:$0xf]
  %v514 = vld [vmem:[%s1 + $0x78c] sm:$0xf]
  %v515 = vld [vmem:[%s1 + $0x790] sm:$0xf]
  %v516 = vld [vmem:[%s1 + $0x794] sm:$0xf]
  %v517 = vld [vmem:[%s1 + $0x798] sm:$0xf]
  %v518 = vld [vmem:[%s1 + $0x79c] sm:$0xf]
  %v519 = vld [vmem:[%s1 + $0x7a0] sm:$0xf]
  %v520 = vld [vmem:[%s1 + $0x7a4] sm:$0xf]
  %v521 = vld [vmem:[%s1 + $0x7a8] sm:$0xf]
  %v522 = vld [vmem:[%s1 + $0x7ac] sm:$0xf]
  %v523 = vld [vmem:[%s1 + $0x7b0] sm:$0xf]
  %v524 = vld [vmem:[%s1 + $0x7b4] sm:$0xf]
  %v525 = vld [vmem:[%s1 + $0x7b8] sm:$0xf]
  %v526 = vld [vmem:[%s1 + $0x7bc] sm:$0xf]
  %v527 = vld [vmem:[%s1 + $0x7c0] sm:$0xf]
  %v528 = vld [vmem:[%s1 + $0x7c4] sm:$0xf]
  %v529 = vld [vmem:[%s1 + $0x7c8] sm:$0xf]
  %v530 = vld [vmem:[%s1 + $0x7cc] sm:$0xf]
  %v531 = vld [vmem:[%s1 + $0x7d0] sm:$0xf]
  %v532 = vld [vmem:[%s1 + $0x7d4] sm:$0xf]
  %v533 = vld [vmem:[%s1 + $0x7d8] sm:$0xf]
  %v534 = vld [vmem:[%s1 + $0x7dc] sm:$0xf]
  %v535 = vld [vmem:[%s1 + $0x7e0] sm:$0xf]
  %v536 = vld [vmem:[%s1 + $0x7e4] sm:$0xf]
  %v537 = vld [vmem:[%s1 + $0x7e8] sm:$0xf]
  %v538 = vld [vmem:[%s1 + $0x7ec] sm:$0xf]
  %v539 = vld [vmem:[%s1 + $0x7f0] sm:$0xf]
  %v540 = vld [vmem:[%s1 + $0x7f4] sm:$0xf]
  %v541 = vld [vmem:[%s1 + $0x7f8] sm:$0xf]
  %v542 = vld [vmem:[%s1 + $0x7fc] sm:$0xf]
  %v543 = vld [vmem:[%s2] sm:$0x1]
  %v545 = vlaneseq
  %v546 = vshrl.u32 %v545, 7
  %v547 = vsub.s32 0, %v546
  %v548 = vrot.slane %v543, %v547
  %v566 = vunpack.c.l.b16 %v15
  %v567 = vunpack.c.h.b16 %v15
  %v568 = vunpack.c.l.b16 %v16
  %v569 = vunpack.c.h.b16 %v16
  %v570 = vunpack.c.l.b16 %v17
  %v571 = vunpack.c.h.b16 %v17
  %v572 = vunpack.c.l.b16 %v18
  %v573 = vunpack.c.h.b16 %v18
  %v574 = vunpack.c.l.b16 %v19
  %v575 = vunpack.c.h.b16 %v19
  %v576 = vunpack.c.l.b16 %v20
  %v577 = vunpack.c.h.b16 %v20
  %v578 = vunpack.c.l.b16 %v21
  %v579 = vunpack.c.h.b16 %v21
  %v580 = vunpack.c.l.b16 %v22
  %v581 = vunpack.c.h.b16 %v22
  %v582 = vunpack.c.l.b16 %v23
  %v583 = vunpack.c.h.b16 %v23
  %v584 = vunpack.c.l.b16 %v24
  %v585 = vunpack.c.h.b16 %v24
  %v586 = vunpack.c.l.b16 %v25
  %v587 = vunpack.c.h.b16 %v25
  %v588 = vunpack.c.l.b16 %v26
  %v589 = vunpack.c.h.b16 %v26
  %v590 = vunpack.c.l.b16 %v27
  %v591 = vunpack.c.h.b16 %v27
  %v592 = vunpack.c.l.b16 %v28
  %v593 = vunpack.c.h.b16 %v28
  %v594 = vunpack.c.l.b16 %v29
  %v595 = vunpack.c.h.b16 %v29
  %v596 = vunpack.c.l.b16 %v30
  %v597 = vunpack.c.h.b16 %v30
  %v598 = vpack.c.b16 %v566, %v566
  %v599 = vpack.c.b16 %v567, %v567
  %v600 = vpack.c.b16 %v568, %v568
  %v601 = vpack.c.b16 %v569, %v569
  %v602 = vpack.c.b16 %v570, %v570
  %v603 = vpack.c.b16 %v571, %v571
  %v604 = vpack.c.b16 %v572, %v572
  %v605 = vpack.c.b16 %v573, %v573
  %v606 = vpack.c.b16 %v574, %v574
  %v607 = vpack.c.b16 %v575, %v575
  %v608 = vpack.c.b16 %v576, %v576
  %v609 = vpack.c.b16 %v577, %v577
  %v610 = vpack.c.b16 %v578, %v578
  %v611 = vpack.c.b16 %v579, %v579
  %v612 = vpack.c.b16 %v580, %v580
  %v613 = vpack.c.b16 %v581, %v581
  %v614 = vpack.c.b16 %v582, %v582
  %v615 = vpack.c.b16 %v583, %v583
  %v616 = vpack.c.b16 %v584, %v584
  %v617 = vpack.c.b16 %v585, %v585
  %v618 = vpack.c.b16 %v586, %v586
  %v619 = vpack.c.b16 %v587, %v587
  %v620 = vpack.c.b16 %v588, %v588
  %v621 = vpack.c.b16 %v589, %v589
  %v622 = vpack.c.b16 %v590, %v590
  %v623 = vpack.c.b16 %v591, %v591
  %v624 = vpack.c.b16 %v592, %v592
  %v625 = vpack.c.b16 %v593, %v593
  %v626 = vpack.c.b16 %v594, %v594
  %v627 = vpack.c.b16 %v595, %v595
  %v628 = vpack.c.b16 %v596, %v596
  %v629 = vpack.c.b16 %v597, %v597
  %v1174 = vunpack.c.l.b16 %v31
  %v1175 = vunpack.c.l.b16 %v32
  %v1176 = vunpack.c.l.b16 %v33
  %v1177 = vunpack.c.l.b16 %v34
  %v1178 = vunpack.c.l.b16 %v35
  %v1179 = vunpack.c.l.b16 %v36
  %v1180 = vunpack.c.l.b16 %v37
  %v1181 = vunpack.c.l.b16 %v38
  %v1182 = vunpack.c.l.b16 %v39
  %v1183 = vunpack.c.l.b16 %v40
  %v1184 = vunpack.c.l.b16 %v41
  %v1185 = vunpack.c.l.b16 %v42
  %v1186 = vunpack.c.l.b16 %v43
  %v1187 = vunpack.c.l.b16 %v44
  %v1188 = vunpack.c.l.b16 %v45
  %v1189 = vunpack.c.l.b16 %v46
  %v1190 = vunpack.c.l.b16 %v47
  %v1191 = vunpack.c.l.b16 %v48
  %v1192 = vunpack.c.l.b16 %v49
  %v1193 = vunpack.c.l.b16 %v50
  %v1194 = vunpack.c.l.b16 %v51
  %v1195 = vunpack.c.l.b16 %v52
  %v1196 = vunpack.c.l.b16 %v53
  %v1197 = vunpack.c.l.b16 %v54
  %v1198 = vunpack.c.l.b16 %v55
  %v1199 = vunpack.c.l.b16 %v56
  %v1200 = vunpack.c.l.b16 %v57
  %v1201 = vunpack.c.l.b16 %v58
  %v1202 = vunpack.c.l.b16 %v59
  %v1203 = vunpack.c.l.b16 %v60
  %v1204 = vunpack.c.l.b16 %v61
  %v1205 = vunpack.c.l.b16 %v62
  %v1206 = vunpack.c.l.b16 %v63
  %v1207 = vunpack.c.l.b16 %v64
  %v1208 = vunpack.c.l.b16 %v65
  %v1209 = vunpack.c.l.b16 %v66
  %v1210 = vunpack.c.l.b16 %v67
  %v1211 = vunpack.c.l.b16 %v68
  %v1212 = vunpack.c.l.b16 %v69
  %v1213 = vunpack.c.l.b16 %v70
  %v1214 = vunpack.c.l.b16 %v71
  %v1215 = vunpack.c.l.b16 %v72
  %v1216 = vunpack.c.l.b16 %v73
  %v1217 = vunpack.c.l.b16 %v74
  %v1218 = vunpack.c.l.b16 %v75
  %v1219 = vunpack.c.l.b16 %v76
  %v1220 = vunpack.c.l.b16 %v77
  %v1221 = vunpack.c.l.b16 %v78
  %v1222 = vunpack.c.l.b16 %v79
  %v1223 = vunpack.c.l.b16 %v80
  %v1224 = vunpack.c.l.b16 %v81
  %v1225 = vunpack.c.l.b16 %v82
  %v1226 = vunpack.c.l.b16 %v83
  %v1227 = vunpack.c.l.b16 %v84
  %v1228 = vunpack.c.l.b16 %v85
  %v1229 = vunpack.c.l.b16 %v86
  %v1230 = vunpack.c.l.b16 %v87
  %v1231 = vunpack.c.l.b16 %v88
  %v1232 = vunpack.c.l.b16 %v89
  %v1233 = vunpack.c.l.b16 %v90
  %v1234 = vunpack.c.l.b16 %v91
  %v1235 = vunpack.c.l.b16 %v92
  %v1236 = vunpack.c.l.b16 %v93
  %v1237 = vunpack.c.l.b16 %v94
  %v1238 = vunpack.c.l.b16 %v95
  %v1239 = vunpack.c.l.b16 %v96
  %v1240 = vunpack.c.l.b16 %v97
  %v1241 = vunpack.c.l.b16 %v98
  %v1242 = vunpack.c.l.b16 %v99
  %v1243 = vunpack.c.l.b16 %v100
  %v1244 = vunpack.c.l.b16 %v101
  %v1245 = vunpack.c.l.b16 %v102
  %v1246 = vunpack.c.l.b16 %v103
  %v1247 = vunpack.c.l.b16 %v104
  %v1248 = vunpack.c.l.b16 %v105
  %v1249 = vunpack.c.l.b16 %v106
  %v1250 = vunpack.c.l.b16 %v107
  %v1251 = vunpack.c.l.b16 %v108
  %v1252 = vunpack.c.l.b16 %v109
  %v1253 = vunpack.c.l.b16 %v110
  %v1254 = vunpack.c.l.b16 %v111
  %v1255 = vunpack.c.l.b16 %v112
  %v1256 = vunpack.c.l.b16 %v113
  %v1257 = vunpack.c.l.b16 %v114
  %v1258 = vunpack.c.l.b16 %v115
  %v1259 = vunpack.c.l.b16 %v116
  %v1260 = vunpack.c.l.b16 %v117
  %v1261 = vunpack.c.l.b16 %v118
  %v1262 = vunpack.c.l.b16 %v119
  %v1263 = vunpack.c.l.b16 %v120
  %v1264 = vunpack.c.l.b16 %v121
  %v1265 = vunpack.c.l.b16 %v122
  %v1266 = vunpack.c.l.b16 %v123
  %v1267 = vunpack.c.l.b16 %v124
  %v1268 = vunpack.c.l.b16 %v125
  %v1269 = vunpack.c.l.b16 %v126
  %v1270 = vunpack.c.l.b16 %v127
  %v1271 = vunpack.c.l.b16 %v128
  %v1272 = vunpack.c.l.b16 %v129
  %v1273 = vunpack.c.l.b16 %v130
  %v1274 = vunpack.c.l.b16 %v131
  %v1275 = vunpack.c.l.b16 %v132
  %v1276 = vunpack.c.l.b16 %v133
  %v1277 = vunpack.c.l.b16 %v134
  %v1278 = vunpack.c.l.b16 %v135
  %v1279 = vunpack.c.l.b16 %v136
  %v1280 = vunpack.c.l.b16 %v137
  %v1281 = vunpack.c.l.b16 %v138
  %v1282 = vunpack.c.l.b16 %v139
  %v1283 = vunpack.c.l.b16 %v140
  %v1284 = vunpack.c.l.b16 %v141
  %v1285 = vunpack.c.l.b16 %v142
  %v1286 = vunpack.c.l.b16 %v143
  %v1287 = vunpack.c.l.b16 %v144
  %v1288 = vunpack.c.l.b16 %v145
  %v1289 = vunpack.c.l.b16 %v146
  %v1290 = vunpack.c.l.b16 %v147
  %v1291 = vunpack.c.l.b16 %v148
  %v1292 = vunpack.c.l.b16 %v149
  %v1293 = vunpack.c.l.b16 %v150
  %v1294 = vunpack.c.l.b16 %v151
  %v1295 = vunpack.c.l.b16 %v152
  %v1296 = vunpack.c.l.b16 %v153
  %v1297 = vunpack.c.l.b16 %v154
  %v1298 = vunpack.c.l.b16 %v155
  %v1299 = vunpack.c.l.b16 %v156
  %v1300 = vunpack.c.l.b16 %v157
  %v1301 = vunpack.c.l.b16 %v158
  %v1302 = vunpack.c.l.b16 %v159
  %v1303 = vunpack.c.l.b16 %v160
  %v1304 = vunpack.c.l.b16 %v161
  %v1305 = vunpack.c.l.b16 %v162
  %v1306 = vunpack.c.l.b16 %v163
  %v1307 = vunpack.c.l.b16 %v164
  %v1308 = vunpack.c.l.b16 %v165
  %v1309 = vunpack.c.l.b16 %v166
  %v1310 = vunpack.c.l.b16 %v167
  %v1311 = vunpack.c.l.b16 %v168
  %v1312 = vunpack.c.l.b16 %v169
  %v1313 = vunpack.c.l.b16 %v170
  %v1314 = vunpack.c.l.b16 %v171
  %v1315 = vunpack.c.l.b16 %v172
  %v1316 = vunpack.c.l.b16 %v173
  %v1317 = vunpack.c.l.b16 %v174
  %v1318 = vunpack.c.l.b16 %v175
  %v1319 = vunpack.c.l.b16 %v176
  %v1320 = vunpack.c.l.b16 %v177
  %v1321 = vunpack.c.l.b16 %v178
  %v1322 = vunpack.c.l.b16 %v179
  %v1323 = vunpack.c.l.b16 %v180
  %v1324 = vunpack.c.l.b16 %v181
  %v1325 = vunpack.c.l.b16 %v182
  %v1326 = vunpack.c.l.b16 %v183
  %v1327 = vunpack.c.l.b16 %v184
  %v1328 = vunpack.c.l.b16 %v185
  %v1329 = vunpack.c.l.b16 %v186
  %v1330 = vunpack.c.l.b16 %v187
  %v1331 = vunpack.c.l.b16 %v188
  %v1332 = vunpack.c.l.b16 %v189
  %v1333 = vunpack.c.l.b16 %v190
  %v1334 = vunpack.c.l.b16 %v191
  %v1335 = vunpack.c.l.b16 %v192
  %v1336 = vunpack.c.l.b16 %v193
  %v1337 = vunpack.c.l.b16 %v194
  %v1338 = vunpack.c.l.b16 %v195
  %v1339 = vunpack.c.l.b16 %v196
  %v1340 = vunpack.c.l.b16 %v197
  %v1341 = vunpack.c.l.b16 %v198
  %v1342 = vunpack.c.l.b16 %v199
  %v1343 = vunpack.c.l.b16 %v200
  %v1344 = vunpack.c.l.b16 %v201
  %v1345 = vunpack.c.l.b16 %v202
  %v1346 = vunpack.c.l.b16 %v203
  %v1347 = vunpack.c.l.b16 %v204
  %v1348 = vunpack.c.l.b16 %v205
  %v1349 = vunpack.c.l.b16 %v206
  %v1350 = vunpack.c.l.b16 %v207
  %v1351 = vunpack.c.l.b16 %v208
  %v1352 = vunpack.c.l.b16 %v209
  %v1353 = vunpack.c.l.b16 %v210
  %v1354 = vunpack.c.l.b16 %v211
  %v1355 = vunpack.c.l.b16 %v212
  %v1356 = vunpack.c.l.b16 %v213
  %v1357 = vunpack.c.l.b16 %v214
  %v1358 = vunpack.c.l.b16 %v215
  %v1359 = vunpack.c.l.b16 %v216
  %v1360 = vunpack.c.l.b16 %v217
  %v1361 = vunpack.c.l.b16 %v218
  %v1362 = vunpack.c.l.b16 %v219
  %v1363 = vunpack.c.l.b16 %v220
  %v1364 = vunpack.c.l.b16 %v221
  %v1365 = vunpack.c.l.b16 %v222
  %v1366 = vunpack.c.l.b16 %v223
  %v1367 = vunpack.c.l.b16 %v224
  %v1368 = vunpack.c.l.b16 %v225
  %v1369 = vunpack.c.l.b16 %v226
  %v1370 = vunpack.c.l.b16 %v227
  %v1371 = vunpack.c.l.b16 %v228
  %v1372 = vunpack.c.l.b16 %v229
  %v1373 = vunpack.c.l.b16 %v230
  %v1374 = vunpack.c.l.b16 %v231
  %v1375 = vunpack.c.l.b16 %v232
  %v1376 = vunpack.c.l.b16 %v233
  %v1377 = vunpack.c.l.b16 %v234
  %v1378 = vunpack.c.l.b16 %v235
  %v1379 = vunpack.c.l.b16 %v236
  %v1380 = vunpack.c.l.b16 %v237
  %v1381 = vunpack.c.l.b16 %v238
  %v1382 = vunpack.c.l.b16 %v239
  %v1383 = vunpack.c.l.b16 %v240
  %v1384 = vunpack.c.l.b16 %v241
  %v1385 = vunpack.c.l.b16 %v242
  %v1386 = vunpack.c.l.b16 %v243
  %v1387 = vunpack.c.l.b16 %v244
  %v1388 = vunpack.c.l.b16 %v245
  %v1389 = vunpack.c.l.b16 %v246
  %v1390 = vunpack.c.l.b16 %v247
  %v1391 = vunpack.c.l.b16 %v248
  %v1392 = vunpack.c.l.b16 %v249
  %v1393 = vunpack.c.l.b16 %v250
  %v1394 = vunpack.c.l.b16 %v251
  %v1395 = vunpack.c.l.b16 %v252
  %v1396 = vunpack.c.l.b16 %v253
  %v1397 = vunpack.c.l.b16 %v254
  %v1398 = vunpack.c.l.b16 %v255
  %v1399 = vunpack.c.l.b16 %v256
  %v1400 = vunpack.c.l.b16 %v257
  %v1401 = vunpack.c.l.b16 %v258
  %v1402 = vunpack.c.l.b16 %v259
  %v1403 = vunpack.c.l.b16 %v260
  %v1404 = vunpack.c.l.b16 %v261
  %v1405 = vunpack.c.l.b16 %v262
  %v1406 = vunpack.c.l.b16 %v263
  %v1407 = vunpack.c.l.b16 %v264
  %v1408 = vunpack.c.l.b16 %v265
  %v1409 = vunpack.c.l.b16 %v266
  %v1410 = vunpack.c.l.b16 %v267
  %v1411 = vunpack.c.l.b16 %v268
  %v1412 = vunpack.c.l.b16 %v269
  %v1413 = vunpack.c.l.b16 %v270
  %v1414 = vunpack.c.l.b16 %v271
  %v1415 = vunpack.c.l.b16 %v272
  %v1416 = vunpack.c.l.b16 %v273
  %v1417 = vunpack.c.l.b16 %v274
  %v1418 = vunpack.c.l.b16 %v275
  %v1419 = vunpack.c.l.b16 %v276
  %v1420 = vunpack.c.l.b16 %v277
  %v1421 = vunpack.c.l.b16 %v278
  %v1422 = vunpack.c.l.b16 %v279
  %v1423 = vunpack.c.l.b16 %v280
  %v1424 = vunpack.c.l.b16 %v281
  %v1425 = vunpack.c.l.b16 %v282
  %v1426 = vunpack.c.l.b16 %v283
  %v1427 = vunpack.c.l.b16 %v284
  %v1428 = vunpack.c.l.b16 %v285
  %v1429 = vunpack.c.l.b16 %v286
  %v1430 = vunpack.c.l.b16 %v287
  %v1431 = vunpack.c.l.b16 %v288
  %v1432 = vunpack.c.l.b16 %v289
  %v1433 = vunpack.c.l.b16 %v290
  %v1434 = vunpack.c.l.b16 %v291
  %v1435 = vunpack.c.l.b16 %v292
  %v1436 = vunpack.c.l.b16 %v293
  %v1437 = vunpack.c.l.b16 %v294
  %v1438 = vunpack.c.l.b16 %v295
  %v1439 = vunpack.c.l.b16 %v296
  %v1440 = vunpack.c.l.b16 %v297
  %v1441 = vunpack.c.l.b16 %v298
  %v1442 = vunpack.c.l.b16 %v299
  %v1443 = vunpack.c.l.b16 %v300
  %v1444 = vunpack.c.l.b16 %v301
  %v1445 = vunpack.c.l.b16 %v302
  %v1446 = vunpack.c.l.b16 %v303
  %v1447 = vunpack.c.l.b16 %v304
  %v1448 = vunpack.c.l.b16 %v305
  %v1449 = vunpack.c.l.b16 %v306
  %v1450 = vunpack.c.l.b16 %v307
  %v1451 = vunpack.c.l.b16 %v308
  %v1452 = vunpack.c.l.b16 %v309
  %v1453 = vunpack.c.l.b16 %v310
  %v1454 = vunpack.c.l.b16 %v311
  %v1455 = vunpack.c.l.b16 %v312
  %v1456 = vunpack.c.l.b16 %v313
  %v1457 = vunpack.c.l.b16 %v314
  %v1458 = vunpack.c.l.b16 %v315
  %v1459 = vunpack.c.l.b16 %v316
  %v1460 = vunpack.c.l.b16 %v317
  %v1461 = vunpack.c.l.b16 %v318
  %v1462 = vunpack.c.l.b16 %v319
  %v1463 = vunpack.c.l.b16 %v320
  %v1464 = vunpack.c.l.b16 %v321
  %v1465 = vunpack.c.l.b16 %v322
  %v1466 = vunpack.c.l.b16 %v323
  %v1467 = vunpack.c.l.b16 %v324
  %v1468 = vunpack.c.l.b16 %v325
  %v1469 = vunpack.c.l.b16 %v326
  %v1470 = vunpack.c.l.b16 %v327
  %v1471 = vunpack.c.l.b16 %v328
  %v1472 = vunpack.c.l.b16 %v329
  %v1473 = vunpack.c.l.b16 %v330
  %v1474 = vunpack.c.l.b16 %v331
  %v1475 = vunpack.c.l.b16 %v332
  %v1476 = vunpack.c.l.b16 %v333
  %v1477 = vunpack.c.l.b16 %v334
  %v1478 = vunpack.c.l.b16 %v335
  %v1479 = vunpack.c.l.b16 %v336
  %v1480 = vunpack.c.l.b16 %v337
  %v1481 = vunpack.c.l.b16 %v338
  %v1482 = vunpack.c.l.b16 %v339
  %v1483 = vunpack.c.l.b16 %v340
  %v1484 = vunpack.c.l.b16 %v341
  %v1485 = vunpack.c.l.b16 %v342
  %v1486 = vunpack.c.l.b16 %v343
  %v1487 = vunpack.c.l.b16 %v344
  %v1488 = vunpack.c.l.b16 %v345
  %v1489 = vunpack.c.l.b16 %v346
  %v1490 = vunpack.c.l.b16 %v347
  %v1491 = vunpack.c.l.b16 %v348
  %v1492 = vunpack.c.l.b16 %v349
  %v1493 = vunpack.c.l.b16 %v350
  %v1494 = vunpack.c.l.b16 %v351
  %v1495 = vunpack.c.l.b16 %v352
  %v1496 = vunpack.c.l.b16 %v353
  %v1497 = vunpack.c.l.b16 %v354
  %v1498 = vunpack.c.l.b16 %v355
  %v1499 = vunpack.c.l.b16 %v356
  %v1500 = vunpack.c.l.b16 %v357
  %v1501 = vunpack.c.l.b16 %v358
  %v1502 = vunpack.c.l.b16 %v359
  %v1503 = vunpack.c.l.b16 %v360
  %v1504 = vunpack.c.l.b16 %v361
  %v1505 = vunpack.c.l.b16 %v362
  %v1506 = vunpack.c.l.b16 %v363
  %v1507 = vunpack.c.l.b16 %v364
  %v1508 = vunpack.c.l.b16 %v365
  %v1509 = vunpack.c.l.b16 %v366
  %v1510 = vunpack.c.l.b16 %v367
  %v1511 = vunpack.c.l.b16 %v368
  %v1512 = vunpack.c.l.b16 %v369
  %v1513 = vunpack.c.l.b16 %v370
  %v1514 = vunpack.c.l.b16 %v371
  %v1515 = vunpack.c.l.b16 %v372
  %v1516 = vunpack.c.l.b16 %v373
  %v1517 = vunpack.c.l.b16 %v374
  %v1518 = vunpack.c.l.b16 %v375
  %v1519 = vunpack.c.l.b16 %v376
  %v1520 = vunpack.c.l.b16 %v377
  %v1521 = vunpack.c.l.b16 %v378
  %v1522 = vunpack.c.l.b16 %v379
  %v1523 = vunpack.c.l.b16 %v380
  %v1524 = vunpack.c.l.b16 %v381
  %v1525 = vunpack.c.l.b16 %v382
  %v1526 = vunpack.c.l.b16 %v383
  %v1527 = vunpack.c.l.b16 %v384
  %v1528 = vunpack.c.l.b16 %v385
  %v1529 = vunpack.c.l.b16 %v386
  %v1530 = vunpack.c.l.b16 %v387
  %v1531 = vunpack.c.l.b16 %v388
  %v1532 = vunpack.c.l.b16 %v389
  %v1533 = vunpack.c.l.b16 %v390
  %v1534 = vunpack.c.l.b16 %v391
  %v1535 = vunpack.c.l.b16 %v392
  %v1536 = vunpack.c.l.b16 %v393
  %v1537 = vunpack.c.l.b16 %v394
  %v1538 = vunpack.c.l.b16 %v395
  %v1539 = vunpack.c.l.b16 %v396
  %v1540 = vunpack.c.l.b16 %v397
  %v1541 = vunpack.c.l.b16 %v398
  %v1542 = vunpack.c.l.b16 %v399
  %v1543 = vunpack.c.l.b16 %v400
  %v1544 = vunpack.c.l.b16 %v401
  %v1545 = vunpack.c.l.b16 %v402
  %v1546 = vunpack.c.l.b16 %v403
  %v1547 = vunpack.c.l.b16 %v404
  %v1548 = vunpack.c.l.b16 %v405
  %v1549 = vunpack.c.l.b16 %v406
  %v1550 = vunpack.c.l.b16 %v407
  %v1551 = vunpack.c.l.b16 %v408
  %v1552 = vunpack.c.l.b16 %v409
  %v1553 = vunpack.c.l.b16 %v410
  %v1554 = vunpack.c.l.b16 %v411
  %v1555 = vunpack.c.l.b16 %v412
  %v1556 = vunpack.c.l.b16 %v413
  %v1557 = vunpack.c.l.b16 %v414
  %v1558 = vunpack.c.l.b16 %v415
  %v1559 = vunpack.c.l.b16 %v416
  %v1560 = vunpack.c.l.b16 %v417
  %v1561 = vunpack.c.l.b16 %v418
  %v1562 = vunpack.c.l.b16 %v419
  %v1563 = vunpack.c.l.b16 %v420
  %v1564 = vunpack.c.l.b16 %v421
  %v1565 = vunpack.c.l.b16 %v422
  %v1566 = vunpack.c.l.b16 %v423
  %v1567 = vunpack.c.l.b16 %v424
  %v1568 = vunpack.c.l.b16 %v425
  %v1569 = vunpack.c.l.b16 %v426
  %v1570 = vunpack.c.l.b16 %v427
  %v1571 = vunpack.c.l.b16 %v428
  %v1572 = vunpack.c.l.b16 %v429
  %v1573 = vunpack.c.l.b16 %v430
  %v1574 = vunpack.c.l.b16 %v431
  %v1575 = vunpack.c.l.b16 %v432
  %v1576 = vunpack.c.l.b16 %v433
  %v1577 = vunpack.c.l.b16 %v434
  %v1578 = vunpack.c.l.b16 %v435
  %v1579 = vunpack.c.l.b16 %v436
  %v1580 = vunpack.c.l.b16 %v437
  %v1581 = vunpack.c.l.b16 %v438
  %v1582 = vunpack.c.l.b16 %v439
  %v1583 = vunpack.c.l.b16 %v440
  %v1584 = vunpack.c.l.b16 %v441
  %v1585 = vunpack.c.l.b16 %v442
  %v1586 = vunpack.c.l.b16 %v443
  %v1587 = vunpack.c.l.b16 %v444
  %v1588 = vunpack.c.l.b16 %v445
  %v1589 = vunpack.c.l.b16 %v446
  %v1590 = vunpack.c.l.b16 %v447
  %v1591 = vunpack.c.l.b16 %v448
  %v1592 = vunpack.c.l.b16 %v449
  %v1593 = vunpack.c.l.b16 %v450
  %v1594 = vunpack.c.l.b16 %v451
  %v1595 = vunpack.c.l.b16 %v452
  %v1596 = vunpack.c.l.b16 %v453
  %v1597 = vunpack.c.l.b16 %v454
  %v1598 = vunpack.c.l.b16 %v455
  %v1599 = vunpack.c.l.b16 %v456
  %v1600 = vunpack.c.l.b16 %v457
  %v1601 = vunpack.c.l.b16 %v458
  %v1602 = vunpack.c.l.b16 %v459
  %v1603 = vunpack.c.l.b16 %v460
  %v1604 = vunpack.c.l.b16 %v461
  %v1605 = vunpack.c.l.b16 %v462
  %v1606 = vunpack.c.l.b16 %v463
  %v1607 = vunpack.c.l.b16 %v464
  %v1608 = vunpack.c.l.b16 %v465
  %v1609 = vunpack.c.l.b16 %v466
  %v1610 = vunpack.c.l.b16 %v467
  %v1611 = vunpack.c.l.b16 %v468
  %v1612 = vunpack.c.l.b16 %v469
  %v1613 = vunpack.c.l.b16 %v470
  %v1614 = vunpack.c.l.b16 %v471
  %v1615 = vunpack.c.l.b16 %v472
  %v1616 = vunpack.c.l.b16 %v473
  %v1617 = vunpack.c.l.b16 %v474
  %v1618 = vunpack.c.l.b16 %v475
  %v1619 = vunpack.c.l.b16 %v476
  %v1620 = vunpack.c.l.b16 %v477
  %v1621 = vunpack.c.l.b16 %v478
  %v1622 = vunpack.c.l.b16 %v479
  %v1623 = vunpack.c.l.b16 %v480
  %v1624 = vunpack.c.l.b16 %v481
  %v1625 = vunpack.c.l.b16 %v482
  %v1626 = vunpack.c.l.b16 %v483
  %v1627 = vunpack.c.l.b16 %v484
  %v1628 = vunpack.c.l.b16 %v485
  %v1629 = vunpack.c.l.b16 %v486
  %v1630 = vunpack.c.l.b16 %v487
  %v1631 = vunpack.c.l.b16 %v488
  %v1632 = vunpack.c.l.b16 %v489
  %v1633 = vunpack.c.l.b16 %v490
  %v1634 = vunpack.c.l.b16 %v491
  %v1635 = vunpack.c.l.b16 %v492
  %v1636 = vunpack.c.l.b16 %v493
  %v1637 = vunpack.c.l.b16 %v494
  %v1638 = vunpack.c.l.b16 %v495
  %v1639 = vunpack.c.l.b16 %v496
  %v1640 = vunpack.c.l.b16 %v497
  %v1641 = vunpack.c.l.b16 %v498
  %v1642 = vunpack.c.l.b16 %v499
  %v1643 = vunpack.c.l.b16 %v500
  %v1644 = vunpack.c.l.b16 %v501
  %v1645 = vunpack.c.l.b16 %v502
  %v1646 = vunpack.c.l.b16 %v503
  %v1647 = vunpack.c.l.b16 %v504
  %v1648 = vunpack.c.l.b16 %v505
  %v1649 = vunpack.c.l.b16 %v506
  %v1650 = vunpack.c.l.b16 %v507
  %v1651 = vunpack.c.l.b16 %v508
  %v1652 = vunpack.c.l.b16 %v509
  %v1653 = vunpack.c.l.b16 %v510
  %v1654 = vunpack.c.l.b16 %v511
  %v1655 = vunpack.c.l.b16 %v512
  %v1656 = vunpack.c.l.b16 %v513
  %v1657 = vunpack.c.l.b16 %v514
  %v1658 = vunpack.c.l.b16 %v515
  %v1659 = vunpack.c.l.b16 %v516
  %v1660 = vunpack.c.l.b16 %v517
  %v1661 = vunpack.c.l.b16 %v518
  %v1662 = vunpack.c.l.b16 %v519
  %v1663 = vunpack.c.l.b16 %v520
  %v1664 = vunpack.c.l.b16 %v521
  %v1665 = vunpack.c.l.b16 %v522
  %v1666 = vunpack.c.l.b16 %v523
  %v1667 = vunpack.c.l.b16 %v524
  %v1668 = vunpack.c.l.b16 %v525
  %v1669 = vunpack.c.l.b16 %v526
  %v1670 = vunpack.c.l.b16 %v527
  %v1671 = vunpack.c.l.b16 %v528
  %v1672 = vunpack.c.l.b16 %v529
  %v1673 = vunpack.c.l.b16 %v530
  %v1674 = vunpack.c.l.b16 %v531
  %v1675 = vunpack.c.l.b16 %v532
  %v1676 = vunpack.c.l.b16 %v533
  %v1677 = vunpack.c.l.b16 %v534
  %v1678 = vunpack.c.l.b16 %v535
  %v1679 = vunpack.c.l.b16 %v536
  %v1680 = vunpack.c.l.b16 %v537
  %v1681 = vunpack.c.l.b16 %v538
  %v1682 = vunpack.c.l.b16 %v539
  %v1683 = vunpack.c.l.b16 %v540
  %v1684 = vunpack.c.l.b16 %v541
  %v1685 = vunpack.c.l.b16 %v542
  %v1686 = vpack.c.b16 %v1175, %v1174
  %v1687 = vpack.c.b16 %v1177, %v1176
  %v1688 = vpack.c.b16 %v1179, %v1178
  %v1689 = vpack.c.b16 %v1181, %v1180
  %v1690 = vpack.c.b16 %v1183, %v1182
  %v1691 = vpack.c.b16 %v1185, %v1184
  %v1692 = vpack.c.b16 %v1187, %v1186
  %v1693 = vpack.c.b16 %v1189, %v1188
  %v1694 = vpack.c.b16 %v1191, %v1190
  %v1695 = vpack.c.b16 %v1193, %v1192
  %v1696 = vpack.c.b16 %v1195, %v1194
  %v1697 = vpack.c.b16 %v1197, %v1196
  %v1698 = vpack.c.b16 %v1199, %v1198
  %v1699 = vpack.c.b16 %v1201, %v1200
  %v1700 = vpack.c.b16 %v1203, %v1202
  %v1701 = vpack.c.b16 %v1205, %v1204
  %v1702 = vpack.c.b16 %v1207, %v1206
  %v1703 = vpack.c.b16 %v1209, %v1208
  %v1704 = vpack.c.b16 %v1211, %v1210
  %v1705 = vpack.c.b16 %v1213, %v1212
  %v1706 = vpack.c.b16 %v1215, %v1214
  %v1707 = vpack.c.b16 %v1217, %v1216
  %v1708 = vpack.c.b16 %v1219, %v1218
  %v1709 = vpack.c.b16 %v1221, %v1220
  %v1710 = vpack.c.b16 %v1223, %v1222
  %v1711 = vpack.c.b16 %v1225, %v1224
  %v1712 = vpack.c.b16 %v1227, %v1226
  %v1713 = vpack.c.b16 %v1229, %v1228
  %v1714 = vpack.c.b16 %v1231, %v1230
  %v1715 = vpack.c.b16 %v1233, %v1232
  %v1716 = vpack.c.b16 %v1235, %v1234
  %v1717 = vpack.c.b16 %v1237, %v1236
  %v1718 = vpack.c.b16 %v1239, %v1238
  %v1719 = vpack.c.b16 %v1241, %v1240
  %v1720 = vpack.c.b16 %v1243, %v1242
  %v1721 = vpack.c.b16 %v1245, %v1244
  %v1722 = vpack.c.b16 %v1247, %v1246
  %v1723 = vpack.c.b16 %v1249, %v1248
  %v1724 = vpack.c.b16 %v1251, %v1250
  %v1725 = vpack.c.b16 %v1253, %v1252
  %v1726 = vpack.c.b16 %v1255, %v1254
  %v1727 = vpack.c.b16 %v1257, %v1256
  %v1728 = vpack.c.b16 %v1259, %v1258
  %v1729 = vpack.c.b16 %v1261, %v1260
  %v1730 = vpack.c.b16 %v1263, %v1262
  %v1731 = vpack.c.b16 %v1265, %v1264
  %v1732 = vpack.c.b16 %v1267, %v1266
  %v1733 = vpack.c.b16 %v1269, %v1268
  %v1734 = vpack.c.b16 %v1271, %v1270
  %v1735 = vpack.c.b16 %v1273, %v1272
  %v1736 = vpack.c.b16 %v1275, %v1274
  %v1737 = vpack.c.b16 %v1277, %v1276
  %v1738 = vpack.c.b16 %v1279, %v1278
  %v1739 = vpack.c.b16 %v1281, %v1280
  %v1740 = vpack.c.b16 %v1283, %v1282
  %v1741 = vpack.c.b16 %v1285, %v1284
  %v1742 = vpack.c.b16 %v1287, %v1286
  %v1743 = vpack.c.b16 %v1289, %v1288
  %v1744 = vpack.c.b16 %v1291, %v1290
  %v1745 = vpack.c.b16 %v1293, %v1292
  %v1746 = vpack.c.b16 %v1295, %v1294
  %v1747 = vpack.c.b16 %v1297, %v1296
  %v1748 = vpack.c.b16 %v1299, %v1298
  %v1749 = vpack.c.b16 %v1301, %v1300
  %v1750 = vpack.c.b16 %v1303, %v1302
  %v1751 = vpack.c.b16 %v1305, %v1304
  %v1752 = vpack.c.b16 %v1307, %v1306
  %v1753 = vpack.c.b16 %v1309, %v1308
  %v1754 = vpack.c.b16 %v1311, %v1310
  %v1755 = vpack.c.b16 %v1313, %v1312
  %v1756 = vpack.c.b16 %v1315, %v1314
  %v1757 = vpack.c.b16 %v1317, %v1316
  %v1758 = vpack.c.b16 %v1319, %v1318
  %v1759 = vpack.c.b16 %v1321, %v1320
  %v1760 = vpack.c.b16 %v1323, %v1322
  %v1761 = vpack.c.b16 %v1325, %v1324
  %v1762 = vpack.c.b16 %v1327, %v1326
  %v1763 = vpack.c.b16 %v1329, %v1328
  %v1764 = vpack.c.b16 %v1331, %v1330
  %v1765 = vpack.c.b16 %v1333, %v1332
  %v1766 = vpack.c.b16 %v1335, %v1334
  %v1767 = vpack.c.b16 %v1337, %v1336
  %v1768 = vpack.c.b16 %v1339, %v1338
  %v1769 = vpack.c.b16 %v1341, %v1340
  %v1770 = vpack.c.b16 %v1343, %v1342
  %v1771 = vpack.c.b16 %v1345, %v1344
  %v1772 = vpack.c.b16 %v1347, %v1346
  %v1773 = vpack.c.b16 %v1349, %v1348
  %v1774 = vpack.c.b16 %v1351, %v1350
  %v1775 = vpack.c.b16 %v1353, %v1352
  %v1776 = vpack.c.b16 %v1355, %v1354
  %v1777 = vpack.c.b16 %v1357, %v1356
  %v1778 = vpack.c.b16 %v1359, %v1358
  %v1779 = vpack.c.b16 %v1361, %v1360
  %v1780 = vpack.c.b16 %v1363, %v1362
  %v1781 = vpack.c.b16 %v1365, %v1364
  %v1782 = vpack.c.b16 %v1367, %v1366
  %v1783 = vpack.c.b16 %v1369, %v1368
  %v1784 = vpack.c.b16 %v1371, %v1370
  %v1785 = vpack.c.b16 %v1373, %v1372
  %v1786 = vpack.c.b16 %v1375, %v1374
  %v1787 = vpack.c.b16 %v1377, %v1376
  %v1788 = vpack.c.b16 %v1379, %v1378
  %v1789 = vpack.c.b16 %v1381, %v1380
  %v1790 = vpack.c.b16 %v1383, %v1382
  %v1791 = vpack.c.b16 %v1385, %v1384
  %v1792 = vpack.c.b16 %v1387, %v1386
  %v1793 = vpack.c.b16 %v1389, %v1388
  %v1794 = vpack.c.b16 %v1391, %v1390
  %v1795 = vpack.c.b16 %v1393, %v1392
  %v1796 = vpack.c.b16 %v1395, %v1394
  %v1797 = vpack.c.b16 %v1397, %v1396
  %v1798 = vpack.c.b16 %v1399, %v1398
  %v1799 = vpack.c.b16 %v1401, %v1400
  %v1800 = vpack.c.b16 %v1403, %v1402
  %v1801 = vpack.c.b16 %v1405, %v1404
  %v1802 = vpack.c.b16 %v1407, %v1406
  %v1803 = vpack.c.b16 %v1409, %v1408
  %v1804 = vpack.c.b16 %v1411, %v1410
  %v1805 = vpack.c.b16 %v1413, %v1412
  %v1806 = vpack.c.b16 %v1415, %v1414
  %v1807 = vpack.c.b16 %v1417, %v1416
  %v1808 = vpack.c.b16 %v1419, %v1418
  %v1809 = vpack.c.b16 %v1421, %v1420
  %v1810 = vpack.c.b16 %v1423, %v1422
  %v1811 = vpack.c.b16 %v1425, %v1424
  %v1812 = vpack.c.b16 %v1427, %v1426
  %v1813 = vpack.c.b16 %v1429, %v1428
  %v1814 = vpack.c.b16 %v1431, %v1430
  %v1815 = vpack.c.b16 %v1433, %v1432
  %v1816 = vpack.c.b16 %v1435, %v1434
  %v1817 = vpack.c.b16 %v1437, %v1436
  %v1818 = vpack.c.b16 %v1439, %v1438
  %v1819 = vpack.c.b16 %v1441, %v1440
  %v1820 = vpack.c.b16 %v1443, %v1442
  %v1821 = vpack.c.b16 %v1445, %v1444
  %v1822 = vpack.c.b16 %v1447, %v1446
  %v1823 = vpack.c.b16 %v1449, %v1448
  %v1824 = vpack.c.b16 %v1451, %v1450
  %v1825 = vpack.c.b16 %v1453, %v1452
  %v1826 = vpack.c.b16 %v1455, %v1454
  %v1827 = vpack.c.b16 %v1457, %v1456
  %v1828 = vpack.c.b16 %v1459, %v1458
  %v1829 = vpack.c.b16 %v1461, %v1460
  %v1830 = vpack.c.b16 %v1463, %v1462
  %v1831 = vpack.c.b16 %v1465, %v1464
  %v1832 = vpack.c.b16 %v1467, %v1466
  %v1833 = vpack.c.b16 %v1469, %v1468
  %v1834 = vpack.c.b16 %v1471, %v1470
  %v1835 = vpack.c.b16 %v1473, %v1472
  %v1836 = vpack.c.b16 %v1475, %v1474
  %v1837 = vpack.c.b16 %v1477, %v1476
  %v1838 = vpack.c.b16 %v1479, %v1478
  %v1839 = vpack.c.b16 %v1481, %v1480
  %v1840 = vpack.c.b16 %v1483, %v1482
  %v1841 = vpack.c.b16 %v1485, %v1484
  %v1842 = vpack.c.b16 %v1487, %v1486
  %v1843 = vpack.c.b16 %v1489, %v1488
  %v1844 = vpack.c.b16 %v1491, %v1490
  %v1845 = vpack.c.b16 %v1493, %v1492
  %v1846 = vpack.c.b16 %v1495, %v1494
  %v1847 = vpack.c.b16 %v1497, %v1496
  %v1848 = vpack.c.b16 %v1499, %v1498
  %v1849 = vpack.c.b16 %v1501, %v1500
  %v1850 = vpack.c.b16 %v1503, %v1502
  %v1851 = vpack.c.b16 %v1505, %v1504
  %v1852 = vpack.c.b16 %v1507, %v1506
  %v1853 = vpack.c.b16 %v1509, %v1508
  %v1854 = vpack.c.b16 %v1511, %v1510
  %v1855 = vpack.c.b16 %v1513, %v1512
  %v1856 = vpack.c.b16 %v1515, %v1514
  %v1857 = vpack.c.b16 %v1517, %v1516
  %v1858 = vpack.c.b16 %v1519, %v1518
  %v1859 = vpack.c.b16 %v1521, %v1520
  %v1860 = vpack.c.b16 %v1523, %v1522
  %v1861 = vpack.c.b16 %v1525, %v1524
  %v1862 = vpack.c.b16 %v1527, %v1526
  %v1863 = vpack.c.b16 %v1529, %v1528
  %v1864 = vpack.c.b16 %v1531, %v1530
  %v1865 = vpack.c.b16 %v1533, %v1532
  %v1866 = vpack.c.b16 %v1535, %v1534
  %v1867 = vpack.c.b16 %v1537, %v1536
  %v1868 = vpack.c.b16 %v1539, %v1538
  %v1869 = vpack.c.b16 %v1541, %v1540
  %v1870 = vpack.c.b16 %v1543, %v1542
  %v1871 = vpack.c.b16 %v1545, %v1544
  %v1872 = vpack.c.b16 %v1547, %v1546
  %v1873 = vpack.c.b16 %v1549, %v1548
  %v1874 = vpack.c.b16 %v1551, %v1550
  %v1875 = vpack.c.b16 %v1553, %v1552
  %v1876 = vpack.c.b16 %v1555, %v1554
  %v1877 = vpack.c.b16 %v1557, %v1556
  %v1878 = vpack.c.b16 %v1559, %v1558
  %v1879 = vpack.c.b16 %v1561, %v1560
  %v1880 = vpack.c.b16 %v1563, %v1562
  %v1881 = vpack.c.b16 %v1565, %v1564
  %v1882 = vpack.c.b16 %v1567, %v1566
  %v1883 = vpack.c.b16 %v1569, %v1568
  %v1884 = vpack.c.b16 %v1571, %v1570
  %v1885 = vpack.c.b16 %v1573, %v1572
  %v1886 = vpack.c.b16 %v1575, %v1574
  %v1887 = vpack.c.b16 %v1577, %v1576
  %v1888 = vpack.c.b16 %v1579, %v1578
  %v1889 = vpack.c.b16 %v1581, %v1580
  %v1890 = vpack.c.b16 %v1583, %v1582
  %v1891 = vpack.c.b16 %v1585, %v1584
  %v1892 = vpack.c.b16 %v1587, %v1586
  %v1893 = vpack.c.b16 %v1589, %v1588
  %v1894 = vpack.c.b16 %v1591, %v1590
  %v1895 = vpack.c.b16 %v1593, %v1592
  %v1896 = vpack.c.b16 %v1595, %v1594
  %v1897 = vpack.c.b16 %v1597, %v1596
  %v1898 = vpack.c.b16 %v1599, %v1598
  %v1899 = vpack.c.b16 %v1601, %v1600
  %v1900 = vpack.c.b16 %v1603, %v1602
  %v1901 = vpack.c.b16 %v1605, %v1604
  %v1902 = vpack.c.b16 %v1607, %v1606
  %v1903 = vpack.c.b16 %v1609, %v1608
  %v1904 = vpack.c.b16 %v1611, %v1610
  %v1905 = vpack.c.b16 %v1613, %v1612
  %v1906 = vpack.c.b16 %v1615, %v1614
  %v1907 = vpack.c.b16 %v1617, %v1616
  %v1908 = vpack.c.b16 %v1619, %v1618
  %v1909 = vpack.c.b16 %v1621, %v1620
  %v1910 = vpack.c.b16 %v1623, %v1622
  %v1911 = vpack.c.b16 %v1625, %v1624
  %v1912 = vpack.c.b16 %v1627, %v1626
  %v1913 = vpack.c.b16 %v1629, %v1628
  %v1914 = vpack.c.b16 %v1631, %v1630
  %v1915 = vpack.c.b16 %v1633, %v1632
  %v1916 = vpack.c.b16 %v1635, %v1634
  %v1917 = vpack.c.b16 %v1637, %v1636
  %v1918 = vpack.c.b16 %v1639, %v1638
  %v1919 = vpack.c.b16 %v1641, %v1640
  %v1920 = vpack.c.b16 %v1643, %v1642
  %v1921 = vpack.c.b16 %v1645, %v1644
  %v1922 = vpack.c.b16 %v1647, %v1646
  %v1923 = vpack.c.b16 %v1649, %v1648
  %v1924 = vpack.c.b16 %v1651, %v1650
  %v1925 = vpack.c.b16 %v1653, %v1652
  %v1926 = vpack.c.b16 %v1655, %v1654
  %v1927 = vpack.c.b16 %v1657, %v1656
  %v1928 = vpack.c.b16 %v1659, %v1658
  %v1929 = vpack.c.b16 %v1661, %v1660
  %v1930 = vpack.c.b16 %v1663, %v1662
  %v1931 = vpack.c.b16 %v1665, %v1664
  %v1932 = vpack.c.b16 %v1667, %v1666
  %v1933 = vpack.c.b16 %v1669, %v1668
  %v1934 = vpack.c.b16 %v1671, %v1670
  %v1935 = vpack.c.b16 %v1673, %v1672
  %v1936 = vpack.c.b16 %v1675, %v1674
  %v1937 = vpack.c.b16 %v1677, %v1676
  %v1938 = vpack.c.b16 %v1679, %v1678
  %v1939 = vpack.c.b16 %v1681, %v1680
  %v1940 = vpack.c.b16 %v1683, %v1682
  %v1941 = vpack.c.b16 %v1685, %v1684
  %2198 = vmatprep.subr.bf16.mxu0 0
  %2199 = vmatpush1.bf16.msra.mxu0 %v1693
  %2200 = vmatprep.subr.bf16.mxu0 0
  %2201 = vmatpush1.bf16.msra.mxu0 %v1692
  %2202 = vmatprep.subr.bf16.mxu0 0
  %2203 = vmatpush1.bf16.msra.mxu0 %v1691
  %2204 = vmatprep.subr.bf16.mxu0 0
  %2205 = vmatpush1.bf16.msra.mxu0 %v1690
  %2206 = vmatprep.subr.bf16.mxu0 0
  %2207 = vmatpush1.bf16.msra.mxu0 %v1689
  %2208 = vmatprep.subr.bf16.mxu0 0
  %2209 = vmatpush1.bf16.msra.mxu0 %v1688
  %2210 = vmatprep.subr.bf16.mxu0 0
  %2211 = vmatpush1.bf16.msra.mxu0 %v1687
  %2212 = vmatprep.subr.bf16.mxu0 0
  %2213 = vmatpush1.bf16.msra.mxu0 %v1686
  %2214 = vmatprep.subr.bf16.mxu0 0
  %2215 = vmatpush2.bf16.msra.mxu0 %v1701
  %2216 = vmatprep.subr.bf16.mxu0 0
  %2217 = vmatpush2.bf16.msra.mxu0 %v1700
  %2218 = vmatprep.subr.bf16.mxu0 0
  %2219 = vmatpush2.bf16.msra.mxu0 %v1699
  %2220 = vmatprep.subr.bf16.mxu0 0
  %2221 = vmatpush2.bf16.msra.mxu0 %v1698
  %2222 = vmatprep.subr.bf16.mxu0 0
  %2223 = vmatpush2.bf16.msra.mxu0 %v1697
  %2224 = vmatprep.subr.bf16.mxu0 0
  %2225 = vmatpush2.bf16.msra.mxu0 %v1696
  %2226 = vmatprep.subr.bf16.mxu0 0
  %2227 = vmatpush2.bf16.msra.mxu0 %v1695
  %2228 = vmatprep.subr.bf16.mxu0 0
  %2229 = vmatpush2.bf16.msra.mxu0 %v1694
  %2230 = vmatprep.mubr.bf16.mxu0 %v599
  %2231 = vmatmul.mubr.bf16.gmra.mxu0 %v598
  %v2232 = vpop.f32.mrf.mxu0
  %v2233 = vadd.f32 %v548, %v2232
  %v2234 = vpop.f32.mrf.mxu0
  %v2235 = vpop.f32.mrf.mxu0
  %v2236 = vpop.f32.mrf.mxu0
  %2237 = vdwg.mxu0
  %2238 = vmatprep.subr.bf16.mxu0 0
  %2239 = vmatpush1.bf16.msra.mxu0 %v1709
  %2240 = vmatprep.subr.bf16.mxu0 0
  %2241 = vmatpush1.bf16.msra.mxu0 %v1708
  %2242 = vmatprep.subr.bf16.mxu0 0
  %2243 = vmatpush1.bf16.msra.mxu0 %v1707
  %2244 = vmatprep.subr.bf16.mxu0 0
  %2245 = vmatpush1.bf16.msra.mxu0 %v1706
  %2246 = vmatprep.subr.bf16.mxu0 0
  %2247 = vmatpush1.bf16.msra.mxu0 %v1705
  %2248 = vmatprep.subr.bf16.mxu0 0
  %2249 = vmatpush1.bf16.msra.mxu0 %v1704
  %2250 = vmatprep.subr.bf16.mxu0 0
  %2251 = vmatpush1.bf16.msra.mxu0 %v1703
  %2252 = vmatprep.subr.bf16.mxu0 0
  %2253 = vmatpush1.bf16.msra.mxu0 %v1702
  %2254 = vmatprep.subr.bf16.mxu0 0
  %2255 = vmatpush2.bf16.msra.mxu0 %v1717
  %2256 = vmatprep.subr.bf16.mxu0 0
  %2257 = vmatpush2.bf16.msra.mxu0 %v1716
  %2258 = vmatprep.subr.bf16.mxu0 0
  %2259 = vmatpush2.bf16.msra.mxu0 %v1715
  %2260 = vmatprep.subr.bf16.mxu0 0
  %2261 = vmatpush2.bf16.msra.mxu0 %v1714
  %2262 = vmatprep.subr.bf16.mxu0 0
  %2263 = vmatpush2.bf16.msra.mxu0 %v1713
  %2264 = vmatprep.subr.bf16.mxu0 0
  %2265 = vmatpush2.bf16.msra.mxu0 %v1712
  %2266 = vmatprep.subr.bf16.mxu0 0
  %2267 = vmatpush2.bf16.msra.mxu0 %v1711
  %2268 = vmatprep.subr.bf16.mxu0 0
  %2269 = vmatpush2.bf16.msra.mxu0 %v1710
  %2270 = vmatprep.mubr.bf16.mxu0 %v601
  %2271 = vmatmul.mubr.bf16.gmra.mxu0 %v600
  %v2272 = vpop.f32.mrf.mxu0
  %v2273 = vadd.f32 %v2233, %v2272
  %v2274 = vpop.f32.mrf.mxu0
  %v2275 = vpop.f32.mrf.mxu0
  %v2276 = vpop.f32.mrf.mxu0
  %2277 = vdwg.mxu0
  %2278 = vmatprep.subr.bf16.mxu0 0
  %2279 = vmatpush1.bf16.msra.mxu0 %v1725
  %2280 = vmatprep.subr.bf16.mxu0 0
  %2281 = vmatpush1.bf16.msra.mxu0 %v1724
  %2282 = vmatprep.subr.bf16.mxu0 0
  %2283 = vmatpush1.bf16.msra.mxu0 %v1723
  %2284 = vmatprep.subr.bf16.mxu0 0
  %2285 = vmatpush1.bf16.msra.mxu0 %v1722
  %2286 = vmatprep.subr.bf16.mxu0 0
  %2287 = vmatpush1.bf16.msra.mxu0 %v1721
  %2288 = vmatprep.subr.bf16.mxu0 0
  %2289 = vmatpush1.bf16.msra.mxu0 %v1720
  %2290 = vmatprep.subr.bf16.mxu0 0
  %2291 = vmatpush1.bf16.msra.mxu0 %v1719
  %2292 = vmatprep.subr.bf16.mxu0 0
  %2293 = vmatpush1.bf16.msra.mxu0 %v1718
  %2294 = vmatprep.subr.bf16.mxu0 0
  %2295 = vmatpush2.bf16.msra.mxu0 %v1733
  %2296 = vmatprep.subr.bf16.mxu0 0
  %2297 = vmatpush2.bf16.msra.mxu0 %v1732
  %2298 = vmatprep.subr.bf16.mxu0 0
  %2299 = vmatpush2.bf16.msra.mxu0 %v1731
  %2300 = vmatprep.subr.bf16.mxu0 0
  %2301 = vmatpush2.bf16.msra.mxu0 %v1730
  %2302 = vmatprep.subr.bf16.mxu0 0
  %2303 = vmatpush2.bf16.msra.mxu0 %v1729
  %2304 = vmatprep.subr.bf16.mxu0 0
  %2305 = vmatpush2.bf16.msra.mxu0 %v1728
  %2306 = vmatprep.subr.bf16.mxu0 0
  %2307 = vmatpush2.bf16.msra.mxu0 %v1727
  %2308 = vmatprep.subr.bf16.mxu0 0
  %2309 = vmatpush2.bf16.msra.mxu0 %v1726
  %2310 = vmatprep.mubr.bf16.mxu0 %v603
  %2311 = vmatmul.mubr.bf16.gmra.mxu0 %v602
  %v2312 = vpop.f32.mrf.mxu0
  %v2313 = vadd.f32 %v2273, %v2312
  %v2314 = vpop.f32.mrf.mxu0
  %v2315 = vpop.f32.mrf.mxu0
  %v2316 = vpop.f32.mrf.mxu0
  %2317 = vdwg.mxu0
  %2318 = vmatprep.subr.bf16.mxu0 0
  %2319 = vmatpush1.bf16.msra.mxu0 %v1741
  %2320 = vmatprep.subr.bf16.mxu0 0
  %2321 = vmatpush1.bf16.msra.mxu0 %v1740
  %2322 = vmatprep.subr.bf16.mxu0 0
  %2323 = vmatpush1.bf16.msra.mxu0 %v1739
  %2324 = vmatprep.subr.bf16.mxu0 0
  %2325 = vmatpush1.bf16.msra.mxu0 %v1738
  %2326 = vmatprep.subr.bf16.mxu0 0
  %2327 = vmatpush1.bf16.msra.mxu0 %v1737
  %2328 = vmatprep.subr.bf16.mxu0 0
  %2329 = vmatpush1.bf16.msra.mxu0 %v1736
  %2330 = vmatprep.subr.bf16.mxu0 0
  %2331 = vmatpush1.bf16.msra.mxu0 %v1735
  %2332 = vmatprep.subr.bf16.mxu0 0
  %2333 = vmatpush1.bf16.msra.mxu0 %v1734
  %2334 = vmatprep.subr.bf16.mxu0 0
  %2335 = vmatpush2.bf16.msra.mxu0 %v1749
  %2336 = vmatprep.subr.bf16.mxu0 0
  %2337 = vmatpush2.bf16.msra.mxu0 %v1748
  %2338 = vmatprep.subr.bf16.mxu0 0
  %2339 = vmatpush2.bf16.msra.mxu0 %v1747
  %2340 = vmatprep.subr.bf16.mxu0 0
  %2341 = vmatpush2.bf16.msra.mxu0 %v1746
  %2342 = vmatprep.subr.bf16.mxu0 0
  %2343 = vmatpush2.bf16.msra.mxu0 %v1745
  %2344 = vmatprep.subr.bf16.mxu0 0
  %2345 = vmatpush2.bf16.msra.mxu0 %v1744
  %2346 = vmatprep.subr.bf16.mxu0 0
  %2347 = vmatpush2.bf16.msra.mxu0 %v1743
  %2348 = vmatprep.subr.bf16.mxu0 0
  %2349 = vmatpush2.bf16.msra.mxu0 %v1742
  %2350 = vmatprep.mubr.bf16.mxu0 %v605
  %2351 = vmatmul.mubr.bf16.gmra.mxu0 %v604
  %v2352 = vpop.f32.mrf.mxu0
  %v2353 = vadd.f32 %v2313, %v2352
  %v2354 = vpop.f32.mrf.mxu0
  %v2355 = vpop.f32.mrf.mxu0
  %v2356 = vpop.f32.mrf.mxu0
  %2357 = vdwg.mxu0
  %2358 = vmatprep.subr.bf16.mxu0 0
  %2359 = vmatpush1.bf16.msra.mxu0 %v1757
  %2360 = vmatprep.subr.bf16.mxu0 0
  %2361 = vmatpush1.bf16.msra.mxu0 %v1756
  %2362 = vmatprep.subr.bf16.mxu0 0
  %2363 = vmatpush1.bf16.msra.mxu0 %v1755
  %2364 = vmatprep.subr.bf16.mxu0 0
  %2365 = vmatpush1.bf16.msra.mxu0 %v1754
  %2366 = vmatprep.subr.bf16.mxu0 0
  %2367 = vmatpush1.bf16.msra.mxu0 %v1753
  %2368 = vmatprep.subr.bf16.mxu0 0
  %2369 = vmatpush1.bf16.msra.mxu0 %v1752
  %2370 = vmatprep.subr.bf16.mxu0 0
  %2371 = vmatpush1.bf16.msra.mxu0 %v1751
  %2372 = vmatprep.subr.bf16.mxu0 0
  %2373 = vmatpush1.bf16.msra.mxu0 %v1750
  %2374 = vmatprep.subr.bf16.mxu0 0
  %2375 = vmatpush2.bf16.msra.mxu0 %v1765
  %2376 = vmatprep.subr.bf16.mxu0 0
  %2377 = vmatpush2.bf16.msra.mxu0 %v1764
  %2378 = vmatprep.subr.bf16.mxu0 0
  %2379 = vmatpush2.bf16.msra.mxu0 %v1763
  %2380 = vmatprep.subr.bf16.mxu0 0
  %2381 = vmatpush2.bf16.msra.mxu0 %v1762
  %2382 = vmatprep.subr.bf16.mxu0 0
  %2383 = vmatpush2.bf16.msra.mxu0 %v1761
  %2384 = vmatprep.subr.bf16.mxu0 0
  %2385 = vmatpush2.bf16.msra.mxu0 %v1760
  %2386 = vmatprep.subr.bf16.mxu0 0
  %2387 = vmatpush2.bf16.msra.mxu0 %v1759
  %2388 = vmatprep.subr.bf16.mxu0 0
  %2389 = vmatpush2.bf16.msra.mxu0 %v1758
  %2390 = vmatprep.mubr.bf16.mxu0 %v607
  %2391 = vmatmul.mubr.bf16.gmra.mxu0 %v606
  %v2392 = vpop.f32.mrf.mxu0
  %v2393 = vadd.f32 %v2353, %v2392
  %v2394 = vpop.f32.mrf.mxu0
  %v2395 = vpop.f32.mrf.mxu0
  %v2396 = vpop.f32.mrf.mxu0
  %2397 = vdwg.mxu0
  %2398 = vmatprep.subr.bf16.mxu0 0
  %2399 = vmatpush1.bf16.msra.mxu0 %v1773
  %2400 = vmatprep.subr.bf16.mxu0 0
  %2401 = vmatpush1.bf16.msra.mxu0 %v1772
  %2402 = vmatprep.subr.bf16.mxu0 0
  %2403 = vmatpush1.bf16.msra.mxu0 %v1771
  %2404 = vmatprep.subr.bf16.mxu0 0
  %2405 = vmatpush1.bf16.msra.mxu0 %v1770
  %2406 = vmatprep.subr.bf16.mxu0 0
  %2407 = vmatpush1.bf16.msra.mxu0 %v1769
  %2408 = vmatprep.subr.bf16.mxu0 0
  %2409 = vmatpush1.bf16.msra.mxu0 %v1768
  %2410 = vmatprep.subr.bf16.mxu0 0
  %2411 = vmatpush1.bf16.msra.mxu0 %v1767
  %2412 = vmatprep.subr.bf16.mxu0 0
  %2413 = vmatpush1.bf16.msra.mxu0 %v1766
  %2414 = vmatprep.subr.bf16.mxu0 0
  %2415 = vmatpush2.bf16.msra.mxu0 %v1781
  %2416 = vmatprep.subr.bf16.mxu0 0
  %2417 = vmatpush2.bf16.msra.mxu0 %v1780
  %2418 = vmatprep.subr.bf16.mxu0 0
  %2419 = vmatpush2.bf16.msra.mxu0 %v1779
  %2420 = vmatprep.subr.bf16.mxu0 0
  %2421 = vmatpush2.bf16.msra.mxu0 %v1778
  %2422 = vmatprep.subr.bf16.mxu0 0
  %2423 = vmatpush2.bf16.msra.mxu0 %v1777
  %2424 = vmatprep.subr.bf16.mxu0 0
  %2425 = vmatpush2.bf16.msra.mxu0 %v1776
  %2426 = vmatprep.subr.bf16.mxu0 0
  %2427 = vmatpush2.bf16.msra.mxu0 %v1775
  %2428 = vmatprep.subr.bf16.mxu0 0
  %2429 = vmatpush2.bf16.msra.mxu0 %v1774
  %2430 = vmatprep.mubr.bf16.mxu0 %v609
  %2431 = vmatmul.mubr.bf16.gmra.mxu0 %v608
  %v2432 = vpop.f32.mrf.mxu0
  %v2433 = vadd.f32 %v2393, %v2432
  %v2434 = vpop.f32.mrf.mxu0
  %v2435 = vpop.f32.mrf.mxu0
  %v2436 = vpop.f32.mrf.mxu0
  %2437 = vdwg.mxu0
  %2438 = vmatprep.subr.bf16.mxu0 0
  %2439 = vmatpush1.bf16.msra.mxu0 %v1789
  %2440 = vmatprep.subr.bf16.mxu0 0
  %2441 = vmatpush1.bf16.msra.mxu0 %v1788
  %2442 = vmatprep.subr.bf16.mxu0 0
  %2443 = vmatpush1.bf16.msra.mxu0 %v1787
  %2444 = vmatprep.subr.bf16.mxu0 0
  %2445 = vmatpush1.bf16.msra.mxu0 %v1786
  %2446 = vmatprep.subr.bf16.mxu0 0
  %2447 = vmatpush1.bf16.msra.mxu0 %v1785
  %2448 = vmatprep.subr.bf16.mxu0 0
  %2449 = vmatpush1.bf16.msra.mxu0 %v1784
  %2450 = vmatprep.subr.bf16.mxu0 0
  %2451 = vmatpush1.bf16.msra.mxu0 %v1783
  %2452 = vmatprep.subr.bf16.mxu0 0
  %2453 = vmatpush1.bf16.msra.mxu0 %v1782
  %2454 = vmatprep.subr.bf16.mxu0 0
  %2455 = vmatpush2.bf16.msra.mxu0 %v1797
  %2456 = vmatprep.subr.bf16.mxu0 0
  %2457 = vmatpush2.bf16.msra.mxu0 %v1796
  %2458 = vmatprep.subr.bf16.mxu0 0
  %2459 = vmatpush2.bf16.msra.mxu0 %v1795
  %2460 = vmatprep.subr.bf16.mxu0 0
  %2461 = vmatpush2.bf16.msra.mxu0 %v1794
  %2462 = vmatprep.subr.bf16.mxu0 0
  %2463 = vmatpush2.bf16.msra.mxu0 %v1793
  %2464 = vmatprep.subr.bf16.mxu0 0
  %2465 = vmatpush2.bf16.msra.mxu0 %v1792
  %2466 = vmatprep.subr.bf16.mxu0 0
  %2467 = vmatpush2.bf16.msra.mxu0 %v1791
  %2468 = vmatprep.subr.bf16.mxu0 0
  %2469 = vmatpush2.bf16.msra.mxu0 %v1790
  %2470 = vmatprep.mubr.bf16.mxu0 %v611
  %2471 = vmatmul.mubr.bf16.gmra.mxu0 %v610
  %v2472 = vpop.f32.mrf.mxu0
  %v2473 = vadd.f32 %v2433, %v2472
  %v2474 = vpop.f32.mrf.mxu0
  %v2475 = vpop.f32.mrf.mxu0
  %v2476 = vpop.f32.mrf.mxu0
  %2477 = vdwg.mxu0
  %2478 = vmatprep.subr.bf16.mxu0 0
  %2479 = vmatpush1.bf16.msra.mxu0 %v1805
  %2480 = vmatprep.subr.bf16.mxu0 0
  %2481 = vmatpush1.bf16.msra.mxu0 %v1804
  %2482 = vmatprep.subr.bf16.mxu0 0
  %2483 = vmatpush1.bf16.msra.mxu0 %v1803
  %2484 = vmatprep.subr.bf16.mxu0 0
  %2485 = vmatpush1.bf16.msra.mxu0 %v1802
  %2486 = vmatprep.subr.bf16.mxu0 0
  %2487 = vmatpush1.bf16.msra.mxu0 %v1801
  %2488 = vmatprep.subr.bf16.mxu0 0
  %2489 = vmatpush1.bf16.msra.mxu0 %v1800
  %2490 = vmatprep.subr.bf16.mxu0 0
  %2491 = vmatpush1.bf16.msra.mxu0 %v1799
  %2492 = vmatprep.subr.bf16.mxu0 0
  %2493 = vmatpush1.bf16.msra.mxu0 %v1798
  %2494 = vmatprep.subr.bf16.mxu0 0
  %2495 = vmatpush2.bf16.msra.mxu0 %v1813
  %2496 = vmatprep.subr.bf16.mxu0 0
  %2497 = vmatpush2.bf16.msra.mxu0 %v1812
  %2498 = vmatprep.subr.bf16.mxu0 0
  %2499 = vmatpush2.bf16.msra.mxu0 %v1811
  %2500 = vmatprep.subr.bf16.mxu0 0
  %2501 = vmatpush2.bf16.msra.mxu0 %v1810
  %2502 = vmatprep.subr.bf16.mxu0 0
  %2503 = vmatpush2.bf16.msra.mxu0 %v1809
  %2504 = vmatprep.subr.bf16.mxu0 0
  %2505 = vmatpush2.bf16.msra.mxu0 %v1808
  %2506 = vmatprep.subr.bf16.mxu0 0
  %2507 = vmatpush2.bf16.msra.mxu0 %v1807
  %2508 = vmatprep.subr.bf16.mxu0 0
  %2509 = vmatpush2.bf16.msra.mxu0 %v1806
  %2510 = vmatprep.mubr.bf16.mxu0 %v613
  %2511 = vmatmul.mubr.bf16.gmra.mxu0 %v612
  %v2512 = vpop.f32.mrf.mxu0
  %v2513 = vadd.f32 %v2473, %v2512
  %v2514 = vpop.f32.mrf.mxu0
  %v2515 = vpop.f32.mrf.mxu0
  %v2516 = vpop.f32.mrf.mxu0
  %2517 = vdwg.mxu0
  %2518 = vmatprep.subr.bf16.mxu0 0
  %2519 = vmatpush1.bf16.msra.mxu0 %v1821
  %2520 = vmatprep.subr.bf16.mxu0 0
  %2521 = vmatpush1.bf16.msra.mxu0 %v1820
  %2522 = vmatprep.subr.bf16.mxu0 0
  %2523 = vmatpush1.bf16.msra.mxu0 %v1819
  %2524 = vmatprep.subr.bf16.mxu0 0
  %2525 = vmatpush1.bf16.msra.mxu0 %v1818
  %2526 = vmatprep.subr.bf16.mxu0 0
  %2527 = vmatpush1.bf16.msra.mxu0 %v1817
  %2528 = vmatprep.subr.bf16.mxu0 0
  %2529 = vmatpush1.bf16.msra.mxu0 %v1816
  %2530 = vmatprep.subr.bf16.mxu0 0
  %2531 = vmatpush1.bf16.msra.mxu0 %v1815
  %2532 = vmatprep.subr.bf16.mxu0 0
  %2533 = vmatpush1.bf16.msra.mxu0 %v1814
  %2534 = vmatprep.subr.bf16.mxu0 0
  %2535 = vmatpush2.bf16.msra.mxu0 %v1829
  %2536 = vmatprep.subr.bf16.mxu0 0
  %2537 = vmatpush2.bf16.msra.mxu0 %v1828
  %2538 = vmatprep.subr.bf16.mxu0 0
  %2539 = vmatpush2.bf16.msra.mxu0 %v1827
  %2540 = vmatprep.subr.bf16.mxu0 0
  %2541 = vmatpush2.bf16.msra.mxu0 %v1826
  %2542 = vmatprep.subr.bf16.mxu0 0
  %2543 = vmatpush2.bf16.msra.mxu0 %v1825
  %2544 = vmatprep.subr.bf16.mxu0 0
  %2545 = vmatpush2.bf16.msra.mxu0 %v1824
  %2546 = vmatprep.subr.bf16.mxu0 0
  %2547 = vmatpush2.bf16.msra.mxu0 %v1823
  %2548 = vmatprep.subr.bf16.mxu0 0
  %2549 = vmatpush2.bf16.msra.mxu0 %v1822
  %2550 = vmatprep.mubr.bf16.mxu0 %v615
  %2551 = vmatmul.mubr.bf16.gmra.mxu0 %v614
  %v2552 = vpop.f32.mrf.mxu0
  %v2553 = vadd.f32 %v2513, %v2552
  %v2554 = vpop.f32.mrf.mxu0
  %v2555 = vpop.f32.mrf.mxu0
  %v2556 = vpop.f32.mrf.mxu0
  %2557 = vdwg.mxu0
  %2558 = vmatprep.subr.bf16.mxu0 0
  %2559 = vmatpush1.bf16.msra.mxu0 %v1837
  %2560 = vmatprep.subr.bf16.mxu0 0
  %2561 = vmatpush1.bf16.msra.mxu0 %v1836
  %2562 = vmatprep.subr.bf16.mxu0 0
  %2563 = vmatpush1.bf16.msra.mxu0 %v1835
  %2564 = vmatprep.subr.bf16.mxu0 0
  %2565 = vmatpush1.bf16.msra.mxu0 %v1834
  %2566 = vmatprep.subr.bf16.mxu0 0
  %2567 = vmatpush1.bf16.msra.mxu0 %v1833
  %2568 = vmatprep.subr.bf16.mxu0 0
  %2569 = vmatpush1.bf16.msra.mxu0 %v1832
  %2570 = vmatprep.subr.bf16.mxu0 0
  %2571 = vmatpush1.bf16.msra.mxu0 %v1831
  %2572 = vmatprep.subr.bf16.mxu0 0
  %2573 = vmatpush1.bf16.msra.mxu0 %v1830
  %2574 = vmatprep.subr.bf16.mxu0 0
  %2575 = vmatpush2.bf16.msra.mxu0 %v1845
  %2576 = vmatprep.subr.bf16.mxu0 0
  %2577 = vmatpush2.bf16.msra.mxu0 %v1844
  %2578 = vmatprep.subr.bf16.mxu0 0
  %2579 = vmatpush2.bf16.msra.mxu0 %v1843
  %2580 = vmatprep.subr.bf16.mxu0 0
  %2581 = vmatpush2.bf16.msra.mxu0 %v1842
  %2582 = vmatprep.subr.bf16.mxu0 0
  %2583 = vmatpush2.bf16.msra.mxu0 %v1841
  %2584 = vmatprep.subr.bf16.mxu0 0
  %2585 = vmatpush2.bf16.msra.mxu0 %v1840
  %2586 = vmatprep.subr.bf16.mxu0 0
  %2587 = vmatpush2.bf16.msra.mxu0 %v1839
  %2588 = vmatprep.subr.bf16.mxu0 0
  %2589 = vmatpush2.bf16.msra.mxu0 %v1838
  %2590 = vmatprep.mubr.bf16.mxu0 %v617
  %2591 = vmatmul.mubr.bf16.gmra.mxu0 %v616
  %v2592 = vpop.f32.mrf.mxu0
  %v2593 = vadd.f32 %v2553, %v2592
  %v2594 = vpop.f32.mrf.mxu0
  %v2595 = vpop.f32.mrf.mxu0
  %v2596 = vpop.f32.mrf.mxu0
  %2597 = vdwg.mxu0
  %2598 = vmatprep.subr.bf16.mxu0 0
  %2599 = vmatpush1.bf16.msra.mxu0 %v1853
  %2600 = vmatprep.subr.bf16.mxu0 0
  %2601 = vmatpush1.bf16.msra.mxu0 %v1852
  %2602 = vmatprep.subr.bf16.mxu0 0
  %2603 = vmatpush1.bf16.msra.mxu0 %v1851
  %2604 = vmatprep.subr.bf16.mxu0 0
  %2605 = vmatpush1.bf16.msra.mxu0 %v1850
  %2606 = vmatprep.subr.bf16.mxu0 0
  %2607 = vmatpush1.bf16.msra.mxu0 %v1849
  %2608 = vmatprep.subr.bf16.mxu0 0
  %2609 = vmatpush1.bf16.msra.mxu0 %v1848
  %2610 = vmatprep.subr.bf16.mxu0 0
  %2611 = vmatpush1.bf16.msra.mxu0 %v1847
  %2612 = vmatprep.subr.bf16.mxu0 0
  %2613 = vmatpush1.bf16.msra.mxu0 %v1846
  %2614 = vmatprep.subr.bf16.mxu0 0
  %2615 = vmatpush2.bf16.msra.mxu0 %v1861
  %2616 = vmatprep.subr.bf16.mxu0 0
  %2617 = vmatpush2.bf16.msra.mxu0 %v1860
  %2618 = vmatprep.subr.bf16.mxu0 0
  %2619 = vmatpush2.bf16.msra.mxu0 %v1859
  %2620 = vmatprep.subr.bf16.mxu0 0
  %2621 = vmatpush2.bf16.msra.mxu0 %v1858
  %2622 = vmatprep.subr.bf16.mxu0 0
  %2623 = vmatpush2.bf16.msra.mxu0 %v1857
  %2624 = vmatprep.subr.bf16.mxu0 0
  %2625 = vmatpush2.bf16.msra.mxu0 %v1856
  %2626 = vmatprep.subr.bf16.mxu0 0
  %2627 = vmatpush2.bf16.msra.mxu0 %v1855
  %2628 = vmatprep.subr.bf16.mxu0 0
  %2629 = vmatpush2.bf16.msra.mxu0 %v1854
  %2630 = vmatprep.mubr.bf16.mxu0 %v619
  %2631 = vmatmul.mubr.bf16.gmra.mxu0 %v618
  %v2632 = vpop.f32.mrf.mxu0
  %v2633 = vadd.f32 %v2593, %v2632
  %v2634 = vpop.f32.mrf.mxu0
  %v2635 = vpop.f32.mrf.mxu0
  %v2636 = vpop.f32.mrf.mxu0
  %2637 = vdwg.mxu0
  %2638 = vmatprep.subr.bf16.mxu0 0
  %2639 = vmatpush1.bf16.msra.mxu0 %v1869
  %2640 = vmatprep.subr.bf16.mxu0 0
  %2641 = vmatpush1.bf16.msra.mxu0 %v1868
  %2642 = vmatprep.subr.bf16.mxu0 0
  %2643 = vmatpush1.bf16.msra.mxu0 %v1867
  %2644 = vmatprep.subr.bf16.mxu0 0
  %2645 = vmatpush1.bf16.msra.mxu0 %v1866
  %2646 = vmatprep.subr.bf16.mxu0 0
  %2647 = vmatpush1.bf16.msra.mxu0 %v1865
  %2648 = vmatprep.subr.bf16.mxu0 0
  %2649 = vmatpush1.bf16.msra.mxu0 %v1864
  %2650 = vmatprep.subr.bf16.mxu0 0
  %2651 = vmatpush1.bf16.msra.mxu0 %v1863
  %2652 = vmatprep.subr.bf16.mxu0 0
  %2653 = vmatpush1.bf16.msra.mxu0 %v1862
  %2654 = vmatprep.subr.bf16.mxu0 0
  %2655 = vmatpush2.bf16.msra.mxu0 %v1877
  %2656 = vmatprep.subr.bf16.mxu0 0
  %2657 = vmatpush2.bf16.msra.mxu0 %v1876
  %2658 = vmatprep.subr.bf16.mxu0 0
  %2659 = vmatpush2.bf16.msra.mxu0 %v1875
  %2660 = vmatprep.subr.bf16.mxu0 0
  %2661 = vmatpush2.bf16.msra.mxu0 %v1874
  %2662 = vmatprep.subr.bf16.mxu0 0
  %2663 = vmatpush2.bf16.msra.mxu0 %v1873
  %2664 = vmatprep.subr.bf16.mxu0 0
  %2665 = vmatpush2.bf16.msra.mxu0 %v1872
  %2666 = vmatprep.subr.bf16.mxu0 0
  %2667 = vmatpush2.bf16.msra.mxu0 %v1871
  %2668 = vmatprep.subr.bf16.mxu0 0
  %2669 = vmatpush2.bf16.msra.mxu0 %v1870
  %2670 = vmatprep.mubr.bf16.mxu0 %v621
  %2671 = vmatmul.mubr.bf16.gmra.mxu0 %v620
  %v2672 = vpop.f32.mrf.mxu0
  %v2673 = vadd.f32 %v2633, %v2672
  %v2674 = vpop.f32.mrf.mxu0
  %v2675 = vpop.f32.mrf.mxu0
  %v2676 = vpop.f32.mrf.mxu0
  %2677 = vdwg.mxu0
  %2678 = vmatprep.subr.bf16.mxu0 0
  %2679 = vmatpush1.bf16.msra.mxu0 %v1885
  %2680 = vmatprep.subr.bf16.mxu0 0
  %2681 = vmatpush1.bf16.msra.mxu0 %v1884
  %2682 = vmatprep.subr.bf16.mxu0 0
  %2683 = vmatpush1.bf16.msra.mxu0 %v1883
  %2684 = vmatprep.subr.bf16.mxu0 0
  %2685 = vmatpush1.bf16.msra.mxu0 %v1882
  %2686 = vmatprep.subr.bf16.mxu0 0
  %2687 = vmatpush1.bf16.msra.mxu0 %v1881
  %2688 = vmatprep.subr.bf16.mxu0 0
  %2689 = vmatpush1.bf16.msra.mxu0 %v1880
  %2690 = vmatprep.subr.bf16.mxu0 0
  %2691 = vmatpush1.bf16.msra.mxu0 %v1879
  %2692 = vmatprep.subr.bf16.mxu0 0
  %2693 = vmatpush1.bf16.msra.mxu0 %v1878
  %2694 = vmatprep.subr.bf16.mxu0 0
  %2695 = vmatpush2.bf16.msra.mxu0 %v1893
  %2696 = vmatprep.subr.bf16.mxu0 0
  %2697 = vmatpush2.bf16.msra.mxu0 %v1892
  %2698 = vmatprep.subr.bf16.mxu0 0
  %2699 = vmatpush2.bf16.msra.mxu0 %v1891
  %2700 = vmatprep.subr.bf16.mxu0 0
  %2701 = vmatpush2.bf16.msra.mxu0 %v1890
  %2702 = vmatprep.subr.bf16.mxu0 0
  %2703 = vmatpush2.bf16.msra.mxu0 %v1889
  %2704 = vmatprep.subr.bf16.mxu0 0
  %2705 = vmatpush2.bf16.msra.mxu0 %v1888
  %2706 = vmatprep.subr.bf16.mxu0 0
  %2707 = vmatpush2.bf16.msra.mxu0 %v1887
  %2708 = vmatprep.subr.bf16.mxu0 0
  %2709 = vmatpush2.bf16.msra.mxu0 %v1886
  %2710 = vmatprep.mubr.bf16.mxu0 %v623
  %2711 = vmatmul.mubr.bf16.gmra.mxu0 %v622
  %v2712 = vpop.f32.mrf.mxu0
  %v2713 = vadd.f32 %v2673, %v2712
  %v2714 = vpop.f32.mrf.mxu0
  %v2715 = vpop.f32.mrf.mxu0
  %v2716 = vpop.f32.mrf.mxu0
  %2717 = vdwg.mxu0
  %2718 = vmatprep.subr.bf16.mxu0 0
  %2719 = vmatpush1.bf16.msra.mxu0 %v1901
  %2720 = vmatprep.subr.bf16.mxu0 0
  %2721 = vmatpush1.bf16.msra.mxu0 %v1900
  %2722 = vmatprep.subr.bf16.mxu0 0
  %2723 = vmatpush1.bf16.msra.mxu0 %v1899
  %2724 = vmatprep.subr.bf16.mxu0 0
  %2725 = vmatpush1.bf16.msra.mxu0 %v1898
  %2726 = vmatprep.subr.bf16.mxu0 0
  %2727 = vmatpush1.bf16.msra.mxu0 %v1897
  %2728 = vmatprep.subr.bf16.mxu0 0
  %2729 = vmatpush1.bf16.msra.mxu0 %v1896
  %2730 = vmatprep.subr.bf16.mxu0 0
  %2731 = vmatpush1.bf16.msra.mxu0 %v1895
  %2732 = vmatprep.subr.bf16.mxu0 0
  %2733 = vmatpush1.bf16.msra.mxu0 %v1894
  %2734 = vmatprep.subr.bf16.mxu0 0
  %2735 = vmatpush2.bf16.msra.mxu0 %v1909
  %2736 = vmatprep.subr.bf16.mxu0 0
  %2737 = vmatpush2.bf16.msra.mxu0 %v1908
  %2738 = vmatprep.subr.bf16.mxu0 0
  %2739 = vmatpush2.bf16.msra.mxu0 %v1907
  %2740 = vmatprep.subr.bf16.mxu0 0
  %2741 = vmatpush2.bf16.msra.mxu0 %v1906
  %2742 = vmatprep.subr.bf16.mxu0 0
  %2743 = vmatpush2.bf16.msra.mxu0 %v1905
  %2744 = vmatprep.subr.bf16.mxu0 0
  %2745 = vmatpush2.bf16.msra.mxu0 %v1904
  %2746 = vmatprep.subr.bf16.mxu0 0
  %2747 = vmatpush2.bf16.msra.mxu0 %v1903
  %2748 = vmatprep.subr.bf16.mxu0 0
  %2749 = vmatpush2.bf16.msra.mxu0 %v1902
  %2750 = vmatprep.mubr.bf16.mxu0 %v625
  %2751 = vmatmul.mubr.bf16.gmra.mxu0 %v624
  %v2752 = vpop.f32.mrf.mxu0
  %v2753 = vadd.f32 %v2713, %v2752
  %v2754 = vpop.f32.mrf.mxu0
  %v2755 = vpop.f32.mrf.mxu0
  %v2756 = vpop.f32.mrf.mxu0
  %2757 = vdwg.mxu0
  %2758 = vmatprep.subr.bf16.mxu0 0
  %2759 = vmatpush1.bf16.msra.mxu0 %v1917
  %2760 = vmatprep.subr.bf16.mxu0 0
  %2761 = vmatpush1.bf16.msra.mxu0 %v1916
  %2762 = vmatprep.subr.bf16.mxu0 0
  %2763 = vmatpush1.bf16.msra.mxu0 %v1915
  %2764 = vmatprep.subr.bf16.mxu0 0
  %2765 = vmatpush1.bf16.msra.mxu0 %v1914
  %2766 = vmatprep.subr.bf16.mxu0 0
  %2767 = vmatpush1.bf16.msra.mxu0 %v1913
  %2768 = vmatprep.subr.bf16.mxu0 0
  %2769 = vmatpush1.bf16.msra.mxu0 %v1912
  %2770 = vmatprep.subr.bf16.mxu0 0
  %2771 = vmatpush1.bf16.msra.mxu0 %v1911
  %2772 = vmatprep.subr.bf16.mxu0 0
  %2773 = vmatpush1.bf16.msra.mxu0 %v1910
  %2774 = vmatprep.subr.bf16.mxu0 0
  %2775 = vmatpush2.bf16.msra.mxu0 %v1925
  %2776 = vmatprep.subr.bf16.mxu0 0
  %2777 = vmatpush2.bf16.msra.mxu0 %v1924
  %2778 = vmatprep.subr.bf16.mxu0 0
  %2779 = vmatpush2.bf16.msra.mxu0 %v1923
  %2780 = vmatprep.subr.bf16.mxu0 0
  %2781 = vmatpush2.bf16.msra.mxu0 %v1922
  %2782 = vmatprep.subr.bf16.mxu0 0
  %2783 = vmatpush2.bf16.msra.mxu0 %v1921
  %2784 = vmatprep.subr.bf16.mxu0 0
  %2785 = vmatpush2.bf16.msra.mxu0 %v1920
  %2786 = vmatprep.subr.bf16.mxu0 0
  %2787 = vmatpush2.bf16.msra.mxu0 %v1919
  %2788 = vmatprep.subr.bf16.mxu0 0
  %2789 = vmatpush2.bf16.msra.mxu0 %v1918
  %2790 = vmatprep.mubr.bf16.mxu0 %v627
  %2791 = vmatmul.mubr.bf16.gmra.mxu0 %v626
  %v2792 = vpop.f32.mrf.mxu0
  %v2793 = vadd.f32 %v2753, %v2792
  %v2794 = vpop.f32.mrf.mxu0
  %v2795 = vpop.f32.mrf.mxu0
  %v2796 = vpop.f32.mrf.mxu0
  %2797 = vdwg.mxu0
  %2798 = vmatprep.subr.bf16.mxu0 0
  %2799 = vmatpush1.bf16.msra.mxu0 %v1933
  %2800 = vmatprep.subr.bf16.mxu0 0
  %2801 = vmatpush1.bf16.msra.mxu0 %v1932
  %2802 = vmatprep.subr.bf16.mxu0 0
  %2803 = vmatpush1.bf16.msra.mxu0 %v1931
  %2804 = vmatprep.subr.bf16.mxu0 0
  %2805 = vmatpush1.bf16.msra.mxu0 %v1930
  %2806 = vmatprep.subr.bf16.mxu0 0
  %2807 = vmatpush1.bf16.msra.mxu0 %v1929
  %2808 = vmatprep.subr.bf16.mxu0 0
  %2809 = vmatpush1.bf16.msra.mxu0 %v1928
  %2810 = vmatprep.subr.bf16.mxu0 0
  %2811 = vmatpush1.bf16.msra.mxu0 %v1927
  %2812 = vmatprep.subr.bf16.mxu0 0
  %2813 = vmatpush1.bf16.msra.mxu0 %v1926
  %2814 = vmatprep.subr.bf16.mxu0 0
  %2815 = vmatpush2.bf16.msra.mxu0 %v1941
  %2816 = vmatprep.subr.bf16.mxu0 0
  %2817 = vmatpush2.bf16.msra.mxu0 %v1940
  %2818 = vmatprep.subr.bf16.mxu0 0
  %2819 = vmatpush2.bf16.msra.mxu0 %v1939
  %2820 = vmatprep.subr.bf16.mxu0 0
  %2821 = vmatpush2.bf16.msra.mxu0 %v1938
  %2822 = vmatprep.subr.bf16.mxu0 0
  %2823 = vmatpush2.bf16.msra.mxu0 %v1937
  %2824 = vmatprep.subr.bf16.mxu0 0
  %2825 = vmatpush2.bf16.msra.mxu0 %v1936
  %2826 = vmatprep.subr.bf16.mxu0 0
  %2827 = vmatpush2.bf16.msra.mxu0 %v1935
  %2828 = vmatprep.subr.bf16.mxu0 0
  %2829 = vmatpush2.bf16.msra.mxu0 %v1934
  %2830 = vmatprep.mubr.bf16.mxu0 %v629
  %2831 = vmatmul.mubr.bf16.gmra.mxu0 %v628
  %v2832 = vpop.f32.mrf.mxu0
  %v2833 = vadd.f32 %v2793, %v2832
  %v2834 = vpop.f32.mrf.mxu0
  %v2835 = vpop.f32.mrf.mxu0
  %v2836 = vpop.f32.mrf.mxu0
  %2837 = vdwg.mxu0
  %2838 = vst [vmem:[%s3] sm:$0xff] %v2833
  // Predicated region
  $region14: #{discriminator_forward.15} parent=0 // pred_check
    _
  $region15: #{discriminator_forward.15} parent=0 // pred_check_branch
    %2840 = sbr.rel (0) target = $region17
  $region16: #{discriminator_forward.15} parent=0 // pred_region
    _
  $region17: #{discriminator_forward.15} parent=0 // pred_fallthru
    _
  // Predicated region
  $region18: #{discriminator_forward.15} parent=0 // pred_check
    _
  $region19: #{discriminator_forward.15} parent=0 // pred_check_branch
    %2842 = sbr.rel (0) target = $region21
  $region20: #{discriminator_forward.15} parent=0 // pred_region
    _
  $region21: #{discriminator_forward.15} parent=0 // pred_fallthru
    _

</llo_original>
